<compile_context>
chip_gen: v7x
topology: tpu7x:2x2x1
jax: 0.10.0
libtpu: 0.0.40
codegen_flags: <defaults>
</compile_context>

<pallas_src>
import jax
import jax.numpy as jnp
from jax.experimental import pallas as pl
from jax.experimental.pallas import tpu as pltpu

# ---- scaled-down ViT config (stands in for google/vit-base-patch16-224) ----
B = 2                 # batch of "video paths"
C = 3                 # spectrogram image converted to RGB
IMG = 32              # target_spectrogram_height/width (scaled from 224)
PS = 8                # patch size (scaled from 16)
NP = (IMG // PS) ** 2 # num audio patches = 16  (module: mae_num_patches)
S = NP + 1            # tokens incl. CLS = 17
SPB = 32              # per-sample seq padded to a multiple of 16 (bf16 tile)
MT = B * SPB          # 64 rows: batch folded into the matmul M dimension
D = 128               # vit_hidden_size (scaled from 768)
NH = 4                # attention heads
HD = D // NH          # 32
MLP = 4 * D           # 512
NLAYERS = 2           # scaled from 12
EPS = 1e-12           # HF ViT layer_norm_eps
PD = C * PS * PS      # flattened patch dim = 192
PDP = 256             # patch dim padded to a lane multiple

# ---- row offsets inside the packed weight slabs (static, shared w/ kernel) ----
# slab A (bf16, width D): pw | wo[l] | w2[l]
A_PW = 0
A_WO = PDP
A_W2 = PDP + NLAYERS * D
SLAB_A_ROWS = PDP + NLAYERS * (D + MLP)          # 1536
# slab B (bf16, width MLP): wqkv[l] (cols 0:3D) | w1[l]
B_WQKV = 0
B_W1 = NLAYERS * D
SLAB_B_ROWS = 2 * NLAYERS * D                    # 512
# slab N (f32, width D): addend rows | per-layer (ln1g, ln1b, bo, ln2g, ln2b, b2) | fg, fb
N_ADD = 0
N_LAYER = MT
N_FINAL = MT + 6 * NLAYERS
SLAB_N_ROWS = ((MT + 6 * NLAYERS + 2 + 7) // 8) * 8   # 80
# slab W (f32, width MLP): bqkv[l] (cols 0:3D) | b1[l]
W_BQKV = 0
W_B1 = NLAYERS
SLAB_W_ROWS = 8


# ------------------------------ kernel helpers -------------------------------
def _layernorm(x, g, b):
    mu = jnp.mean(x, axis=-1, keepdims=True)
    xc = x - mu
    var = jnp.mean(xc * xc, axis=-1, keepdims=True)
    return xc * jax.lax.rsqrt(var + EPS) * g + b


def _gelu_erf(x):
    # exact GELU = 0.5*x*(1+erf(x/sqrt(2))); erf via Abramowitz-Stegun 7.1.26
    # (|err| < 1.5e-7).  The divide is an EUP reciprocal (idle slot).
    z = x * 0.7071067811865476
    a = jnp.abs(z)
    t = pl.reciprocal(1.0 + 0.3275911 * a, approx=True)
    poly = ((((1.061405429 * t - 1.453152027) * t + 1.421413741) * t
             - 0.284496736) * t + 0.254829592) * t
    erf_a = 1.0 - poly * jnp.exp(-(a * a))
    erf = jnp.where(z >= 0.0, erf_a, -erf_a)
    return 0.5 * x * (1.0 + erf)


# -------------------------------- fused kernel -------------------------------
def vit_fused_kernel(patches_ref, wa_ref, wb_ref, nb_ref, wbias_ref, o_ref):
    f32 = jnp.float32
    bf16 = jnp.bfloat16

    # Patch embedding (Conv2d-as-matmul) over the whole folded (B*SPB) slab.
    # `addend` pre-folds conv bias + positional embeddings + CLS token; CLS sits
    # at row NP of each per-sample block (output slice stays sublane-aligned).
    addend = nb_ref[N_ADD:N_ADD + MT, :]                              # (MT, D) f32
    x = jnp.dot(patches_ref[...], wa_ref[A_PW:A_PW + PDP, :],
                preferred_element_type=f32) + addend                  # (MT, D) f32

    # Key mask: per-sample padded rows (>= S) never contribute as keys.
    key_ids = jax.lax.broadcasted_iota(jnp.int32, (1, SPB, SPB), 2)
    kmask = jnp.where(key_ids < S, 0.0, -1e30).astype(f32)            # (1, SPB, SPB)

    for l in range(NLAYERS):          # static unroll over the encoder layers
        base = N_LAYER + 6 * l
        ln1g = nb_ref[base + 0:base + 1, :]
        ln1b = nb_ref[base + 1:base + 2, :]
        bo = nb_ref[base + 2:base + 3, :]
        ln2g = nb_ref[base + 3:base + 4, :]
        ln2b = nb_ref[base + 4:base + 5, :]
        b2 = nb_ref[base + 5:base + 6, :]
        bqkv = wbias_ref[W_BQKV + l:W_BQKV + l + 1, 0:3 * D]
        b1 = wbias_ref[W_B1 + l:W_B1 + l + 1, :]

        wqkv = wb_ref[B_WQKV + l * D:B_WQKV + (l + 1) * D, 0:3 * D]    # (D, 3D) bf16
        w1 = wb_ref[B_W1 + l * D:B_W1 + (l + 1) * D, :]                # (D, MLP) bf16
        wo = wa_ref[A_WO + l * D:A_WO + (l + 1) * D, :]                # (D, D)   bf16
        w2 = wa_ref[A_W2 + l * MLP:A_W2 + (l + 1) * MLP, :]            # (MLP, D) bf16

        # ---- self-attention block (pre-LN); 1/sqrt(HD) folded into Q cols ----
        h = _layernorm(x, ln1g, ln1b)
        qkv = jnp.dot(h.astype(bf16), wqkv, preferred_element_type=f32) + bqkv  # (MT, 3D)

        qh = jnp.stack([qkv[bb * SPB:(bb + 1) * SPB, hh * HD:(hh + 1) * HD]
                        for bb in range(B) for hh in range(NH)], 0).astype(bf16)
        kh = jnp.stack([qkv[bb * SPB:(bb + 1) * SPB, D + hh * HD:D + (hh + 1) * HD]
                        for bb in range(B) for hh in range(NH)], 0).astype(bf16)
        vh = jnp.stack([qkv[bb * SPB:(bb + 1) * SPB, 2 * D + hh * HD:2 * D + (hh + 1) * HD]
                        for bb in range(B) for hh in range(NH)], 0).astype(bf16)
        # qh/kh/vh: (B*NH, SPB, HD)

        s = jnp.einsum('nqd,nkd->nqk', qh, kh, preferred_element_type=f32) + kmask
        m = jnp.max(s, axis=-1, keepdims=True)
        e = jnp.exp(s - m)
        p = (e * pl.reciprocal(jnp.sum(e, axis=-1, keepdims=True),
                               approx=True)).astype(bf16)
        ctx = jnp.einsum('nqk,nkd->nqd', p, vh, preferred_element_type=f32)

        # Lane-concat the heads (XLU, idle slot), then ONE full-K out projection.
        ctx_rows = jnp.concatenate(
            [jnp.concatenate([ctx[bb * NH + hh] for hh in range(NH)], axis=-1)
             for bb in range(B)], axis=0)                              # (MT, D)
        x = x + jnp.dot(ctx_rows.astype(bf16), wo,
                        preferred_element_type=f32) + bo

        # ---- MLP block (pre-LN) ----
        h2 = _layernorm(x, ln2g, ln2b)
        mm = jnp.dot(h2.astype(bf16), w1, preferred_element_type=f32) + b1
        mm = _gelu_erf(mm)
        x = x + jnp.dot(mm.astype(bf16), w2, preferred_element_type=f32) + b2

    x = _layernorm(x, nb_ref[N_FINAL:N_FINAL + 1, :],
                   nb_ref[N_FINAL + 1:N_FINAL + 2, :])

    # forward() returns last_hidden_state[:, 1:, :]; CLS lives at row NP, so the
    # per-sample output slice [0:NP) is sublane-aligned (no cross-sublane shift).
    for bb in range(B):
        o_ref[bb] = x[bb * SPB:bb * SPB + NP, :]


# --------------------------- pallas_call wrapper ------------------------------
def vit_forward(patches, prep):
    # Single grid step: batch is folded into the matmul M dimension (best on the
    # single-TC v5e/v6e).  On v7x a 2-way 'parallel' split over samples would
    # re-engage the second core, but per-core work is already latency-bound.
    return pl.pallas_call(
        vit_fused_kernel,
        out_shape=jax.ShapeDtypeStruct((B, NP, D), jnp.float32),
        grid=(1,),
        in_specs=[
            pl.BlockSpec((MT, PDP), lambda i: (0, 0)),
            pl.BlockSpec((SLAB_A_ROWS, D), lambda i: (0, 0)),
            pl.BlockSpec((SLAB_B_ROWS, MLP), lambda i: (0, 0)),
            pl.BlockSpec((SLAB_N_ROWS, D), lambda i: (0, 0)),
            pl.BlockSpec((SLAB_W_ROWS, MLP), lambda i: (0, 0)),
        ],
        out_specs=pl.BlockSpec((B, NP, D), lambda i: (0, 0, 0)),
        compiler_params=pltpu.CompilerParams(
            dimension_semantics=("arbitrary",)),
    )(patches, prep["slab_a"], prep["slab_b"], prep["slab_n"], prep["slab_w"])


# ----------------------- parameter layout preparation -------------------------
def prepare_params(params):
    """Pack weights/biases into 4 contiguous slabs.  Call ONCE (outside jit)."""
    f32, bf16 = jnp.float32, jnp.bfloat16
    scale = 1.0 / (HD ** 0.5)

    # --- bf16 slab A (width D): pw | wo[l] | w2[l] ---
    pw = jnp.pad(params["patch_w"], ((0, PDP - PD), (0, 0)))           # (PDP, D)
    wo_list = [params["layers"][l]["wo"] for l in range(NLAYERS)]
    w2_list = [params["layers"][l]["w2"] for l in range(NLAYERS)]
    slab_a = jnp.concatenate([pw] + wo_list + w2_list, axis=0).astype(bf16)

    # --- bf16 slab B (width MLP): wqkv[l] (384 cols zero-padded to 512) | w1[l] ---
    wqkv_list = []
    for l in range(NLAYERS):
        w = params["layers"][l]["wqkv"]
        w = w.at[:, :D].multiply(scale)          # fold 1/sqrt(HD) into Q columns
        wqkv_list.append(jnp.pad(w, ((0, 0), (0, MLP - 3 * D))))
    w1_list = [params["layers"][l]["w1"] for l in range(NLAYERS)]
    slab_b = jnp.concatenate(wqkv_list + w1_list, axis=0).astype(bf16)

    # --- f32 slab N (width D): addend | per-layer LN/bias rows | final LN ---
    pb = params["patch_b"]                       # (1, D)
    cls = params["cls"][0]                       # (1, D)
    pos = params["pos"][0]                       # (S, D)
    addend_one = jnp.concatenate([
        pb + pos[1:S],                           # rows 0..NP-1: patch rows
        cls + pos[0:1],                          # row NP: CLS (no conv bias)
        jnp.tile(pb, (SPB - S, 1)),              # padding rows (nonzero LN variance)
    ], axis=0)                                   # (SPB, D)
    addend = jnp.tile(addend_one, (B, 1))        # (MT, D) — same spectrogram ViT per sample

    nrows = [addend]
    for l in range(NLAYERS):
        lp = params["layers"][l]
        nrows += [lp["ln1_g"], lp["ln1_b"], lp["bo"],
                  lp["ln2_g"], lp["ln2_b"], lp["b2"]]
    nrows += [params["final_ln_g"], params["final_ln_b"]]
    slab_n = jnp.concatenate(nrows, axis=0).astype(f32)
    slab_n = jnp.pad(slab_n, ((0, SLAB_N_ROWS - slab_n.shape[0]), (0, 0)))

    # --- f32 slab W (width MLP): bqkv[l] (scaled Q cols) | b1[l] ---
    wrows = []
    for l in range(NLAYERS):
        bq = params["layers"][l]["bqkv"].at[:, :D].multiply(scale)
        wrows.append(jnp.pad(bq, ((0, 0), (0, MLP - 3 * D))))
    for l in range(NLAYERS):
        wrows.append(params["layers"][l]["b1"])
    slab_w = jnp.concatenate(wrows, axis=0).astype(f32)
    slab_w = jnp.pad(slab_w, ((0, SLAB_W_ROWS - slab_w.shape[0]), (0, 0)))

    return dict(slab_a=slab_a, slab_b=slab_b, slab_n=slab_n, slab_w=slab_w)


# ---------------------------------- forward -----------------------------------
def audio_modality_forward(pixel_values, prep):
    """pixel_values: (B, C, IMG, IMG) NCHW float32 (the processed spectrogram
    image the real module feeds into the ViT).  `prep` is the pre-packed weight
    pytree from prepare_params (built once, outside the per-call path).
    Returns last_hidden_state[:, 1:, :] of shape (B, NP, D)."""
    hp = IMG // PS
    # Conv2d(stride=PS) patch embedding == matmul over flattened patches.
    x = pixel_values.reshape(B, C, hp, PS, hp, PS)
    x = x.transpose(0, 2, 4, 1, 3, 5)                        # (B, hp, wp, C, ps, ps)
    patches = x.reshape(B, NP, PD)                           # (B, NP, C*ps*ps)
    # Pad: per-sample seq padding (CLS slot at row NP + pad rows) and lane padding.
    patches = jnp.pad(patches, ((0, 0), (0, SPB - NP), (0, PDP - PD)))
    # Fold batch into the M dimension and pre-cast to bf16 (halves the input DMA).
    patches = patches.reshape(MT, PDP).astype(jnp.bfloat16)
    return vit_forward(patches, prep)


# ------------------------------ parameter init ---------------------------------
def init_params(key):
    sd = 0.02
    keys = jax.random.split(key, 4 + NLAYERS * 8)
    ki = iter(range(len(keys)))

    def nrm(shape):
        return sd * jax.random.normal(keys[next(ki)], shape, jnp.float32)

    # Conv2d weight (D, C, PS, PS) flattened to (C*PS*PS, D) for the matmul.
    conv_w = nrm((D, C, PS, PS)).reshape(D, C * PS * PS).T
    params = {
        "patch_w": conv_w,
        "patch_b": nrm((1, D)),
        "cls": nrm((1, 1, D)),
        "pos": nrm((1, S, D)),
        "final_ln_g": jnp.ones((1, D), jnp.float32),
        "final_ln_b": jnp.zeros((1, D), jnp.float32),
        "layers": [],
    }
    for _ in range(NLAYERS):
        params["layers"].append({
            "ln1_g": jnp.ones((1, D), jnp.float32),
            "ln1_b": jnp.zeros((1, D), jnp.float32),
            "wqkv": nrm((D, 3 * D)),
            "bqkv": nrm((1, 3 * D)),
            "wo": nrm((D, D)),
            "bo": nrm((1, D)),
            "ln2_g": jnp.ones((1, D), jnp.float32),
            "ln2_b": jnp.zeros((1, D), jnp.float32),
            "w1": nrm((D, MLP)),
            "b1": nrm((1, MLP)),
            "w2": nrm((MLP, D)),
            "b2": nrm((1, D)),
        })
    return params


if __name__ == "__main__":
    key = jax.random.PRNGKey(0)
    pkey, xkey = jax.random.split(key)
    params = init_params(pkey)
    prep = prepare_params(params)      # hoisted: slabs built once, reused per call

    # Synthetic "processed spectrogram image" (what ViTImageProcessor would feed
    # into the ViT).
    # TODO(synk): audio extraction / mel-spectrogram (STFT) / PIL resize are
    # host-side preprocessing with no Pallas equivalent and are not implemented.
    pixel_values = jax.random.normal(xkey, (B, C, IMG, IMG), jnp.float32)

    fwd = jax.jit(audio_modality_forward)
    out = fwd(pixel_values, prep)
    out = jax.block_until_ready(out)
    assert out.shape == (B, NP, D), out.shape
    assert bool(jnp.all(jnp.isfinite(out)))
    print("KERNEL_OK")
</pallas_src>

<mosaic_0001>
module attributes {stable_mosaic.version = 11 : i64} {
  func.func @vit_fused_kernel(%arg0: i32, %arg1: memref<64x256xbf16, #tpu.memory_space<vmem>>, %arg2: memref<1536x128xbf16, #tpu.memory_space<vmem>>, %arg3: memref<512x512xbf16, #tpu.memory_space<vmem>>, %arg4: memref<80x128xf32, #tpu.memory_space<vmem>>, %arg5: memref<8x512xf32, #tpu.memory_space<vmem>>, %arg6: memref<2x16x128xf32, #tpu.memory_space<vmem>>) attributes {dimension_semantics = [#tpu.dimension_semantics<arbitrary>], iteration_bounds = array<i64: 1>, scalar_prefetch = 0 : i64, scratch_operands = 0 : i64, tpu.core_type = #tpu.core_type<tc>, window_params = [{pipeline_mode = #tpu.pipeline_mode<synchronous>, transform_indices = @transform_0, window_bounds = array<i64: 64, 256>}, {pipeline_mode = #tpu.pipeline_mode<synchronous>, transform_indices = @transform_1, window_bounds = array<i64: 1536, 128>}, {pipeline_mode = #tpu.pipeline_mode<synchronous>, transform_indices = @transform_2, window_bounds = array<i64: 512, 512>}, {pipeline_mode = #tpu.pipeline_mode<synchronous>, transform_indices = @transform_3, window_bounds = array<i64: 80, 128>}, {pipeline_mode = #tpu.pipeline_mode<synchronous>, transform_indices = @transform_4, window_bounds = array<i64: 8, 512>}, {pipeline_mode = #tpu.pipeline_mode<synchronous>, transform_indices = @transform_5, window_bounds = array<i64: 2, 16, 128>}]} {
    %c0 = arith.constant 0 : index
    %c0_0 = arith.constant 0 : index
    %0 = vector.load %arg4[%c0, %c0_0] : memref<80x128xf32, #tpu.memory_space<vmem>>, vector<64x128xf32>
    %c0_1 = arith.constant 0 : index
    %c0_2 = arith.constant 0 : index
    %1 = vector.load %arg1[%c0_1, %c0_2] : memref<64x256xbf16, #tpu.memory_space<vmem>>, vector<64x256xbf16>
    %c0_3 = arith.constant 0 : index
    %c0_4 = arith.constant 0 : index
    %2 = vector.load %arg2[%c0_3, %c0_4] : memref<1536x128xbf16, #tpu.memory_space<vmem>>, vector<256x128xbf16>
    %cst = arith.constant dense<0.000000e+00> : vector<64x128xf32>
    %3 = tpu.matmul %1, %2, %cst {dimension_numbers = #tpu.dot_dimension_numbers<[1], [0], [0], [1], [0, 0, 1, 1], [], []>} : vector<64x256xbf16>, vector<256x128xbf16>, vector<64x128xf32> -> vector<64x128xf32>
    %4 = arith.addf %3, %0 : vector<64x128xf32>
    %5 = tpu.iota {dimensions = array<i32: 2>} : vector<1x32x32xi32>
    %c17_i32 = arith.constant 17 : i32
    %6 = vector.broadcast %c17_i32 : i32 to vector<1x32x32xi32>
    %7 = arith.cmpi slt, %5, %6 : vector<1x32x32xi32>
    %cst_5 = arith.constant 0.000000e+00 : f32
    %cst_6 = arith.constant -1.000000e+30 : f32
    %8 = vector.broadcast %cst_5 : f32 to vector<1x32x32xf32>
    %9 = vector.broadcast %cst_6 : f32 to vector<1x32x32xf32>
    %10 = arith.select %7, %8, %9 : vector<1x32x32xi1>, vector<1x32x32xf32>
    %c64 = arith.constant 64 : index
    %c0_7 = arith.constant 0 : index
    %11 = vector.load %arg4[%c64, %c0_7] : memref<80x128xf32, #tpu.memory_space<vmem>>, vector<1x128xf32>
    %c65 = arith.constant 65 : index
    %c0_8 = arith.constant 0 : index
    %12 = vector.load %arg4[%c65, %c0_8] : memref<80x128xf32, #tpu.memory_space<vmem>>, vector<1x128xf32>
    %c66 = arith.constant 66 : index
    %c0_9 = arith.constant 0 : index
    %13 = vector.load %arg4[%c66, %c0_9] : memref<80x128xf32, #tpu.memory_space<vmem>>, vector<1x128xf32>
    %c67 = arith.constant 67 : index
    %c0_10 = arith.constant 0 : index
    %14 = vector.load %arg4[%c67, %c0_10] : memref<80x128xf32, #tpu.memory_space<vmem>>, vector<1x128xf32>
    %c68 = arith.constant 68 : index
    %c0_11 = arith.constant 0 : index
    %15 = vector.load %arg4[%c68, %c0_11] : memref<80x128xf32, #tpu.memory_space<vmem>>, vector<1x128xf32>
    %c69 = arith.constant 69 : index
    %c0_12 = arith.constant 0 : index
    %16 = vector.load %arg4[%c69, %c0_12] : memref<80x128xf32, #tpu.memory_space<vmem>>, vector<1x128xf32>
    %c0_13 = arith.constant 0 : index
    %c0_14 = arith.constant 0 : index
    %17 = vector.load %arg5[%c0_13, %c0_14] : memref<8x512xf32, #tpu.memory_space<vmem>>, vector<1x384xf32>
    %c2 = arith.constant 2 : index
    %c0_15 = arith.constant 0 : index
    %18 = vector.load %arg5[%c2, %c0_15] : memref<8x512xf32, #tpu.memory_space<vmem>>, vector<1x512xf32>
    %c0_16 = arith.constant 0 : index
    %c0_17 = arith.constant 0 : index
    %19 = vector.load %arg3[%c0_16, %c0_17] : memref<512x512xbf16, #tpu.memory_space<vmem>>, vector<128x384xbf16>
    %c256 = arith.constant 256 : index
    %c0_18 = arith.constant 0 : index
    %20 = vector.load %arg3[%c256, %c0_18] : memref<512x512xbf16, #tpu.memory_space<vmem>>, vector<128x512xbf16>
    %c256_19 = arith.constant 256 : index
    %c0_20 = arith.constant 0 : index
    %21 = vector.load %arg2[%c256_19, %c0_20] : memref<1536x128xbf16, #tpu.memory_space<vmem>>, vector<128x128xbf16>
    %c512 = arith.constant 512 : index
    %c0_21 = arith.constant 0 : index
    %22 = vector.load %arg2[%c512, %c0_21] : memref<1536x128xbf16, #tpu.memory_space<vmem>>, vector<512x128xbf16>
    %cst_22 = arith.constant dense<0.000000e+00> : vector<64xf32>
    %23 = vector.multi_reduction <add>, %4, %cst_22 [1] : vector<64x128xf32> to vector<64xf32>
    %24 = vector.shape_cast %23 : vector<64xf32> to vector<64x1xf32>
    %cst_23 = arith.constant 1.280000e+02 : f32
    %25 = vector.broadcast %cst_23 : f32 to vector<64x1xf32>
    %26 = arith.divf %24, %25 : vector<64x1xf32>
    %27 = vector.broadcast %26 : vector<64x1xf32> to vector<64x128xf32>
    %28 = arith.subf %4, %27 : vector<64x128xf32>
    %29 = arith.mulf %28, %28 : vector<64x128xf32>
    %cst_24 = arith.constant dense<0.000000e+00> : vector<64xf32>
    %30 = vector.multi_reduction <add>, %29, %cst_24 [1] : vector<64x128xf32> to vector<64xf32>
    %31 = vector.shape_cast %30 : vector<64xf32> to vector<64x1xf32>
    %cst_25 = arith.constant 1.280000e+02 : f32
    %32 = vector.broadcast %cst_25 : f32 to vector<64x1xf32>
    %33 = arith.divf %31, %32 : vector<64x1xf32>
    %cst_26 = arith.constant 9.99999996E-13 : f32
    %34 = vector.broadcast %cst_26 : f32 to vector<64x1xf32>
    %35 = arith.addf %33, %34 : vector<64x1xf32>
    %36 = math.rsqrt %35 : vector<64x1xf32>
    %37 = vector.broadcast %36 : vector<64x1xf32> to vector<64x128xf32>
    %38 = arith.mulf %28, %37 : vector<64x128xf32>
    %39 = vector.broadcast %11 : vector<1x128xf32> to vector<64x128xf32>
    %40 = arith.mulf %38, %39 : vector<64x128xf32>
    %41 = vector.broadcast %12 : vector<1x128xf32> to vector<64x128xf32>
    %42 = arith.addf %40, %41 : vector<64x128xf32>
    %43 = arith.truncf %42 : vector<64x128xf32> to vector<64x128xbf16>
    %cst_27 = arith.constant dense<0.000000e+00> : vector<64x384xf32>
    %44 = tpu.matmul %43, %19, %cst_27 {dimension_numbers = #tpu.dot_dimension_numbers<[1], [0], [0], [1], [0, 0, 1, 1], [], []>} : vector<64x128xbf16>, vector<128x384xbf16>, vector<64x384xf32> -> vector<64x384xf32>
    %45 = vector.broadcast %17 : vector<1x384xf32> to vector<64x384xf32>
    %46 = arith.addf %44, %45 : vector<64x384xf32>
    %47 = vector.extract_strided_slice %46 {offsets = [0, 0], sizes = [32, 32], strides = [1, 1]} : vector<64x384xf32> to vector<32x32xf32>
    %48 = vector.extract_strided_slice %46 {offsets = [0, 32], sizes = [32, 32], strides = [1, 1]} : vector<64x384xf32> to vector<32x32xf32>
    %49 = vector.extract_strided_slice %46 {offsets = [0, 64], sizes = [32, 32], strides = [1, 1]} : vector<64x384xf32> to vector<32x32xf32>
    %50 = vector.extract_strided_slice %46 {offsets = [0, 96], sizes = [32, 32], strides = [1, 1]} : vector<64x384xf32> to vector<32x32xf32>
    %51 = vector.extract_strided_slice %46 {offsets = [32, 0], sizes = [32, 32], strides = [1, 1]} : vector<64x384xf32> to vector<32x32xf32>
    %52 = vector.extract_strided_slice %46 {offsets = [32, 32], sizes = [32, 32], strides = [1, 1]} : vector<64x384xf32> to vector<32x32xf32>
    %53 = vector.extract_strided_slice %46 {offsets = [32, 64], sizes = [32, 32], strides = [1, 1]} : vector<64x384xf32> to vector<32x32xf32>
    %54 = vector.extract_strided_slice %46 {offsets = [32, 96], sizes = [32, 32], strides = [1, 1]} : vector<64x384xf32> to vector<32x32xf32>
    %55 = vector.shape_cast %47 : vector<32x32xf32> to vector<1x32x32xf32>
    %56 = vector.shape_cast %48 : vector<32x32xf32> to vector<1x32x32xf32>
    %57 = vector.shape_cast %49 : vector<32x32xf32> to vector<1x32x32xf32>
    %58 = vector.shape_cast %50 : vector<32x32xf32> to vector<1x32x32xf32>
    %59 = vector.shape_cast %51 : vector<32x32xf32> to vector<1x32x32xf32>
    %60 = vector.shape_cast %52 : vector<32x32xf32> to vector<1x32x32xf32>
    %61 = vector.shape_cast %53 : vector<32x32xf32> to vector<1x32x32xf32>
    %62 = vector.shape_cast %54 : vector<32x32xf32> to vector<1x32x32xf32>
    %63 = tpu.concatenate %55, %56, %57, %58, %59, %60, %61, %62 in 0 : vector<1x32x32xf32>, vector<1x32x32xf32>, vector<1x32x32xf32>, vector<1x32x32xf32>, vector<1x32x32xf32>, vector<1x32x32xf32>, vector<1x32x32xf32>, vector<1x32x32xf32> -> vector<8x32x32xf32>
    %64 = arith.truncf %63 : vector<8x32x32xf32> to vector<8x32x32xbf16>
    %65 = vector.extract_strided_slice %46 {offsets = [0, 128], sizes = [32, 32], strides = [1, 1]} : vector<64x384xf32> to vector<32x32xf32>
    %66 = vector.extract_strided_slice %46 {offsets = [0, 160], sizes = [32, 32], strides = [1, 1]} : vector<64x384xf32> to vector<32x32xf32>
    %67 = vector.extract_strided_slice %46 {offsets = [0, 192], sizes = [32, 32], strides = [1, 1]} : vector<64x384xf32> to vector<32x32xf32>
    %68 = vector.extract_strided_slice %46 {offsets = [0, 224], sizes = [32, 32], strides = [1, 1]} : vector<64x384xf32> to vector<32x32xf32>
    %69 = vector.extract_strided_slice %46 {offsets = [32, 128], sizes = [32, 32], strides = [1, 1]} : vector<64x384xf32> to vector<32x32xf32>
    %70 = vector.extract_strided_slice %46 {offsets = [32, 160], sizes = [32, 32], strides = [1, 1]} : vector<64x384xf32> to vector<32x32xf32>
    %71 = vector.extract_strided_slice %46 {offsets = [32, 192], sizes = [32, 32], strides = [1, 1]} : vector<64x384xf32> to vector<32x32xf32>
    %72 = vector.extract_strided_slice %46 {offsets = [32, 224], sizes = [32, 32], strides = [1, 1]} : vector<64x384xf32> to vector<32x32xf32>
    %73 = vector.shape_cast %65 : vector<32x32xf32> to vector<1x32x32xf32>
    %74 = vector.shape_cast %66 : vector<32x32xf32> to vector<1x32x32xf32>
    %75 = vector.shape_cast %67 : vector<32x32xf32> to vector<1x32x32xf32>
    %76 = vector.shape_cast %68 : vector<32x32xf32> to vector<1x32x32xf32>
    %77 = vector.shape_cast %69 : vector<32x32xf32> to vector<1x32x32xf32>
    %78 = vector.shape_cast %70 : vector<32x32xf32> to vector<1x32x32xf32>
    %79 = vector.shape_cast %71 : vector<32x32xf32> to vector<1x32x32xf32>
    %80 = vector.shape_cast %72 : vector<32x32xf32> to vector<1x32x32xf32>
    %81 = tpu.concatenate %73, %74, %75, %76, %77, %78, %79, %80 in 0 : vector<1x32x32xf32>, vector<1x32x32xf32>, vector<1x32x32xf32>, vector<1x32x32xf32>, vector<1x32x32xf32>, vector<1x32x32xf32>, vector<1x32x32xf32>, vector<1x32x32xf32> -> vector<8x32x32xf32>
    %82 = arith.truncf %81 : vector<8x32x32xf32> to vector<8x32x32xbf16>
    %83 = vector.extract_strided_slice %46 {offsets = [0, 256], sizes = [32, 32], strides = [1, 1]} : vector<64x384xf32> to vector<32x32xf32>
    %84 = vector.extract_strided_slice %46 {offsets = [0, 288], sizes = [32, 32], strides = [1, 1]} : vector<64x384xf32> to vector<32x32xf32>
    %85 = vector.extract_strided_slice %46 {offsets = [0, 320], sizes = [32, 32], strides = [1, 1]} : vector<64x384xf32> to vector<32x32xf32>
    %86 = vector.extract_strided_slice %46 {offsets = [0, 352], sizes = [32, 32], strides = [1, 1]} : vector<64x384xf32> to vector<32x32xf32>
    %87 = vector.extract_strided_slice %46 {offsets = [32, 256], sizes = [32, 32], strides = [1, 1]} : vector<64x384xf32> to vector<32x32xf32>
    %88 = vector.extract_strided_slice %46 {offsets = [32, 288], sizes = [32, 32], strides = [1, 1]} : vector<64x384xf32> to vector<32x32xf32>
    %89 = vector.extract_strided_slice %46 {offsets = [32, 320], sizes = [32, 32], strides = [1, 1]} : vector<64x384xf32> to vector<32x32xf32>
    %90 = vector.extract_strided_slice %46 {offsets = [32, 352], sizes = [32, 32], strides = [1, 1]} : vector<64x384xf32> to vector<32x32xf32>
    %91 = vector.shape_cast %83 : vector<32x32xf32> to vector<1x32x32xf32>
    %92 = vector.shape_cast %84 : vector<32x32xf32> to vector<1x32x32xf32>
    %93 = vector.shape_cast %85 : vector<32x32xf32> to vector<1x32x32xf32>
    %94 = vector.shape_cast %86 : vector<32x32xf32> to vector<1x32x32xf32>
    %95 = vector.shape_cast %87 : vector<32x32xf32> to vector<1x32x32xf32>
    %96 = vector.shape_cast %88 : vector<32x32xf32> to vector<1x32x32xf32>
    %97 = vector.shape_cast %89 : vector<32x32xf32> to vector<1x32x32xf32>
    %98 = vector.shape_cast %90 : vector<32x32xf32> to vector<1x32x32xf32>
    %99 = tpu.concatenate %91, %92, %93, %94, %95, %96, %97, %98 in 0 : vector<1x32x32xf32>, vector<1x32x32xf32>, vector<1x32x32xf32>, vector<1x32x32xf32>, vector<1x32x32xf32>, vector<1x32x32xf32>, vector<1x32x32xf32>, vector<1x32x32xf32> -> vector<8x32x32xf32>
    %100 = arith.truncf %99 : vector<8x32x32xf32> to vector<8x32x32xbf16>
    "tpu.trace_start"() <{level = 10 : i32, message = "nqd,nkd->nqk"}> : () -> ()
    %cst_28 = arith.constant dense<0.000000e+00> : vector<8x32x32xf32>
    %101 = tpu.matmul %64, %82, %cst_28 {dimension_numbers = #tpu.dot_dimension_numbers<[2], [2], [1], [1], [0, 0, 0, 1, 1, 1], [0], [0]>} : vector<8x32x32xbf16>, vector<8x32x32xbf16>, vector<8x32x32xf32> -> vector<8x32x32xf32>
    "tpu.trace_stop"() : () -> ()
    %102 = vector.broadcast %10 : vector<1x32x32xf32> to vector<8x32x32xf32>
    %103 = arith.addf %101, %102 : vector<8x32x32xf32>
    %cst_29 = arith.constant dense<0xFF800000> : vector<8x32xf32>
    %104 = vector.multi_reduction <maximumf>, %103, %cst_29 [2] : vector<8x32x32xf32> to vector<8x32xf32>
    %105 = vector.shape_cast %104 : vector<8x32xf32> to vector<8x32x1xf32>
    %106 = vector.broadcast %105 : vector<8x32x1xf32> to vector<8x32x32xf32>
    %107 = arith.subf %103, %106 : vector<8x32x32xf32>
    %108 = math.exp %107 : vector<8x32x32xf32>
    %cst_30 = arith.constant dense<0.000000e+00> : vector<8x32xf32>
    %109 = vector.multi_reduction <add>, %108, %cst_30 [2] : vector<8x32x32xf32> to vector<8x32xf32>
    %110 = vector.shape_cast %109 : vector<8x32xf32> to vector<8x32x1xf32>
    %111 = tpu.reciprocal %110 {approx = true} : vector<8x32x1xf32> -> vector<8x32x1xf32>
    %112 = vector.broadcast %111 : vector<8x32x1xf32> to vector<8x32x32xf32>
    %113 = arith.mulf %108, %112 : vector<8x32x32xf32>
    %114 = arith.truncf %113 : vector<8x32x32xf32> to vector<8x32x32xbf16>
    "tpu.trace_start"() <{level = 10 : i32, message = "nqk,nkd->nqd"}> : () -> ()
    %cst_31 = arith.constant dense<0.000000e+00> : vector<8x32x32xf32>
    %115 = tpu.matmul %114, %100, %cst_31 {dimension_numbers = #tpu.dot_dimension_numbers<[2], [1], [1], [2], [0, 0, 0, 1, 1, 2], [0], [0]>} : vector<8x32x32xbf16>, vector<8x32x32xbf16>, vector<8x32x32xf32> -> vector<8x32x32xf32>
    "tpu.trace_stop"() : () -> ()
    %116 = vector.extract_strided_slice %115 {offsets = [0, 0, 0], sizes = [1, 32, 32], strides = [1, 1, 1]} : vector<8x32x32xf32> to vector<1x32x32xf32>
    %117 = vector.shape_cast %116 : vector<1x32x32xf32> to vector<32x32xf32>
    %118 = vector.extract_strided_slice %115 {offsets = [1, 0, 0], sizes = [1, 32, 32], strides = [1, 1, 1]} : vector<8x32x32xf32> to vector<1x32x32xf32>
    %119 = vector.shape_cast %118 : vector<1x32x32xf32> to vector<32x32xf32>
    %120 = vector.extract_strided_slice %115 {offsets = [2, 0, 0], sizes = [1, 32, 32], strides = [1, 1, 1]} : vector<8x32x32xf32> to vector<1x32x32xf32>
    %121 = vector.shape_cast %120 : vector<1x32x32xf32> to vector<32x32xf32>
    %122 = vector.extract_strided_slice %115 {offsets = [3, 0, 0], sizes = [1, 32, 32], strides = [1, 1, 1]} : vector<8x32x32xf32> to vector<1x32x32xf32>
    %123 = vector.shape_cast %122 : vector<1x32x32xf32> to vector<32x32xf32>
    %124 = tpu.concatenate %117, %119, %121, %123 in 1 : vector<32x32xf32>, vector<32x32xf32>, vector<32x32xf32>, vector<32x32xf32> -> vector<32x128xf32>
    %125 = vector.extract_strided_slice %115 {offsets = [4, 0, 0], sizes = [1, 32, 32], strides = [1, 1, 1]} : vector<8x32x32xf32> to vector<1x32x32xf32>
    %126 = vector.shape_cast %125 : vector<1x32x32xf32> to vector<32x32xf32>
    %127 = vector.extract_strided_slice %115 {offsets = [5, 0, 0], sizes = [1, 32, 32], strides = [1, 1, 1]} : vector<8x32x32xf32> to vector<1x32x32xf32>
    %128 = vector.shape_cast %127 : vector<1x32x32xf32> to vector<32x32xf32>
    %129 = vector.extract_strided_slice %115 {offsets = [6, 0, 0], sizes = [1, 32, 32], strides = [1, 1, 1]} : vector<8x32x32xf32> to vector<1x32x32xf32>
    %130 = vector.shape_cast %129 : vector<1x32x32xf32> to vector<32x32xf32>
    %131 = vector.extract_strided_slice %115 {offsets = [7, 0, 0], sizes = [1, 32, 32], strides = [1, 1, 1]} : vector<8x32x32xf32> to vector<1x32x32xf32>
    %132 = vector.shape_cast %131 : vector<1x32x32xf32> to vector<32x32xf32>
    %133 = tpu.concatenate %126, %128, %130, %132 in 1 : vector<32x32xf32>, vector<32x32xf32>, vector<32x32xf32>, vector<32x32xf32> -> vector<32x128xf32>
    %134 = tpu.concatenate %124, %133 in 0 : vector<32x128xf32>, vector<32x128xf32> -> vector<64x128xf32>
    %135 = arith.truncf %134 : vector<64x128xf32> to vector<64x128xbf16>
    %cst_32 = arith.constant dense<0.000000e+00> : vector<64x128xf32>
    %136 = tpu.matmul %135, %21, %cst_32 {dimension_numbers = #tpu.dot_dimension_numbers<[1], [0], [0], [1], [0, 0, 1, 1], [], []>} : vector<64x128xbf16>, vector<128x128xbf16>, vector<64x128xf32> -> vector<64x128xf32>
    %137 = arith.addf %4, %136 : vector<64x128xf32>
    %138 = vector.broadcast %13 : vector<1x128xf32> to vector<64x128xf32>
    %139 = arith.addf %137, %138 : vector<64x128xf32>
    %cst_33 = arith.constant dense<0.000000e+00> : vector<64xf32>
    %140 = vector.multi_reduction <add>, %139, %cst_33 [1] : vector<64x128xf32> to vector<64xf32>
    %141 = vector.shape_cast %140 : vector<64xf32> to vector<64x1xf32>
    %cst_34 = arith.constant 1.280000e+02 : f32
    %142 = vector.broadcast %cst_34 : f32 to vector<64x1xf32>
    %143 = arith.divf %141, %142 : vector<64x1xf32>
    %144 = vector.broadcast %143 : vector<64x1xf32> to vector<64x128xf32>
    %145 = arith.subf %139, %144 : vector<64x128xf32>
    %146 = arith.mulf %145, %145 : vector<64x128xf32>
    %cst_35 = arith.constant dense<0.000000e+00> : vector<64xf32>
    %147 = vector.multi_reduction <add>, %146, %cst_35 [1] : vector<64x128xf32> to vector<64xf32>
    %148 = vector.shape_cast %147 : vector<64xf32> to vector<64x1xf32>
    %cst_36 = arith.constant 1.280000e+02 : f32
    %149 = vector.broadcast %cst_36 : f32 to vector<64x1xf32>
    %150 = arith.divf %148, %149 : vector<64x1xf32>
    %cst_37 = arith.constant 9.99999996E-13 : f32
    %151 = vector.broadcast %cst_37 : f32 to vector<64x1xf32>
    %152 = arith.addf %150, %151 : vector<64x1xf32>
    %153 = math.rsqrt %152 : vector<64x1xf32>
    %154 = vector.broadcast %153 : vector<64x1xf32> to vector<64x128xf32>
    %155 = arith.mulf %145, %154 : vector<64x128xf32>
    %156 = vector.broadcast %14 : vector<1x128xf32> to vector<64x128xf32>
    %157 = arith.mulf %155, %156 : vector<64x128xf32>
    %158 = vector.broadcast %15 : vector<1x128xf32> to vector<64x128xf32>
    %159 = arith.addf %157, %158 : vector<64x128xf32>
    %160 = arith.truncf %159 : vector<64x128xf32> to vector<64x128xbf16>
    %cst_38 = arith.constant dense<0.000000e+00> : vector<64x512xf32>
    %161 = tpu.matmul %160, %20, %cst_38 {dimension_numbers = #tpu.dot_dimension_numbers<[1], [0], [0], [1], [0, 0, 1, 1], [], []>} : vector<64x128xbf16>, vector<128x512xbf16>, vector<64x512xf32> -> vector<64x512xf32>
    %162 = vector.broadcast %18 : vector<1x512xf32> to vector<64x512xf32>
    %163 = arith.addf %161, %162 : vector<64x512xf32>
    %cst_39 = arith.constant 0.707106769 : f32
    %164 = vector.broadcast %cst_39 : f32 to vector<64x512xf32>
    %165 = arith.mulf %163, %164 : vector<64x512xf32>
    %166 = math.absf %165 : vector<64x512xf32>
    %cst_40 = arith.constant 0.327591091 : f32
    %167 = vector.broadcast %cst_40 : f32 to vector<64x512xf32>
    %168 = arith.mulf %167, %166 : vector<64x512xf32>
    %cst_41 = arith.constant 1.000000e+00 : f32
    %169 = vector.broadcast %cst_41 : f32 to vector<64x512xf32>
    %170 = arith.addf %169, %168 : vector<64x512xf32>
    %171 = tpu.reciprocal %170 {approx = true} : vector<64x512xf32> -> vector<64x512xf32>
    %cst_42 = arith.constant 1.06140542 : f32
    %172 = vector.broadcast %cst_42 : f32 to vector<64x512xf32>
    %173 = arith.mulf %172, %171 : vector<64x512xf32>
    %cst_43 = arith.constant 1.45315206 : f32
    %174 = vector.broadcast %cst_43 : f32 to vector<64x512xf32>
    %175 = arith.subf %173, %174 : vector<64x512xf32>
    %176 = arith.mulf %175, %171 : vector<64x512xf32>
    %cst_44 = arith.constant 1.42141378 : f32
    %177 = vector.broadcast %cst_44 : f32 to vector<64x512xf32>
    %178 = arith.addf %176, %177 : vector<64x512xf32>
    %179 = arith.mulf %178, %171 : vector<64x512xf32>
    %cst_45 = arith.constant 0.284496725 : f32
    %180 = vector.broadcast %cst_45 : f32 to vector<64x512xf32>
    %181 = arith.subf %179, %180 : vector<64x512xf32>
    %182 = arith.mulf %181, %171 : vector<64x512xf32>
    %cst_46 = arith.constant 0.254829586 : f32
    %183 = vector.broadcast %cst_46 : f32 to vector<64x512xf32>
    %184 = arith.addf %182, %183 : vector<64x512xf32>
    %185 = arith.mulf %184, %171 : vector<64x512xf32>
    %186 = arith.mulf %166, %166 : vector<64x512xf32>
    %cst_47 = arith.constant 0.000000e+00 : f32
    %187 = vector.broadcast %cst_47 : f32 to vector<64x512xf32>
    %188 = arith.subf %187, %186 : vector<64x512xf32>
    %189 = math.exp %188 : vector<64x512xf32>
    %190 = arith.mulf %185, %189 : vector<64x512xf32>
    %cst_48 = arith.constant 1.000000e+00 : f32
    %191 = vector.broadcast %cst_48 : f32 to vector<64x512xf32>
    %192 = arith.subf %191, %190 : vector<64x512xf32>
    %cst_49 = arith.constant 0.000000e+00 : f32
    %193 = vector.broadcast %cst_49 : f32 to vector<64x512xf32>
    %194 = arith.cmpf oge, %165, %193 : vector<64x512xf32>
    %cst_50 = arith.constant 0.000000e+00 : f32
    %195 = vector.broadcast %cst_50 : f32 to vector<64x512xf32>
    %196 = arith.subf %195, %192 : vector<64x512xf32>
    %197 = arith.select %194, %192, %196 : vector<64x512xi1>, vector<64x512xf32>
    %cst_51 = arith.constant 5.000000e-01 : f32
    %198 = vector.broadcast %cst_51 : f32 to vector<64x512xf32>
    %199 = arith.mulf %198, %163 : vector<64x512xf32>
    %cst_52 = arith.constant 1.000000e+00 : f32
    %200 = vector.broadcast %cst_52 : f32 to vector<64x512xf32>
    %201 = arith.addf %200, %197 : vector<64x512xf32>
    %202 = arith.mulf %199, %201 : vector<64x512xf32>
    %203 = arith.truncf %202 : vector<64x512xf32> to vector<64x512xbf16>
    %cst_53 = arith.constant dense<0.000000e+00> : vector<64x128xf32>
    %204 = tpu.matmul %203, %22, %cst_53 {dimension_numbers = #tpu.dot_dimension_numbers<[1], [0], [0], [1], [0, 0, 1, 1], [], []>} : vector<64x512xbf16>, vector<512x128xbf16>, vector<64x128xf32> -> vector<64x128xf32>
    %205 = arith.addf %139, %204 : vector<64x128xf32>
    %206 = vector.broadcast %16 : vector<1x128xf32> to vector<64x128xf32>
    %207 = arith.addf %205, %206 : vector<64x128xf32>
    %c70 = arith.constant 70 : index
    %c0_54 = arith.constant 0 : index
    %208 = vector.load %arg4[%c70, %c0_54] : memref<80x128xf32, #tpu.memory_space<vmem>>, vector<1x128xf32>
    %c71 = arith.constant 71 : index
    %c0_55 = arith.constant 0 : index
    %209 = vector.load %arg4[%c71, %c0_55] : memref<80x128xf32, #tpu.memory_space<vmem>>, vector<1x128xf32>
    %c72 = arith.constant 72 : index
    %c0_56 = arith.constant 0 : index
    %210 = vector.load %arg4[%c72, %c0_56] : memref<80x128xf32, #tpu.memory_space<vmem>>, vector<1x128xf32>
    %c73 = arith.constant 73 : index
    %c0_57 = arith.constant 0 : index
    %211 = vector.load %arg4[%c73, %c0_57] : memref<80x128xf32, #tpu.memory_space<vmem>>, vector<1x128xf32>
    %c74 = arith.constant 74 : index
    %c0_58 = arith.constant 0 : index
    %212 = vector.load %arg4[%c74, %c0_58] : memref<80x128xf32, #tpu.memory_space<vmem>>, vector<1x128xf32>
    %c75 = arith.constant 75 : index
    %c0_59 = arith.constant 0 : index
    %213 = vector.load %arg4[%c75, %c0_59] : memref<80x128xf32, #tpu.memory_space<vmem>>, vector<1x128xf32>
    %c1 = arith.constant 1 : index
    %c0_60 = arith.constant 0 : index
    %214 = vector.load %arg5[%c1, %c0_60] : memref<8x512xf32, #tpu.memory_space<vmem>>, vector<1x384xf32>
    %c3 = arith.constant 3 : index
    %c0_61 = arith.constant 0 : index
    %215 = vector.load %arg5[%c3, %c0_61] : memref<8x512xf32, #tpu.memory_space<vmem>>, vector<1x512xf32>
    %c128 = arith.constant 128 : index
    %c0_62 = arith.constant 0 : index
    %216 = vector.load %arg3[%c128, %c0_62] : memref<512x512xbf16, #tpu.memory_space<vmem>>, vector<128x384xbf16>
    %c384 = arith.constant 384 : index
    %c0_63 = arith.constant 0 : index
    %217 = vector.load %arg3[%c384, %c0_63] : memref<512x512xbf16, #tpu.memory_space<vmem>>, vector<128x512xbf16>
    %c384_64 = arith.constant 384 : index
    %c0_65 = arith.constant 0 : index
    %218 = vector.load %arg2[%c384_64, %c0_65] : memref<1536x128xbf16, #tpu.memory_space<vmem>>, vector<128x128xbf16>
    %c1024 = arith.constant 1024 : index
    %c0_66 = arith.constant 0 : index
    %219 = vector.load %arg2[%c1024, %c0_66] : memref<1536x128xbf16, #tpu.memory_space<vmem>>, vector<512x128xbf16>
    %cst_67 = arith.constant dense<0.000000e+00> : vector<64xf32>
    %220 = vector.multi_reduction <add>, %207, %cst_67 [1] : vector<64x128xf32> to vector<64xf32>
    %221 = vector.shape_cast %220 : vector<64xf32> to vector<64x1xf32>
    %cst_68 = arith.constant 1.280000e+02 : f32
    %222 = vector.broadcast %cst_68 : f32 to vector<64x1xf32>
    %223 = arith.divf %221, %222 : vector<64x1xf32>
    %224 = vector.broadcast %223 : vector<64x1xf32> to vector<64x128xf32>
    %225 = arith.subf %207, %224 : vector<64x128xf32>
    %226 = arith.mulf %225, %225 : vector<64x128xf32>
    %cst_69 = arith.constant dense<0.000000e+00> : vector<64xf32>
    %227 = vector.multi_reduction <add>, %226, %cst_69 [1] : vector<64x128xf32> to vector<64xf32>
    %228 = vector.shape_cast %227 : vector<64xf32> to vector<64x1xf32>
    %cst_70 = arith.constant 1.280000e+02 : f32
    %229 = vector.broadcast %cst_70 : f32 to vector<64x1xf32>
    %230 = arith.divf %228, %229 : vector<64x1xf32>
    %cst_71 = arith.constant 9.99999996E-13 : f32
    %231 = vector.broadcast %cst_71 : f32 to vector<64x1xf32>
    %232 = arith.addf %230, %231 : vector<64x1xf32>
    %233 = math.rsqrt %232 : vector<64x1xf32>
    %234 = vector.broadcast %233 : vector<64x1xf32> to vector<64x128xf32>
    %235 = arith.mulf %225, %234 : vector<64x128xf32>
    %236 = vector.broadcast %208 : vector<1x128xf32> to vector<64x128xf32>
    %237 = arith.mulf %235, %236 : vector<64x128xf32>
    %238 = vector.broadcast %209 : vector<1x128xf32> to vector<64x128xf32>
    %239 = arith.addf %237, %238 : vector<64x128xf32>
    %240 = arith.truncf %239 : vector<64x128xf32> to vector<64x128xbf16>
    %cst_72 = arith.constant dense<0.000000e+00> : vector<64x384xf32>
    %241 = tpu.matmul %240, %216, %cst_72 {dimension_numbers = #tpu.dot_dimension_numbers<[1], [0], [0], [1], [0, 0, 1, 1], [], []>} : vector<64x128xbf16>, vector<128x384xbf16>, vector<64x384xf32> -> vector<64x384xf32>
    %242 = vector.broadcast %214 : vector<1x384xf32> to vector<64x384xf32>
    %243 = arith.addf %241, %242 : vector<64x384xf32>
    %244 = vector.extract_strided_slice %243 {offsets = [0, 0], sizes = [32, 32], strides = [1, 1]} : vector<64x384xf32> to vector<32x32xf32>
    %245 = vector.extract_strided_slice %243 {offsets = [0, 32], sizes = [32, 32], strides = [1, 1]} : vector<64x384xf32> to vector<32x32xf32>
    %246 = vector.extract_strided_slice %243 {offsets = [0, 64], sizes = [32, 32], strides = [1, 1]} : vector<64x384xf32> to vector<32x32xf32>
    %247 = vector.extract_strided_slice %243 {offsets = [0, 96], sizes = [32, 32], strides = [1, 1]} : vector<64x384xf32> to vector<32x32xf32>
    %248 = vector.extract_strided_slice %243 {offsets = [32, 0], sizes = [32, 32], strides = [1, 1]} : vector<64x384xf32> to vector<32x32xf32>
    %249 = vector.extract_strided_slice %243 {offsets = [32, 32], sizes = [32, 32], strides = [1, 1]} : vector<64x384xf32> to vector<32x32xf32>
    %250 = vector.extract_strided_slice %243 {offsets = [32, 64], sizes = [32, 32], strides = [1, 1]} : vector<64x384xf32> to vector<32x32xf32>
    %251 = vector.extract_strided_slice %243 {offsets = [32, 96], sizes = [32, 32], strides = [1, 1]} : vector<64x384xf32> to vector<32x32xf32>
    %252 = vector.shape_cast %244 : vector<32x32xf32> to vector<1x32x32xf32>
    %253 = vector.shape_cast %245 : vector<32x32xf32> to vector<1x32x32xf32>
    %254 = vector.shape_cast %246 : vector<32x32xf32> to vector<1x32x32xf32>
    %255 = vector.shape_cast %247 : vector<32x32xf32> to vector<1x32x32xf32>
    %256 = vector.shape_cast %248 : vector<32x32xf32> to vector<1x32x32xf32>
    %257 = vector.shape_cast %249 : vector<32x32xf32> to vector<1x32x32xf32>
    %258 = vector.shape_cast %250 : vector<32x32xf32> to vector<1x32x32xf32>
    %259 = vector.shape_cast %251 : vector<32x32xf32> to vector<1x32x32xf32>
    %260 = tpu.concatenate %252, %253, %254, %255, %256, %257, %258, %259 in 0 : vector<1x32x32xf32>, vector<1x32x32xf32>, vector<1x32x32xf32>, vector<1x32x32xf32>, vector<1x32x32xf32>, vector<1x32x32xf32>, vector<1x32x32xf32>, vector<1x32x32xf32> -> vector<8x32x32xf32>
    %261 = arith.truncf %260 : vector<8x32x32xf32> to vector<8x32x32xbf16>
    %262 = vector.extract_strided_slice %243 {offsets = [0, 128], sizes = [32, 32], strides = [1, 1]} : vector<64x384xf32> to vector<32x32xf32>
    %263 = vector.extract_strided_slice %243 {offsets = [0, 160], sizes = [32, 32], strides = [1, 1]} : vector<64x384xf32> to vector<32x32xf32>
    %264 = vector.extract_strided_slice %243 {offsets = [0, 192], sizes = [32, 32], strides = [1, 1]} : vector<64x384xf32> to vector<32x32xf32>
    %265 = vector.extract_strided_slice %243 {offsets = [0, 224], sizes = [32, 32], strides = [1, 1]} : vector<64x384xf32> to vector<32x32xf32>
    %266 = vector.extract_strided_slice %243 {offsets = [32, 128], sizes = [32, 32], strides = [1, 1]} : vector<64x384xf32> to vector<32x32xf32>
    %267 = vector.extract_strided_slice %243 {offsets = [32, 160], sizes = [32, 32], strides = [1, 1]} : vector<64x384xf32> to vector<32x32xf32>
    %268 = vector.extract_strided_slice %243 {offsets = [32, 192], sizes = [32, 32], strides = [1, 1]} : vector<64x384xf32> to vector<32x32xf32>
    %269 = vector.extract_strided_slice %243 {offsets = [32, 224], sizes = [32, 32], strides = [1, 1]} : vector<64x384xf32> to vector<32x32xf32>
    %270 = vector.shape_cast %262 : vector<32x32xf32> to vector<1x32x32xf32>
    %271 = vector.shape_cast %263 : vector<32x32xf32> to vector<1x32x32xf32>
    %272 = vector.shape_cast %264 : vector<32x32xf32> to vector<1x32x32xf32>
    %273 = vector.shape_cast %265 : vector<32x32xf32> to vector<1x32x32xf32>
    %274 = vector.shape_cast %266 : vector<32x32xf32> to vector<1x32x32xf32>
    %275 = vector.shape_cast %267 : vector<32x32xf32> to vector<1x32x32xf32>
    %276 = vector.shape_cast %268 : vector<32x32xf32> to vector<1x32x32xf32>
    %277 = vector.shape_cast %269 : vector<32x32xf32> to vector<1x32x32xf32>
    %278 = tpu.concatenate %270, %271, %272, %273, %274, %275, %276, %277 in 0 : vector<1x32x32xf32>, vector<1x32x32xf32>, vector<1x32x32xf32>, vector<1x32x32xf32>, vector<1x32x32xf32>, vector<1x32x32xf32>, vector<1x32x32xf32>, vector<1x32x32xf32> -> vector<8x32x32xf32>
    %279 = arith.truncf %278 : vector<8x32x32xf32> to vector<8x32x32xbf16>
    %280 = vector.extract_strided_slice %243 {offsets = [0, 256], sizes = [32, 32], strides = [1, 1]} : vector<64x384xf32> to vector<32x32xf32>
    %281 = vector.extract_strided_slice %243 {offsets = [0, 288], sizes = [32, 32], strides = [1, 1]} : vector<64x384xf32> to vector<32x32xf32>
    %282 = vector.extract_strided_slice %243 {offsets = [0, 320], sizes = [32, 32], strides = [1, 1]} : vector<64x384xf32> to vector<32x32xf32>
    %283 = vector.extract_strided_slice %243 {offsets = [0, 352], sizes = [32, 32], strides = [1, 1]} : vector<64x384xf32> to vector<32x32xf32>
    %284 = vector.extract_strided_slice %243 {offsets = [32, 256], sizes = [32, 32], strides = [1, 1]} : vector<64x384xf32> to vector<32x32xf32>
    %285 = vector.extract_strided_slice %243 {offsets = [32, 288], sizes = [32, 32], strides = [1, 1]} : vector<64x384xf32> to vector<32x32xf32>
    %286 = vector.extract_strided_slice %243 {offsets = [32, 320], sizes = [32, 32], strides = [1, 1]} : vector<64x384xf32> to vector<32x32xf32>
    %287 = vector.extract_strided_slice %243 {offsets = [32, 352], sizes = [32, 32], strides = [1, 1]} : vector<64x384xf32> to vector<32x32xf32>
    %288 = vector.shape_cast %280 : vector<32x32xf32> to vector<1x32x32xf32>
    %289 = vector.shape_cast %281 : vector<32x32xf32> to vector<1x32x32xf32>
    %290 = vector.shape_cast %282 : vector<32x32xf32> to vector<1x32x32xf32>
    %291 = vector.shape_cast %283 : vector<32x32xf32> to vector<1x32x32xf32>
    %292 = vector.shape_cast %284 : vector<32x32xf32> to vector<1x32x32xf32>
    %293 = vector.shape_cast %285 : vector<32x32xf32> to vector<1x32x32xf32>
    %294 = vector.shape_cast %286 : vector<32x32xf32> to vector<1x32x32xf32>
    %295 = vector.shape_cast %287 : vector<32x32xf32> to vector<1x32x32xf32>
    %296 = tpu.concatenate %288, %289, %290, %291, %292, %293, %294, %295 in 0 : vector<1x32x32xf32>, vector<1x32x32xf32>, vector<1x32x32xf32>, vector<1x32x32xf32>, vector<1x32x32xf32>, vector<1x32x32xf32>, vector<1x32x32xf32>, vector<1x32x32xf32> -> vector<8x32x32xf32>
    %297 = arith.truncf %296 : vector<8x32x32xf32> to vector<8x32x32xbf16>
    "tpu.trace_start"() <{level = 10 : i32, message = "nqd,nkd->nqk"}> : () -> ()
    %cst_73 = arith.constant dense<0.000000e+00> : vector<8x32x32xf32>
    %298 = tpu.matmul %261, %279, %cst_73 {dimension_numbers = #tpu.dot_dimension_numbers<[2], [2], [1], [1], [0, 0, 0, 1, 1, 1], [0], [0]>} : vector<8x32x32xbf16>, vector<8x32x32xbf16>, vector<8x32x32xf32> -> vector<8x32x32xf32>
    "tpu.trace_stop"() : () -> ()
    %299 = vector.broadcast %10 : vector<1x32x32xf32> to vector<8x32x32xf32>
    %300 = arith.addf %298, %299 : vector<8x32x32xf32>
    %cst_74 = arith.constant dense<0xFF800000> : vector<8x32xf32>
    %301 = vector.multi_reduction <maximumf>, %300, %cst_74 [2] : vector<8x32x32xf32> to vector<8x32xf32>
    %302 = vector.shape_cast %301 : vector<8x32xf32> to vector<8x32x1xf32>
    %303 = vector.broadcast %302 : vector<8x32x1xf32> to vector<8x32x32xf32>
    %304 = arith.subf %300, %303 : vector<8x32x32xf32>
    %305 = math.exp %304 : vector<8x32x32xf32>
    %cst_75 = arith.constant dense<0.000000e+00> : vector<8x32xf32>
    %306 = vector.multi_reduction <add>, %305, %cst_75 [2] : vector<8x32x32xf32> to vector<8x32xf32>
    %307 = vector.shape_cast %306 : vector<8x32xf32> to vector<8x32x1xf32>
    %308 = tpu.reciprocal %307 {approx = true} : vector<8x32x1xf32> -> vector<8x32x1xf32>
    %309 = vector.broadcast %308 : vector<8x32x1xf32> to vector<8x32x32xf32>
    %310 = arith.mulf %305, %309 : vector<8x32x32xf32>
    %311 = arith.truncf %310 : vector<8x32x32xf32> to vector<8x32x32xbf16>
    "tpu.trace_start"() <{level = 10 : i32, message = "nqk,nkd->nqd"}> : () -> ()
    %cst_76 = arith.constant dense<0.000000e+00> : vector<8x32x32xf32>
    %312 = tpu.matmul %311, %297, %cst_76 {dimension_numbers = #tpu.dot_dimension_numbers<[2], [1], [1], [2], [0, 0, 0, 1, 1, 2], [0], [0]>} : vector<8x32x32xbf16>, vector<8x32x32xbf16>, vector<8x32x32xf32> -> vector<8x32x32xf32>
    "tpu.trace_stop"() : () -> ()
    %313 = vector.extract_strided_slice %312 {offsets = [0, 0, 0], sizes = [1, 32, 32], strides = [1, 1, 1]} : vector<8x32x32xf32> to vector<1x32x32xf32>
    %314 = vector.shape_cast %313 : vector<1x32x32xf32> to vector<32x32xf32>
    %315 = vector.extract_strided_slice %312 {offsets = [1, 0, 0], sizes = [1, 32, 32], strides = [1, 1, 1]} : vector<8x32x32xf32> to vector<1x32x32xf32>
    %316 = vector.shape_cast %315 : vector<1x32x32xf32> to vector<32x32xf32>
    %317 = vector.extract_strided_slice %312 {offsets = [2, 0, 0], sizes = [1, 32, 32], strides = [1, 1, 1]} : vector<8x32x32xf32> to vector<1x32x32xf32>
    %318 = vector.shape_cast %317 : vector<1x32x32xf32> to vector<32x32xf32>
    %319 = vector.extract_strided_slice %312 {offsets = [3, 0, 0], sizes = [1, 32, 32], strides = [1, 1, 1]} : vector<8x32x32xf32> to vector<1x32x32xf32>
    %320 = vector.shape_cast %319 : vector<1x32x32xf32> to vector<32x32xf32>
    %321 = tpu.concatenate %314, %316, %318, %320 in 1 : vector<32x32xf32>, vector<32x32xf32>, vector<32x32xf32>, vector<32x32xf32> -> vector<32x128xf32>
    %322 = vector.extract_strided_slice %312 {offsets = [4, 0, 0], sizes = [1, 32, 32], strides = [1, 1, 1]} : vector<8x32x32xf32> to vector<1x32x32xf32>
    %323 = vector.shape_cast %322 : vector<1x32x32xf32> to vector<32x32xf32>
    %324 = vector.extract_strided_slice %312 {offsets = [5, 0, 0], sizes = [1, 32, 32], strides = [1, 1, 1]} : vector<8x32x32xf32> to vector<1x32x32xf32>
    %325 = vector.shape_cast %324 : vector<1x32x32xf32> to vector<32x32xf32>
    %326 = vector.extract_strided_slice %312 {offsets = [6, 0, 0], sizes = [1, 32, 32], strides = [1, 1, 1]} : vector<8x32x32xf32> to vector<1x32x32xf32>
    %327 = vector.shape_cast %326 : vector<1x32x32xf32> to vector<32x32xf32>
    %328 = vector.extract_strided_slice %312 {offsets = [7, 0, 0], sizes = [1, 32, 32], strides = [1, 1, 1]} : vector<8x32x32xf32> to vector<1x32x32xf32>
    %329 = vector.shape_cast %328 : vector<1x32x32xf32> to vector<32x32xf32>
    %330 = tpu.concatenate %323, %325, %327, %329 in 1 : vector<32x32xf32>, vector<32x32xf32>, vector<32x32xf32>, vector<32x32xf32> -> vector<32x128xf32>
    %331 = tpu.concatenate %321, %330 in 0 : vector<32x128xf32>, vector<32x128xf32> -> vector<64x128xf32>
    %332 = arith.truncf %331 : vector<64x128xf32> to vector<64x128xbf16>
    %cst_77 = arith.constant dense<0.000000e+00> : vector<64x128xf32>
    %333 = tpu.matmul %332, %218, %cst_77 {dimension_numbers = #tpu.dot_dimension_numbers<[1], [0], [0], [1], [0, 0, 1, 1], [], []>} : vector<64x128xbf16>, vector<128x128xbf16>, vector<64x128xf32> -> vector<64x128xf32>
    %334 = arith.addf %207, %333 : vector<64x128xf32>
    %335 = vector.broadcast %210 : vector<1x128xf32> to vector<64x128xf32>
    %336 = arith.addf %334, %335 : vector<64x128xf32>
    %cst_78 = arith.constant dense<0.000000e+00> : vector<64xf32>
    %337 = vector.multi_reduction <add>, %336, %cst_78 [1] : vector<64x128xf32> to vector<64xf32>
    %338 = vector.shape_cast %337 : vector<64xf32> to vector<64x1xf32>
    %cst_79 = arith.constant 1.280000e+02 : f32
    %339 = vector.broadcast %cst_79 : f32 to vector<64x1xf32>
    %340 = arith.divf %338, %339 : vector<64x1xf32>
    %341 = vector.broadcast %340 : vector<64x1xf32> to vector<64x128xf32>
    %342 = arith.subf %336, %341 : vector<64x128xf32>
    %343 = arith.mulf %342, %342 : vector<64x128xf32>
    %cst_80 = arith.constant dense<0.000000e+00> : vector<64xf32>
    %344 = vector.multi_reduction <add>, %343, %cst_80 [1] : vector<64x128xf32> to vector<64xf32>
    %345 = vector.shape_cast %344 : vector<64xf32> to vector<64x1xf32>
    %cst_81 = arith.constant 1.280000e+02 : f32
    %346 = vector.broadcast %cst_81 : f32 to vector<64x1xf32>
    %347 = arith.divf %345, %346 : vector<64x1xf32>
    %cst_82 = arith.constant 9.99999996E-13 : f32
    %348 = vector.broadcast %cst_82 : f32 to vector<64x1xf32>
    %349 = arith.addf %347, %348 : vector<64x1xf32>
    %350 = math.rsqrt %349 : vector<64x1xf32>
    %351 = vector.broadcast %350 : vector<64x1xf32> to vector<64x128xf32>
    %352 = arith.mulf %342, %351 : vector<64x128xf32>
    %353 = vector.broadcast %211 : vector<1x128xf32> to vector<64x128xf32>
    %354 = arith.mulf %352, %353 : vector<64x128xf32>
    %355 = vector.broadcast %212 : vector<1x128xf32> to vector<64x128xf32>
    %356 = arith.addf %354, %355 : vector<64x128xf32>
    %357 = arith.truncf %356 : vector<64x128xf32> to vector<64x128xbf16>
    %cst_83 = arith.constant dense<0.000000e+00> : vector<64x512xf32>
    %358 = tpu.matmul %357, %217, %cst_83 {dimension_numbers = #tpu.dot_dimension_numbers<[1], [0], [0], [1], [0, 0, 1, 1], [], []>} : vector<64x128xbf16>, vector<128x512xbf16>, vector<64x512xf32> -> vector<64x512xf32>
    %359 = vector.broadcast %215 : vector<1x512xf32> to vector<64x512xf32>
    %360 = arith.addf %358, %359 : vector<64x512xf32>
    %cst_84 = arith.constant 0.707106769 : f32
    %361 = vector.broadcast %cst_84 : f32 to vector<64x512xf32>
    %362 = arith.mulf %360, %361 : vector<64x512xf32>
    %363 = math.absf %362 : vector<64x512xf32>
    %cst_85 = arith.constant 0.327591091 : f32
    %364 = vector.broadcast %cst_85 : f32 to vector<64x512xf32>
    %365 = arith.mulf %364, %363 : vector<64x512xf32>
    %cst_86 = arith.constant 1.000000e+00 : f32
    %366 = vector.broadcast %cst_86 : f32 to vector<64x512xf32>
    %367 = arith.addf %366, %365 : vector<64x512xf32>
    %368 = tpu.reciprocal %367 {approx = true} : vector<64x512xf32> -> vector<64x512xf32>
    %cst_87 = arith.constant 1.06140542 : f32
    %369 = vector.broadcast %cst_87 : f32 to vector<64x512xf32>
    %370 = arith.mulf %369, %368 : vector<64x512xf32>
    %cst_88 = arith.constant 1.45315206 : f32
    %371 = vector.broadcast %cst_88 : f32 to vector<64x512xf32>
    %372 = arith.subf %370, %371 : vector<64x512xf32>
    %373 = arith.mulf %372, %368 : vector<64x512xf32>
    %cst_89 = arith.constant 1.42141378 : f32
    %374 = vector.broadcast %cst_89 : f32 to vector<64x512xf32>
    %375 = arith.addf %373, %374 : vector<64x512xf32>
    %376 = arith.mulf %375, %368 : vector<64x512xf32>
    %cst_90 = arith.constant 0.284496725 : f32
    %377 = vector.broadcast %cst_90 : f32 to vector<64x512xf32>
    %378 = arith.subf %376, %377 : vector<64x512xf32>
    %379 = arith.mulf %378, %368 : vector<64x512xf32>
    %cst_91 = arith.constant 0.254829586 : f32
    %380 = vector.broadcast %cst_91 : f32 to vector<64x512xf32>
    %381 = arith.addf %379, %380 : vector<64x512xf32>
    %382 = arith.mulf %381, %368 : vector<64x512xf32>
    %383 = arith.mulf %363, %363 : vector<64x512xf32>
    %cst_92 = arith.constant 0.000000e+00 : f32
    %384 = vector.broadcast %cst_92 : f32 to vector<64x512xf32>
    %385 = arith.subf %384, %383 : vector<64x512xf32>
    %386 = math.exp %385 : vector<64x512xf32>
    %387 = arith.mulf %382, %386 : vector<64x512xf32>
    %cst_93 = arith.constant 1.000000e+00 : f32
    %388 = vector.broadcast %cst_93 : f32 to vector<64x512xf32>
    %389 = arith.subf %388, %387 : vector<64x512xf32>
    %cst_94 = arith.constant 0.000000e+00 : f32
    %390 = vector.broadcast %cst_94 : f32 to vector<64x512xf32>
    %391 = arith.cmpf oge, %362, %390 : vector<64x512xf32>
    %cst_95 = arith.constant 0.000000e+00 : f32
    %392 = vector.broadcast %cst_95 : f32 to vector<64x512xf32>
    %393 = arith.subf %392, %389 : vector<64x512xf32>
    %394 = arith.select %391, %389, %393 : vector<64x512xi1>, vector<64x512xf32>
    %cst_96 = arith.constant 5.000000e-01 : f32
    %395 = vector.broadcast %cst_96 : f32 to vector<64x512xf32>
    %396 = arith.mulf %395, %360 : vector<64x512xf32>
    %cst_97 = arith.constant 1.000000e+00 : f32
    %397 = vector.broadcast %cst_97 : f32 to vector<64x512xf32>
    %398 = arith.addf %397, %394 : vector<64x512xf32>
    %399 = arith.mulf %396, %398 : vector<64x512xf32>
    %400 = arith.truncf %399 : vector<64x512xf32> to vector<64x512xbf16>
    %cst_98 = arith.constant dense<0.000000e+00> : vector<64x128xf32>
    %401 = tpu.matmul %400, %219, %cst_98 {dimension_numbers = #tpu.dot_dimension_numbers<[1], [0], [0], [1], [0, 0, 1, 1], [], []>} : vector<64x512xbf16>, vector<512x128xbf16>, vector<64x128xf32> -> vector<64x128xf32>
    %402 = arith.addf %336, %401 : vector<64x128xf32>
    %403 = vector.broadcast %213 : vector<1x128xf32> to vector<64x128xf32>
    %404 = arith.addf %402, %403 : vector<64x128xf32>
    %c76 = arith.constant 76 : index
    %c0_99 = arith.constant 0 : index
    %405 = vector.load %arg4[%c76, %c0_99] : memref<80x128xf32, #tpu.memory_space<vmem>>, vector<1x128xf32>
    %c77 = arith.constant 77 : index
    %c0_100 = arith.constant 0 : index
    %406 = vector.load %arg4[%c77, %c0_100] : memref<80x128xf32, #tpu.memory_space<vmem>>, vector<1x128xf32>
    %cst_101 = arith.constant dense<0.000000e+00> : vector<64xf32>
    %407 = vector.multi_reduction <add>, %404, %cst_101 [1] : vector<64x128xf32> to vector<64xf32>
    %408 = vector.shape_cast %407 : vector<64xf32> to vector<64x1xf32>
    %cst_102 = arith.constant 1.280000e+02 : f32
    %409 = vector.broadcast %cst_102 : f32 to vector<64x1xf32>
    %410 = arith.divf %408, %409 : vector<64x1xf32>
    %411 = vector.broadcast %410 : vector<64x1xf32> to vector<64x128xf32>
    %412 = arith.subf %404, %411 : vector<64x128xf32>
    %413 = arith.mulf %412, %412 : vector<64x128xf32>
    %cst_103 = arith.constant dense<0.000000e+00> : vector<64xf32>
    %414 = vector.multi_reduction <add>, %413, %cst_103 [1] : vector<64x128xf32> to vector<64xf32>
    %415 = vector.shape_cast %414 : vector<64xf32> to vector<64x1xf32>
    %cst_104 = arith.constant 1.280000e+02 : f32
    %416 = vector.broadcast %cst_104 : f32 to vector<64x1xf32>
    %417 = arith.divf %415, %416 : vector<64x1xf32>
    %cst_105 = arith.constant 9.99999996E-13 : f32
    %418 = vector.broadcast %cst_105 : f32 to vector<64x1xf32>
    %419 = arith.addf %417, %418 : vector<64x1xf32>
    %420 = math.rsqrt %419 : vector<64x1xf32>
    %421 = vector.broadcast %420 : vector<64x1xf32> to vector<64x128xf32>
    %422 = arith.mulf %412, %421 : vector<64x128xf32>
    %423 = vector.broadcast %405 : vector<1x128xf32> to vector<64x128xf32>
    %424 = arith.mulf %422, %423 : vector<64x128xf32>
    %425 = vector.broadcast %406 : vector<1x128xf32> to vector<64x128xf32>
    %426 = arith.addf %424, %425 : vector<64x128xf32>
    %427 = vector.extract_strided_slice %426 {offsets = [0, 0], sizes = [16, 128], strides = [1, 1]} : vector<64x128xf32> to vector<16x128xf32>
    %c0_106 = arith.constant 0 : index
    %c0_107 = arith.constant 0 : index
    %c0_108 = arith.constant 0 : index
    %428 = vector.load %arg6[%c0_106, %c0_107, %c0_108] : memref<2x16x128xf32, #tpu.memory_space<vmem>>, vector<1x16x128xf32>
    %429 = vector.shape_cast %428 : vector<1x16x128xf32> to vector<16x128xf32>
    %430 = vector.shape_cast %427 : vector<16x128xf32> to vector<1x16x128xf32>
    tpu.vector_store %arg6[%c0_106, %c0_107, %c0_108], %430 {strides = array<i32>} : memref<2x16x128xf32, #tpu.memory_space<vmem>>, vector<1x16x128xf32>,
    %431 = vector.extract_strided_slice %426 {offsets = [32, 0], sizes = [16, 128], strides = [1, 1]} : vector<64x128xf32> to vector<16x128xf32>
    %c1_109 = arith.constant 1 : index
    %c0_110 = arith.constant 0 : index
    %c0_111 = arith.constant 0 : index
    %432 = vector.load %arg6[%c1_109, %c0_110, %c0_111] : memref<2x16x128xf32, #tpu.memory_space<vmem>>, vector<1x16x128xf32>
    %433 = vector.shape_cast %432 : vector<1x16x128xf32> to vector<16x128xf32>
    %434 = vector.shape_cast %431 : vector<16x128xf32> to vector<1x16x128xf32>
    tpu.vector_store %arg6[%c1_109, %c0_110, %c0_111], %434 {strides = array<i32>} : memref<2x16x128xf32, #tpu.memory_space<vmem>>, vector<1x16x128xf32>,
    return
  }
  func.func @transform_0(%arg0: i32) -> (i32, i32) {
    %c0_i32 = arith.constant 0 : i32
    %c0_i32_0 = arith.constant 0 : i32
    %c0_i32_1 = arith.constant 0 : i32
    return %c0_i32, %c0_i32_0 : i32, i32
  }
  func.func @transform_1(%arg0: i32) -> (i32, i32) {
    %c0_i32 = arith.constant 0 : i32
    %c0_i32_0 = arith.constant 0 : i32
    %c0_i32_1 = arith.constant 0 : i32
    return %c0_i32, %c0_i32_0 : i32, i32
  }
  func.func @transform_2(%arg0: i32) -> (i32, i32) {
    %c0_i32 = arith.constant 0 : i32
    %c0_i32_0 = arith.constant 0 : i32
    %c0_i32_1 = arith.constant 0 : i32
    return %c0_i32, %c0_i32_0 : i32, i32
  }
  func.func @transform_3(%arg0: i32) -> (i32, i32) {
    %c0_i32 = arith.constant 0 : i32
    %c0_i32_0 = arith.constant 0 : i32
    %c0_i32_1 = arith.constant 0 : i32
    return %c0_i32, %c0_i32_0 : i32, i32
  }
  func.func @transform_4(%arg0: i32) -> (i32, i32) {
    %c0_i32 = arith.constant 0 : i32
    %c0_i32_0 = arith.constant 0 : i32
    %c0_i32_1 = arith.constant 0 : i32
    return %c0_i32, %c0_i32_0 : i32, i32
  }
  func.func @transform_5(%arg0: i32) -> (i32, i32, i32) {
    %c0_i32 = arith.constant 0 : i32
    %c0_i32_0 = arith.constant 0 : i32
    %c0_i32_1 = arith.constant 0 : i32
    %c0_i32_2 = arith.constant 0 : i32
    return %c0_i32, %c0_i32_0, %c0_i32_1 : i32, i32, i32
  }
}

</mosaic_0001>

<llo_original>
// kernel: audio_modality_forward.1
$region0: #{audio_modality_forward.1}
  #allocation0 [shape = 'u32[]', space=smem, size = 0x4, offset = 0x4, fixed_abs, tag = 'smem constant byte address 0x4 - core index']
  #allocation1 [shape = 'u32[144,128]{1,0:T(1,128)}', space=vmem, size = 0x12000, scoped, tag = 'internal scratch']
  %s0 = inlined_call_operand.vmem [shape: bf16[64,256], index: 0, kind: input, shape index: {}]
  %s1 = inlined_call_operand.vmem [shape: bf16[1536,128], index: 1, kind: input, shape index: {}]
  %s2 = inlined_call_operand.vmem [shape: bf16[512,512], index: 2, kind: input, shape index: {}]
  %s3 = inlined_call_operand.vmem [shape: f32[80,128], index: 3, kind: input, shape index: {}]
  %s4 = inlined_call_operand.vmem [shape: f32[8,512], index: 4, kind: input, shape index: {}]
  %s5 = inlined_call_operand.hbm [shape: f32[2,16,128], index: 5, kind: output, shape index: {}]
  %s6 = sld [smem:[#allocation0]]
  $region30: #{audio_modality_forward.1} parent=0
    _
  %s8 = ssub.s32 1, %s6
  %s9 = scalar_select 0, %s8, %s6
  $region1: #{audio_modality_forward.1} parent=0
    #allocation2 [shape = 'u8[16384]{0}', space=vmem, size = 0x4000, scoped, tag = 'output window, operand 0, single buffered']
    #allocation3 [shape = 's32[1]{0}', space=sflag, size = 0x4, scoped, tag = 'scoped memory for audio_modality_forward.1']
    %10 = vsyncpa [#allocation3], 0
    // Predicated region
    $region2: #{audio_modality_forward.1} parent=1 // pred_check
      _
    $region3: #{audio_modality_forward.1} parent=1 // pred_check_branch
      %12 = sbr.rel (0) target = $region5
    $region4: #{audio_modality_forward.1} parent=1 // pred_region
      _
    $region5: #{audio_modality_forward.1} parent=1 // pred_fallthru
      _
    // Predicated region
    $region6: #{audio_modality_forward.1} parent=1 // pred_check
      _
    $region7: #{audio_modality_forward.1} parent=1 // pred_check_branch
      %14 = sbr.rel (0) target = $region9
    $region8: #{audio_modality_forward.1} parent=1 // pred_region
      _
    $region9: #{audio_modality_forward.1} parent=1 // pred_fallthru
      _
    // Predicated region
    $region10: #{audio_modality_forward.1} parent=1 // pred_check
      _
    $region11: #{audio_modality_forward.1} parent=1 // pred_check_branch
      %16 = sbr.rel (0) target = $region13
    $region12: #{audio_modality_forward.1} parent=1 // pred_region
      _
    $region13: #{audio_modality_forward.1} parent=1 // pred_fallthru
      _
    // Predicated region
    $region14: #{audio_modality_forward.1} parent=1 // pred_check
      _
    $region15: #{audio_modality_forward.1} parent=1 // pred_check_branch
      %18 = sbr.rel (0) target = $region17
    $region16: #{audio_modality_forward.1} parent=1 // pred_region
      _
    $region17: #{audio_modality_forward.1} parent=1 // pred_fallthru
      _
    // Predicated region
    $region18: #{audio_modality_forward.1} parent=1 // pred_check
      _
    $region19: #{audio_modality_forward.1} parent=1 // pred_check_branch
      %20 = sbr.rel (0) target = $region21
    $region20: #{audio_modality_forward.1} parent=1 // pred_region
      _
    $region21: #{audio_modality_forward.1} parent=1 // pred_fallthru
      _
    %v22 = vld [vmem:[%s3] sm:$0xff]
    %v23 = vld [vmem:[%s3 + $0x8] sm:$0xff]
    %v24 = vld [vmem:[%s3 + $0x10] sm:$0xff]
    %v25 = vld [vmem:[%s3 + $0x18] sm:$0xff]
    %v26 = vld [vmem:[%s3 + $0x20] sm:$0xff]
    %v27 = vld [vmem:[%s3 + $0x28] sm:$0xff]
    %v28 = vld [vmem:[%s3 + $0x30] sm:$0xff]
    %v29 = vld [vmem:[%s3 + $0x38] sm:$0xff]
    %v30 = vld [vmem:[%s0] sm:$0xff]
    %v31 = vld [vmem:[%s0 + $0x8] sm:$0xff]
    %v32 = vld [vmem:[%s0 + $0x10] sm:$0xff]
    %v33 = vld [vmem:[%s0 + $0x18] sm:$0xff]
    %v34 = vld [vmem:[%s0 + $0x20] sm:$0xff]
    %v35 = vld [vmem:[%s0 + $0x28] sm:$0xff]
    %v36 = vld [vmem:[%s0 + $0x30] sm:$0xff]
    %v37 = vld [vmem:[%s0 + $0x38] sm:$0xff]
    %v38 = vld [vmem:[%s1] sm:$0xf]
    %v39 = vld [vmem:[%s1 + $0x4] sm:$0xf]
    %v40 = vld [vmem:[%s1 + $0x8] sm:$0xf]
    %v41 = vld [vmem:[%s1 + $0xc] sm:$0xf]
    %v42 = vld [vmem:[%s1 + $0x10] sm:$0xf]
    %v43 = vld [vmem:[%s1 + $0x14] sm:$0xf]
    %v44 = vld [vmem:[%s1 + $0x18] sm:$0xf]
    %v45 = vld [vmem:[%s1 + $0x1c] sm:$0xf]
    %v46 = vld [vmem:[%s1 + $0x20] sm:$0xf]
    %v47 = vld [vmem:[%s1 + $0x24] sm:$0xf]
    %v48 = vld [vmem:[%s1 + $0x28] sm:$0xf]
    %v49 = vld [vmem:[%s1 + $0x2c] sm:$0xf]
    %v50 = vld [vmem:[%s1 + $0x30] sm:$0xf]
    %v51 = vld [vmem:[%s1 + $0x34] sm:$0xf]
    %v52 = vld [vmem:[%s1 + $0x38] sm:$0xf]
    %v53 = vld [vmem:[%s1 + $0x3c] sm:$0xf]
    %v54 = vld [vmem:[%s1 + $0x40] sm:$0xf]
    %v55 = vld [vmem:[%s1 + $0x44] sm:$0xf]
    %v56 = vld [vmem:[%s1 + $0x48] sm:$0xf]
    %v57 = vld [vmem:[%s1 + $0x4c] sm:$0xf]
    %v58 = vld [vmem:[%s1 + $0x50] sm:$0xf]
    %v59 = vld [vmem:[%s1 + $0x54] sm:$0xf]
    %v60 = vld [vmem:[%s1 + $0x58] sm:$0xf]
    %v61 = vld [vmem:[%s1 + $0x5c] sm:$0xf]
    %v62 = vld [vmem:[%s1 + $0x60] sm:$0xf]
    %v63 = vld [vmem:[%s1 + $0x64] sm:$0xf]
    %v64 = vld [vmem:[%s1 + $0x68] sm:$0xf]
    %v65 = vld [vmem:[%s1 + $0x6c] sm:$0xf]
    %v66 = vld [vmem:[%s1 + $0x70] sm:$0xf]
    %v67 = vld [vmem:[%s1 + $0x74] sm:$0xf]
    %v68 = vld [vmem:[%s1 + $0x78] sm:$0xf]
    %v69 = vld [vmem:[%s1 + $0x7c] sm:$0xf]
    %v78 = vunpack.c.l.b16 %v30
    %v79 = vunpack.c.h.b16 %v30
    %v80 = vunpack.c.l.b16 %v31
    %v81 = vunpack.c.h.b16 %v31
    %v82 = vunpack.c.l.b16 %v32
    %v83 = vunpack.c.h.b16 %v32
    %v84 = vunpack.c.l.b16 %v33
    %v85 = vunpack.c.h.b16 %v33
    %v86 = vunpack.c.l.b16 %v34
    %v87 = vunpack.c.h.b16 %v34
    %v88 = vunpack.c.l.b16 %v35
    %v89 = vunpack.c.h.b16 %v35
    %v90 = vunpack.c.l.b16 %v36
    %v91 = vunpack.c.h.b16 %v36
    %v92 = vunpack.c.l.b16 %v37
    %v93 = vunpack.c.h.b16 %v37
    %v94 = vpack.c.b16 %v80, %v78
    %v95 = vpack.c.b16 %v81, %v79
    %v96 = vpack.c.b16 %v84, %v82
    %v97 = vpack.c.b16 %v85, %v83
    %v98 = vpack.c.b16 %v88, %v86
    %v99 = vpack.c.b16 %v89, %v87
    %v100 = vpack.c.b16 %v92, %v90
    %v101 = vpack.c.b16 %v93, %v91
    %v142 = vunpack.c.l.b16 %v38
    %v143 = vunpack.c.l.b16 %v39
    %v144 = vunpack.c.l.b16 %v40
    %v145 = vunpack.c.l.b16 %v41
    %v146 = vunpack.c.l.b16 %v42
    %v147 = vunpack.c.l.b16 %v43
    %v148 = vunpack.c.l.b16 %v44
    %v149 = vunpack.c.l.b16 %v45
    %v150 = vunpack.c.l.b16 %v46
    %v151 = vunpack.c.l.b16 %v47
    %v152 = vunpack.c.l.b16 %v48
    %v153 = vunpack.c.l.b16 %v49
    %v154 = vunpack.c.l.b16 %v50
    %v155 = vunpack.c.l.b16 %v51
    %v156 = vunpack.c.l.b16 %v52
    %v157 = vunpack.c.l.b16 %v53
    %v158 = vunpack.c.l.b16 %v54
    %v159 = vunpack.c.l.b16 %v55
    %v160 = vunpack.c.l.b16 %v56
    %v161 = vunpack.c.l.b16 %v57
    %v162 = vunpack.c.l.b16 %v58
    %v163 = vunpack.c.l.b16 %v59
    %v164 = vunpack.c.l.b16 %v60
    %v165 = vunpack.c.l.b16 %v61
    %v166 = vunpack.c.l.b16 %v62
    %v167 = vunpack.c.l.b16 %v63
    %v168 = vunpack.c.l.b16 %v64
    %v169 = vunpack.c.l.b16 %v65
    %v170 = vunpack.c.l.b16 %v66
    %v171 = vunpack.c.l.b16 %v67
    %v172 = vunpack.c.l.b16 %v68
    %v173 = vunpack.c.l.b16 %v69
    %v174 = vpack.c.b16 %v143, %v142
    %v175 = vpack.c.b16 %v145, %v144
    %v176 = vpack.c.b16 %v147, %v146
    %v177 = vpack.c.b16 %v149, %v148
    %v178 = vpack.c.b16 %v151, %v150
    %v179 = vpack.c.b16 %v153, %v152
    %v180 = vpack.c.b16 %v155, %v154
    %v181 = vpack.c.b16 %v157, %v156
    %v182 = vpack.c.b16 %v159, %v158
    %v183 = vpack.c.b16 %v161, %v160
    %v184 = vpack.c.b16 %v163, %v162
    %v185 = vpack.c.b16 %v165, %v164
    %v186 = vpack.c.b16 %v167, %v166
    %v187 = vpack.c.b16 %v169, %v168
    %v188 = vpack.c.b16 %v171, %v170
    %v189 = vpack.c.b16 %v173, %v172
    %206 = vmatprep.subr.bf16.mxu0 0
    %207 = vmatpush1.bf16.msra.mxu0 %v174
    %208 = vmatprep.subr.bf16.mxu0 0
    %209 = vmatpush1.bf16.msra.mxu0 %v175
    %210 = vmatprep.subr.bf16.mxu0 0
    %211 = vmatpush1.bf16.msra.mxu0 %v176
    %212 = vmatprep.subr.bf16.mxu0 0
    %213 = vmatpush1.bf16.msra.mxu0 %v177
    %214 = vmatprep.subr.bf16.mxu0 0
    %215 = vmatpush1.bf16.msra.mxu0 %v178
    %216 = vmatprep.subr.bf16.mxu0 0
    %217 = vmatpush1.bf16.msra.mxu0 %v179
    %218 = vmatprep.subr.bf16.mxu0 0
    %219 = vmatpush1.bf16.msra.mxu0 %v180
    %220 = vmatprep.subr.bf16.mxu0 0
    %221 = vmatpush1.bf16.msra.mxu0 %v181
    %222 = vmatprep.subr.bf16.mxu0 0
    %223 = vmatpush1.bf16.msra.mxu0 %v182
    %224 = vmatprep.subr.bf16.mxu0 0
    %225 = vmatpush1.bf16.msra.mxu0 %v183
    %226 = vmatprep.subr.bf16.mxu0 0
    %227 = vmatpush1.bf16.msra.mxu0 %v184
    %228 = vmatprep.subr.bf16.mxu0 0
    %229 = vmatpush1.bf16.msra.mxu0 %v185
    %230 = vmatprep.subr.bf16.mxu0 0
    %231 = vmatpush1.bf16.msra.mxu0 %v186
    %232 = vmatprep.subr.bf16.mxu0 0
    %233 = vmatpush1.bf16.msra.mxu0 %v187
    %234 = vmatprep.subr.bf16.mxu0 0
    %235 = vmatpush1.bf16.msra.mxu0 %v188
    %236 = vmatprep.subr.bf16.mxu0 0
    %237 = vmatpush1.bf16.msra.mxu0 %v189
    %238 = vmatprep.mubr.bf16.mxu0 %v95
    %239 = vmatmul.mubr.bf16.gmra.mrb[0].mxu0 %v94
    %v240 = vpop.f32.mrb[0].mxu0
    %v241 = vadd.f32 %v22, %v240
    %v242 = vpop.f32.mrb[0].mxu0
    %v243 = vpop.f32.mrb[0].mxu0
    %v244 = vadd.f32 %v23, %v243
    %v245 = vpop.f32.mrb[0].mxu0
    %246 = vmatprep.mubr.bf16.mxu0 %v97
    %247 = vmatmul.mubr.bf16.gmra.mrb[0].mxu0 %v96
    %v248 = vpop.f32.mrb[0].mxu0
    %v249 = vadd.f32 %v24, %v248
    %v250 = vpop.f32.mrb[0].mxu0
    %v251 = vpop.f32.mrb[0].mxu0
    %v252 = vadd.f32 %v25, %v251
    %v253 = vpop.f32.mrb[0].mxu0
    %254 = vmatprep.mubr.bf16.mxu0 %v99
    %255 = vmatmul.mubr.bf16.gmra.mrb[0].mxu0 %v98
    %v256 = vpop.f32.mrb[0].mxu0
    %v257 = vadd.f32 %v26, %v256
    %v258 = vpop.f32.mrb[0].mxu0
    %v259 = vpop.f32.mrb[0].mxu0
    %v260 = vadd.f32 %v27, %v259
    %v261 = vpop.f32.mrb[0].mxu0
    %262 = vmatprep.mubr.bf16.mxu0 %v101
    %263 = vmatmul.mubr.bf16.gmra.mrb[0].mxu0 %v100
    %v264 = vpop.f32.mrb[0].mxu0
    %v265 = vadd.f32 %v28, %v264
    %v266 = vpop.f32.mrb[0].mxu0
    %v267 = vpop.f32.mrb[0].mxu0
    %v268 = vadd.f32 %v29, %v267
    %v269 = vpop.f32.mrb[0].mxu0
    %270 = vdwg.mxu0
    %v271 = vlaneseq
    %v272 = vand.u32 %v271, 127
    %vm273 = vcmp.lt.s32.totalorder %v272, 17
    %v274 = vsel %vm273, 0.0, -1e+30
    %v275 = vld [vmem:[%s3 + $0x40] sm:$0x1]
    %v276 = vld [vmem:[%s3 + $0x41] sm:$0x1]
    %v277 = vld [vmem:[%s3 + $0x42] sm:$0x1]
    %v278 = vld [vmem:[%s3 + $0x43] sm:$0x1]
    %v279 = vld [vmem:[%s3 + $0x44] sm:$0x1]
    %v280 = vld [vmem:[%s3 + $0x45] sm:$0x1]
    %v281 = vld [vmem:[%s4] ss:$8 sm:$0x7]
    %s282 = scalar_lea.vmem %s4, 2
    %v283 = vld [vmem:[%s282] ss:$8 sm:$0xf]
    %v284 = vld [vmem:[%s2] sm:$0xff]
    %v285 = vld [vmem:[%s2 + $0x8] sm:$0xf]
    %v286 = vld [vmem:[%s2 + $0x10] sm:$0xff]
    %v287 = vld [vmem:[%s2 + $0x18] sm:$0xf]
    %v288 = vld [vmem:[%s2 + $0x20] sm:$0xff]
    %v289 = vld [vmem:[%s2 + $0x28] sm:$0xf]
    %v290 = vld [vmem:[%s2 + $0x30] sm:$0xff]
    %v291 = vld [vmem:[%s2 + $0x38] sm:$0xf]
    %v292 = vld [vmem:[%s2 + $0x40] sm:$0xff]
    %v293 = vld [vmem:[%s2 + $0x48] sm:$0xf]
    %v294 = vld [vmem:[%s2 + $0x50] sm:$0xff]
    %v295 = vld [vmem:[%s2 + $0x58] sm:$0xf]
    %v296 = vld [vmem:[%s2 + $0x60] sm:$0xff]
    %v297 = vld [vmem:[%s2 + $0x68] sm:$0xf]
    %v298 = vld [vmem:[%s2 + $0x70] sm:$0xff]
    %v299 = vld [vmem:[%s2 + $0x78] sm:$0xf]
    %v300 = vld [vmem:[%s2 + $0x80] sm:$0xff]
    %v301 = vld [vmem:[%s2 + $0x88] sm:$0xf]
    %v302 = vld [vmem:[%s2 + $0x90] sm:$0xff]
    %v303 = vld [vmem:[%s2 + $0x98] sm:$0xf]
    %v304 = vld [vmem:[%s2 + $0xa0] sm:$0xff]
    %v305 = vld [vmem:[%s2 + $0xa8] sm:$0xf]
    %v306 = vld [vmem:[%s2 + $0xb0] sm:$0xff]
    %v307 = vld [vmem:[%s2 + $0xb8] sm:$0xf]
    %v308 = vld [vmem:[%s2 + $0xc0] sm:$0xff]
    %v309 = vld [vmem:[%s2 + $0xc8] sm:$0xf]
    %v310 = vld [vmem:[%s2 + $0xd0] sm:$0xff]
    %v311 = vld [vmem:[%s2 + $0xd8] sm:$0xf]
    %v312 = vld [vmem:[%s2 + $0xe0] sm:$0xff]
    %v313 = vld [vmem:[%s2 + $0xe8] sm:$0xf]
    %v314 = vld [vmem:[%s2 + $0xf0] sm:$0xff]
    %v315 = vld [vmem:[%s2 + $0xf8] sm:$0xf]
    %v316 = vld [vmem:[%s2 + $0x200] sm:$0xff]
    %v317 = vld [vmem:[%s2 + $0x208] sm:$0xff]
    %v318 = vld [vmem:[%s2 + $0x210] sm:$0xff]
    %v319 = vld [vmem:[%s2 + $0x218] sm:$0xff]
    %v320 = vld [vmem:[%s2 + $0x220] sm:$0xff]
    %v321 = vld [vmem:[%s2 + $0x228] sm:$0xff]
    %v322 = vld [vmem:[%s2 + $0x230] sm:$0xff]
    %v323 = vld [vmem:[%s2 + $0x238] sm:$0xff]
    %v324 = vld [vmem:[%s2 + $0x240] sm:$0xff]
    %v325 = vld [vmem:[%s2 + $0x248] sm:$0xff]
    %v326 = vld [vmem:[%s2 + $0x250] sm:$0xff]
    %v327 = vld [vmem:[%s2 + $0x258] sm:$0xff]
    %v328 = vld [vmem:[%s2 + $0x260] sm:$0xff]
    %v329 = vld [vmem:[%s2 + $0x268] sm:$0xff]
    %v330 = vld [vmem:[%s2 + $0x270] sm:$0xff]
    %v331 = vld [vmem:[%s2 + $0x278] sm:$0xff]
    %v332 = vld [vmem:[%s2 + $0x280] sm:$0xff]
    %v333 = vld [vmem:[%s2 + $0x288] sm:$0xff]
    %v334 = vld [vmem:[%s2 + $0x290] sm:$0xff]
    %v335 = vld [vmem:[%s2 + $0x298] sm:$0xff]
    %v336 = vld [vmem:[%s2 + $0x2a0] sm:$0xff]
    %v337 = vld [vmem:[%s2 + $0x2a8] sm:$0xff]
    %v338 = vld [vmem:[%s2 + $0x2b0] sm:$0xff]
    %v339 = vld [vmem:[%s2 + $0x2b8] sm:$0xff]
    %v340 = vld [vmem:[%s2 + $0x2c0] sm:$0xff]
    %v341 = vld [vmem:[%s2 + $0x2c8] sm:$0xff]
    %v342 = vld [vmem:[%s2 + $0x2d0] sm:$0xff]
    %v343 = vld [vmem:[%s2 + $0x2d8] sm:$0xff]
    %v344 = vld [vmem:[%s2 + $0x2e0] sm:$0xff]
    %v345 = vld [vmem:[%s2 + $0x2e8] sm:$0xff]
    %v346 = vld [vmem:[%s2 + $0x2f0] sm:$0xff]
    %v347 = vld [vmem:[%s2 + $0x2f8] sm:$0xff]
    %v348 = vld [vmem:[%s1 + $0x80] sm:$0xf]
    %v349 = vld [vmem:[%s1 + $0x84] sm:$0xf]
    %v350 = vld [vmem:[%s1 + $0x88] sm:$0xf]
    %v351 = vld [vmem:[%s1 + $0x8c] sm:$0xf]
    %v352 = vld [vmem:[%s1 + $0x90] sm:$0xf]
    %v353 = vld [vmem:[%s1 + $0x94] sm:$0xf]
    %v354 = vld [vmem:[%s1 + $0x98] sm:$0xf]
    %v355 = vld [vmem:[%s1 + $0x9c] sm:$0xf]
    %v356 = vld [vmem:[%s1 + $0xa0] sm:$0xf]
    %v357 = vld [vmem:[%s1 + $0xa4] sm:$0xf]
    %v358 = vld [vmem:[%s1 + $0xa8] sm:$0xf]
    %v359 = vld [vmem:[%s1 + $0xac] sm:$0xf]
    %v360 = vld [vmem:[%s1 + $0xb0] sm:$0xf]
    %v361 = vld [vmem:[%s1 + $0xb4] sm:$0xf]
    %v362 = vld [vmem:[%s1 + $0xb8] sm:$0xf]
    %v363 = vld [vmem:[%s1 + $0xbc] sm:$0xf]
    %v364 = vld [vmem:[%s1 + $0x100] sm:$0xf]
    %v365 = vld [vmem:[%s1 + $0x104] sm:$0xf]
    %v366 = vld [vmem:[%s1 + $0x108] sm:$0xf]
    %v367 = vld [vmem:[%s1 + $0x10c] sm:$0xf]
    %v368 = vld [vmem:[%s1 + $0x110] sm:$0xf]
    %v369 = vld [vmem:[%s1 + $0x114] sm:$0xf]
    %v370 = vld [vmem:[%s1 + $0x118] sm:$0xf]
    %v371 = vld [vmem:[%s1 + $0x11c] sm:$0xf]
    %v372 = vld [vmem:[%s1 + $0x120] sm:$0xf]
    %v373 = vld [vmem:[%s1 + $0x124] sm:$0xf]
    %v374 = vld [vmem:[%s1 + $0x128] sm:$0xf]
    %v375 = vld [vmem:[%s1 + $0x12c] sm:$0xf]
    %v376 = vld [vmem:[%s1 + $0x130] sm:$0xf]
    %v377 = vld [vmem:[%s1 + $0x134] sm:$0xf]
    %v378 = vld [vmem:[%s1 + $0x138] sm:$0xf]
    %v379 = vld [vmem:[%s1 + $0x13c] sm:$0xf]
    %v380 = vld [vmem:[%s1 + $0x140] sm:$0xf]
    %v381 = vld [vmem:[%s1 + $0x144] sm:$0xf]
    %v382 = vld [vmem:[%s1 + $0x148] sm:$0xf]
    %v383 = vld [vmem:[%s1 + $0x14c] sm:$0xf]
    %v384 = vld [vmem:[%s1 + $0x150] sm:$0xf]
    %v385 = vld [vmem:[%s1 + $0x154] sm:$0xf]
    %v386 = vld [vmem:[%s1 + $0x158] sm:$0xf]
    %v387 = vld [vmem:[%s1 + $0x15c] sm:$0xf]
    %v388 = vld [vmem:[%s1 + $0x160] sm:$0xf]
    %v389 = vld [vmem:[%s1 + $0x164] sm:$0xf]
    %v390 = vld [vmem:[%s1 + $0x168] sm:$0xf]
    %v391 = vld [vmem:[%s1 + $0x16c] sm:$0xf]
    %v392 = vld [vmem:[%s1 + $0x170] sm:$0xf]
    %v393 = vld [vmem:[%s1 + $0x174] sm:$0xf]
    %v394 = vld [vmem:[%s1 + $0x178] sm:$0xf]
    %v395 = vld [vmem:[%s1 + $0x17c] sm:$0xf]
    %v396 = vld [vmem:[%s1 + $0x180] sm:$0xf]
    %v397 = vld [vmem:[%s1 + $0x184] sm:$0xf]
    %v398 = vld [vmem:[%s1 + $0x188] sm:$0xf]
    %v399 = vld [vmem:[%s1 + $0x18c] sm:$0xf]
    %v400 = vld [vmem:[%s1 + $0x190] sm:$0xf]
    %v401 = vld [vmem:[%s1 + $0x194] sm:$0xf]
    %v402 = vld [vmem:[%s1 + $0x198] sm:$0xf]
    %v403 = vld [vmem:[%s1 + $0x19c] sm:$0xf]
    %v404 = vld [vmem:[%s1 + $0x1a0] sm:$0xf]
    %v405 = vld [vmem:[%s1 + $0x1a4] sm:$0xf]
    %v406 = vld [vmem:[%s1 + $0x1a8] sm:$0xf]
    %v407 = vld [vmem:[%s1 + $0x1ac] sm:$0xf]
    %v408 = vld [vmem:[%s1 + $0x1b0] sm:$0xf]
    %v409 = vld [vmem:[%s1 + $0x1b4] sm:$0xf]
    %v410 = vld [vmem:[%s1 + $0x1b8] sm:$0xf]
    %v411 = vld [vmem:[%s1 + $0x1bc] sm:$0xf]
    %v412 = vld [vmem:[%s1 + $0x1c0] sm:$0xf]
    %v413 = vld [vmem:[%s1 + $0x1c4] sm:$0xf]
    %v414 = vld [vmem:[%s1 + $0x1c8] sm:$0xf]
    %v415 = vld [vmem:[%s1 + $0x1cc] sm:$0xf]
    %v416 = vld [vmem:[%s1 + $0x1d0] sm:$0xf]
    %v417 = vld [vmem:[%s1 + $0x1d4] sm:$0xf]
    %v418 = vld [vmem:[%s1 + $0x1d8] sm:$0xf]
    %v419 = vld [vmem:[%s1 + $0x1dc] sm:$0xf]
    %v420 = vld [vmem:[%s1 + $0x1e0] sm:$0xf]
    %v421 = vld [vmem:[%s1 + $0x1e4] sm:$0xf]
    %v422 = vld [vmem:[%s1 + $0x1e8] sm:$0xf]
    %v423 = vld [vmem:[%s1 + $0x1ec] sm:$0xf]
    %v424 = vld [vmem:[%s1 + $0x1f0] sm:$0xf]
    %v425 = vld [vmem:[%s1 + $0x1f4] sm:$0xf]
    %v426 = vld [vmem:[%s1 + $0x1f8] sm:$0xf]
    %v427 = vld [vmem:[%s1 + $0x1fc] sm:$0xf]
    %428 = vadd.xlane.f32.xlu0 %v241
    %v429 = vpop.xlane.xlu0 %428
    %430 = vadd.xlane.f32.xlu0 %v244
    %v431 = vpop.xlane.xlu0 %430
    %432 = vadd.xlane.f32.xlu0 %v249
    %v433 = vpop.xlane.xlu0 %432
    %434 = vadd.xlane.f32.xlu0 %v252
    %v435 = vpop.xlane.xlu0 %434
    %436 = vadd.xlane.f32.xlu0 %v257
    %v437 = vpop.xlane.xlu0 %436
    %438 = vadd.xlane.f32.xlu0 %v260
    %v439 = vpop.xlane.xlu0 %438
    %440 = vadd.xlane.f32.xlu0 %v265
    %v441 = vpop.xlane.xlu0 %440
    %442 = vadd.xlane.f32.xlu0 %v268
    %v443 = vpop.xlane.xlu0 %442
    %v444 = vrcp.pop 128.0
    %v445 = vmul.f32 %v429, %v444
    %v446 = vmul.f32 %v431, %v444
    %v447 = vmul.f32 %v433, %v444
    %v448 = vmul.f32 %v435, %v444
    %v449 = vmul.f32 %v437, %v444
    %v450 = vmul.f32 %v439, %v444
    %v451 = vmul.f32 %v441, %v444
    %v452 = vmul.f32 %v443, %v444
    %v453 = vsub.f32 %v241, %v445
    %v454 = vsub.f32 %v244, %v446
    %v455 = vsub.f32 %v249, %v447
    %v456 = vsub.f32 %v252, %v448
    %v457 = vsub.f32 %v257, %v449
    %v458 = vsub.f32 %v260, %v450
    %v459 = vsub.f32 %v265, %v451
    %v460 = vsub.f32 %v268, %v452
    %v461 = vmul.f32 %v453, %v453
    %v462 = vmul.f32 %v454, %v454
    %v463 = vmul.f32 %v455, %v455
    %v464 = vmul.f32 %v456, %v456
    %v465 = vmul.f32 %v457, %v457
    %v466 = vmul.f32 %v458, %v458
    %v467 = vmul.f32 %v459, %v459
    %v468 = vmul.f32 %v460, %v460
    %469 = vadd.xlane.f32.xlu0 %v461
    %v470 = vpop.xlane.xlu0 %469
    %471 = vadd.xlane.f32.xlu0 %v462
    %v472 = vpop.xlane.xlu0 %471
    %473 = vadd.xlane.f32.xlu0 %v463
    %v474 = vpop.xlane.xlu0 %473
    %475 = vadd.xlane.f32.xlu0 %v464
    %v476 = vpop.xlane.xlu0 %475
    %477 = vadd.xlane.f32.xlu0 %v465
    %v478 = vpop.xlane.xlu0 %477
    %479 = vadd.xlane.f32.xlu0 %v466
    %v480 = vpop.xlane.xlu0 %479
    %481 = vadd.xlane.f32.xlu0 %v467
    %v482 = vpop.xlane.xlu0 %481
    %483 = vadd.xlane.f32.xlu0 %v468
    %v484 = vpop.xlane.xlu0 %483
    %v485 = vmul.f32 %v470, %v444
    %v486 = vmul.f32 %v472, %v444
    %v487 = vmul.f32 %v474, %v444
    %v488 = vmul.f32 %v476, %v444
    %v489 = vmul.f32 %v478, %v444
    %v490 = vmul.f32 %v480, %v444
    %v491 = vmul.f32 %v482, %v444
    %v492 = vmul.f32 %v484, %v444
    %v493 = vadd.f32 %v485, 1e-12
    %v494 = vadd.f32 %v486, 1e-12
    %v495 = vadd.f32 %v487, 1e-12
    %v496 = vadd.f32 %v488, 1e-12
    %v497 = vadd.f32 %v489, 1e-12
    %v498 = vadd.f32 %v490, 1e-12
    %v499 = vadd.f32 %v491, 1e-12
    %v500 = vadd.f32 %v492, 1e-12
    %v501 = vrsqrt.pop %v493
    %v502 = vrsqrt.pop %v494
    %v503 = vrsqrt.pop %v495
    %v504 = vrsqrt.pop %v496
    %v505 = vrsqrt.pop %v497
    %v506 = vrsqrt.pop %v498
    %v507 = vrsqrt.pop %v499
    %v508 = vrsqrt.pop %v500
    %v509 = vmul.f32 %v453, %v501
    %v510 = vmul.f32 %v454, %v502
    %v511 = vmul.f32 %v455, %v503
    %v512 = vmul.f32 %v456, %v504
    %v513 = vmul.f32 %v457, %v505
    %v514 = vmul.f32 %v458, %v506
    %v515 = vmul.f32 %v459, %v507
    %v516 = vmul.f32 %v460, %v508
    %v517 = vlaneseq
    %v518 = vshrl.u32 %v517, 7
    %v519 = vsub.s32 0, %v518
    %v520 = vrot.slane %v275, %v519
    %v521 = vmul.f32 %v509, %v520
    %v522 = vmul.f32 %v510, %v520
    %v523 = vmul.f32 %v511, %v520
    %v524 = vmul.f32 %v512, %v520
    %v525 = vmul.f32 %v513, %v520
    %v526 = vmul.f32 %v514, %v520
    %v527 = vmul.f32 %v515, %v520
    %v528 = vmul.f32 %v516, %v520
    %v529 = vlaneseq
    %v530 = vshrl.u32 %v529, 7
    %v531 = vsub.s32 0, %v530
    %v532 = vrot.slane %v276, %v531
    %v533 = vadd.f32 %v521, %v532
    %v534 = vadd.f32 %v522, %v532
    %v535 = vadd.f32 %v523, %v532
    %v536 = vadd.f32 %v524, %v532
    %v537 = vadd.f32 %v525, %v532
    %v538 = vadd.f32 %v526, %v532
    %v539 = vadd.f32 %v527, %v532
    %v540 = vadd.f32 %v528, %v532
    %v541 = vpack.c.bf16 %v534, %v533
    %v542 = vpack.c.bf16 %v536, %v535
    %v543 = vpack.c.bf16 %v538, %v537
    %v544 = vpack.c.bf16 %v540, %v539
    %v546 = vlaneseq
    %v547 = vshrl.u32 %v546, 7
    %v548 = vsub.s32 0, %v547
    %v549 = vrot.slane %v281, %v548
    %v550 = vlaneseq
    %v551 = vshrl.u32 %v550, 7
    %v552 = vsub.s32 1, %v551
    %v553 = vrot.slane %v281, %v552
    %v554 = vlaneseq
    %v555 = vshrl.u32 %v554, 7
    %v556 = vsub.s32 2, %v555
    %v557 = vrot.slane %v281, %v556
    %v593 = vunpack.c.l.b16 %v284
    %v594 = vunpack.c.h.b16 %v284
    %v595 = vunpack.c.l.b16 %v285
    %v596 = vunpack.c.l.b16 %v286
    %v597 = vunpack.c.h.b16 %v286
    %v598 = vunpack.c.l.b16 %v287
    %v599 = vunpack.c.l.b16 %v288
    %v600 = vunpack.c.h.b16 %v288
    %v601 = vunpack.c.l.b16 %v289
    %v602 = vunpack.c.l.b16 %v290
    %v603 = vunpack.c.h.b16 %v290
    %v604 = vunpack.c.l.b16 %v291
    %v605 = vunpack.c.l.b16 %v292
    %v606 = vunpack.c.h.b16 %v292
    %v607 = vunpack.c.l.b16 %v293
    %v608 = vunpack.c.l.b16 %v294
    %v609 = vunpack.c.h.b16 %v294
    %v610 = vunpack.c.l.b16 %v295
    %v611 = vunpack.c.l.b16 %v296
    %v612 = vunpack.c.h.b16 %v296
    %v613 = vunpack.c.l.b16 %v297
    %v614 = vunpack.c.l.b16 %v298
    %v615 = vunpack.c.h.b16 %v298
    %v616 = vunpack.c.l.b16 %v299
    %v617 = vunpack.c.l.b16 %v300
    %v618 = vunpack.c.h.b16 %v300
    %v619 = vunpack.c.l.b16 %v301
    %v620 = vunpack.c.l.b16 %v302
    %v621 = vunpack.c.h.b16 %v302
    %v622 = vunpack.c.l.b16 %v303
    %v623 = vunpack.c.l.b16 %v304
    %v624 = vunpack.c.h.b16 %v304
    %v625 = vunpack.c.l.b16 %v305
    %v626 = vunpack.c.l.b16 %v306
    %v627 = vunpack.c.h.b16 %v306
    %v628 = vunpack.c.l.b16 %v307
    %v629 = vunpack.c.l.b16 %v308
    %v630 = vunpack.c.h.b16 %v308
    %v631 = vunpack.c.l.b16 %v309
    %v632 = vunpack.c.l.b16 %v310
    %v633 = vunpack.c.h.b16 %v310
    %v634 = vunpack.c.l.b16 %v311
    %v635 = vunpack.c.l.b16 %v312
    %v636 = vunpack.c.h.b16 %v312
    %v637 = vunpack.c.l.b16 %v313
    %v638 = vunpack.c.l.b16 %v314
    %v639 = vunpack.c.h.b16 %v314
    %v640 = vunpack.c.l.b16 %v315
    %v641 = vpack.c.b16 %v596, %v593
    %v642 = vpack.c.b16 %v597, %v594
    %v643 = vpack.c.b16 %v598, %v595
    %v644 = vpack.c.b16 %v602, %v599
    %v645 = vpack.c.b16 %v603, %v600
    %v646 = vpack.c.b16 %v604, %v601
    %v647 = vpack.c.b16 %v608, %v605
    %v648 = vpack.c.b16 %v609, %v606
    %v649 = vpack.c.b16 %v610, %v607
    %v650 = vpack.c.b16 %v614, %v611
    %v651 = vpack.c.b16 %v615, %v612
    %v652 = vpack.c.b16 %v616, %v613
    %v653 = vpack.c.b16 %v620, %v617
    %v654 = vpack.c.b16 %v621, %v618
    %v655 = vpack.c.b16 %v622, %v619
    %v656 = vpack.c.b16 %v626, %v623
    %v657 = vpack.c.b16 %v627, %v624
    %v658 = vpack.c.b16 %v628, %v625
    %v659 = vpack.c.b16 %v632, %v629
    %v660 = vpack.c.b16 %v633, %v630
    %v661 = vpack.c.b16 %v634, %v631
    %v662 = vpack.c.b16 %v638, %v635
    %v663 = vpack.c.b16 %v639, %v636
    %v664 = vpack.c.b16 %v640, %v637
    %689 = vmatprep.subr.bf16.mxu0 %v642
    %690 = vmatpush1.bf16.msra.mxu0 %v641
    %691 = vmatprep.subr.bf16.mxu0 %v645
    %692 = vmatpush1.bf16.msra.mxu0 %v644
    %693 = vmatprep.subr.bf16.mxu0 %v648
    %694 = vmatpush1.bf16.msra.mxu0 %v647
    %695 = vmatprep.subr.bf16.mxu0 %v651
    %696 = vmatpush1.bf16.msra.mxu0 %v650
    %697 = vmatprep.subr.bf16.mxu0 %v654
    %698 = vmatpush1.bf16.msra.mxu0 %v653
    %699 = vmatprep.subr.bf16.mxu0 %v657
    %700 = vmatpush1.bf16.msra.mxu0 %v656
    %701 = vmatprep.subr.bf16.mxu0 %v660
    %702 = vmatpush1.bf16.msra.mxu0 %v659
    %703 = vmatprep.subr.bf16.mxu0 %v663
    %704 = vmatpush1.bf16.msra.mxu0 %v662
    %705 = vmatprep.subr.bf16.mxu0 0
    %706 = vmatpush1.bf16.msra.mxu0 0
    %707 = vmatprep.subr.bf16.mxu0 0
    %708 = vmatpush1.bf16.msra.mxu0 0
    %709 = vmatprep.subr.bf16.mxu0 0
    %710 = vmatpush1.bf16.msra.mxu0 0
    %711 = vmatprep.subr.bf16.mxu0 0
    %712 = vmatpush1.bf16.msra.mxu0 0
    %713 = vmatprep.subr.bf16.mxu0 0
    %714 = vmatpush1.bf16.msra.mxu0 0
    %715 = vmatprep.subr.bf16.mxu0 0
    %716 = vmatpush1.bf16.msra.mxu0 0
    %717 = vmatprep.subr.bf16.mxu0 0
    %718 = vmatpush1.bf16.msra.mxu0 0
    %719 = vmatprep.subr.bf16.mxu0 0
    %720 = vmatpush1.bf16.msra.mxu0 0
    %721 = vmatprep.mubr.bf16.mxu0 0
    %722 = vmatmul.mubr.bf16.gmra.mrb[0].mxu0 %v541
    %v723 = vpop.f32.mrb[0].mxu0
    %v724 = vadd.f32 %v549, %v723
    %v725 = vpop.f32.mrb[0].mxu0
    %v726 = vadd.f32 %v553, %v725
    %v727 = vpop.f32.mrb[0].mxu0
    %v728 = vadd.f32 %v549, %v727
    %v729 = vpop.f32.mrb[0].mxu0
    %v730 = vadd.f32 %v553, %v729
    %731 = vmatprep.mubr.bf16.mxu0 0
    %732 = vmatmul.mubr.bf16.gmra.mrb[0].mxu0 %v542
    %v733 = vpop.f32.mrb[0].mxu0
    %v734 = vadd.f32 %v549, %v733
    %v735 = vpop.f32.mrb[0].mxu0
    %v736 = vadd.f32 %v553, %v735
    %v737 = vpop.f32.mrb[0].mxu0
    %v738 = vadd.f32 %v549, %v737
    %v739 = vpop.f32.mrb[0].mxu0
    %v740 = vadd.f32 %v553, %v739
    %741 = vmatprep.mubr.bf16.mxu0 0
    %742 = vmatmul.mubr.bf16.gmra.mrb[0].mxu0 %v543
    %v743 = vpop.f32.mrb[0].mxu0
    %v744 = vadd.f32 %v549, %v743
    %v745 = vpop.f32.mrb[0].mxu0
    %v746 = vadd.f32 %v553, %v745
    %v747 = vpop.f32.mrb[0].mxu0
    %v748 = vadd.f32 %v549, %v747
    %v749 = vpop.f32.mrb[0].mxu0
    %v750 = vadd.f32 %v553, %v749
    %751 = vmatprep.mubr.bf16.mxu0 0
    %752 = vmatmul.mubr.bf16.gmra.mrb[0].mxu0 %v544
    %v753 = vpop.f32.mrb[0].mxu0
    %v754 = vadd.f32 %v549, %v753
    %v755 = vpop.f32.mrb[0].mxu0
    %v756 = vadd.f32 %v553, %v755
    %v757 = vpop.f32.mrb[0].mxu0
    %v758 = vadd.f32 %v549, %v757
    %v759 = vpop.f32.mrb[0].mxu0
    %v760 = vadd.f32 %v553, %v759
    %761 = vdwg.mxu0
    %762 = vmatprep.subr.bf16.mxu0 0
    %763 = vmatpush1.bf16.msra.mxu0 %v643
    %764 = vmatprep.subr.bf16.mxu0 0
    %765 = vmatpush1.bf16.msra.mxu0 %v646
    %766 = vmatprep.subr.bf16.mxu0 0
    %767 = vmatpush1.bf16.msra.mxu0 %v649
    %768 = vmatprep.subr.bf16.mxu0 0
    %769 = vmatpush1.bf16.msra.mxu0 %v652
    %770 = vmatprep.subr.bf16.mxu0 0
    %771 = vmatpush1.bf16.msra.mxu0 %v655
    %772 = vmatprep.subr.bf16.mxu0 0
    %773 = vmatpush1.bf16.msra.mxu0 %v658
    %774 = vmatprep.subr.bf16.mxu0 0
    %775 = vmatpush1.bf16.msra.mxu0 %v661
    %776 = vmatprep.subr.bf16.mxu0 0
    %777 = vmatpush1.bf16.msra.mxu0 %v664
    %778 = vmatprep.subr.bf16.mxu0 0
    %779 = vmatpush1.bf16.msra.mxu0 0
    %780 = vmatprep.subr.bf16.mxu0 0
    %781 = vmatpush1.bf16.msra.mxu0 0
    %782 = vmatprep.subr.bf16.mxu0 0
    %783 = vmatpush1.bf16.msra.mxu0 0
    %784 = vmatprep.subr.bf16.mxu0 0
    %785 = vmatpush1.bf16.msra.mxu0 0
    %786 = vmatprep.subr.bf16.mxu0 0
    %787 = vmatpush1.bf16.msra.mxu0 0
    %788 = vmatprep.subr.bf16.mxu0 0
    %789 = vmatpush1.bf16.msra.mxu0 0
    %790 = vmatprep.subr.bf16.mxu0 0
    %791 = vmatpush1.bf16.msra.mxu0 0
    %792 = vmatprep.subr.bf16.mxu0 0
    %793 = vmatpush1.bf16.msra.mxu0 0
    %794 = vmatprep.mubr.bf16.mxu0 0
    %795 = vmatmul.mubr.bf16.gmra.mrb[0].mxu0 %v541
    %v796 = vpop.f32.mrb[0].mxu0
    %v797 = vadd.f32 %v557, %v796
    %v798 = vpop.f32.mrb[0].mxu0
    %v799 = vpop.f32.mrb[0].mxu0
    %v800 = vadd.f32 %v557, %v799
    %v801 = vpop.f32.mrb[0].mxu0
    %802 = vmatprep.mubr.bf16.mxu0 0
    %803 = vmatmul.mubr.bf16.gmra.mrb[0].mxu0 %v542
    %v804 = vpop.f32.mrb[0].mxu0
    %v805 = vadd.f32 %v557, %v804
    %v806 = vpop.f32.mrb[0].mxu0
    %v807 = vpop.f32.mrb[0].mxu0
    %v808 = vadd.f32 %v557, %v807
    %v809 = vpop.f32.mrb[0].mxu0
    %810 = vmatprep.mubr.bf16.mxu0 0
    %811 = vmatmul.mubr.bf16.gmra.mrb[0].mxu0 %v543
    %v812 = vpop.f32.mrb[0].mxu0
    %v813 = vadd.f32 %v557, %v812
    %v814 = vpop.f32.mrb[0].mxu0
    %v815 = vpop.f32.mrb[0].mxu0
    %v816 = vadd.f32 %v557, %v815
    %v817 = vpop.f32.mrb[0].mxu0
    %818 = vmatprep.mubr.bf16.mxu0 0
    %819 = vmatmul.mubr.bf16.gmra.mrb[0].mxu0 %v544
    %v820 = vpop.f32.mrb[0].mxu0
    %v821 = vadd.f32 %v557, %v820
    %v822 = vpop.f32.mrb[0].mxu0
    %v823 = vpop.f32.mrb[0].mxu0
    %v824 = vadd.f32 %v557, %v823
    %v825 = vpop.f32.mrb[0].mxu0
    %826 = vdwg.mxu0
    %831 = vrot.lane.b32.xlu0 %v724, 96
    %v832 = vpop.permute.xlu0 %831
    %833 = vrot.lane.b32.xlu0 %v728, 96
    %v834 = vpop.permute.xlu0 %833
    %835 = vrot.lane.b32.xlu0 %v734, 96
    %v836 = vpop.permute.xlu0 %835
    %837 = vrot.lane.b32.xlu0 %v738, 96
    %v838 = vpop.permute.xlu0 %837
    %843 = vrot.lane.b32.xlu0 %v724, 64
    %v844 = vpop.permute.xlu0 %843
    %845 = vrot.lane.b32.xlu0 %v728, 64
    %v846 = vpop.permute.xlu0 %845
    %847 = vrot.lane.b32.xlu0 %v734, 64
    %v848 = vpop.permute.xlu0 %847
    %849 = vrot.lane.b32.xlu0 %v738, 64
    %v850 = vpop.permute.xlu0 %849
    %855 = vrot.lane.b32.xlu0 %v724, 32
    %v856 = vpop.permute.xlu0 %855
    %857 = vrot.lane.b32.xlu0 %v728, 32
    %v858 = vpop.permute.xlu0 %857
    %859 = vrot.lane.b32.xlu0 %v734, 32
    %v860 = vpop.permute.xlu0 %859
    %861 = vrot.lane.b32.xlu0 %v738, 32
    %v862 = vpop.permute.xlu0 %861
    %871 = vrot.lane.b32.xlu0 %v744, 96
    %v872 = vpop.permute.xlu0 %871
    %873 = vrot.lane.b32.xlu0 %v748, 96
    %v874 = vpop.permute.xlu0 %873
    %875 = vrot.lane.b32.xlu0 %v754, 96
    %v876 = vpop.permute.xlu0 %875
    %877 = vrot.lane.b32.xlu0 %v758, 96
    %v878 = vpop.permute.xlu0 %877
    %883 = vrot.lane.b32.xlu0 %v744, 64
    %v884 = vpop.permute.xlu0 %883
    %885 = vrot.lane.b32.xlu0 %v748, 64
    %v886 = vpop.permute.xlu0 %885
    %887 = vrot.lane.b32.xlu0 %v754, 64
    %v888 = vpop.permute.xlu0 %887
    %889 = vrot.lane.b32.xlu0 %v758, 64
    %v890 = vpop.permute.xlu0 %889
    %895 = vrot.lane.b32.xlu0 %v744, 32
    %v896 = vpop.permute.xlu0 %895
    %897 = vrot.lane.b32.xlu0 %v748, 32
    %v898 = vpop.permute.xlu0 %897
    %899 = vrot.lane.b32.xlu0 %v754, 32
    %v900 = vpop.permute.xlu0 %899
    %901 = vrot.lane.b32.xlu0 %v758, 32
    %v902 = vpop.permute.xlu0 %901
    %v907 = vpack.c.bf16 %v728, %v724
    %v908 = vpack.c.bf16 %v738, %v734
    %v909 = vpack.c.bf16 %v834, %v832
    %v910 = vpack.c.bf16 %v838, %v836
    %v911 = vpack.c.bf16 %v846, %v844
    %v912 = vpack.c.bf16 %v850, %v848
    %v913 = vpack.c.bf16 %v858, %v856
    %v914 = vpack.c.bf16 %v862, %v860
    %v915 = vpack.c.bf16 %v748, %v744
    %v916 = vpack.c.bf16 %v758, %v754
    %v917 = vpack.c.bf16 %v874, %v872
    %v918 = vpack.c.bf16 %v878, %v876
    %v919 = vpack.c.bf16 %v886, %v884
    %v920 = vpack.c.bf16 %v890, %v888
    %v921 = vpack.c.bf16 %v898, %v896
    %v922 = vpack.c.bf16 %v902, %v900
    %927 = vrot.lane.b32.xlu0 %v726, 96
    %v928 = vpop.permute.xlu0 %927
    %929 = vrot.lane.b32.xlu0 %v730, 96
    %v930 = vpop.permute.xlu0 %929
    %931 = vrot.lane.b32.xlu0 %v736, 96
    %v932 = vpop.permute.xlu0 %931
    %933 = vrot.lane.b32.xlu0 %v740, 96
    %v934 = vpop.permute.xlu0 %933
    %939 = vrot.lane.b32.xlu0 %v726, 64
    %v940 = vpop.permute.xlu0 %939
    %941 = vrot.lane.b32.xlu0 %v730, 64
    %v942 = vpop.permute.xlu0 %941
    %943 = vrot.lane.b32.xlu0 %v736, 64
    %v944 = vpop.permute.xlu0 %943
    %945 = vrot.lane.b32.xlu0 %v740, 64
    %v946 = vpop.permute.xlu0 %945
    %951 = vrot.lane.b32.xlu0 %v726, 32
    %v952 = vpop.permute.xlu0 %951
    %953 = vrot.lane.b32.xlu0 %v730, 32
    %v954 = vpop.permute.xlu0 %953
    %955 = vrot.lane.b32.xlu0 %v736, 32
    %v956 = vpop.permute.xlu0 %955
    %957 = vrot.lane.b32.xlu0 %v740, 32
    %v958 = vpop.permute.xlu0 %957
    %967 = vrot.lane.b32.xlu0 %v746, 96
    %v968 = vpop.permute.xlu0 %967
    %969 = vrot.lane.b32.xlu0 %v750, 96
    %v970 = vpop.permute.xlu0 %969
    %971 = vrot.lane.b32.xlu0 %v756, 96
    %v972 = vpop.permute.xlu0 %971
    %973 = vrot.lane.b32.xlu0 %v760, 96
    %v974 = vpop.permute.xlu0 %973
    %979 = vrot.lane.b32.xlu0 %v746, 64
    %v980 = vpop.permute.xlu0 %979
    %981 = vrot.lane.b32.xlu0 %v750, 64
    %v982 = vpop.permute.xlu0 %981
    %983 = vrot.lane.b32.xlu0 %v756, 64
    %v984 = vpop.permute.xlu0 %983
    %985 = vrot.lane.b32.xlu0 %v760, 64
    %v986 = vpop.permute.xlu0 %985
    %991 = vrot.lane.b32.xlu0 %v746, 32
    %v992 = vpop.permute.xlu0 %991
    %993 = vrot.lane.b32.xlu0 %v750, 32
    %v994 = vpop.permute.xlu0 %993
    %995 = vrot.lane.b32.xlu0 %v756, 32
    %v996 = vpop.permute.xlu0 %995
    %997 = vrot.lane.b32.xlu0 %v760, 32
    %v998 = vpop.permute.xlu0 %997
    %v1003 = vpack.c.bf16 %v730, %v726
    %v1004 = vpack.c.bf16 %v740, %v736
    %v1005 = vpack.c.bf16 %v930, %v928
    %v1006 = vpack.c.bf16 %v934, %v932
    %v1007 = vpack.c.bf16 %v942, %v940
    %v1008 = vpack.c.bf16 %v946, %v944
    %v1009 = vpack.c.bf16 %v954, %v952
    %v1010 = vpack.c.bf16 %v958, %v956
    %v1011 = vpack.c.bf16 %v750, %v746
    %v1012 = vpack.c.bf16 %v760, %v756
    %v1013 = vpack.c.bf16 %v970, %v968
    %v1014 = vpack.c.bf16 %v974, %v972
    %v1015 = vpack.c.bf16 %v982, %v980
    %v1016 = vpack.c.bf16 %v986, %v984
    %v1017 = vpack.c.bf16 %v994, %v992
    %v1018 = vpack.c.bf16 %v998, %v996
    %1023 = vrot.lane.b32.xlu0 %v797, 96
    %v1024 = vpop.permute.xlu0 %1023
    %1025 = vrot.lane.b32.xlu0 %v800, 96
    %v1026 = vpop.permute.xlu0 %1025
    %1027 = vrot.lane.b32.xlu0 %v805, 96
    %v1028 = vpop.permute.xlu0 %1027
    %1029 = vrot.lane.b32.xlu0 %v808, 96
    %v1030 = vpop.permute.xlu0 %1029
    %1035 = vrot.lane.b32.xlu0 %v797, 64
    %v1036 = vpop.permute.xlu0 %1035
    %1037 = vrot.lane.b32.xlu0 %v800, 64
    %v1038 = vpop.permute.xlu0 %1037
    %1039 = vrot.lane.b32.xlu0 %v805, 64
    %v1040 = vpop.permute.xlu0 %1039
    %1041 = vrot.lane.b32.xlu0 %v808, 64
    %v1042 = vpop.permute.xlu0 %1041
    %1047 = vrot.lane.b32.xlu0 %v797, 32
    %v1048 = vpop.permute.xlu0 %1047
    %1049 = vrot.lane.b32.xlu0 %v800, 32
    %v1050 = vpop.permute.xlu0 %1049
    %1051 = vrot.lane.b32.xlu0 %v805, 32
    %v1052 = vpop.permute.xlu0 %1051
    %1053 = vrot.lane.b32.xlu0 %v808, 32
    %v1054 = vpop.permute.xlu0 %1053
    %1063 = vrot.lane.b32.xlu0 %v813, 96
    %v1064 = vpop.permute.xlu0 %1063
    %1065 = vrot.lane.b32.xlu0 %v816, 96
    %v1066 = vpop.permute.xlu0 %1065
    %1067 = vrot.lane.b32.xlu0 %v821, 96
    %v1068 = vpop.permute.xlu0 %1067
    %1069 = vrot.lane.b32.xlu0 %v824, 96
    %v1070 = vpop.permute.xlu0 %1069
    %1075 = vrot.lane.b32.xlu0 %v813, 64
    %v1076 = vpop.permute.xlu0 %1075
    %1077 = vrot.lane.b32.xlu0 %v816, 64
    %v1078 = vpop.permute.xlu0 %1077
    %1079 = vrot.lane.b32.xlu0 %v821, 64
    %v1080 = vpop.permute.xlu0 %1079
    %1081 = vrot.lane.b32.xlu0 %v824, 64
    %v1082 = vpop.permute.xlu0 %1081
    %1087 = vrot.lane.b32.xlu0 %v813, 32
    %v1088 = vpop.permute.xlu0 %1087
    %1089 = vrot.lane.b32.xlu0 %v816, 32
    %v1090 = vpop.permute.xlu0 %1089
    %1091 = vrot.lane.b32.xlu0 %v821, 32
    %v1092 = vpop.permute.xlu0 %1091
    %1093 = vrot.lane.b32.xlu0 %v824, 32
    %v1094 = vpop.permute.xlu0 %1093
    %v1099 = vpack.c.bf16 %v800, %v797
    %v1100 = vpack.c.bf16 %v808, %v805
    %v1101 = vpack.c.bf16 %v1026, %v1024
    %v1102 = vpack.c.bf16 %v1030, %v1028
    %v1103 = vpack.c.bf16 %v1038, %v1036
    %v1104 = vpack.c.bf16 %v1042, %v1040
    %v1105 = vpack.c.bf16 %v1050, %v1048
    %v1106 = vpack.c.bf16 %v1054, %v1052
    %v1107 = vpack.c.bf16 %v816, %v813
    %v1108 = vpack.c.bf16 %v824, %v821
    %v1109 = vpack.c.bf16 %v1066, %v1064
    %v1110 = vpack.c.bf16 %v1070, %v1068
    %v1111 = vpack.c.bf16 %v1078, %v1076
    %v1112 = vpack.c.bf16 %v1082, %v1080
    %v1113 = vpack.c.bf16 %v1090, %v1088
    %v1114 = vpack.c.bf16 %v1094, %v1092
    %vm1115 = vcmask 261120
    %v1117 = vsel %vm1115, %v907, 0
    %v1120 = vsel %vm1115, %v908, 0
    %v1123 = vsel %vm1115, %v1003, 0
    %v1126 = vsel %vm1115, %v1004, 0
    %1128 = vmatprep.subr.bf16.mxu0 0
    %1129 = vmatpush1.bf16.xpose.msra.mxu0 %v1123
    %1130 = vmatprep.subr.bf16.mxu0 0
    %1131 = vmatpush1.bf16.xpose.msra.mxu0 %v1126
    %1132 = vmatprep.subr.bf16.mxu0 0
    %1133 = vmatpush1.bf16.xpose.msra.mxu0 0
    %1134 = vmatprep.subr.bf16.mxu0 0
    %1135 = vmatpush1.bf16.xpose.msra.mxu0 0
    %1136 = vmatprep.subr.bf16.mxu0 0
    %1137 = vmatpush1.bf16.xpose.msra.mxu0 0
    %1138 = vmatprep.subr.bf16.mxu0 0
    %1139 = vmatpush1.bf16.xpose.msra.mxu0 0
    %1140 = vmatprep.subr.bf16.mxu0 0
    %1141 = vmatpush1.bf16.xpose.msra.mxu0 0
    %1142 = vmatprep.subr.bf16.mxu0 0
    %1143 = vmatpush1.bf16.xpose.msra.mxu0 0
    %1144 = vmatprep.subr.bf16.mxu0 0
    %1145 = vmatpush1.bf16.xpose.msra.mxu0 0
    %1146 = vmatprep.subr.bf16.mxu0 0
    %1147 = vmatpush1.bf16.xpose.msra.mxu0 0
    %1148 = vmatprep.subr.bf16.mxu0 0
    %1149 = vmatpush1.bf16.xpose.msra.mxu0 0
    %1150 = vmatprep.subr.bf16.mxu0 0
    %1151 = vmatpush1.bf16.xpose.msra.mxu0 0
    %1152 = vmatprep.subr.bf16.mxu0 0
    %1153 = vmatpush1.bf16.xpose.msra.mxu0 0
    %1154 = vmatprep.subr.bf16.mxu0 0
    %1155 = vmatpush1.bf16.xpose.msra.mxu0 0
    %1156 = vmatprep.subr.bf16.mxu0 0
    %1157 = vmatpush1.bf16.xpose.msra.mxu0 0
    %1158 = vmatprep.subr.bf16.mxu0 0
    %1159 = vmatpush1.bf16.xpose.msra.mxu0 0
    %1160 = vmatprep.mubr.bf16.mxu0 0
    %1161 = vmatmul.mubr.bf16.gmra.mrb[0].mxu0 %v1117
    %v1162 = vpop.f32.mrb[0].mxu0
    %v1163 = vadd.f32 %v274, %v1162
    %v1164 = vpop.f32.mrb[0].mxu0
    %v1165 = vpop.f32.mrb[0].mxu0
    %v1166 = vadd.f32 %v274, %v1165
    %v1167 = vpop.f32.mrb[0].mxu0
    %1168 = vmatprep.mubr.bf16.mxu0 0
    %1169 = vmatmul.mubr.bf16.gmra.mrb[0].mxu0 %v1120
    %v1170 = vpop.f32.mrb[0].mxu0
    %v1171 = vadd.f32 %v274, %v1170
    %v1172 = vpop.f32.mrb[0].mxu0
    %v1173 = vpop.f32.mrb[0].mxu0
    %v1174 = vadd.f32 %v274, %v1173
    %v1175 = vpop.f32.mrb[0].mxu0
    %1176 = vdwg.mxu0
    %v1178 = vsel %vm1115, %v909, 0
    %v1181 = vsel %vm1115, %v910, 0
    %v1184 = vsel %vm1115, %v1005, 0
    %v1187 = vsel %vm1115, %v1006, 0
    %1189 = vmatprep.subr.bf16.mxu0 0
    %1190 = vmatpush1.bf16.xpose.msra.mxu0 %v1184
    %1191 = vmatprep.subr.bf16.mxu0 0
    %1192 = vmatpush1.bf16.xpose.msra.mxu0 %v1187
    %1193 = vmatprep.subr.bf16.mxu0 0
    %1194 = vmatpush1.bf16.xpose.msra.mxu0 0
    %1195 = vmatprep.subr.bf16.mxu0 0
    %1196 = vmatpush1.bf16.xpose.msra.mxu0 0
    %1197 = vmatprep.subr.bf16.mxu0 0
    %1198 = vmatpush1.bf16.xpose.msra.mxu0 0
    %1199 = vmatprep.subr.bf16.mxu0 0
    %1200 = vmatpush1.bf16.xpose.msra.mxu0 0
    %1201 = vmatprep.subr.bf16.mxu0 0
    %1202 = vmatpush1.bf16.xpose.msra.mxu0 0
    %1203 = vmatprep.subr.bf16.mxu0 0
    %1204 = vmatpush1.bf16.xpose.msra.mxu0 0
    %1205 = vmatprep.subr.bf16.mxu0 0
    %1206 = vmatpush1.bf16.xpose.msra.mxu0 0
    %1207 = vmatprep.subr.bf16.mxu0 0
    %1208 = vmatpush1.bf16.xpose.msra.mxu0 0
    %1209 = vmatprep.subr.bf16.mxu0 0
    %1210 = vmatpush1.bf16.xpose.msra.mxu0 0
    %1211 = vmatprep.subr.bf16.mxu0 0
    %1212 = vmatpush1.bf16.xpose.msra.mxu0 0
    %1213 = vmatprep.subr.bf16.mxu0 0
    %1214 = vmatpush1.bf16.xpose.msra.mxu0 0
    %1215 = vmatprep.subr.bf16.mxu0 0
    %1216 = vmatpush1.bf16.xpose.msra.mxu0 0
    %1217 = vmatprep.subr.bf16.mxu0 0
    %1218 = vmatpush1.bf16.xpose.msra.mxu0 0
    %1219 = vmatprep.subr.bf16.mxu0 0
    %1220 = vmatpush1.bf16.xpose.msra.mxu0 0
    %1221 = vmatprep.mubr.bf16.mxu0 0
    %1222 = vmatmul.mubr.bf16.gmra.mrb[0].mxu0 %v1178
    %v1223 = vpop.f32.mrb[0].mxu0
    %v1224 = vadd.f32 %v274, %v1223
    %v1225 = vpop.f32.mrb[0].mxu0
    %v1226 = vpop.f32.mrb[0].mxu0
    %v1227 = vadd.f32 %v274, %v1226
    %v1228 = vpop.f32.mrb[0].mxu0
    %1229 = vmatprep.mubr.bf16.mxu0 0
    %1230 = vmatmul.mubr.bf16.gmra.mrb[0].mxu0 %v1181
    %v1231 = vpop.f32.mrb[0].mxu0
    %v1232 = vadd.f32 %v274, %v1231
    %v1233 = vpop.f32.mrb[0].mxu0
    %v1234 = vpop.f32.mrb[0].mxu0
    %v1235 = vadd.f32 %v274, %v1234
    %v1236 = vpop.f32.mrb[0].mxu0
    %1237 = vdwg.mxu0
    %v1239 = vsel %vm1115, %v911, 0
    %v1242 = vsel %vm1115, %v912, 0
    %v1245 = vsel %vm1115, %v1007, 0
    %v1248 = vsel %vm1115, %v1008, 0
    %1250 = vmatprep.subr.bf16.mxu0 0
    %1251 = vmatpush1.bf16.xpose.msra.mxu0 %v1245
    %1252 = vmatprep.subr.bf16.mxu0 0
    %1253 = vmatpush1.bf16.xpose.msra.mxu0 %v1248
    %1254 = vmatprep.subr.bf16.mxu0 0
    %1255 = vmatpush1.bf16.xpose.msra.mxu0 0
    %1256 = vmatprep.subr.bf16.mxu0 0
    %1257 = vmatpush1.bf16.xpose.msra.mxu0 0
    %1258 = vmatprep.subr.bf16.mxu0 0
    %1259 = vmatpush1.bf16.xpose.msra.mxu0 0
    %1260 = vmatprep.subr.bf16.mxu0 0
    %1261 = vmatpush1.bf16.xpose.msra.mxu0 0
    %1262 = vmatprep.subr.bf16.mxu0 0
    %1263 = vmatpush1.bf16.xpose.msra.mxu0 0
    %1264 = vmatprep.subr.bf16.mxu0 0
    %1265 = vmatpush1.bf16.xpose.msra.mxu0 0
    %1266 = vmatprep.subr.bf16.mxu0 0
    %1267 = vmatpush1.bf16.xpose.msra.mxu0 0
    %1268 = vmatprep.subr.bf16.mxu0 0
    %1269 = vmatpush1.bf16.xpose.msra.mxu0 0
    %1270 = vmatprep.subr.bf16.mxu0 0
    %1271 = vmatpush1.bf16.xpose.msra.mxu0 0
    %1272 = vmatprep.subr.bf16.mxu0 0
    %1273 = vmatpush1.bf16.xpose.msra.mxu0 0
    %1274 = vmatprep.subr.bf16.mxu0 0
    %1275 = vmatpush1.bf16.xpose.msra.mxu0 0
    %1276 = vmatprep.subr.bf16.mxu0 0
    %1277 = vmatpush1.bf16.xpose.msra.mxu0 0
    %1278 = vmatprep.subr.bf16.mxu0 0
    %1279 = vmatpush1.bf16.xpose.msra.mxu0 0
    %1280 = vmatprep.subr.bf16.mxu0 0
    %1281 = vmatpush1.bf16.xpose.msra.mxu0 0
    %1282 = vmatprep.mubr.bf16.mxu0 0
    %1283 = vmatmul.mubr.bf16.gmra.mrb[0].mxu0 %v1239
    %v1284 = vpop.f32.mrb[0].mxu0
    %v1285 = vadd.f32 %v274, %v1284
    %v1286 = vpop.f32.mrb[0].mxu0
    %v1287 = vpop.f32.mrb[0].mxu0
    %v1288 = vadd.f32 %v274, %v1287
    %v1289 = vpop.f32.mrb[0].mxu0
    %1290 = vmatprep.mubr.bf16.mxu0 0
    %1291 = vmatmul.mubr.bf16.gmra.mrb[0].mxu0 %v1242
    %v1292 = vpop.f32.mrb[0].mxu0
    %v1293 = vadd.f32 %v274, %v1292
    %v1294 = vpop.f32.mrb[0].mxu0
    %v1295 = vpop.f32.mrb[0].mxu0
    %v1296 = vadd.f32 %v274, %v1295
    %v1297 = vpop.f32.mrb[0].mxu0
    %1298 = vdwg.mxu0
    %v1300 = vsel %vm1115, %v913, 0
    %v1303 = vsel %vm1115, %v914, 0
    %v1306 = vsel %vm1115, %v1009, 0
    %v1309 = vsel %vm1115, %v1010, 0
    %1311 = vmatprep.subr.bf16.mxu0 0
    %1312 = vmatpush1.bf16.xpose.msra.mxu0 %v1306
    %1313 = vmatprep.subr.bf16.mxu0 0
    %1314 = vmatpush1.bf16.xpose.msra.mxu0 %v1309
    %1315 = vmatprep.subr.bf16.mxu0 0
    %1316 = vmatpush1.bf16.xpose.msra.mxu0 0
    %1317 = vmatprep.subr.bf16.mxu0 0
    %1318 = vmatpush1.bf16.xpose.msra.mxu0 0
    %1319 = vmatprep.subr.bf16.mxu0 0
    %1320 = vmatpush1.bf16.xpose.msra.mxu0 0
    %1321 = vmatprep.subr.bf16.mxu0 0
    %1322 = vmatpush1.bf16.xpose.msra.mxu0 0
    %1323 = vmatprep.subr.bf16.mxu0 0
    %1324 = vmatpush1.bf16.xpose.msra.mxu0 0
    %1325 = vmatprep.subr.bf16.mxu0 0
    %1326 = vmatpush1.bf16.xpose.msra.mxu0 0
    %1327 = vmatprep.subr.bf16.mxu0 0
    %1328 = vmatpush1.bf16.xpose.msra.mxu0 0
    %1329 = vmatprep.subr.bf16.mxu0 0
    %1330 = vmatpush1.bf16.xpose.msra.mxu0 0
    %1331 = vmatprep.subr.bf16.mxu0 0
    %1332 = vmatpush1.bf16.xpose.msra.mxu0 0
    %1333 = vmatprep.subr.bf16.mxu0 0
    %1334 = vmatpush1.bf16.xpose.msra.mxu0 0
    %1335 = vmatprep.subr.bf16.mxu0 0
    %1336 = vmatpush1.bf16.xpose.msra.mxu0 0
    %1337 = vmatprep.subr.bf16.mxu0 0
    %1338 = vmatpush1.bf16.xpose.msra.mxu0 0
    %1339 = vmatprep.subr.bf16.mxu0 0
    %1340 = vmatpush1.bf16.xpose.msra.mxu0 0
    %1341 = vmatprep.subr.bf16.mxu0 0
    %1342 = vmatpush1.bf16.xpose.msra.mxu0 0
    %1343 = vmatprep.mubr.bf16.mxu0 0
    %1344 = vmatmul.mubr.bf16.gmra.mrb[0].mxu0 %v1300
    %v1345 = vpop.f32.mrb[0].mxu0
    %v1346 = vadd.f32 %v274, %v1345
    %v1347 = vpop.f32.mrb[0].mxu0
    %v1348 = vpop.f32.mrb[0].mxu0
    %v1349 = vadd.f32 %v274, %v1348
    %v1350 = vpop.f32.mrb[0].mxu0
    %1351 = vmatprep.mubr.bf16.mxu0 0
    %1352 = vmatmul.mubr.bf16.gmra.mrb[0].mxu0 %v1303
    %v1353 = vpop.f32.mrb[0].mxu0
    %v1354 = vadd.f32 %v274, %v1353
    %v1355 = vpop.f32.mrb[0].mxu0
    %v1356 = vpop.f32.mrb[0].mxu0
    %v1357 = vadd.f32 %v274, %v1356
    %v1358 = vpop.f32.mrb[0].mxu0
    %1359 = vdwg.mxu0
    %v1361 = vsel %vm1115, %v915, 0
    %v1364 = vsel %vm1115, %v916, 0
    %v1367 = vsel %vm1115, %v1011, 0
    %v1370 = vsel %vm1115, %v1012, 0
    %1372 = vmatprep.subr.bf16.mxu0 0
    %1373 = vmatpush1.bf16.xpose.msra.mxu0 %v1367
    %1374 = vmatprep.subr.bf16.mxu0 0
    %1375 = vmatpush1.bf16.xpose.msra.mxu0 %v1370
    %1376 = vmatprep.subr.bf16.mxu0 0
    %1377 = vmatpush1.bf16.xpose.msra.mxu0 0
    %1378 = vmatprep.subr.bf16.mxu0 0
    %1379 = vmatpush1.bf16.xpose.msra.mxu0 0
    %1380 = vmatprep.subr.bf16.mxu0 0
    %1381 = vmatpush1.bf16.xpose.msra.mxu0 0
    %1382 = vmatprep.subr.bf16.mxu0 0
    %1383 = vmatpush1.bf16.xpose.msra.mxu0 0
    %1384 = vmatprep.subr.bf16.mxu0 0
    %1385 = vmatpush1.bf16.xpose.msra.mxu0 0
    %1386 = vmatprep.subr.bf16.mxu0 0
    %1387 = vmatpush1.bf16.xpose.msra.mxu0 0
    %1388 = vmatprep.subr.bf16.mxu0 0
    %1389 = vmatpush1.bf16.xpose.msra.mxu0 0
    %1390 = vmatprep.subr.bf16.mxu0 0
    %1391 = vmatpush1.bf16.xpose.msra.mxu0 0
    %1392 = vmatprep.subr.bf16.mxu0 0
    %1393 = vmatpush1.bf16.xpose.msra.mxu0 0
    %1394 = vmatprep.subr.bf16.mxu0 0
    %1395 = vmatpush1.bf16.xpose.msra.mxu0 0
    %1396 = vmatprep.subr.bf16.mxu0 0
    %1397 = vmatpush1.bf16.xpose.msra.mxu0 0
    %1398 = vmatprep.subr.bf16.mxu0 0
    %1399 = vmatpush1.bf16.xpose.msra.mxu0 0
    %1400 = vmatprep.subr.bf16.mxu0 0
    %1401 = vmatpush1.bf16.xpose.msra.mxu0 0
    %1402 = vmatprep.subr.bf16.mxu0 0
    %1403 = vmatpush1.bf16.xpose.msra.mxu0 0
    %1404 = vmatprep.mubr.bf16.mxu0 0
    %1405 = vmatmul.mubr.bf16.gmra.mrb[0].mxu0 %v1361
    %v1406 = vpop.f32.mrb[0].mxu0
    %v1407 = vadd.f32 %v274, %v1406
    %v1408 = vpop.f32.mrb[0].mxu0
    %v1409 = vpop.f32.mrb[0].mxu0
    %v1410 = vadd.f32 %v274, %v1409
    %v1411 = vpop.f32.mrb[0].mxu0
    %1412 = vmatprep.mubr.bf16.mxu0 0
    %1413 = vmatmul.mubr.bf16.gmra.mrb[0].mxu0 %v1364
    %v1414 = vpop.f32.mrb[0].mxu0
    %v1415 = vadd.f32 %v274, %v1414
    %v1416 = vpop.f32.mrb[0].mxu0
    %v1417 = vpop.f32.mrb[0].mxu0
    %v1418 = vadd.f32 %v274, %v1417
    %v1419 = vpop.f32.mrb[0].mxu0
    %1420 = vdwg.mxu0
    %v1422 = vsel %vm1115, %v917, 0
    %v1425 = vsel %vm1115, %v918, 0
    %v1428 = vsel %vm1115, %v1013, 0
    %v1431 = vsel %vm1115, %v1014, 0
    %1433 = vmatprep.subr.bf16.mxu0 0
    %1434 = vmatpush1.bf16.xpose.msra.mxu0 %v1428
    %1435 = vmatprep.subr.bf16.mxu0 0
    %1436 = vmatpush1.bf16.xpose.msra.mxu0 %v1431
    %1437 = vmatprep.subr.bf16.mxu0 0
    %1438 = vmatpush1.bf16.xpose.msra.mxu0 0
    %1439 = vmatprep.subr.bf16.mxu0 0
    %1440 = vmatpush1.bf16.xpose.msra.mxu0 0
    %1441 = vmatprep.subr.bf16.mxu0 0
    %1442 = vmatpush1.bf16.xpose.msra.mxu0 0
    %1443 = vmatprep.subr.bf16.mxu0 0
    %1444 = vmatpush1.bf16.xpose.msra.mxu0 0
    %1445 = vmatprep.subr.bf16.mxu0 0
    %1446 = vmatpush1.bf16.xpose.msra.mxu0 0
    %1447 = vmatprep.subr.bf16.mxu0 0
    %1448 = vmatpush1.bf16.xpose.msra.mxu0 0
    %1449 = vmatprep.subr.bf16.mxu0 0
    %1450 = vmatpush1.bf16.xpose.msra.mxu0 0
    %1451 = vmatprep.subr.bf16.mxu0 0
    %1452 = vmatpush1.bf16.xpose.msra.mxu0 0
    %1453 = vmatprep.subr.bf16.mxu0 0
    %1454 = vmatpush1.bf16.xpose.msra.mxu0 0
    %1455 = vmatprep.subr.bf16.mxu0 0
    %1456 = vmatpush1.bf16.xpose.msra.mxu0 0
    %1457 = vmatprep.subr.bf16.mxu0 0
    %1458 = vmatpush1.bf16.xpose.msra.mxu0 0
    %1459 = vmatprep.subr.bf16.mxu0 0
    %1460 = vmatpush1.bf16.xpose.msra.mxu0 0
    %1461 = vmatprep.subr.bf16.mxu0 0
    %1462 = vmatpush1.bf16.xpose.msra.mxu0 0
    %1463 = vmatprep.subr.bf16.mxu0 0
    %1464 = vmatpush1.bf16.xpose.msra.mxu0 0
    %1465 = vmatprep.mubr.bf16.mxu0 0
    %1466 = vmatmul.mubr.bf16.gmra.mrb[0].mxu0 %v1422
    %v1467 = vpop.f32.mrb[0].mxu0
    %v1468 = vadd.f32 %v274, %v1467
    %v1469 = vpop.f32.mrb[0].mxu0
    %v1470 = vpop.f32.mrb[0].mxu0
    %v1471 = vadd.f32 %v274, %v1470
    %v1472 = vpop.f32.mrb[0].mxu0
    %1473 = vmatprep.mubr.bf16.mxu0 0
    %1474 = vmatmul.mubr.bf16.gmra.mrb[0].mxu0 %v1425
    %v1475 = vpop.f32.mrb[0].mxu0
    %v1476 = vadd.f32 %v274, %v1475
    %v1477 = vpop.f32.mrb[0].mxu0
    %v1478 = vpop.f32.mrb[0].mxu0
    %v1479 = vadd.f32 %v274, %v1478
    %v1480 = vpop.f32.mrb[0].mxu0
    %1481 = vdwg.mxu0
    %v1483 = vsel %vm1115, %v919, 0
    %v1486 = vsel %vm1115, %v920, 0
    %v1489 = vsel %vm1115, %v1015, 0
    %v1492 = vsel %vm1115, %v1016, 0
    %1494 = vmatprep.subr.bf16.mxu0 0
    %1495 = vmatpush1.bf16.xpose.msra.mxu0 %v1489
    %1496 = vmatprep.subr.bf16.mxu0 0
    %1497 = vmatpush1.bf16.xpose.msra.mxu0 %v1492
    %1498 = vmatprep.subr.bf16.mxu0 0
    %1499 = vmatpush1.bf16.xpose.msra.mxu0 0
    %1500 = vmatprep.subr.bf16.mxu0 0
    %1501 = vmatpush1.bf16.xpose.msra.mxu0 0
    %1502 = vmatprep.subr.bf16.mxu0 0
    %1503 = vmatpush1.bf16.xpose.msra.mxu0 0
    %1504 = vmatprep.subr.bf16.mxu0 0
    %1505 = vmatpush1.bf16.xpose.msra.mxu0 0
    %1506 = vmatprep.subr.bf16.mxu0 0
    %1507 = vmatpush1.bf16.xpose.msra.mxu0 0
    %1508 = vmatprep.subr.bf16.mxu0 0
    %1509 = vmatpush1.bf16.xpose.msra.mxu0 0
    %1510 = vmatprep.subr.bf16.mxu0 0
    %1511 = vmatpush1.bf16.xpose.msra.mxu0 0
    %1512 = vmatprep.subr.bf16.mxu0 0
    %1513 = vmatpush1.bf16.xpose.msra.mxu0 0
    %1514 = vmatprep.subr.bf16.mxu0 0
    %1515 = vmatpush1.bf16.xpose.msra.mxu0 0
    %1516 = vmatprep.subr.bf16.mxu0 0
    %1517 = vmatpush1.bf16.xpose.msra.mxu0 0
    %1518 = vmatprep.subr.bf16.mxu0 0
    %1519 = vmatpush1.bf16.xpose.msra.mxu0 0
    %1520 = vmatprep.subr.bf16.mxu0 0
    %1521 = vmatpush1.bf16.xpose.msra.mxu0 0
    %1522 = vmatprep.subr.bf16.mxu0 0
    %1523 = vmatpush1.bf16.xpose.msra.mxu0 0
    %1524 = vmatprep.subr.bf16.mxu0 0
    %1525 = vmatpush1.bf16.xpose.msra.mxu0 0
    %1526 = vmatprep.mubr.bf16.mxu0 0
    %1527 = vmatmul.mubr.bf16.gmra.mrb[0].mxu0 %v1483
    %v1528 = vpop.f32.mrb[0].mxu0
    %v1529 = vadd.f32 %v274, %v1528
    %v1530 = vpop.f32.mrb[0].mxu0
    %v1531 = vpop.f32.mrb[0].mxu0
    %v1532 = vadd.f32 %v274, %v1531
    %v1533 = vpop.f32.mrb[0].mxu0
    %1534 = vmatprep.mubr.bf16.mxu0 0
    %1535 = vmatmul.mubr.bf16.gmra.mrb[0].mxu0 %v1486
    %v1536 = vpop.f32.mrb[0].mxu0
    %v1537 = vadd.f32 %v274, %v1536
    %v1538 = vpop.f32.mrb[0].mxu0
    %v1539 = vpop.f32.mrb[0].mxu0
    %v1540 = vadd.f32 %v274, %v1539
    %v1541 = vpop.f32.mrb[0].mxu0
    %1542 = vdwg.mxu0
    %v1544 = vsel %vm1115, %v921, 0
    %v1547 = vsel %vm1115, %v922, 0
    %v1550 = vsel %vm1115, %v1017, 0
    %v1553 = vsel %vm1115, %v1018, 0
    %1555 = vmatprep.subr.bf16.mxu0 0
    %1556 = vmatpush1.bf16.xpose.msra.mxu0 %v1550
    %1557 = vmatprep.subr.bf16.mxu0 0
    %1558 = vmatpush1.bf16.xpose.msra.mxu0 %v1553
    %1559 = vmatprep.subr.bf16.mxu0 0
    %1560 = vmatpush1.bf16.xpose.msra.mxu0 0
    %1561 = vmatprep.subr.bf16.mxu0 0
    %1562 = vmatpush1.bf16.xpose.msra.mxu0 0
    %1563 = vmatprep.subr.bf16.mxu0 0
    %1564 = vmatpush1.bf16.xpose.msra.mxu0 0
    %1565 = vmatprep.subr.bf16.mxu0 0
    %1566 = vmatpush1.bf16.xpose.msra.mxu0 0
    %1567 = vmatprep.subr.bf16.mxu0 0
    %1568 = vmatpush1.bf16.xpose.msra.mxu0 0
    %1569 = vmatprep.subr.bf16.mxu0 0
    %1570 = vmatpush1.bf16.xpose.msra.mxu0 0
    %1571 = vmatprep.subr.bf16.mxu0 0
    %1572 = vmatpush1.bf16.xpose.msra.mxu0 0
    %1573 = vmatprep.subr.bf16.mxu0 0
    %1574 = vmatpush1.bf16.xpose.msra.mxu0 0
    %1575 = vmatprep.subr.bf16.mxu0 0
    %1576 = vmatpush1.bf16.xpose.msra.mxu0 0
    %1577 = vmatprep.subr.bf16.mxu0 0
    %1578 = vmatpush1.bf16.xpose.msra.mxu0 0
    %1579 = vmatprep.subr.bf16.mxu0 0
    %1580 = vmatpush1.bf16.xpose.msra.mxu0 0
    %1581 = vmatprep.subr.bf16.mxu0 0
    %1582 = vmatpush1.bf16.xpose.msra.mxu0 0
    %1583 = vmatprep.subr.bf16.mxu0 0
    %1584 = vmatpush1.bf16.xpose.msra.mxu0 0
    %1585 = vmatprep.subr.bf16.mxu0 0
    %1586 = vmatpush1.bf16.xpose.msra.mxu0 0
    %1587 = vmatprep.mubr.bf16.mxu0 0
    %1588 = vmatmul.mubr.bf16.gmra.mrb[0].mxu0 %v1544
    %v1589 = vpop.f32.mrb[0].mxu0
    %v1590 = vadd.f32 %v274, %v1589
    %v1591 = vpop.f32.mrb[0].mxu0
    %v1592 = vpop.f32.mrb[0].mxu0
    %v1593 = vadd.f32 %v274, %v1592
    %v1594 = vpop.f32.mrb[0].mxu0
    %1595 = vmatprep.mubr.bf16.mxu0 0
    %1596 = vmatmul.mubr.bf16.gmra.mrb[0].mxu0 %v1547
    %v1597 = vpop.f32.mrb[0].mxu0
    %v1598 = vadd.f32 %v274, %v1597
    %v1599 = vpop.f32.mrb[0].mxu0
    %v1600 = vpop.f32.mrb[0].mxu0
    %v1601 = vadd.f32 %v274, %v1600
    %v1602 = vpop.f32.mrb[0].mxu0
    %1603 = vdwg.mxu0
    %v1604 = vsel %vm1115, %v1163, -inf
    %1605 = vmax.xlane.f32.xlu0 %v1604
    %v1606 = vpop.xlane.xlu0 %1605
    %v1607 = vsel %vm1115, %v1166, -inf
    %1608 = vmax.xlane.f32.xlu0 %v1607
    %v1609 = vpop.xlane.xlu0 %1608
    %v1610 = vsel %vm1115, %v1171, -inf
    %1611 = vmax.xlane.f32.xlu0 %v1610
    %v1612 = vpop.xlane.xlu0 %1611
    %v1613 = vsel %vm1115, %v1174, -inf
    %1614 = vmax.xlane.f32.xlu0 %v1613
    %v1615 = vpop.xlane.xlu0 %1614
    %v1616 = vsel %vm1115, %v1224, -inf
    %1617 = vmax.xlane.f32.xlu0 %v1616
    %v1618 = vpop.xlane.xlu0 %1617
    %v1619 = vsel %vm1115, %v1227, -inf
    %1620 = vmax.xlane.f32.xlu0 %v1619
    %v1621 = vpop.xlane.xlu0 %1620
    %v1622 = vsel %vm1115, %v1232, -inf
    %1623 = vmax.xlane.f32.xlu0 %v1622
    %v1624 = vpop.xlane.xlu0 %1623
    %v1625 = vsel %vm1115, %v1235, -inf
    %1626 = vmax.xlane.f32.xlu0 %v1625
    %v1627 = vpop.xlane.xlu0 %1626
    %v1628 = vsel %vm1115, %v1285, -inf
    %1629 = vmax.xlane.f32.xlu0 %v1628
    %v1630 = vpop.xlane.xlu0 %1629
    %v1631 = vsel %vm1115, %v1288, -inf
    %1632 = vmax.xlane.f32.xlu0 %v1631
    %v1633 = vpop.xlane.xlu0 %1632
    %v1634 = vsel %vm1115, %v1293, -inf
    %1635 = vmax.xlane.f32.xlu0 %v1634
    %v1636 = vpop.xlane.xlu0 %1635
    %v1637 = vsel %vm1115, %v1296, -inf
    %1638 = vmax.xlane.f32.xlu0 %v1637
    %v1639 = vpop.xlane.xlu0 %1638
    %v1640 = vsel %vm1115, %v1346, -inf
    %1641 = vmax.xlane.f32.xlu0 %v1640
    %v1642 = vpop.xlane.xlu0 %1641
    %v1643 = vsel %vm1115, %v1349, -inf
    %1644 = vmax.xlane.f32.xlu0 %v1643
    %v1645 = vpop.xlane.xlu0 %1644
    %v1646 = vsel %vm1115, %v1354, -inf
    %1647 = vmax.xlane.f32.xlu0 %v1646
    %v1648 = vpop.xlane.xlu0 %1647
    %v1649 = vsel %vm1115, %v1357, -inf
    %1650 = vmax.xlane.f32.xlu0 %v1649
    %v1651 = vpop.xlane.xlu0 %1650
    %v1652 = vsel %vm1115, %v1407, -inf
    %1653 = vmax.xlane.f32.xlu0 %v1652
    %v1654 = vpop.xlane.xlu0 %1653
    %v1655 = vsel %vm1115, %v1410, -inf
    %1656 = vmax.xlane.f32.xlu0 %v1655
    %v1657 = vpop.xlane.xlu0 %1656
    %v1658 = vsel %vm1115, %v1415, -inf
    %1659 = vmax.xlane.f32.xlu0 %v1658
    %v1660 = vpop.xlane.xlu0 %1659
    %v1661 = vsel %vm1115, %v1418, -inf
    %1662 = vmax.xlane.f32.xlu0 %v1661
    %v1663 = vpop.xlane.xlu0 %1662
    %v1664 = vsel %vm1115, %v1468, -inf
    %1665 = vmax.xlane.f32.xlu0 %v1664
    %v1666 = vpop.xlane.xlu0 %1665
    %v1667 = vsel %vm1115, %v1471, -inf
    %1668 = vmax.xlane.f32.xlu0 %v1667
    %v1669 = vpop.xlane.xlu0 %1668
    %v1670 = vsel %vm1115, %v1476, -inf
    %1671 = vmax.xlane.f32.xlu0 %v1670
    %v1672 = vpop.xlane.xlu0 %1671
    %v1673 = vsel %vm1115, %v1479, -inf
    %1674 = vmax.xlane.f32.xlu0 %v1673
    %v1675 = vpop.xlane.xlu0 %1674
    %v1676 = vsel %vm1115, %v1529, -inf
    %1677 = vmax.xlane.f32.xlu0 %v1676
    %v1678 = vpop.xlane.xlu0 %1677
    %v1679 = vsel %vm1115, %v1532, -inf
    %1680 = vmax.xlane.f32.xlu0 %v1679
    %v1681 = vpop.xlane.xlu0 %1680
    %v1682 = vsel %vm1115, %v1537, -inf
    %1683 = vmax.xlane.f32.xlu0 %v1682
    %v1684 = vpop.xlane.xlu0 %1683
    %v1685 = vsel %vm1115, %v1540, -inf
    %1686 = vmax.xlane.f32.xlu0 %v1685
    %v1687 = vpop.xlane.xlu0 %1686
    %v1688 = vsel %vm1115, %v1590, -inf
    %1689 = vmax.xlane.f32.xlu0 %v1688
    %v1690 = vpop.xlane.xlu0 %1689
    %v1691 = vsel %vm1115, %v1593, -inf
    %1692 = vmax.xlane.f32.xlu0 %v1691
    %v1693 = vpop.xlane.xlu0 %1692
    %v1694 = vsel %vm1115, %v1598, -inf
    %1695 = vmax.xlane.f32.xlu0 %v1694
    %v1696 = vpop.xlane.xlu0 %1695
    %v1697 = vsel %vm1115, %v1601, -inf
    %1698 = vmax.xlane.f32.xlu0 %v1697
    %v1699 = vpop.xlane.xlu0 %1698
    %v1700 = vsub.f32 %v1163, %v1606
    %v1701 = vsub.f32 %v1166, %v1609
    %v1702 = vsub.f32 %v1171, %v1612
    %v1703 = vsub.f32 %v1174, %v1615
    %v1704 = vsub.f32 %v1224, %v1618
    %v1705 = vsub.f32 %v1227, %v1621
    %v1706 = vsub.f32 %v1232, %v1624
    %v1707 = vsub.f32 %v1235, %v1627
    %v1708 = vsub.f32 %v1285, %v1630
    %v1709 = vsub.f32 %v1288, %v1633
    %v1710 = vsub.f32 %v1293, %v1636
    %v1711 = vsub.f32 %v1296, %v1639
    %v1712 = vsub.f32 %v1346, %v1642
    %v1713 = vsub.f32 %v1349, %v1645
    %v1714 = vsub.f32 %v1354, %v1648
    %v1715 = vsub.f32 %v1357, %v1651
    %v1716 = vsub.f32 %v1407, %v1654
    %v1717 = vsub.f32 %v1410, %v1657
    %v1718 = vsub.f32 %v1415, %v1660
    %v1719 = vsub.f32 %v1418, %v1663
    %v1720 = vsub.f32 %v1468, %v1666
    %v1721 = vsub.f32 %v1471, %v1669
    %v1722 = vsub.f32 %v1476, %v1672
    %v1723 = vsub.f32 %v1479, %v1675
    %v1724 = vsub.f32 %v1529, %v1678
    %v1725 = vsub.f32 %v1532, %v1681
    %v1726 = vsub.f32 %v1537, %v1684
    %v1727 = vsub.f32 %v1540, %v1687
    %v1728 = vsub.f32 %v1590, %v1690
    %v1729 = vsub.f32 %v1593, %v1693
    %v1730 = vsub.f32 %v1598, %v1696
    %v1731 = vsub.f32 %v1601, %v1699
    %v1732 = vmul.f32 %v1700, 1.442695
    %v1733 = vpow.pop %v1732
    %v1734 = vmul.f32 %v1701, 1.442695
    %v1735 = vpow.pop %v1734
    %v1736 = vmul.f32 %v1702, 1.442695
    %v1737 = vpow.pop %v1736
    %v1738 = vmul.f32 %v1703, 1.442695
    %v1739 = vpow.pop %v1738
    %v1740 = vmul.f32 %v1704, 1.442695
    %v1741 = vpow.pop %v1740
    %v1742 = vmul.f32 %v1705, 1.442695
    %v1743 = vpow.pop %v1742
    %v1744 = vmul.f32 %v1706, 1.442695
    %v1745 = vpow.pop %v1744
    %v1746 = vmul.f32 %v1707, 1.442695
    %v1747 = vpow.pop %v1746
    %v1748 = vmul.f32 %v1708, 1.442695
    %v1749 = vpow.pop %v1748
    %v1750 = vmul.f32 %v1709, 1.442695
    %v1751 = vpow.pop %v1750
    %v1752 = vmul.f32 %v1710, 1.442695
    %v1753 = vpow.pop %v1752
    %v1754 = vmul.f32 %v1711, 1.442695
    %v1755 = vpow.pop %v1754
    %v1756 = vmul.f32 %v1712, 1.442695
    %v1757 = vpow.pop %v1756
    %v1758 = vmul.f32 %v1713, 1.442695
    %v1759 = vpow.pop %v1758
    %v1760 = vmul.f32 %v1714, 1.442695
    %v1761 = vpow.pop %v1760
    %v1762 = vmul.f32 %v1715, 1.442695
    %v1763 = vpow.pop %v1762
    %v1764 = vmul.f32 %v1716, 1.442695
    %v1765 = vpow.pop %v1764
    %v1766 = vmul.f32 %v1717, 1.442695
    %v1767 = vpow.pop %v1766
    %v1768 = vmul.f32 %v1718, 1.442695
    %v1769 = vpow.pop %v1768
    %v1770 = vmul.f32 %v1719, 1.442695
    %v1771 = vpow.pop %v1770
    %v1772 = vmul.f32 %v1720, 1.442695
    %v1773 = vpow.pop %v1772
    %v1774 = vmul.f32 %v1721, 1.442695
    %v1775 = vpow.pop %v1774
    %v1776 = vmul.f32 %v1722, 1.442695
    %v1777 = vpow.pop %v1776
    %v1778 = vmul.f32 %v1723, 1.442695
    %v1779 = vpow.pop %v1778
    %v1780 = vmul.f32 %v1724, 1.442695
    %v1781 = vpow.pop %v1780
    %v1782 = vmul.f32 %v1725, 1.442695
    %v1783 = vpow.pop %v1782
    %v1784 = vmul.f32 %v1726, 1.442695
    %v1785 = vpow.pop %v1784
    %v1786 = vmul.f32 %v1727, 1.442695
    %v1787 = vpow.pop %v1786
    %v1788 = vmul.f32 %v1728, 1.442695
    %v1789 = vpow.pop %v1788
    %v1790 = vmul.f32 %v1729, 1.442695
    %v1791 = vpow.pop %v1790
    %v1792 = vmul.f32 %v1730, 1.442695
    %v1793 = vpow.pop %v1792
    %v1794 = vmul.f32 %v1731, 1.442695
    %v1795 = vpow.pop %v1794
    %v1796 = vsel %vm1115, %v1733, 0.0
    %1797 = vadd.xlane.f32.xlu0 %v1796
    %v1798 = vpop.xlane.xlu0 %1797
    %v1799 = vsel %vm1115, %v1735, 0.0
    %1800 = vadd.xlane.f32.xlu0 %v1799
    %v1801 = vpop.xlane.xlu0 %1800
    %v1802 = vsel %vm1115, %v1737, 0.0
    %1803 = vadd.xlane.f32.xlu0 %v1802
    %v1804 = vpop.xlane.xlu0 %1803
    %v1805 = vsel %vm1115, %v1739, 0.0
    %1806 = vadd.xlane.f32.xlu0 %v1805
    %v1807 = vpop.xlane.xlu0 %1806
    %v1808 = vsel %vm1115, %v1741, 0.0
    %1809 = vadd.xlane.f32.xlu0 %v1808
    %v1810 = vpop.xlane.xlu0 %1809
    %v1811 = vsel %vm1115, %v1743, 0.0
    %1812 = vadd.xlane.f32.xlu0 %v1811
    %v1813 = vpop.xlane.xlu0 %1812
    %v1814 = vsel %vm1115, %v1745, 0.0
    %1815 = vadd.xlane.f32.xlu0 %v1814
    %v1816 = vpop.xlane.xlu0 %1815
    %v1817 = vsel %vm1115, %v1747, 0.0
    %1818 = vadd.xlane.f32.xlu0 %v1817
    %v1819 = vpop.xlane.xlu0 %1818
    %v1820 = vsel %vm1115, %v1749, 0.0
    %1821 = vadd.xlane.f32.xlu0 %v1820
    %v1822 = vpop.xlane.xlu0 %1821
    %v1823 = vsel %vm1115, %v1751, 0.0
    %1824 = vadd.xlane.f32.xlu0 %v1823
    %v1825 = vpop.xlane.xlu0 %1824
    %v1826 = vsel %vm1115, %v1753, 0.0
    %1827 = vadd.xlane.f32.xlu0 %v1826
    %v1828 = vpop.xlane.xlu0 %1827
    %v1829 = vsel %vm1115, %v1755, 0.0
    %1830 = vadd.xlane.f32.xlu0 %v1829
    %v1831 = vpop.xlane.xlu0 %1830
    %v1832 = vsel %vm1115, %v1757, 0.0
    %1833 = vadd.xlane.f32.xlu0 %v1832
    %v1834 = vpop.xlane.xlu0 %1833
    %v1835 = vsel %vm1115, %v1759, 0.0
    %1836 = vadd.xlane.f32.xlu0 %v1835
    %v1837 = vpop.xlane.xlu0 %1836
    %v1838 = vsel %vm1115, %v1761, 0.0
    %1839 = vadd.xlane.f32.xlu0 %v1838
    %v1840 = vpop.xlane.xlu0 %1839
    %v1841 = vsel %vm1115, %v1763, 0.0
    %1842 = vadd.xlane.f32.xlu0 %v1841
    %v1843 = vpop.xlane.xlu0 %1842
    %v1844 = vsel %vm1115, %v1765, 0.0
    %1845 = vadd.xlane.f32.xlu0 %v1844
    %v1846 = vpop.xlane.xlu0 %1845
    %v1847 = vsel %vm1115, %v1767, 0.0
    %1848 = vadd.xlane.f32.xlu0 %v1847
    %v1849 = vpop.xlane.xlu0 %1848
    %v1850 = vsel %vm1115, %v1769, 0.0
    %1851 = vadd.xlane.f32.xlu0 %v1850
    %v1852 = vpop.xlane.xlu0 %1851
    %v1853 = vsel %vm1115, %v1771, 0.0
    %1854 = vadd.xlane.f32.xlu0 %v1853
    %v1855 = vpop.xlane.xlu0 %1854
    %v1856 = vsel %vm1115, %v1773, 0.0
    %1857 = vadd.xlane.f32.xlu0 %v1856
    %v1858 = vpop.xlane.xlu0 %1857
    %v1859 = vsel %vm1115, %v1775, 0.0
    %1860 = vadd.xlane.f32.xlu0 %v1859
    %v1861 = vpop.xlane.xlu0 %1860
    %v1862 = vsel %vm1115, %v1777, 0.0
    %1863 = vadd.xlane.f32.xlu0 %v1862
    %v1864 = vpop.xlane.xlu0 %1863
    %v1865 = vsel %vm1115, %v1779, 0.0
    %1866 = vadd.xlane.f32.xlu0 %v1865
    %v1867 = vpop.xlane.xlu0 %1866
    %v1868 = vsel %vm1115, %v1781, 0.0
    %1869 = vadd.xlane.f32.xlu0 %v1868
    %v1870 = vpop.xlane.xlu0 %1869
    %v1871 = vsel %vm1115, %v1783, 0.0
    %1872 = vadd.xlane.f32.xlu0 %v1871
    %v1873 = vpop.xlane.xlu0 %1872
    %v1874 = vsel %vm1115, %v1785, 0.0
    %1875 = vadd.xlane.f32.xlu0 %v1874
    %v1876 = vpop.xlane.xlu0 %1875
    %v1877 = vsel %vm1115, %v1787, 0.0
    %1878 = vadd.xlane.f32.xlu0 %v1877
    %v1879 = vpop.xlane.xlu0 %1878
    %v1880 = vsel %vm1115, %v1789, 0.0
    %1881 = vadd.xlane.f32.xlu0 %v1880
    %v1882 = vpop.xlane.xlu0 %1881
    %v1883 = vsel %vm1115, %v1791, 0.0
    %1884 = vadd.xlane.f32.xlu0 %v1883
    %v1885 = vpop.xlane.xlu0 %1884
    %v1886 = vsel %vm1115, %v1793, 0.0
    %1887 = vadd.xlane.f32.xlu0 %v1886
    %v1888 = vpop.xlane.xlu0 %1887
    %v1889 = vsel %vm1115, %v1795, 0.0
    %1890 = vadd.xlane.f32.xlu0 %v1889
    %v1891 = vpop.xlane.xlu0 %1890
    %v1892 = vrcp.pop %v1798
    %v1893 = vrcp.pop %v1801
    %v1894 = vrcp.pop %v1804
    %v1895 = vrcp.pop %v1807
    %v1896 = vrcp.pop %v1810
    %v1897 = vrcp.pop %v1813
    %v1898 = vrcp.pop %v1816
    %v1899 = vrcp.pop %v1819
    %v1900 = vrcp.pop %v1822
    %v1901 = vrcp.pop %v1825
    %v1902 = vrcp.pop %v1828
    %v1903 = vrcp.pop %v1831
    %v1904 = vrcp.pop %v1834
    %v1905 = vrcp.pop %v1837
    %v1906 = vrcp.pop %v1840
    %v1907 = vrcp.pop %v1843
    %v1908 = vrcp.pop %v1846
    %v1909 = vrcp.pop %v1849
    %v1910 = vrcp.pop %v1852
    %v1911 = vrcp.pop %v1855
    %v1912 = vrcp.pop %v1858
    %v1913 = vrcp.pop %v1861
    %v1914 = vrcp.pop %v1864
    %v1915 = vrcp.pop %v1867
    %v1916 = vrcp.pop %v1870
    %v1917 = vrcp.pop %v1873
    %v1918 = vrcp.pop %v1876
    %v1919 = vrcp.pop %v1879
    %v1920 = vrcp.pop %v1882
    %v1921 = vrcp.pop %v1885
    %v1922 = vrcp.pop %v1888
    %v1923 = vrcp.pop %v1891
    %v1924 = vmul.f32 %v1733, %v1892
    %v1925 = vmul.f32 %v1735, %v1893
    %v1926 = vmul.f32 %v1737, %v1894
    %v1927 = vmul.f32 %v1739, %v1895
    %v1928 = vmul.f32 %v1741, %v1896
    %v1929 = vmul.f32 %v1743, %v1897
    %v1930 = vmul.f32 %v1745, %v1898
    %v1931 = vmul.f32 %v1747, %v1899
    %v1932 = vmul.f32 %v1749, %v1900
    %v1933 = vmul.f32 %v1751, %v1901
    %v1934 = vmul.f32 %v1753, %v1902
    %v1935 = vmul.f32 %v1755, %v1903
    %v1936 = vmul.f32 %v1757, %v1904
    %v1937 = vmul.f32 %v1759, %v1905
    %v1938 = vmul.f32 %v1761, %v1906
    %v1939 = vmul.f32 %v1763, %v1907
    %v1940 = vmul.f32 %v1765, %v1908
    %v1941 = vmul.f32 %v1767, %v1909
    %v1942 = vmul.f32 %v1769, %v1910
    %v1943 = vmul.f32 %v1771, %v1911
    %v1944 = vmul.f32 %v1773, %v1912
    %v1945 = vmul.f32 %v1775, %v1913
    %v1946 = vmul.f32 %v1777, %v1914
    %v1947 = vmul.f32 %v1779, %v1915
    %v1948 = vmul.f32 %v1781, %v1916
    %v1949 = vmul.f32 %v1783, %v1917
    %v1950 = vmul.f32 %v1785, %v1918
    %v1951 = vmul.f32 %v1787, %v1919
    %v1952 = vmul.f32 %v1789, %v1920
    %v1953 = vmul.f32 %v1791, %v1921
    %v1954 = vmul.f32 %v1793, %v1922
    %v1955 = vmul.f32 %v1795, %v1923
    %v1956 = vpack.c.bf16 %v1925, %v1924
    %v1957 = vpack.c.bf16 %v1927, %v1926
    %v1958 = vpack.c.bf16 %v1929, %v1928
    %v1959 = vpack.c.bf16 %v1931, %v1930
    %v1960 = vpack.c.bf16 %v1933, %v1932
    %v1961 = vpack.c.bf16 %v1935, %v1934
    %v1962 = vpack.c.bf16 %v1937, %v1936
    %v1963 = vpack.c.bf16 %v1939, %v1938
    %v1964 = vpack.c.bf16 %v1941, %v1940
    %v1965 = vpack.c.bf16 %v1943, %v1942
    %v1966 = vpack.c.bf16 %v1945, %v1944
    %v1967 = vpack.c.bf16 %v1947, %v1946
    %v1968 = vpack.c.bf16 %v1949, %v1948
    %v1969 = vpack.c.bf16 %v1951, %v1950
    %v1970 = vpack.c.bf16 %v1953, %v1952
    %v1971 = vpack.c.bf16 %v1955, %v1954
    %v1973 = vsel %vm1115, %v1956, 0
    %v1976 = vsel %vm1115, %v1957, 0
    %1978 = vmatprep.subr.bf16.mxu0 0
    %1979 = vmatpush1.bf16.msra.mxu0 %v1099
    %1980 = vmatprep.subr.bf16.mxu0 0
    %1981 = vmatpush1.bf16.msra.mxu0 %v1100
    %1982 = vmatprep.subr.bf16.mxu0 0
    %1983 = vmatpush1.bf16.msra.mxu0 0
    %1984 = vmatprep.subr.bf16.mxu0 0
    %1985 = vmatpush1.bf16.msra.mxu0 0
    %1986 = vmatprep.subr.bf16.mxu0 0
    %1987 = vmatpush1.bf16.msra.mxu0 0
    %1988 = vmatprep.subr.bf16.mxu0 0
    %1989 = vmatpush1.bf16.msra.mxu0 0
    %1990 = vmatprep.subr.bf16.mxu0 0
    %1991 = vmatpush1.bf16.msra.mxu0 0
    %1992 = vmatprep.subr.bf16.mxu0 0
    %1993 = vmatpush1.bf16.msra.mxu0 0
    %1994 = vmatprep.subr.bf16.mxu0 0
    %1995 = vmatpush1.bf16.msra.mxu0 0
    %1996 = vmatprep.subr.bf16.mxu0 0
    %1997 = vmatpush1.bf16.msra.mxu0 0
    %1998 = vmatprep.subr.bf16.mxu0 0
    %1999 = vmatpush1.bf16.msra.mxu0 0
    %2000 = vmatprep.subr.bf16.mxu0 0
    %2001 = vmatpush1.bf16.msra.mxu0 0
    %2002 = vmatprep.subr.bf16.mxu0 0
    %2003 = vmatpush1.bf16.msra.mxu0 0
    %2004 = vmatprep.subr.bf16.mxu0 0
    %2005 = vmatpush1.bf16.msra.mxu0 0
    %2006 = vmatprep.subr.bf16.mxu0 0
    %2007 = vmatpush1.bf16.msra.mxu0 0
    %2008 = vmatprep.subr.bf16.mxu0 0
    %2009 = vmatpush1.bf16.msra.mxu0 0
    %2010 = vmatprep.mubr.bf16.mxu0 0
    %2011 = vmatmul.mubr.bf16.gmra.mrb[0].mxu0 %v1973
    %v2012 = vpop.f32.mrb[0].mxu0
    %v2013 = vadd.f32 0.0, %v2012
    %v2014 = vpop.f32.mrb[0].mxu0
    %v2015 = vpop.f32.mrb[0].mxu0
    %v2016 = vadd.f32 0.0, %v2015
    %v2017 = vpop.f32.mrb[0].mxu0
    %2018 = vmatprep.mubr.bf16.mxu0 0
    %2019 = vmatmul.mubr.bf16.gmra.mrb[0].mxu0 %v1976
    %v2020 = vpop.f32.mrb[0].mxu0
    %v2021 = vadd.f32 0.0, %v2020
    %v2022 = vpop.f32.mrb[0].mxu0
    %v2023 = vpop.f32.mrb[0].mxu0
    %v2024 = vadd.f32 0.0, %v2023
    %v2025 = vpop.f32.mrb[0].mxu0
    %2026 = vdwg.mxu0
    %v2028 = vsel %vm1115, %v1958, 0
    %v2031 = vsel %vm1115, %v1959, 0
    %2033 = vmatprep.subr.bf16.mxu0 0
    %2034 = vmatpush1.bf16.msra.mxu0 %v1101
    %2035 = vmatprep.subr.bf16.mxu0 0
    %2036 = vmatpush1.bf16.msra.mxu0 %v1102
    %2037 = vmatprep.subr.bf16.mxu0 0
    %2038 = vmatpush1.bf16.msra.mxu0 0
    %2039 = vmatprep.subr.bf16.mxu0 0
    %2040 = vmatpush1.bf16.msra.mxu0 0
    %2041 = vmatprep.subr.bf16.mxu0 0
    %2042 = vmatpush1.bf16.msra.mxu0 0
    %2043 = vmatprep.subr.bf16.mxu0 0
    %2044 = vmatpush1.bf16.msra.mxu0 0
    %2045 = vmatprep.subr.bf16.mxu0 0
    %2046 = vmatpush1.bf16.msra.mxu0 0
    %2047 = vmatprep.subr.bf16.mxu0 0
    %2048 = vmatpush1.bf16.msra.mxu0 0
    %2049 = vmatprep.subr.bf16.mxu0 0
    %2050 = vmatpush1.bf16.msra.mxu0 0
    %2051 = vmatprep.subr.bf16.mxu0 0
    %2052 = vmatpush1.bf16.msra.mxu0 0
    %2053 = vmatprep.subr.bf16.mxu0 0
    %2054 = vmatpush1.bf16.msra.mxu0 0
    %2055 = vmatprep.subr.bf16.mxu0 0
    %2056 = vmatpush1.bf16.msra.mxu0 0
    %2057 = vmatprep.subr.bf16.mxu0 0
    %2058 = vmatpush1.bf16.msra.mxu0 0
    %2059 = vmatprep.subr.bf16.mxu0 0
    %2060 = vmatpush1.bf16.msra.mxu0 0
    %2061 = vmatprep.subr.bf16.mxu0 0
    %2062 = vmatpush1.bf16.msra.mxu0 0
    %2063 = vmatprep.subr.bf16.mxu0 0
    %2064 = vmatpush1.bf16.msra.mxu0 0
    %2065 = vmatprep.mubr.bf16.mxu0 0
    %2066 = vmatmul.mubr.bf16.gmra.mrb[0].mxu0 %v2028
    %v2067 = vpop.f32.mrb[0].mxu0
    %v2068 = vadd.f32 0.0, %v2067
    %v2069 = vpop.f32.mrb[0].mxu0
    %v2070 = vpop.f32.mrb[0].mxu0
    %v2071 = vadd.f32 0.0, %v2070
    %v2072 = vpop.f32.mrb[0].mxu0
    %2073 = vmatprep.mubr.bf16.mxu0 0
    %2074 = vmatmul.mubr.bf16.gmra.mrb[0].mxu0 %v2031
    %v2075 = vpop.f32.mrb[0].mxu0
    %v2076 = vadd.f32 0.0, %v2075
    %v2077 = vpop.f32.mrb[0].mxu0
    %v2078 = vpop.f32.mrb[0].mxu0
    %v2079 = vadd.f32 0.0, %v2078
    %v2080 = vpop.f32.mrb[0].mxu0
    %2081 = vdwg.mxu0
    %v2083 = vsel %vm1115, %v1960, 0
    %v2086 = vsel %vm1115, %v1961, 0
    %2088 = vmatprep.subr.bf16.mxu0 0
    %2089 = vmatpush1.bf16.msra.mxu0 %v1103
    %2090 = vmatprep.subr.bf16.mxu0 0
    %2091 = vmatpush1.bf16.msra.mxu0 %v1104
    %2092 = vmatprep.subr.bf16.mxu0 0
    %2093 = vmatpush1.bf16.msra.mxu0 0
    %2094 = vmatprep.subr.bf16.mxu0 0
    %2095 = vmatpush1.bf16.msra.mxu0 0
    %2096 = vmatprep.subr.bf16.mxu0 0
    %2097 = vmatpush1.bf16.msra.mxu0 0
    %2098 = vmatprep.subr.bf16.mxu0 0
    %2099 = vmatpush1.bf16.msra.mxu0 0
    %2100 = vmatprep.subr.bf16.mxu0 0
    %2101 = vmatpush1.bf16.msra.mxu0 0
    %2102 = vmatprep.subr.bf16.mxu0 0
    %2103 = vmatpush1.bf16.msra.mxu0 0
    %2104 = vmatprep.subr.bf16.mxu0 0
    %2105 = vmatpush1.bf16.msra.mxu0 0
    %2106 = vmatprep.subr.bf16.mxu0 0
    %2107 = vmatpush1.bf16.msra.mxu0 0
    %2108 = vmatprep.subr.bf16.mxu0 0
    %2109 = vmatpush1.bf16.msra.mxu0 0
    %2110 = vmatprep.subr.bf16.mxu0 0
    %2111 = vmatpush1.bf16.msra.mxu0 0
    %2112 = vmatprep.subr.bf16.mxu0 0
    %2113 = vmatpush1.bf16.msra.mxu0 0
    %2114 = vmatprep.subr.bf16.mxu0 0
    %2115 = vmatpush1.bf16.msra.mxu0 0
    %2116 = vmatprep.subr.bf16.mxu0 0
    %2117 = vmatpush1.bf16.msra.mxu0 0
    %2118 = vmatprep.subr.bf16.mxu0 0
    %2119 = vmatpush1.bf16.msra.mxu0 0
    %2120 = vmatprep.mubr.bf16.mxu0 0
    %2121 = vmatmul.mubr.bf16.gmra.mrb[0].mxu0 %v2083
    %v2122 = vpop.f32.mrb[0].mxu0
    %v2123 = vadd.f32 0.0, %v2122
    %v2124 = vpop.f32.mrb[0].mxu0
    %v2125 = vpop.f32.mrb[0].mxu0
    %v2126 = vadd.f32 0.0, %v2125
    %v2127 = vpop.f32.mrb[0].mxu0
    %2128 = vmatprep.mubr.bf16.mxu0 0
    %2129 = vmatmul.mubr.bf16.gmra.mrb[0].mxu0 %v2086
    %v2130 = vpop.f32.mrb[0].mxu0
    %v2131 = vadd.f32 0.0, %v2130
    %v2132 = vpop.f32.mrb[0].mxu0
    %v2133 = vpop.f32.mrb[0].mxu0
    %v2134 = vadd.f32 0.0, %v2133
    %v2135 = vpop.f32.mrb[0].mxu0
    %2136 = vdwg.mxu0
    %v2138 = vsel %vm1115, %v1962, 0
    %v2141 = vsel %vm1115, %v1963, 0
    %2143 = vmatprep.subr.bf16.mxu0 0
    %2144 = vmatpush1.bf16.msra.mxu0 %v1105
    %2145 = vmatprep.subr.bf16.mxu0 0
    %2146 = vmatpush1.bf16.msra.mxu0 %v1106
    %2147 = vmatprep.subr.bf16.mxu0 0
    %2148 = vmatpush1.bf16.msra.mxu0 0
    %2149 = vmatprep.subr.bf16.mxu0 0
    %2150 = vmatpush1.bf16.msra.mxu0 0
    %2151 = vmatprep.subr.bf16.mxu0 0
    %2152 = vmatpush1.bf16.msra.mxu0 0
    %2153 = vmatprep.subr.bf16.mxu0 0
    %2154 = vmatpush1.bf16.msra.mxu0 0
    %2155 = vmatprep.subr.bf16.mxu0 0
    %2156 = vmatpush1.bf16.msra.mxu0 0
    %2157 = vmatprep.subr.bf16.mxu0 0
    %2158 = vmatpush1.bf16.msra.mxu0 0
    %2159 = vmatprep.subr.bf16.mxu0 0
    %2160 = vmatpush1.bf16.msra.mxu0 0
    %2161 = vmatprep.subr.bf16.mxu0 0
    %2162 = vmatpush1.bf16.msra.mxu0 0
    %2163 = vmatprep.subr.bf16.mxu0 0
    %2164 = vmatpush1.bf16.msra.mxu0 0
    %2165 = vmatprep.subr.bf16.mxu0 0
    %2166 = vmatpush1.bf16.msra.mxu0 0
    %2167 = vmatprep.subr.bf16.mxu0 0
    %2168 = vmatpush1.bf16.msra.mxu0 0
    %2169 = vmatprep.subr.bf16.mxu0 0
    %2170 = vmatpush1.bf16.msra.mxu0 0
    %2171 = vmatprep.subr.bf16.mxu0 0
    %2172 = vmatpush1.bf16.msra.mxu0 0
    %2173 = vmatprep.subr.bf16.mxu0 0
    %2174 = vmatpush1.bf16.msra.mxu0 0
    %2175 = vmatprep.mubr.bf16.mxu0 0
    %2176 = vmatmul.mubr.bf16.gmra.mrb[0].mxu0 %v2138
    %v2177 = vpop.f32.mrb[0].mxu0
    %v2178 = vadd.f32 0.0, %v2177
    %v2179 = vpop.f32.mrb[0].mxu0
    %v2180 = vpop.f32.mrb[0].mxu0
    %v2181 = vadd.f32 0.0, %v2180
    %v2182 = vpop.f32.mrb[0].mxu0
    %2183 = vmatprep.mubr.bf16.mxu0 0
    %2184 = vmatmul.mubr.bf16.gmra.mrb[0].mxu0 %v2141
    %v2185 = vpop.f32.mrb[0].mxu0
    %v2186 = vadd.f32 0.0, %v2185
    %v2187 = vpop.f32.mrb[0].mxu0
    %v2188 = vpop.f32.mrb[0].mxu0
    %v2189 = vadd.f32 0.0, %v2188
    %v2190 = vpop.f32.mrb[0].mxu0
    %2191 = vdwg.mxu0
    %v2193 = vsel %vm1115, %v1964, 0
    %v2196 = vsel %vm1115, %v1965, 0
    %2198 = vmatprep.subr.bf16.mxu0 0
    %2199 = vmatpush1.bf16.msra.mxu0 %v1107
    %2200 = vmatprep.subr.bf16.mxu0 0
    %2201 = vmatpush1.bf16.msra.mxu0 %v1108
    %2202 = vmatprep.subr.bf16.mxu0 0
    %2203 = vmatpush1.bf16.msra.mxu0 0
    %2204 = vmatprep.subr.bf16.mxu0 0
    %2205 = vmatpush1.bf16.msra.mxu0 0
    %2206 = vmatprep.subr.bf16.mxu0 0
    %2207 = vmatpush1.bf16.msra.mxu0 0
    %2208 = vmatprep.subr.bf16.mxu0 0
    %2209 = vmatpush1.bf16.msra.mxu0 0
    %2210 = vmatprep.subr.bf16.mxu0 0
    %2211 = vmatpush1.bf16.msra.mxu0 0
    %2212 = vmatprep.subr.bf16.mxu0 0
    %2213 = vmatpush1.bf16.msra.mxu0 0
    %2214 = vmatprep.subr.bf16.mxu0 0
    %2215 = vmatpush1.bf16.msra.mxu0 0
    %2216 = vmatprep.subr.bf16.mxu0 0
    %2217 = vmatpush1.bf16.msra.mxu0 0
    %2218 = vmatprep.subr.bf16.mxu0 0
    %2219 = vmatpush1.bf16.msra.mxu0 0
    %2220 = vmatprep.subr.bf16.mxu0 0
    %2221 = vmatpush1.bf16.msra.mxu0 0
    %2222 = vmatprep.subr.bf16.mxu0 0
    %2223 = vmatpush1.bf16.msra.mxu0 0
    %2224 = vmatprep.subr.bf16.mxu0 0
    %2225 = vmatpush1.bf16.msra.mxu0 0
    %2226 = vmatprep.subr.bf16.mxu0 0
    %2227 = vmatpush1.bf16.msra.mxu0 0
    %2228 = vmatprep.subr.bf16.mxu0 0
    %2229 = vmatpush1.bf16.msra.mxu0 0
    %2230 = vmatprep.mubr.bf16.mxu0 0
    %2231 = vmatmul.mubr.bf16.gmra.mrb[0].mxu0 %v2193
    %v2232 = vpop.f32.mrb[0].mxu0
    %v2233 = vadd.f32 0.0, %v2232
    %v2234 = vpop.f32.mrb[0].mxu0
    %v2235 = vpop.f32.mrb[0].mxu0
    %v2236 = vadd.f32 0.0, %v2235
    %v2237 = vpop.f32.mrb[0].mxu0
    %2238 = vmatprep.mubr.bf16.mxu0 0
    %2239 = vmatmul.mubr.bf16.gmra.mrb[0].mxu0 %v2196
    %v2240 = vpop.f32.mrb[0].mxu0
    %v2241 = vadd.f32 0.0, %v2240
    %v2242 = vpop.f32.mrb[0].mxu0
    %v2243 = vpop.f32.mrb[0].mxu0
    %v2244 = vadd.f32 0.0, %v2243
    %v2245 = vpop.f32.mrb[0].mxu0
    %2246 = vdwg.mxu0
    %v2248 = vsel %vm1115, %v1966, 0
    %v2251 = vsel %vm1115, %v1967, 0
    %2253 = vmatprep.subr.bf16.mxu0 0
    %2254 = vmatpush1.bf16.msra.mxu0 %v1109
    %2255 = vmatprep.subr.bf16.mxu0 0
    %2256 = vmatpush1.bf16.msra.mxu0 %v1110
    %2257 = vmatprep.subr.bf16.mxu0 0
    %2258 = vmatpush1.bf16.msra.mxu0 0
    %2259 = vmatprep.subr.bf16.mxu0 0
    %2260 = vmatpush1.bf16.msra.mxu0 0
    %2261 = vmatprep.subr.bf16.mxu0 0
    %2262 = vmatpush1.bf16.msra.mxu0 0
    %2263 = vmatprep.subr.bf16.mxu0 0
    %2264 = vmatpush1.bf16.msra.mxu0 0
    %2265 = vmatprep.subr.bf16.mxu0 0
    %2266 = vmatpush1.bf16.msra.mxu0 0
    %2267 = vmatprep.subr.bf16.mxu0 0
    %2268 = vmatpush1.bf16.msra.mxu0 0
    %2269 = vmatprep.subr.bf16.mxu0 0
    %2270 = vmatpush1.bf16.msra.mxu0 0
    %2271 = vmatprep.subr.bf16.mxu0 0
    %2272 = vmatpush1.bf16.msra.mxu0 0
    %2273 = vmatprep.subr.bf16.mxu0 0
    %2274 = vmatpush1.bf16.msra.mxu0 0
    %2275 = vmatprep.subr.bf16.mxu0 0
    %2276 = vmatpush1.bf16.msra.mxu0 0
    %2277 = vmatprep.subr.bf16.mxu0 0
    %2278 = vmatpush1.bf16.msra.mxu0 0
    %2279 = vmatprep.subr.bf16.mxu0 0
    %2280 = vmatpush1.bf16.msra.mxu0 0
    %2281 = vmatprep.subr.bf16.mxu0 0
    %2282 = vmatpush1.bf16.msra.mxu0 0
    %2283 = vmatprep.subr.bf16.mxu0 0
    %2284 = vmatpush1.bf16.msra.mxu0 0
    %2285 = vmatprep.mubr.bf16.mxu0 0
    %2286 = vmatmul.mubr.bf16.gmra.mrb[0].mxu0 %v2248
    %v2287 = vpop.f32.mrb[0].mxu0
    %v2288 = vadd.f32 0.0, %v2287
    %v2289 = vpop.f32.mrb[0].mxu0
    %v2290 = vpop.f32.mrb[0].mxu0
    %v2291 = vadd.f32 0.0, %v2290
    %v2292 = vpop.f32.mrb[0].mxu0
    %2293 = vmatprep.mubr.bf16.mxu0 0
    %2294 = vmatmul.mubr.bf16.gmra.mrb[0].mxu0 %v2251
    %v2295 = vpop.f32.mrb[0].mxu0
    %v2296 = vadd.f32 0.0, %v2295
    %v2297 = vpop.f32.mrb[0].mxu0
    %v2298 = vpop.f32.mrb[0].mxu0
    %v2299 = vadd.f32 0.0, %v2298
    %v2300 = vpop.f32.mrb[0].mxu0
    %2301 = vdwg.mxu0
    %v2303 = vsel %vm1115, %v1968, 0
    %v2306 = vsel %vm1115, %v1969, 0
    %2308 = vmatprep.subr.bf16.mxu0 0
    %2309 = vmatpush1.bf16.msra.mxu0 %v1111
    %2310 = vmatprep.subr.bf16.mxu0 0
    %2311 = vmatpush1.bf16.msra.mxu0 %v1112
    %2312 = vmatprep.subr.bf16.mxu0 0
    %2313 = vmatpush1.bf16.msra.mxu0 0
    %2314 = vmatprep.subr.bf16.mxu0 0
    %2315 = vmatpush1.bf16.msra.mxu0 0
    %2316 = vmatprep.subr.bf16.mxu0 0
    %2317 = vmatpush1.bf16.msra.mxu0 0
    %2318 = vmatprep.subr.bf16.mxu0 0
    %2319 = vmatpush1.bf16.msra.mxu0 0
    %2320 = vmatprep.subr.bf16.mxu0 0
    %2321 = vmatpush1.bf16.msra.mxu0 0
    %2322 = vmatprep.subr.bf16.mxu0 0
    %2323 = vmatpush1.bf16.msra.mxu0 0
    %2324 = vmatprep.subr.bf16.mxu0 0
    %2325 = vmatpush1.bf16.msra.mxu0 0
    %2326 = vmatprep.subr.bf16.mxu0 0
    %2327 = vmatpush1.bf16.msra.mxu0 0
    %2328 = vmatprep.subr.bf16.mxu0 0
    %2329 = vmatpush1.bf16.msra.mxu0 0
    %2330 = vmatprep.subr.bf16.mxu0 0
    %2331 = vmatpush1.bf16.msra.mxu0 0
    %2332 = vmatprep.subr.bf16.mxu0 0
    %2333 = vmatpush1.bf16.msra.mxu0 0
    %2334 = vmatprep.subr.bf16.mxu0 0
    %2335 = vmatpush1.bf16.msra.mxu0 0
    %2336 = vmatprep.subr.bf16.mxu0 0
    %2337 = vmatpush1.bf16.msra.mxu0 0
    %2338 = vmatprep.subr.bf16.mxu0 0
    %2339 = vmatpush1.bf16.msra.mxu0 0
    %2340 = vmatprep.mubr.bf16.mxu0 0
    %2341 = vmatmul.mubr.bf16.gmra.mrb[0].mxu0 %v2303
    %v2342 = vpop.f32.mrb[0].mxu0
    %v2343 = vadd.f32 0.0, %v2342
    %v2344 = vpop.f32.mrb[0].mxu0
    %v2345 = vpop.f32.mrb[0].mxu0
    %v2346 = vadd.f32 0.0, %v2345
    %v2347 = vpop.f32.mrb[0].mxu0
    %2348 = vmatprep.mubr.bf16.mxu0 0
    %2349 = vmatmul.mubr.bf16.gmra.mrb[0].mxu0 %v2306
    %v2350 = vpop.f32.mrb[0].mxu0
    %v2351 = vadd.f32 0.0, %v2350
    %v2352 = vpop.f32.mrb[0].mxu0
    %v2353 = vpop.f32.mrb[0].mxu0
    %v2354 = vadd.f32 0.0, %v2353
    %v2355 = vpop.f32.mrb[0].mxu0
    %2356 = vdwg.mxu0
    %v2358 = vsel %vm1115, %v1970, 0
    %v2361 = vsel %vm1115, %v1971, 0
    %2363 = vmatprep.subr.bf16.mxu0 0
    %2364 = vmatpush1.bf16.msra.mxu0 %v1113
    %2365 = vmatprep.subr.bf16.mxu0 0
    %2366 = vmatpush1.bf16.msra.mxu0 %v1114
    %2367 = vmatprep.subr.bf16.mxu0 0
    %2368 = vmatpush1.bf16.msra.mxu0 0
    %2369 = vmatprep.subr.bf16.mxu0 0
    %2370 = vmatpush1.bf16.msra.mxu0 0
    %2371 = vmatprep.subr.bf16.mxu0 0
    %2372 = vmatpush1.bf16.msra.mxu0 0
    %2373 = vmatprep.subr.bf16.mxu0 0
    %2374 = vmatpush1.bf16.msra.mxu0 0
    %2375 = vmatprep.subr.bf16.mxu0 0
    %2376 = vmatpush1.bf16.msra.mxu0 0
    %2377 = vmatprep.subr.bf16.mxu0 0
    %2378 = vmatpush1.bf16.msra.mxu0 0
    %2379 = vmatprep.subr.bf16.mxu0 0
    %2380 = vmatpush1.bf16.msra.mxu0 0
    %2381 = vmatprep.subr.bf16.mxu0 0
    %2382 = vmatpush1.bf16.msra.mxu0 0
    %2383 = vmatprep.subr.bf16.mxu0 0
    %2384 = vmatpush1.bf16.msra.mxu0 0
    %2385 = vmatprep.subr.bf16.mxu0 0
    %2386 = vmatpush1.bf16.msra.mxu0 0
    %2387 = vmatprep.subr.bf16.mxu0 0
    %2388 = vmatpush1.bf16.msra.mxu0 0
    %2389 = vmatprep.subr.bf16.mxu0 0
    %2390 = vmatpush1.bf16.msra.mxu0 0
    %2391 = vmatprep.subr.bf16.mxu0 0
    %2392 = vmatpush1.bf16.msra.mxu0 0
    %2393 = vmatprep.subr.bf16.mxu0 0
    %2394 = vmatpush1.bf16.msra.mxu0 0
    %2395 = vmatprep.mubr.bf16.mxu0 0
    %2396 = vmatmul.mubr.bf16.gmra.mrb[0].mxu0 %v2358
    %v2397 = vpop.f32.mrb[0].mxu0
    %v2398 = vadd.f32 0.0, %v2397
    %v2399 = vpop.f32.mrb[0].mxu0
    %v2400 = vpop.f32.mrb[0].mxu0
    %v2401 = vadd.f32 0.0, %v2400
    %v2402 = vpop.f32.mrb[0].mxu0
    %2403 = vmatprep.mubr.bf16.mxu0 0
    %2404 = vmatmul.mubr.bf16.gmra.mrb[0].mxu0 %v2361
    %v2405 = vpop.f32.mrb[0].mxu0
    %v2406 = vadd.f32 0.0, %v2405
    %v2407 = vpop.f32.mrb[0].mxu0
    %v2408 = vpop.f32.mrb[0].mxu0
    %v2409 = vadd.f32 0.0, %v2408
    %v2410 = vpop.f32.mrb[0].mxu0
    %2411 = vdwg.mxu0
    %2416 = vrot.lane.b32.xlu0 %v2068, 32
    %v2417 = vpop.permute.xlu0 %2416
    %2418 = vrot.lane.b32.xlu0 %v2071, 32
    %v2419 = vpop.permute.xlu0 %2418
    %2420 = vrot.lane.b32.xlu0 %v2076, 32
    %v2421 = vpop.permute.xlu0 %2420
    %2422 = vrot.lane.b32.xlu0 %v2079, 32
    %v2423 = vpop.permute.xlu0 %2422
    %2432 = vrot.lane.b32.xlu0 %v2123, 64
    %v2433 = vpop.permute.xlu0 %2432
    %2434 = vrot.lane.b32.xlu0 %v2126, 64
    %v2435 = vpop.permute.xlu0 %2434
    %2436 = vrot.lane.b32.xlu0 %v2131, 64
    %v2437 = vpop.permute.xlu0 %2436
    %2438 = vrot.lane.b32.xlu0 %v2134, 64
    %v2439 = vpop.permute.xlu0 %2438
    %2448 = vrot.lane.b32.xlu0 %v2178, 96
    %v2449 = vpop.permute.xlu0 %2448
    %2450 = vrot.lane.b32.xlu0 %v2181, 96
    %v2451 = vpop.permute.xlu0 %2450
    %2452 = vrot.lane.b32.xlu0 %v2186, 96
    %v2453 = vpop.permute.xlu0 %2452
    %2454 = vrot.lane.b32.xlu0 %v2189, 96
    %v2455 = vpop.permute.xlu0 %2454
    %v2460 = vsel %vm1115, %v2013, %v2417
    %v2461 = vsel %vm1115, %v2016, %v2419
    %v2462 = vsel %vm1115, %v2021, %v2421
    %v2463 = vsel %vm1115, %v2024, %v2423
    %vm2464 = vcmask 523264
    %v2465 = vsel %vm2464, %v2460, %v2433
    %v2466 = vsel %vm2464, %v2461, %v2435
    %v2467 = vsel %vm2464, %v2462, %v2437
    %v2468 = vsel %vm2464, %v2463, %v2439
    %vm2469 = vcmask 785408
    %v2470 = vsel %vm2469, %v2465, %v2449
    %v2471 = vsel %vm2469, %v2466, %v2451
    %v2472 = vsel %vm2469, %v2467, %v2453
    %v2473 = vsel %vm2469, %v2468, %v2455
    %2478 = vrot.lane.b32.xlu0 %v2288, 32
    %v2479 = vpop.permute.xlu0 %2478
    %2480 = vrot.lane.b32.xlu0 %v2291, 32
    %v2481 = vpop.permute.xlu0 %2480
    %2482 = vrot.lane.b32.xlu0 %v2296, 32
    %v2483 = vpop.permute.xlu0 %2482
    %2484 = vrot.lane.b32.xlu0 %v2299, 32
    %v2485 = vpop.permute.xlu0 %2484
    %2494 = vrot.lane.b32.xlu0 %v2343, 64
    %v2495 = vpop.permute.xlu0 %2494
    %2496 = vrot.lane.b32.xlu0 %v2346, 64
    %v2497 = vpop.permute.xlu0 %2496
    %2498 = vrot.lane.b32.xlu0 %v2351, 64
    %v2499 = vpop.permute.xlu0 %2498
    %2500 = vrot.lane.b32.xlu0 %v2354, 64
    %v2501 = vpop.permute.xlu0 %2500
    %2510 = vrot.lane.b32.xlu0 %v2398, 96
    %v2511 = vpop.permute.xlu0 %2510
    %2512 = vrot.lane.b32.xlu0 %v2401, 96
    %v2513 = vpop.permute.xlu0 %2512
    %2514 = vrot.lane.b32.xlu0 %v2406, 96
    %v2515 = vpop.permute.xlu0 %2514
    %2516 = vrot.lane.b32.xlu0 %v2409, 96
    %v2517 = vpop.permute.xlu0 %2516
    %v2522 = vsel %vm1115, %v2233, %v2479
    %v2523 = vsel %vm1115, %v2236, %v2481
    %v2524 = vsel %vm1115, %v2241, %v2483
    %v2525 = vsel %vm1115, %v2244, %v2485
    %v2526 = vsel %vm2464, %v2522, %v2495
    %v2527 = vsel %vm2464, %v2523, %v2497
    %v2528 = vsel %vm2464, %v2524, %v2499
    %v2529 = vsel %vm2464, %v2525, %v2501
    %v2530 = vsel %vm2469, %v2526, %v2511
    %v2531 = vsel %vm2469, %v2527, %v2513
    %v2532 = vsel %vm2469, %v2528, %v2515
    %v2533 = vsel %vm2469, %v2529, %v2517
    %v2534 = vpack.c.bf16 %v2471, %v2470
    %v2535 = vpack.c.bf16 %v2473, %v2472
    %v2536 = vpack.c.bf16 %v2531, %v2530
    %v2537 = vpack.c.bf16 %v2533, %v2532
    %v2554 = vunpack.c.l.b16 %v348
    %v2555 = vunpack.c.l.b16 %v349
    %v2556 = vunpack.c.l.b16 %v350
    %v2557 = vunpack.c.l.b16 %v351
    %v2558 = vunpack.c.l.b16 %v352
    %v2559 = vunpack.c.l.b16 %v353
    %v2560 = vunpack.c.l.b16 %v354
    %v2561 = vunpack.c.l.b16 %v355
    %v2562 = vunpack.c.l.b16 %v356
    %v2563 = vunpack.c.l.b16 %v357
    %v2564 = vunpack.c.l.b16 %v358
    %v2565 = vunpack.c.l.b16 %v359
    %v2566 = vunpack.c.l.b16 %v360
    %v2567 = vunpack.c.l.b16 %v361
    %v2568 = vunpack.c.l.b16 %v362
    %v2569 = vunpack.c.l.b16 %v363
    %v2570 = vpack.c.b16 %v2555, %v2554
    %v2571 = vpack.c.b16 %v2557, %v2556
    %v2572 = vpack.c.b16 %v2559, %v2558
    %v2573 = vpack.c.b16 %v2561, %v2560
    %v2574 = vpack.c.b16 %v2563, %v2562
    %v2575 = vpack.c.b16 %v2565, %v2564
    %v2576 = vpack.c.b16 %v2567, %v2566
    %v2577 = vpack.c.b16 %v2569, %v2568
    %2586 = vmatprep.subr.bf16.mxu0 0
    %2587 = vmatpush1.bf16.msra.mxu0 %v2570
    %2588 = vmatprep.subr.bf16.mxu0 0
    %2589 = vmatpush1.bf16.msra.mxu0 %v2571
    %2590 = vmatprep.subr.bf16.mxu0 0
    %2591 = vmatpush1.bf16.msra.mxu0 %v2572
    %2592 = vmatprep.subr.bf16.mxu0 0
    %2593 = vmatpush1.bf16.msra.mxu0 %v2573
    %2594 = vmatprep.subr.bf16.mxu0 0
    %2595 = vmatpush1.bf16.msra.mxu0 %v2574
    %2596 = vmatprep.subr.bf16.mxu0 0
    %2597 = vmatpush1.bf16.msra.mxu0 %v2575
    %2598 = vmatprep.subr.bf16.mxu0 0
    %2599 = vmatpush1.bf16.msra.mxu0 %v2576
    %2600 = vmatprep.subr.bf16.mxu0 0
    %2601 = vmatpush1.bf16.msra.mxu0 %v2577
    %2602 = vmatprep.subr.bf16.mxu0 0
    %2603 = vmatpush1.bf16.msra.mxu0 0
    %2604 = vmatprep.subr.bf16.mxu0 0
    %2605 = vmatpush1.bf16.msra.mxu0 0
    %2606 = vmatprep.subr.bf16.mxu0 0
    %2607 = vmatpush1.bf16.msra.mxu0 0
    %2608 = vmatprep.subr.bf16.mxu0 0
    %2609 = vmatpush1.bf16.msra.mxu0 0
    %2610 = vmatprep.subr.bf16.mxu0 0
    %2611 = vmatpush1.bf16.msra.mxu0 0
    %2612 = vmatprep.subr.bf16.mxu0 0
    %2613 = vmatpush1.bf16.msra.mxu0 0
    %2614 = vmatprep.subr.bf16.mxu0 0
    %2615 = vmatpush1.bf16.msra.mxu0 0
    %2616 = vmatprep.subr.bf16.mxu0 0
    %2617 = vmatpush1.bf16.msra.mxu0 0
    %2618 = vmatprep.mubr.bf16.mxu0 0
    %2619 = vmatmul.mubr.bf16.gmra.mrb[0].mxu0 %v2534
    %v2620 = vpop.f32.mrb[0].mxu0
    %v2621 = vadd.f32 0.0, %v2620
    %v2622 = vpop.f32.mrb[0].mxu0
    %v2623 = vpop.f32.mrb[0].mxu0
    %v2624 = vadd.f32 0.0, %v2623
    %v2625 = vpop.f32.mrb[0].mxu0
    %2626 = vmatprep.mubr.bf16.mxu0 0
    %2627 = vmatmul.mubr.bf16.gmra.mrb[0].mxu0 %v2535
    %v2628 = vpop.f32.mrb[0].mxu0
    %v2629 = vadd.f32 0.0, %v2628
    %v2630 = vpop.f32.mrb[0].mxu0
    %v2631 = vpop.f32.mrb[0].mxu0
    %v2632 = vadd.f32 0.0, %v2631
    %v2633 = vpop.f32.mrb[0].mxu0
    %2634 = vmatprep.mubr.bf16.mxu0 0
    %2635 = vmatmul.mubr.bf16.gmra.mrb[0].mxu0 %v2536
    %v2636 = vpop.f32.mrb[0].mxu0
    %v2637 = vadd.f32 0.0, %v2636
    %v2638 = vpop.f32.mrb[0].mxu0
    %v2639 = vpop.f32.mrb[0].mxu0
    %v2640 = vadd.f32 0.0, %v2639
    %v2641 = vpop.f32.mrb[0].mxu0
    %2642 = vmatprep.mubr.bf16.mxu0 0
    %2643 = vmatmul.mubr.bf16.gmra.mrb[0].mxu0 %v2537
    %v2644 = vpop.f32.mrb[0].mxu0
    %v2645 = vadd.f32 0.0, %v2644
    %v2646 = vpop.f32.mrb[0].mxu0
    %v2647 = vpop.f32.mrb[0].mxu0
    %v2648 = vadd.f32 0.0, %v2647
    %v2649 = vpop.f32.mrb[0].mxu0
    %2650 = vdwg.mxu0
    %v2651 = vadd.f32 %v241, %v2621
    %v2652 = vadd.f32 %v244, %v2624
    %v2653 = vadd.f32 %v249, %v2629
    %v2654 = vadd.f32 %v252, %v2632
    %v2655 = vadd.f32 %v257, %v2637
    %v2656 = vadd.f32 %v260, %v2640
    %v2657 = vadd.f32 %v265, %v2645
    %v2658 = vadd.f32 %v268, %v2648
    %v2659 = vlaneseq
    %v2660 = vshrl.u32 %v2659, 7
    %v2661 = vsub.s32 0, %v2660
    %v2662 = vrot.slane %v277, %v2661
    %v2663 = vadd.f32 %v2651, %v2662
    %v2664 = vadd.f32 %v2652, %v2662
    %v2665 = vadd.f32 %v2653, %v2662
    %v2666 = vadd.f32 %v2654, %v2662
    %v2667 = vadd.f32 %v2655, %v2662
    %v2668 = vadd.f32 %v2656, %v2662
    %v2669 = vadd.f32 %v2657, %v2662
    %v2670 = vadd.f32 %v2658, %v2662
    %2671 = vadd.xlane.f32.xlu0 %v2663
    %v2672 = vpop.xlane.xlu0 %2671
    %2673 = vadd.xlane.f32.xlu0 %v2664
    %v2674 = vpop.xlane.xlu0 %2673
    %2675 = vadd.xlane.f32.xlu0 %v2665
    %v2676 = vpop.xlane.xlu0 %2675
    %2677 = vadd.xlane.f32.xlu0 %v2666
    %v2678 = vpop.xlane.xlu0 %2677
    %2679 = vadd.xlane.f32.xlu0 %v2667
    %v2680 = vpop.xlane.xlu0 %2679
    %2681 = vadd.xlane.f32.xlu0 %v2668
    %v2682 = vpop.xlane.xlu0 %2681
    %2683 = vadd.xlane.f32.xlu0 %v2669
    %v2684 = vpop.xlane.xlu0 %2683
    %2685 = vadd.xlane.f32.xlu0 %v2670
    %v2686 = vpop.xlane.xlu0 %2685
    %v2687 = vmul.f32 %v2672, %v444
    %v2688 = vmul.f32 %v2674, %v444
    %v2689 = vmul.f32 %v2676, %v444
    %v2690 = vmul.f32 %v2678, %v444
    %v2691 = vmul.f32 %v2680, %v444
    %v2692 = vmul.f32 %v2682, %v444
    %v2693 = vmul.f32 %v2684, %v444
    %v2694 = vmul.f32 %v2686, %v444
    %v2695 = vsub.f32 %v2663, %v2687
    %v2696 = vsub.f32 %v2664, %v2688
    %v2697 = vsub.f32 %v2665, %v2689
    %v2698 = vsub.f32 %v2666, %v2690
    %v2699 = vsub.f32 %v2667, %v2691
    %v2700 = vsub.f32 %v2668, %v2692
    %v2701 = vsub.f32 %v2669, %v2693
    %v2702 = vsub.f32 %v2670, %v2694
    %v2703 = vmul.f32 %v2695, %v2695
    %v2704 = vmul.f32 %v2696, %v2696
    %v2705 = vmul.f32 %v2697, %v2697
    %v2706 = vmul.f32 %v2698, %v2698
    %v2707 = vmul.f32 %v2699, %v2699
    %v2708 = vmul.f32 %v2700, %v2700
    %v2709 = vmul.f32 %v2701, %v2701
    %v2710 = vmul.f32 %v2702, %v2702
    %2711 = vadd.xlane.f32.xlu0 %v2703
    %v2712 = vpop.xlane.xlu0 %2711
    %2713 = vadd.xlane.f32.xlu0 %v2704
    %v2714 = vpop.xlane.xlu0 %2713
    %2715 = vadd.xlane.f32.xlu0 %v2705
    %v2716 = vpop.xlane.xlu0 %2715
    %2717 = vadd.xlane.f32.xlu0 %v2706
    %v2718 = vpop.xlane.xlu0 %2717
    %2719 = vadd.xlane.f32.xlu0 %v2707
    %v2720 = vpop.xlane.xlu0 %2719
    %2721 = vadd.xlane.f32.xlu0 %v2708
    %v2722 = vpop.xlane.xlu0 %2721
    %2723 = vadd.xlane.f32.xlu0 %v2709
    %v2724 = vpop.xlane.xlu0 %2723
    %2725 = vadd.xlane.f32.xlu0 %v2710
    %v2726 = vpop.xlane.xlu0 %2725
    %v2727 = vmul.f32 %v2712, %v444
    %v2728 = vmul.f32 %v2714, %v444
    %v2729 = vmul.f32 %v2716, %v444
    %v2730 = vmul.f32 %v2718, %v444
    %v2731 = vmul.f32 %v2720, %v444
    %v2732 = vmul.f32 %v2722, %v444
    %v2733 = vmul.f32 %v2724, %v444
    %v2734 = vmul.f32 %v2726, %v444
    %v2735 = vadd.f32 %v2727, 1e-12
    %v2736 = vadd.f32 %v2728, 1e-12
    %v2737 = vadd.f32 %v2729, 1e-12
    %v2738 = vadd.f32 %v2730, 1e-12
    %v2739 = vadd.f32 %v2731, 1e-12
    %v2740 = vadd.f32 %v2732, 1e-12
    %v2741 = vadd.f32 %v2733, 1e-12
    %v2742 = vadd.f32 %v2734, 1e-12
    %v2743 = vrsqrt.pop %v2735
    %v2744 = vrsqrt.pop %v2736
    %v2745 = vrsqrt.pop %v2737
    %v2746 = vrsqrt.pop %v2738
    %v2747 = vrsqrt.pop %v2739
    %v2748 = vrsqrt.pop %v2740
    %v2749 = vrsqrt.pop %v2741
    %v2750 = vrsqrt.pop %v2742
    %v2751 = vmul.f32 %v2695, %v2743
    %v2752 = vmul.f32 %v2696, %v2744
    %v2753 = vmul.f32 %v2697, %v2745
    %v2754 = vmul.f32 %v2698, %v2746
    %v2755 = vmul.f32 %v2699, %v2747
    %v2756 = vmul.f32 %v2700, %v2748
    %v2757 = vmul.f32 %v2701, %v2749
    %v2758 = vmul.f32 %v2702, %v2750
    %v2759 = vlaneseq
    %v2760 = vshrl.u32 %v2759, 7
    %v2761 = vsub.s32 0, %v2760
    %v2762 = vrot.slane %v278, %v2761
    %v2763 = vmul.f32 %v2751, %v2762
    %v2764 = vmul.f32 %v2752, %v2762
    %v2765 = vmul.f32 %v2753, %v2762
    %v2766 = vmul.f32 %v2754, %v2762
    %v2767 = vmul.f32 %v2755, %v2762
    %v2768 = vmul.f32 %v2756, %v2762
    %v2769 = vmul.f32 %v2757, %v2762
    %v2770 = vmul.f32 %v2758, %v2762
    %v2771 = vlaneseq
    %v2772 = vshrl.u32 %v2771, 7
    %v2773 = vsub.s32 0, %v2772
    %v2774 = vrot.slane %v279, %v2773
    %v2775 = vadd.f32 %v2763, %v2774
    %v2776 = vadd.f32 %v2764, %v2774
    %v2777 = vadd.f32 %v2765, %v2774
    %v2778 = vadd.f32 %v2766, %v2774
    %v2779 = vadd.f32 %v2767, %v2774
    %v2780 = vadd.f32 %v2768, %v2774
    %v2781 = vadd.f32 %v2769, %v2774
    %v2782 = vadd.f32 %v2770, %v2774
    %v2783 = vpack.c.bf16 %v2776, %v2775
    %v2784 = vpack.c.bf16 %v2778, %v2777
    %v2785 = vpack.c.bf16 %v2780, %v2779
    %v2786 = vpack.c.bf16 %v2782, %v2781
    %v2788 = vlaneseq
    %v2789 = vshrl.u32 %v2788, 7
    %v2790 = vsub.s32 0, %v2789
    %v2791 = vrot.slane %v283, %v2790
    %v2792 = vlaneseq
    %v2793 = vshrl.u32 %v2792, 7
    %v2794 = vsub.s32 1, %v2793
    %v2795 = vrot.slane %v283, %v2794
    %v2796 = vlaneseq
    %v2797 = vshrl.u32 %v2796, 7
    %v2798 = vsub.s32 2, %v2797
    %v2799 = vrot.slane %v283, %v2798
    %v2800 = vlaneseq
    %v2801 = vshrl.u32 %v2800, 7
    %v2802 = vsub.s32 3, %v2801
    %v2803 = vrot.slane %v283, %v2802
    %v2840 = vunpack.c.l.b16 %v316
    %v2841 = vunpack.c.h.b16 %v316
    %v2842 = vunpack.c.l.b16 %v317
    %v2843 = vunpack.c.h.b16 %v317
    %v2844 = vunpack.c.l.b16 %v318
    %v2845 = vunpack.c.h.b16 %v318
    %v2846 = vunpack.c.l.b16 %v319
    %v2847 = vunpack.c.h.b16 %v319
    %v2848 = vunpack.c.l.b16 %v320
    %v2849 = vunpack.c.h.b16 %v320
    %v2850 = vunpack.c.l.b16 %v321
    %v2851 = vunpack.c.h.b16 %v321
    %v2852 = vunpack.c.l.b16 %v322
    %v2853 = vunpack.c.h.b16 %v322
    %v2854 = vunpack.c.l.b16 %v323
    %v2855 = vunpack.c.h.b16 %v323
    %v2856 = vunpack.c.l.b16 %v324
    %v2857 = vunpack.c.h.b16 %v324
    %v2858 = vunpack.c.l.b16 %v325
    %v2859 = vunpack.c.h.b16 %v325
    %v2860 = vunpack.c.l.b16 %v326
    %v2861 = vunpack.c.h.b16 %v326
    %v2862 = vunpack.c.l.b16 %v327
    %v2863 = vunpack.c.h.b16 %v327
    %v2864 = vunpack.c.l.b16 %v328
    %v2865 = vunpack.c.h.b16 %v328
    %v2866 = vunpack.c.l.b16 %v329
    %v2867 = vunpack.c.h.b16 %v329
    %v2868 = vunpack.c.l.b16 %v330
    %v2869 = vunpack.c.h.b16 %v330
    %v2870 = vunpack.c.l.b16 %v331
    %v2871 = vunpack.c.h.b16 %v331
    %v2872 = vunpack.c.l.b16 %v332
    %v2873 = vunpack.c.h.b16 %v332
    %v2874 = vunpack.c.l.b16 %v333
    %v2875 = vunpack.c.h.b16 %v333
    %v2876 = vunpack.c.l.b16 %v334
    %v2877 = vunpack.c.h.b16 %v334
    %v2878 = vunpack.c.l.b16 %v335
    %v2879 = vunpack.c.h.b16 %v335
    %v2880 = vunpack.c.l.b16 %v336
    %v2881 = vunpack.c.h.b16 %v336
    %v2882 = vunpack.c.l.b16 %v337
    %v2883 = vunpack.c.h.b16 %v337
    %v2884 = vunpack.c.l.b16 %v338
    %v2885 = vunpack.c.h.b16 %v338
    %v2886 = vunpack.c.l.b16 %v339
    %v2887 = vunpack.c.h.b16 %v339
    %v2888 = vunpack.c.l.b16 %v340
    %v2889 = vunpack.c.h.b16 %v340
    %v2890 = vunpack.c.l.b16 %v341
    %v2891 = vunpack.c.h.b16 %v341
    %v2892 = vunpack.c.l.b16 %v342
    %v2893 = vunpack.c.h.b16 %v342
    %v2894 = vunpack.c.l.b16 %v343
    %v2895 = vunpack.c.h.b16 %v343
    %v2896 = vunpack.c.l.b16 %v344
    %v2897 = vunpack.c.h.b16 %v344
    %v2898 = vunpack.c.l.b16 %v345
    %v2899 = vunpack.c.h.b16 %v345
    %v2900 = vunpack.c.l.b16 %v346
    %v2901 = vunpack.c.h.b16 %v346
    %v2902 = vunpack.c.l.b16 %v347
    %v2903 = vunpack.c.h.b16 %v347
    %v2904 = vpack.c.b16 %v2844, %v2840
    %v2905 = vpack.c.b16 %v2845, %v2841
    %v2906 = vpack.c.b16 %v2846, %v2842
    %v2907 = vpack.c.b16 %v2847, %v2843
    %v2908 = vpack.c.b16 %v2852, %v2848
    %v2909 = vpack.c.b16 %v2853, %v2849
    %v2910 = vpack.c.b16 %v2854, %v2850
    %v2911 = vpack.c.b16 %v2855, %v2851
    %v2912 = vpack.c.b16 %v2860, %v2856
    %v2913 = vpack.c.b16 %v2861, %v2857
    %v2914 = vpack.c.b16 %v2862, %v2858
    %v2915 = vpack.c.b16 %v2863, %v2859
    %v2916 = vpack.c.b16 %v2868, %v2864
    %v2917 = vpack.c.b16 %v2869, %v2865
    %v2918 = vpack.c.b16 %v2870, %v2866
    %v2919 = vpack.c.b16 %v2871, %v2867
    %v2920 = vpack.c.b16 %v2876, %v2872
    %v2921 = vpack.c.b16 %v2877, %v2873
    %v2922 = vpack.c.b16 %v2878, %v2874
    %v2923 = vpack.c.b16 %v2879, %v2875
    %v2924 = vpack.c.b16 %v2884, %v2880
    %v2925 = vpack.c.b16 %v2885, %v2881
    %v2926 = vpack.c.b16 %v2886, %v2882
    %v2927 = vpack.c.b16 %v2887, %v2883
    %v2928 = vpack.c.b16 %v2892, %v2888
    %v2929 = vpack.c.b16 %v2893, %v2889
    %v2930 = vpack.c.b16 %v2894, %v2890
    %v2931 = vpack.c.b16 %v2895, %v2891
    %v2932 = vpack.c.b16 %v2900, %v2896
    %v2933 = vpack.c.b16 %v2901, %v2897
    %v2934 = vpack.c.b16 %v2902, %v2898
    %v2935 = vpack.c.b16 %v2903, %v2899
    %2968 = vmatprep.subr.bf16.mxu0 %v2905
    %2969 = vmatpush1.bf16.msra.mxu0 %v2904
    %2970 = vmatprep.subr.bf16.mxu0 %v2909
    %2971 = vmatpush1.bf16.msra.mxu0 %v2908
    %2972 = vmatprep.subr.bf16.mxu0 %v2913
    %2973 = vmatpush1.bf16.msra.mxu0 %v2912
    %2974 = vmatprep.subr.bf16.mxu0 %v2917
    %2975 = vmatpush1.bf16.msra.mxu0 %v2916
    %2976 = vmatprep.subr.bf16.mxu0 %v2921
    %2977 = vmatpush1.bf16.msra.mxu0 %v2920
    %2978 = vmatprep.subr.bf16.mxu0 %v2925
    %2979 = vmatpush1.bf16.msra.mxu0 %v2924
    %2980 = vmatprep.subr.bf16.mxu0 %v2929
    %2981 = vmatpush1.bf16.msra.mxu0 %v2928
    %2982 = vmatprep.subr.bf16.mxu0 %v2933
    %2983 = vmatpush1.bf16.msra.mxu0 %v2932
    %2984 = vmatprep.subr.bf16.mxu0 0
    %2985 = vmatpush1.bf16.msra.mxu0 0
    %2986 = vmatprep.subr.bf16.mxu0 0
    %2987 = vmatpush1.bf16.msra.mxu0 0
    %2988 = vmatprep.subr.bf16.mxu0 0
    %2989 = vmatpush1.bf16.msra.mxu0 0
    %2990 = vmatprep.subr.bf16.mxu0 0
    %2991 = vmatpush1.bf16.msra.mxu0 0
    %2992 = vmatprep.subr.bf16.mxu0 0
    %2993 = vmatpush1.bf16.msra.mxu0 0
    %2994 = vmatprep.subr.bf16.mxu0 0
    %2995 = vmatpush1.bf16.msra.mxu0 0
    %2996 = vmatprep.subr.bf16.mxu0 0
    %2997 = vmatpush1.bf16.msra.mxu0 0
    %2998 = vmatprep.subr.bf16.mxu0 0
    %2999 = vmatpush1.bf16.msra.mxu0 0
    %3000 = vmatprep.mubr.bf16.mxu0 0
    %3001 = vmatmul.mubr.bf16.gmra.mrb[0].mxu0 %v2783
    %v3002 = vpop.f32.mrb[0].mxu0
    %v3003 = vadd.f32 %v2791, %v3002
    %v3004 = vpop.f32.mrb[0].mxu0
    %v3005 = vadd.f32 %v2795, %v3004
    %v3006 = vpop.f32.mrb[0].mxu0
    %v3007 = vadd.f32 %v2791, %v3006
    %v3008 = vpop.f32.mrb[0].mxu0
    %v3009 = vadd.f32 %v2795, %v3008
    %3010 = vmatprep.mubr.bf16.mxu0 0
    %3011 = vmatmul.mubr.bf16.gmra.mrb[0].mxu0 %v2784
    %v3012 = vpop.f32.mrb[0].mxu0
    %v3013 = vadd.f32 %v2791, %v3012
    %v3014 = vpop.f32.mrb[0].mxu0
    %v3015 = vadd.f32 %v2795, %v3014
    %v3016 = vpop.f32.mrb[0].mxu0
    %v3017 = vadd.f32 %v2791, %v3016
    %v3018 = vpop.f32.mrb[0].mxu0
    %v3019 = vadd.f32 %v2795, %v3018
    %3020 = vmatprep.mubr.bf16.mxu0 0
    %3021 = vmatmul.mubr.bf16.gmra.mrb[0].mxu0 %v2785
    %v3022 = vpop.f32.mrb[0].mxu0
    %v3023 = vadd.f32 %v2791, %v3022
    %v3024 = vpop.f32.mrb[0].mxu0
    %v3025 = vadd.f32 %v2795, %v3024
    %v3026 = vpop.f32.mrb[0].mxu0
    %v3027 = vadd.f32 %v2791, %v3026
    %v3028 = vpop.f32.mrb[0].mxu0
    %v3029 = vadd.f32 %v2795, %v3028
    %3030 = vmatprep.mubr.bf16.mxu0 0
    %3031 = vmatmul.mubr.bf16.gmra.mrb[0].mxu0 %v2786
    %v3032 = vpop.f32.mrb[0].mxu0
    %v3033 = vadd.f32 %v2791, %v3032
    %v3034 = vpop.f32.mrb[0].mxu0
    %v3035 = vadd.f32 %v2795, %v3034
    %v3036 = vpop.f32.mrb[0].mxu0
    %v3037 = vadd.f32 %v2791, %v3036
    %v3038 = vpop.f32.mrb[0].mxu0
    %v3039 = vadd.f32 %v2795, %v3038
    %3040 = vdwg.mxu0
    %3041 = vmatprep.subr.bf16.mxu0 %v2907
    %3042 = vmatpush1.bf16.msra.mxu0 %v2906
    %3043 = vmatprep.subr.bf16.mxu0 %v2911
    %3044 = vmatpush1.bf16.msra.mxu0 %v2910
    %3045 = vmatprep.subr.bf16.mxu0 %v2915
    %3046 = vmatpush1.bf16.msra.mxu0 %v2914
    %3047 = vmatprep.subr.bf16.mxu0 %v2919
    %3048 = vmatpush1.bf16.msra.mxu0 %v2918
    %3049 = vmatprep.subr.bf16.mxu0 %v2923
    %3050 = vmatpush1.bf16.msra.mxu0 %v2922
    %3051 = vmatprep.subr.bf16.mxu0 %v2927
    %3052 = vmatpush1.bf16.msra.mxu0 %v2926
    %3053 = vmatprep.subr.bf16.mxu0 %v2931
    %3054 = vmatpush1.bf16.msra.mxu0 %v2930
    %3055 = vmatprep.subr.bf16.mxu0 %v2935
    %3056 = vmatpush1.bf16.msra.mxu0 %v2934
    %3057 = vmatprep.subr.bf16.mxu0 0
    %3058 = vmatpush1.bf16.msra.mxu0 0
    %3059 = vmatprep.subr.bf16.mxu0 0
    %3060 = vmatpush1.bf16.msra.mxu0 0
    %3061 = vmatprep.subr.bf16.mxu0 0
    %3062 = vmatpush1.bf16.msra.mxu0 0
    %3063 = vmatprep.subr.bf16.mxu0 0
    %3064 = vmatpush1.bf16.msra.mxu0 0
    %3065 = vmatprep.subr.bf16.mxu0 0
    %3066 = vmatpush1.bf16.msra.mxu0 0
    %3067 = vmatprep.subr.bf16.mxu0 0
    %3068 = vmatpush1.bf16.msra.mxu0 0
    %3069 = vmatprep.subr.bf16.mxu0 0
    %3070 = vmatpush1.bf16.msra.mxu0 0
    %3071 = vmatprep.subr.bf16.mxu0 0
    %3072 = vmatpush1.bf16.msra.mxu0 0
    %3073 = vmatprep.mubr.bf16.mxu0 0
    %3074 = vmatmul.mubr.bf16.gmra.mrb[0].mxu0 %v2783
    %v3075 = vpop.f32.mrb[0].mxu0
    %v3076 = vadd.f32 %v2799, %v3075
    %v3077 = vpop.f32.mrb[0].mxu0
    %v3078 = vadd.f32 %v2803, %v3077
    %v3079 = vpop.f32.mrb[0].mxu0
    %v3080 = vadd.f32 %v2799, %v3079
    %v3081 = vpop.f32.mrb[0].mxu0
    %v3082 = vadd.f32 %v2803, %v3081
    %3083 = vmatprep.mubr.bf16.mxu0 0
    %3084 = vmatmul.mubr.bf16.gmra.mrb[0].mxu0 %v2784
    %v3085 = vpop.f32.mrb[0].mxu0
    %v3086 = vadd.f32 %v2799, %v3085
    %v3087 = vpop.f32.mrb[0].mxu0
    %v3088 = vadd.f32 %v2803, %v3087
    %v3089 = vpop.f32.mrb[0].mxu0
    %v3090 = vadd.f32 %v2799, %v3089
    %v3091 = vpop.f32.mrb[0].mxu0
    %v3092 = vadd.f32 %v2803, %v3091
    %3093 = vmatprep.mubr.bf16.mxu0 0
    %3094 = vmatmul.mubr.bf16.gmra.mrb[0].mxu0 %v2785
    %v3095 = vpop.f32.mrb[0].mxu0
    %v3096 = vadd.f32 %v2799, %v3095
    %v3097 = vpop.f32.mrb[0].mxu0
    %v3098 = vadd.f32 %v2803, %v3097
    %v3099 = vpop.f32.mrb[0].mxu0
    %v3100 = vadd.f32 %v2799, %v3099
    %v3101 = vpop.f32.mrb[0].mxu0
    %v3102 = vadd.f32 %v2803, %v3101
    %3103 = vmatprep.mubr.bf16.mxu0 0
    %3104 = vmatmul.mubr.bf16.gmra.mrb[0].mxu0 %v2786
    %v3105 = vpop.f32.mrb[0].mxu0
    %v3106 = vadd.f32 %v2799, %v3105
    %v3107 = vpop.f32.mrb[0].mxu0
    %v3108 = vadd.f32 %v2803, %v3107
    %v3109 = vpop.f32.mrb[0].mxu0
    %v3110 = vadd.f32 %v2799, %v3109
    %v3111 = vpop.f32.mrb[0].mxu0
    %v3112 = vadd.f32 %v2803, %v3111
    %3113 = vdwg.mxu0
    %v3114 = vmul.f32 %v3003, 0.70710677
    %v3115 = vmul.f32 %v3005, 0.70710677
    %v3116 = vmul.f32 %v3076, 0.70710677
    %v3117 = vmul.f32 %v3078, 0.70710677
    %v3118 = vmul.f32 %v3007, 0.70710677
    %v3119 = vmul.f32 %v3009, 0.70710677
    %v3120 = vmul.f32 %v3080, 0.70710677
    %v3121 = vmul.f32 %v3082, 0.70710677
    %v3122 = vmul.f32 %v3013, 0.70710677
    %v3123 = vmul.f32 %v3015, 0.70710677
    %v3124 = vmul.f32 %v3086, 0.70710677
    %v3125 = vmul.f32 %v3088, 0.70710677
    %v3126 = vmul.f32 %v3017, 0.70710677
    %v3127 = vmul.f32 %v3019, 0.70710677
    %v3128 = vmul.f32 %v3090, 0.70710677
    %v3129 = vmul.f32 %v3092, 0.70710677
    %v3130 = vmul.f32 %v3023, 0.70710677
    %v3131 = vmul.f32 %v3025, 0.70710677
    %v3132 = vmul.f32 %v3096, 0.70710677
    %v3133 = vmul.f32 %v3098, 0.70710677
    %v3134 = vmul.f32 %v3027, 0.70710677
    %v3135 = vmul.f32 %v3029, 0.70710677
    %v3136 = vmul.f32 %v3100, 0.70710677
    %v3137 = vmul.f32 %v3102, 0.70710677
    %v3138 = vmul.f32 %v3033, 0.70710677
    %v3139 = vmul.f32 %v3035, 0.70710677
    %v3140 = vmul.f32 %v3106, 0.70710677
    %v3141 = vmul.f32 %v3108, 0.70710677
    %v3142 = vmul.f32 %v3037, 0.70710677
    %v3143 = vmul.f32 %v3039, 0.70710677
    %v3144 = vmul.f32 %v3110, 0.70710677
    %v3145 = vmul.f32 %v3112, 0.70710677
    %v3146 = vand.u32 2147483647, %v3114
    %v3147 = vand.u32 2147483647, %v3115
    %v3148 = vand.u32 2147483647, %v3116
    %v3149 = vand.u32 2147483647, %v3117
    %v3150 = vand.u32 2147483647, %v3118
    %v3151 = vand.u32 2147483647, %v3119
    %v3152 = vand.u32 2147483647, %v3120
    %v3153 = vand.u32 2147483647, %v3121
    %v3154 = vand.u32 2147483647, %v3122
    %v3155 = vand.u32 2147483647, %v3123
    %v3156 = vand.u32 2147483647, %v3124
    %v3157 = vand.u32 2147483647, %v3125
    %v3158 = vand.u32 2147483647, %v3126
    %v3159 = vand.u32 2147483647, %v3127
    %v3160 = vand.u32 2147483647, %v3128
    %v3161 = vand.u32 2147483647, %v3129
    %v3162 = vand.u32 2147483647, %v3130
    %v3163 = vand.u32 2147483647, %v3131
    %v3164 = vand.u32 2147483647, %v3132
    %v3165 = vand.u32 2147483647, %v3133
    %v3166 = vand.u32 2147483647, %v3134
    %v3167 = vand.u32 2147483647, %v3135
    %v3168 = vand.u32 2147483647, %v3136
    %v3169 = vand.u32 2147483647, %v3137
    %v3170 = vand.u32 2147483647, %v3138
    %v3171 = vand.u32 2147483647, %v3139
    %v3172 = vand.u32 2147483647, %v3140
    %v3173 = vand.u32 2147483647, %v3141
    %v3174 = vand.u32 2147483647, %v3142
    %v3175 = vand.u32 2147483647, %v3143
    %v3176 = vand.u32 2147483647, %v3144
    %v3177 = vand.u32 2147483647, %v3145
    %v3178 = vmul.f32 %v3146, 0.3275911
    %v3179 = vmul.f32 %v3147, 0.3275911
    %v3180 = vmul.f32 %v3148, 0.3275911
    %v3181 = vmul.f32 %v3149, 0.3275911
    %v3182 = vmul.f32 %v3150, 0.3275911
    %v3183 = vmul.f32 %v3151, 0.3275911
    %v3184 = vmul.f32 %v3152, 0.3275911
    %v3185 = vmul.f32 %v3153, 0.3275911
    %v3186 = vmul.f32 %v3154, 0.3275911
    %v3187 = vmul.f32 %v3155, 0.3275911
    %v3188 = vmul.f32 %v3156, 0.3275911
    %v3189 = vmul.f32 %v3157, 0.3275911
    %v3190 = vmul.f32 %v3158, 0.3275911
    %v3191 = vmul.f32 %v3159, 0.3275911
    %v3192 = vmul.f32 %v3160, 0.3275911
    %v3193 = vmul.f32 %v3161, 0.3275911
    %v3194 = vmul.f32 %v3162, 0.3275911
    %v3195 = vmul.f32 %v3163, 0.3275911
    %v3196 = vmul.f32 %v3164, 0.3275911
    %v3197 = vmul.f32 %v3165, 0.3275911
    %v3198 = vmul.f32 %v3166, 0.3275911
    %v3199 = vmul.f32 %v3167, 0.3275911
    %v3200 = vmul.f32 %v3168, 0.3275911
    %v3201 = vmul.f32 %v3169, 0.3275911
    %v3202 = vmul.f32 %v3170, 0.3275911
    %v3203 = vmul.f32 %v3171, 0.3275911
    %v3204 = vmul.f32 %v3172, 0.3275911
    %v3205 = vmul.f32 %v3173, 0.3275911
    %v3206 = vmul.f32 %v3174, 0.3275911
    %v3207 = vmul.f32 %v3175, 0.3275911
    %v3208 = vmul.f32 %v3176, 0.3275911
    %v3209 = vmul.f32 %v3177, 0.3275911
    %v3210 = vadd.f32 %v3178, 1.0
    %v3211 = vadd.f32 %v3179, 1.0
    %v3212 = vadd.f32 %v3180, 1.0
    %v3213 = vadd.f32 %v3181, 1.0
    %v3214 = vadd.f32 %v3182, 1.0
    %v3215 = vadd.f32 %v3183, 1.0
    %v3216 = vadd.f32 %v3184, 1.0
    %v3217 = vadd.f32 %v3185, 1.0
    %v3218 = vadd.f32 %v3186, 1.0
    %v3219 = vadd.f32 %v3187, 1.0
    %v3220 = vadd.f32 %v3188, 1.0
    %v3221 = vadd.f32 %v3189, 1.0
    %v3222 = vadd.f32 %v3190, 1.0
    %v3223 = vadd.f32 %v3191, 1.0
    %v3224 = vadd.f32 %v3192, 1.0
    %v3225 = vadd.f32 %v3193, 1.0
    %v3226 = vadd.f32 %v3194, 1.0
    %v3227 = vadd.f32 %v3195, 1.0
    %v3228 = vadd.f32 %v3196, 1.0
    %v3229 = vadd.f32 %v3197, 1.0
    %v3230 = vadd.f32 %v3198, 1.0
    %v3231 = vadd.f32 %v3199, 1.0
    %v3232 = vadd.f32 %v3200, 1.0
    %v3233 = vadd.f32 %v3201, 1.0
    %v3234 = vadd.f32 %v3202, 1.0
    %v3235 = vadd.f32 %v3203, 1.0
    %v3236 = vadd.f32 %v3204, 1.0
    %v3237 = vadd.f32 %v3205, 1.0
    %v3238 = vadd.f32 %v3206, 1.0
    %v3239 = vadd.f32 %v3207, 1.0
    %v3240 = vadd.f32 %v3208, 1.0
    %v3241 = vadd.f32 %v3209, 1.0
    %v3242 = vrcp.pop %v3210
    %v3243 = vrcp.pop %v3211
    %v3244 = vrcp.pop %v3212
    %v3245 = vrcp.pop %v3213
    %v3246 = vrcp.pop %v3214
    %v3247 = vrcp.pop %v3215
    %v3248 = vrcp.pop %v3216
    %v3249 = vrcp.pop %v3217
    %v3250 = vrcp.pop %v3218
    %v3251 = vrcp.pop %v3219
    %v3252 = vrcp.pop %v3220
    %v3253 = vrcp.pop %v3221
    %v3254 = vrcp.pop %v3222
    %v3255 = vrcp.pop %v3223
    %v3256 = vrcp.pop %v3224
    %v3257 = vrcp.pop %v3225
    %v3258 = vrcp.pop %v3226
    %v3259 = vrcp.pop %v3227
    %v3260 = vrcp.pop %v3228
    %v3261 = vrcp.pop %v3229
    %v3262 = vrcp.pop %v3230
    %v3263 = vrcp.pop %v3231
    %v3264 = vrcp.pop %v3232
    %v3265 = vrcp.pop %v3233
    %v3266 = vrcp.pop %v3234
    %v3267 = vrcp.pop %v3235
    %v3268 = vrcp.pop %v3236
    %v3269 = vrcp.pop %v3237
    %v3270 = vrcp.pop %v3238
    %v3271 = vrcp.pop %v3239
    %v3272 = vrcp.pop %v3240
    %v3273 = vrcp.pop %v3241
    %v3274 = vmul.f32 %v3242, 1.0614054
    %v3275 = vmul.f32 %v3243, 1.0614054
    %v3276 = vmul.f32 %v3244, 1.0614054
    %v3277 = vmul.f32 %v3245, 1.0614054
    %v3278 = vmul.f32 %v3246, 1.0614054
    %v3279 = vmul.f32 %v3247, 1.0614054
    %v3280 = vmul.f32 %v3248, 1.0614054
    %v3281 = vmul.f32 %v3249, 1.0614054
    %v3282 = vmul.f32 %v3250, 1.0614054
    %v3283 = vmul.f32 %v3251, 1.0614054
    %v3284 = vmul.f32 %v3252, 1.0614054
    %v3285 = vmul.f32 %v3253, 1.0614054
    %v3286 = vmul.f32 %v3254, 1.0614054
    %v3287 = vmul.f32 %v3255, 1.0614054
    %v3288 = vmul.f32 %v3256, 1.0614054
    %v3289 = vmul.f32 %v3257, 1.0614054
    %v3290 = vmul.f32 %v3258, 1.0614054
    %v3291 = vmul.f32 %v3259, 1.0614054
    %v3292 = vmul.f32 %v3260, 1.0614054
    %v3293 = vmul.f32 %v3261, 1.0614054
    %v3294 = vmul.f32 %v3262, 1.0614054
    %v3295 = vmul.f32 %v3263, 1.0614054
    %v3296 = vmul.f32 %v3264, 1.0614054
    %v3297 = vmul.f32 %v3265, 1.0614054
    %v3298 = vmul.f32 %v3266, 1.0614054
    %v3299 = vmul.f32 %v3267, 1.0614054
    %v3300 = vmul.f32 %v3268, 1.0614054
    %v3301 = vmul.f32 %v3269, 1.0614054
    %v3302 = vmul.f32 %v3270, 1.0614054
    %v3303 = vmul.f32 %v3271, 1.0614054
    %v3304 = vmul.f32 %v3272, 1.0614054
    %v3305 = vmul.f32 %v3273, 1.0614054
    %v3306 = vsub.f32 %v3274, 1.4531521
    %v3307 = vsub.f32 %v3275, 1.4531521
    %v3308 = vsub.f32 %v3276, 1.4531521
    %v3309 = vsub.f32 %v3277, 1.4531521
    %v3310 = vsub.f32 %v3278, 1.4531521
    %v3311 = vsub.f32 %v3279, 1.4531521
    %v3312 = vsub.f32 %v3280, 1.4531521
    %v3313 = vsub.f32 %v3281, 1.4531521
    %v3314 = vsub.f32 %v3282, 1.4531521
    %v3315 = vsub.f32 %v3283, 1.4531521
    %v3316 = vsub.f32 %v3284, 1.4531521
    %v3317 = vsub.f32 %v3285, 1.4531521
    %v3318 = vsub.f32 %v3286, 1.4531521
    %v3319 = vsub.f32 %v3287, 1.4531521
    %v3320 = vsub.f32 %v3288, 1.4531521
    %v3321 = vsub.f32 %v3289, 1.4531521
    %v3322 = vsub.f32 %v3290, 1.4531521
    %v3323 = vsub.f32 %v3291, 1.4531521
    %v3324 = vsub.f32 %v3292, 1.4531521
    %v3325 = vsub.f32 %v3293, 1.4531521
    %v3326 = vsub.f32 %v3294, 1.4531521
    %v3327 = vsub.f32 %v3295, 1.4531521
    %v3328 = vsub.f32 %v3296, 1.4531521
    %v3329 = vsub.f32 %v3297, 1.4531521
    %v3330 = vsub.f32 %v3298, 1.4531521
    %v3331 = vsub.f32 %v3299, 1.4531521
    %v3332 = vsub.f32 %v3300, 1.4531521
    %v3333 = vsub.f32 %v3301, 1.4531521
    %v3334 = vsub.f32 %v3302, 1.4531521
    %v3335 = vsub.f32 %v3303, 1.4531521
    %v3336 = vsub.f32 %v3304, 1.4531521
    %v3337 = vsub.f32 %v3305, 1.4531521
    %v3338 = vmul.f32 %v3306, %v3242
    %v3339 = vmul.f32 %v3307, %v3243
    %v3340 = vmul.f32 %v3308, %v3244
    %v3341 = vmul.f32 %v3309, %v3245
    %v3342 = vmul.f32 %v3310, %v3246
    %v3343 = vmul.f32 %v3311, %v3247
    %v3344 = vmul.f32 %v3312, %v3248
    %v3345 = vmul.f32 %v3313, %v3249
    %v3346 = vmul.f32 %v3314, %v3250
    %v3347 = vmul.f32 %v3315, %v3251
    %v3348 = vmul.f32 %v3316, %v3252
    %v3349 = vmul.f32 %v3317, %v3253
    %v3350 = vmul.f32 %v3318, %v3254
    %v3351 = vmul.f32 %v3319, %v3255
    %v3352 = vmul.f32 %v3320, %v3256
    %v3353 = vmul.f32 %v3321, %v3257
    %v3354 = vmul.f32 %v3322, %v3258
    %v3355 = vmul.f32 %v3323, %v3259
    %v3356 = vmul.f32 %v3324, %v3260
    %v3357 = vmul.f32 %v3325, %v3261
    %v3358 = vmul.f32 %v3326, %v3262
    %v3359 = vmul.f32 %v3327, %v3263
    %v3360 = vmul.f32 %v3328, %v3264
    %v3361 = vmul.f32 %v3329, %v3265
    %v3362 = vmul.f32 %v3330, %v3266
    %v3363 = vmul.f32 %v3331, %v3267
    %v3364 = vmul.f32 %v3332, %v3268
    %v3365 = vmul.f32 %v3333, %v3269
    %v3366 = vmul.f32 %v3334, %v3270
    %v3367 = vmul.f32 %v3335, %v3271
    %v3368 = vmul.f32 %v3336, %v3272
    %v3369 = vmul.f32 %v3337, %v3273
    %v3370 = vadd.f32 %v3338, 1.4214138
    %v3371 = vadd.f32 %v3339, 1.4214138
    %v3372 = vadd.f32 %v3340, 1.4214138
    %v3373 = vadd.f32 %v3341, 1.4214138
    %v3374 = vadd.f32 %v3342, 1.4214138
    %v3375 = vadd.f32 %v3343, 1.4214138
    %v3376 = vadd.f32 %v3344, 1.4214138
    %v3377 = vadd.f32 %v3345, 1.4214138
    %v3378 = vadd.f32 %v3346, 1.4214138
    %v3379 = vadd.f32 %v3347, 1.4214138
    %v3380 = vadd.f32 %v3348, 1.4214138
    %v3381 = vadd.f32 %v3349, 1.4214138
    %v3382 = vadd.f32 %v3350, 1.4214138
    %v3383 = vadd.f32 %v3351, 1.4214138
    %v3384 = vadd.f32 %v3352, 1.4214138
    %v3385 = vadd.f32 %v3353, 1.4214138
    %v3386 = vadd.f32 %v3354, 1.4214138
    %v3387 = vadd.f32 %v3355, 1.4214138
    %v3388 = vadd.f32 %v3356, 1.4214138
    %v3389 = vadd.f32 %v3357, 1.4214138
    %v3390 = vadd.f32 %v3358, 1.4214138
    %v3391 = vadd.f32 %v3359, 1.4214138
    %v3392 = vadd.f32 %v3360, 1.4214138
    %v3393 = vadd.f32 %v3361, 1.4214138
    %v3394 = vadd.f32 %v3362, 1.4214138
    %v3395 = vadd.f32 %v3363, 1.4214138
    %v3396 = vadd.f32 %v3364, 1.4214138
    %v3397 = vadd.f32 %v3365, 1.4214138
    %v3398 = vadd.f32 %v3366, 1.4214138
    %v3399 = vadd.f32 %v3367, 1.4214138
    %v3400 = vadd.f32 %v3368, 1.4214138
    %v3401 = vadd.f32 %v3369, 1.4214138
    %v3402 = vmul.f32 %v3370, %v3242
    %v3403 = vmul.f32 %v3371, %v3243
    %v3404 = vmul.f32 %v3372, %v3244
    %v3405 = vmul.f32 %v3373, %v3245
    %v3406 = vmul.f32 %v3374, %v3246
    %v3407 = vmul.f32 %v3375, %v3247
    %v3408 = vmul.f32 %v3376, %v3248
    %v3409 = vmul.f32 %v3377, %v3249
    %v3410 = vmul.f32 %v3378, %v3250
    %v3411 = vmul.f32 %v3379, %v3251
    %v3412 = vmul.f32 %v3380, %v3252
    %v3413 = vmul.f32 %v3381, %v3253
    %v3414 = vmul.f32 %v3382, %v3254
    %v3415 = vmul.f32 %v3383, %v3255
    %v3416 = vmul.f32 %v3384, %v3256
    %v3417 = vmul.f32 %v3385, %v3257
    %v3418 = vmul.f32 %v3386, %v3258
    %v3419 = vmul.f32 %v3387, %v3259
    %v3420 = vmul.f32 %v3388, %v3260
    %v3421 = vmul.f32 %v3389, %v3261
    %v3422 = vmul.f32 %v3390, %v3262
    %v3423 = vmul.f32 %v3391, %v3263
    %v3424 = vmul.f32 %v3392, %v3264
    %v3425 = vmul.f32 %v3393, %v3265
    %v3426 = vmul.f32 %v3394, %v3266
    %v3427 = vmul.f32 %v3395, %v3267
    %v3428 = vmul.f32 %v3396, %v3268
    %v3429 = vmul.f32 %v3397, %v3269
    %v3430 = vmul.f32 %v3398, %v3270
    %v3431 = vmul.f32 %v3399, %v3271
    %v3432 = vmul.f32 %v3400, %v3272
    %v3433 = vmul.f32 %v3401, %v3273
    %v3434 = vsub.f32 %v3402, 0.28449672
    %v3435 = vsub.f32 %v3403, 0.28449672
    %v3436 = vsub.f32 %v3404, 0.28449672
    %v3437 = vsub.f32 %v3405, 0.28449672
    %v3438 = vsub.f32 %v3406, 0.28449672
    %v3439 = vsub.f32 %v3407, 0.28449672
    %v3440 = vsub.f32 %v3408, 0.28449672
    %v3441 = vsub.f32 %v3409, 0.28449672
    %v3442 = vsub.f32 %v3410, 0.28449672
    %v3443 = vsub.f32 %v3411, 0.28449672
    %v3444 = vsub.f32 %v3412, 0.28449672
    %v3445 = vsub.f32 %v3413, 0.28449672
    %v3446 = vsub.f32 %v3414, 0.28449672
    %v3447 = vsub.f32 %v3415, 0.28449672
    %v3448 = vsub.f32 %v3416, 0.28449672
    %v3449 = vsub.f32 %v3417, 0.28449672
    %v3450 = vsub.f32 %v3418, 0.28449672
    %v3451 = vsub.f32 %v3419, 0.28449672
    %v3452 = vsub.f32 %v3420, 0.28449672
    %v3453 = vsub.f32 %v3421, 0.28449672
    %v3454 = vsub.f32 %v3422, 0.28449672
    %v3455 = vsub.f32 %v3423, 0.28449672
    %v3456 = vsub.f32 %v3424, 0.28449672
    %v3457 = vsub.f32 %v3425, 0.28449672
    %v3458 = vsub.f32 %v3426, 0.28449672
    %v3459 = vsub.f32 %v3427, 0.28449672
    %v3460 = vsub.f32 %v3428, 0.28449672
    %v3461 = vsub.f32 %v3429, 0.28449672
    %v3462 = vsub.f32 %v3430, 0.28449672
    %v3463 = vsub.f32 %v3431, 0.28449672
    %v3464 = vsub.f32 %v3432, 0.28449672
    %v3465 = vsub.f32 %v3433, 0.28449672
    %v3466 = vmul.f32 %v3434, %v3242
    %v3467 = vmul.f32 %v3435, %v3243
    %v3468 = vmul.f32 %v3436, %v3244
    %v3469 = vmul.f32 %v3437, %v3245
    %v3470 = vmul.f32 %v3438, %v3246
    %v3471 = vmul.f32 %v3439, %v3247
    %v3472 = vmul.f32 %v3440, %v3248
    %v3473 = vmul.f32 %v3441, %v3249
    %v3474 = vmul.f32 %v3442, %v3250
    %v3475 = vmul.f32 %v3443, %v3251
    %v3476 = vmul.f32 %v3444, %v3252
    %v3477 = vmul.f32 %v3445, %v3253
    %v3478 = vmul.f32 %v3446, %v3254
    %v3479 = vmul.f32 %v3447, %v3255
    %v3480 = vmul.f32 %v3448, %v3256
    %v3481 = vmul.f32 %v3449, %v3257
    %v3482 = vmul.f32 %v3450, %v3258
    %v3483 = vmul.f32 %v3451, %v3259
    %v3484 = vmul.f32 %v3452, %v3260
    %v3485 = vmul.f32 %v3453, %v3261
    %v3486 = vmul.f32 %v3454, %v3262
    %v3487 = vmul.f32 %v3455, %v3263
    %v3488 = vmul.f32 %v3456, %v3264
    %v3489 = vmul.f32 %v3457, %v3265
    %v3490 = vmul.f32 %v3458, %v3266
    %v3491 = vmul.f32 %v3459, %v3267
    %v3492 = vmul.f32 %v3460, %v3268
    %v3493 = vmul.f32 %v3461, %v3269
    %v3494 = vmul.f32 %v3462, %v3270
    %v3495 = vmul.f32 %v3463, %v3271
    %v3496 = vmul.f32 %v3464, %v3272
    %v3497 = vmul.f32 %v3465, %v3273
    %v3498 = vadd.f32 %v3466, 0.2548296
    %v3499 = vadd.f32 %v3467, 0.2548296
    %v3500 = vadd.f32 %v3468, 0.2548296
    %v3501 = vadd.f32 %v3469, 0.2548296
    %v3502 = vadd.f32 %v3470, 0.2548296
    %v3503 = vadd.f32 %v3471, 0.2548296
    %v3504 = vadd.f32 %v3472, 0.2548296
    %v3505 = vadd.f32 %v3473, 0.2548296
    %v3506 = vadd.f32 %v3474, 0.2548296
    %v3507 = vadd.f32 %v3475, 0.2548296
    %v3508 = vadd.f32 %v3476, 0.2548296
    %v3509 = vadd.f32 %v3477, 0.2548296
    %v3510 = vadd.f32 %v3478, 0.2548296
    %v3511 = vadd.f32 %v3479, 0.2548296
    %v3512 = vadd.f32 %v3480, 0.2548296
    %v3513 = vadd.f32 %v3481, 0.2548296
    %v3514 = vadd.f32 %v3482, 0.2548296
    %v3515 = vadd.f32 %v3483, 0.2548296
    %v3516 = vadd.f32 %v3484, 0.2548296
    %v3517 = vadd.f32 %v3485, 0.2548296
    %v3518 = vadd.f32 %v3486, 0.2548296
    %v3519 = vadd.f32 %v3487, 0.2548296
    %v3520 = vadd.f32 %v3488, 0.2548296
    %v3521 = vadd.f32 %v3489, 0.2548296
    %v3522 = vadd.f32 %v3490, 0.2548296
    %v3523 = vadd.f32 %v3491, 0.2548296
    %v3524 = vadd.f32 %v3492, 0.2548296
    %v3525 = vadd.f32 %v3493, 0.2548296
    %v3526 = vadd.f32 %v3494, 0.2548296
    %v3527 = vadd.f32 %v3495, 0.2548296
    %v3528 = vadd.f32 %v3496, 0.2548296
    %v3529 = vadd.f32 %v3497, 0.2548296
    %v3530 = vmul.f32 %v3498, %v3242
    %v3531 = vmul.f32 %v3499, %v3243
    %v3532 = vmul.f32 %v3500, %v3244
    %v3533 = vmul.f32 %v3501, %v3245
    %v3534 = vmul.f32 %v3502, %v3246
    %v3535 = vmul.f32 %v3503, %v3247
    %v3536 = vmul.f32 %v3504, %v3248
    %v3537 = vmul.f32 %v3505, %v3249
    %v3538 = vmul.f32 %v3506, %v3250
    %v3539 = vmul.f32 %v3507, %v3251
    %v3540 = vmul.f32 %v3508, %v3252
    %v3541 = vmul.f32 %v3509, %v3253
    %v3542 = vmul.f32 %v3510, %v3254
    %v3543 = vmul.f32 %v3511, %v3255
    %v3544 = vmul.f32 %v3512, %v3256
    %v3545 = vmul.f32 %v3513, %v3257
    %v3546 = vmul.f32 %v3514, %v3258
    %v3547 = vmul.f32 %v3515, %v3259
    %v3548 = vmul.f32 %v3516, %v3260
    %v3549 = vmul.f32 %v3517, %v3261
    %v3550 = vmul.f32 %v3518, %v3262
    %v3551 = vmul.f32 %v3519, %v3263
    %v3552 = vmul.f32 %v3520, %v3264
    %v3553 = vmul.f32 %v3521, %v3265
    %v3554 = vmul.f32 %v3522, %v3266
    %v3555 = vmul.f32 %v3523, %v3267
    %v3556 = vmul.f32 %v3524, %v3268
    %v3557 = vmul.f32 %v3525, %v3269
    %v3558 = vmul.f32 %v3526, %v3270
    %v3559 = vmul.f32 %v3527, %v3271
    %v3560 = vmul.f32 %v3528, %v3272
    %v3561 = vmul.f32 %v3529, %v3273
    %v3562 = vmul.f32 %v3146, %v3146
    %v3563 = vmul.f32 %v3147, %v3147
    %v3564 = vmul.f32 %v3148, %v3148
    %v3565 = vmul.f32 %v3149, %v3149
    %v3566 = vmul.f32 %v3150, %v3150
    %v3567 = vmul.f32 %v3151, %v3151
    %v3568 = vmul.f32 %v3152, %v3152
    %v3569 = vmul.f32 %v3153, %v3153
    %v3570 = vmul.f32 %v3154, %v3154
    %v3571 = vmul.f32 %v3155, %v3155
    %v3572 = vmul.f32 %v3156, %v3156
    %v3573 = vmul.f32 %v3157, %v3157
    %v3574 = vmul.f32 %v3158, %v3158
    %v3575 = vmul.f32 %v3159, %v3159
    %v3576 = vmul.f32 %v3160, %v3160
    %v3577 = vmul.f32 %v3161, %v3161
    %v3578 = vmul.f32 %v3162, %v3162
    %v3579 = vmul.f32 %v3163, %v3163
    %v3580 = vmul.f32 %v3164, %v3164
    %v3581 = vmul.f32 %v3165, %v3165
    %v3582 = vmul.f32 %v3166, %v3166
    %v3583 = vmul.f32 %v3167, %v3167
    %v3584 = vmul.f32 %v3168, %v3168
    %v3585 = vmul.f32 %v3169, %v3169
    %v3586 = vmul.f32 %v3170, %v3170
    %v3587 = vmul.f32 %v3171, %v3171
    %v3588 = vmul.f32 %v3172, %v3172
    %v3589 = vmul.f32 %v3173, %v3173
    %v3590 = vmul.f32 %v3174, %v3174
    %v3591 = vmul.f32 %v3175, %v3175
    %v3592 = vmul.f32 %v3176, %v3176
    %v3593 = vmul.f32 %v3177, %v3177
    %v3594 = vsub.f32 0.0, %v3562
    %v3595 = vsub.f32 0.0, %v3563
    %v3596 = vsub.f32 0.0, %v3564
    %v3597 = vsub.f32 0.0, %v3565
    %v3598 = vsub.f32 0.0, %v3566
    %v3599 = vsub.f32 0.0, %v3567
    %v3600 = vsub.f32 0.0, %v3568
    %v3601 = vsub.f32 0.0, %v3569
    %v3602 = vsub.f32 0.0, %v3570
    %v3603 = vsub.f32 0.0, %v3571
    %v3604 = vsub.f32 0.0, %v3572
    %v3605 = vsub.f32 0.0, %v3573
    %v3606 = vsub.f32 0.0, %v3574
    %v3607 = vsub.f32 0.0, %v3575
    %v3608 = vsub.f32 0.0, %v3576
    %v3609 = vsub.f32 0.0, %v3577
    %v3610 = vsub.f32 0.0, %v3578
    %v3611 = vsub.f32 0.0, %v3579
    %v3612 = vsub.f32 0.0, %v3580
    %v3613 = vsub.f32 0.0, %v3581
    %v3614 = vsub.f32 0.0, %v3582
    %v3615 = vsub.f32 0.0, %v3583
    %v3616 = vsub.f32 0.0, %v3584
    %v3617 = vsub.f32 0.0, %v3585
    %v3618 = vsub.f32 0.0, %v3586
    %v3619 = vsub.f32 0.0, %v3587
    %v3620 = vsub.f32 0.0, %v3588
    %v3621 = vsub.f32 0.0, %v3589
    %v3622 = vsub.f32 0.0, %v3590
    %v3623 = vsub.f32 0.0, %v3591
    %v3624 = vsub.f32 0.0, %v3592
    %v3625 = vsub.f32 0.0, %v3593
    %v3626 = vmul.f32 %v3594, 1.442695
    %v3627 = vpow.pop %v3626
    %v3628 = vmul.f32 %v3595, 1.442695
    %v3629 = vpow.pop %v3628
    %v3630 = vmul.f32 %v3596, 1.442695
    %v3631 = vpow.pop %v3630
    %v3632 = vmul.f32 %v3597, 1.442695
    %v3633 = vpow.pop %v3632
    %v3634 = vmul.f32 %v3598, 1.442695
    %v3635 = vpow.pop %v3634
    %v3636 = vmul.f32 %v3599, 1.442695
    %v3637 = vpow.pop %v3636
    %v3638 = vmul.f32 %v3600, 1.442695
    %v3639 = vpow.pop %v3638
    %v3640 = vmul.f32 %v3601, 1.442695
    %v3641 = vpow.pop %v3640
    %v3642 = vmul.f32 %v3602, 1.442695
    %v3643 = vpow.pop %v3642
    %v3644 = vmul.f32 %v3603, 1.442695
    %v3645 = vpow.pop %v3644
    %v3646 = vmul.f32 %v3604, 1.442695
    %v3647 = vpow.pop %v3646
    %v3648 = vmul.f32 %v3605, 1.442695
    %v3649 = vpow.pop %v3648
    %v3650 = vmul.f32 %v3606, 1.442695
    %v3651 = vpow.pop %v3650
    %v3652 = vmul.f32 %v3607, 1.442695
    %v3653 = vpow.pop %v3652
    %v3654 = vmul.f32 %v3608, 1.442695
    %v3655 = vpow.pop %v3654
    %v3656 = vmul.f32 %v3609, 1.442695
    %v3657 = vpow.pop %v3656
    %v3658 = vmul.f32 %v3610, 1.442695
    %v3659 = vpow.pop %v3658
    %v3660 = vmul.f32 %v3611, 1.442695
    %v3661 = vpow.pop %v3660
    %v3662 = vmul.f32 %v3612, 1.442695
    %v3663 = vpow.pop %v3662
    %v3664 = vmul.f32 %v3613, 1.442695
    %v3665 = vpow.pop %v3664
    %v3666 = vmul.f32 %v3614, 1.442695
    %v3667 = vpow.pop %v3666
    %v3668 = vmul.f32 %v3615, 1.442695
    %v3669 = vpow.pop %v3668
    %v3670 = vmul.f32 %v3616, 1.442695
    %v3671 = vpow.pop %v3670
    %v3672 = vmul.f32 %v3617, 1.442695
    %v3673 = vpow.pop %v3672
    %v3674 = vmul.f32 %v3618, 1.442695
    %v3675 = vpow.pop %v3674
    %v3676 = vmul.f32 %v3619, 1.442695
    %v3677 = vpow.pop %v3676
    %v3678 = vmul.f32 %v3620, 1.442695
    %v3679 = vpow.pop %v3678
    %v3680 = vmul.f32 %v3621, 1.442695
    %v3681 = vpow.pop %v3680
    %v3682 = vmul.f32 %v3622, 1.442695
    %v3683 = vpow.pop %v3682
    %v3684 = vmul.f32 %v3623, 1.442695
    %v3685 = vpow.pop %v3684
    %v3686 = vmul.f32 %v3624, 1.442695
    %v3687 = vpow.pop %v3686
    %v3688 = vmul.f32 %v3625, 1.442695
    %v3689 = vpow.pop %v3688
    %v3690 = vmul.f32 %v3530, %v3627
    %v3691 = vmul.f32 %v3531, %v3629
    %v3692 = vmul.f32 %v3532, %v3631
    %v3693 = vmul.f32 %v3533, %v3633
    %v3694 = vmul.f32 %v3534, %v3635
    %v3695 = vmul.f32 %v3535, %v3637
    %v3696 = vmul.f32 %v3536, %v3639
    %v3697 = vmul.f32 %v3537, %v3641
    %v3698 = vmul.f32 %v3538, %v3643
    %v3699 = vmul.f32 %v3539, %v3645
    %v3700 = vmul.f32 %v3540, %v3647
    %v3701 = vmul.f32 %v3541, %v3649
    %v3702 = vmul.f32 %v3542, %v3651
    %v3703 = vmul.f32 %v3543, %v3653
    %v3704 = vmul.f32 %v3544, %v3655
    %v3705 = vmul.f32 %v3545, %v3657
    %v3706 = vmul.f32 %v3546, %v3659
    %v3707 = vmul.f32 %v3547, %v3661
    %v3708 = vmul.f32 %v3548, %v3663
    %v3709 = vmul.f32 %v3549, %v3665
    %v3710 = vmul.f32 %v3550, %v3667
    %v3711 = vmul.f32 %v3551, %v3669
    %v3712 = vmul.f32 %v3552, %v3671
    %v3713 = vmul.f32 %v3553, %v3673
    %v3714 = vmul.f32 %v3554, %v3675
    %v3715 = vmul.f32 %v3555, %v3677
    %v3716 = vmul.f32 %v3556, %v3679
    %v3717 = vmul.f32 %v3557, %v3681
    %v3718 = vmul.f32 %v3558, %v3683
    %v3719 = vmul.f32 %v3559, %v3685
    %v3720 = vmul.f32 %v3560, %v3687
    %v3721 = vmul.f32 %v3561, %v3689
    %v3722 = vsub.f32 1.0, %v3690
    %v3723 = vsub.f32 1.0, %v3691
    %v3724 = vsub.f32 1.0, %v3692
    %v3725 = vsub.f32 1.0, %v3693
    %v3726 = vsub.f32 1.0, %v3694
    %v3727 = vsub.f32 1.0, %v3695
    %v3728 = vsub.f32 1.0, %v3696
    %v3729 = vsub.f32 1.0, %v3697
    %v3730 = vsub.f32 1.0, %v3698
    %v3731 = vsub.f32 1.0, %v3699
    %v3732 = vsub.f32 1.0, %v3700
    %v3733 = vsub.f32 1.0, %v3701
    %v3734 = vsub.f32 1.0, %v3702
    %v3735 = vsub.f32 1.0, %v3703
    %v3736 = vsub.f32 1.0, %v3704
    %v3737 = vsub.f32 1.0, %v3705
    %v3738 = vsub.f32 1.0, %v3706
    %v3739 = vsub.f32 1.0, %v3707
    %v3740 = vsub.f32 1.0, %v3708
    %v3741 = vsub.f32 1.0, %v3709
    %v3742 = vsub.f32 1.0, %v3710
    %v3743 = vsub.f32 1.0, %v3711
    %v3744 = vsub.f32 1.0, %v3712
    %v3745 = vsub.f32 1.0, %v3713
    %v3746 = vsub.f32 1.0, %v3714
    %v3747 = vsub.f32 1.0, %v3715
    %v3748 = vsub.f32 1.0, %v3716
    %v3749 = vsub.f32 1.0, %v3717
    %v3750 = vsub.f32 1.0, %v3718
    %v3751 = vsub.f32 1.0, %v3719
    %v3752 = vsub.f32 1.0, %v3720
    %v3753 = vsub.f32 1.0, %v3721
    %vm3754 = vcmp.ge.f32.partialorder %v3114, 0.0
    %vm3755 = vcmp.ge.f32.partialorder %v3115, 0.0
    %vm3756 = vcmp.ge.f32.partialorder %v3116, 0.0
    %vm3757 = vcmp.ge.f32.partialorder %v3117, 0.0
    %vm3758 = vcmp.ge.f32.partialorder %v3118, 0.0
    %vm3759 = vcmp.ge.f32.partialorder %v3119, 0.0
    %vm3760 = vcmp.ge.f32.partialorder %v3120, 0.0
    %vm3761 = vcmp.ge.f32.partialorder %v3121, 0.0
    %vm3762 = vcmp.ge.f32.partialorder %v3122, 0.0
    %vm3763 = vcmp.ge.f32.partialorder %v3123, 0.0
    %vm3764 = vcmp.ge.f32.partialorder %v3124, 0.0
    %vm3765 = vcmp.ge.f32.partialorder %v3125, 0.0
    %vm3766 = vcmp.ge.f32.partialorder %v3126, 0.0
    %vm3767 = vcmp.ge.f32.partialorder %v3127, 0.0
    %vm3768 = vcmp.ge.f32.partialorder %v3128, 0.0
    %vm3769 = vcmp.ge.f32.partialorder %v3129, 0.0
    %vm3770 = vcmp.ge.f32.partialorder %v3130, 0.0
    %vm3771 = vcmp.ge.f32.partialorder %v3131, 0.0
    %vm3772 = vcmp.ge.f32.partialorder %v3132, 0.0
    %vm3773 = vcmp.ge.f32.partialorder %v3133, 0.0
    %vm3774 = vcmp.ge.f32.partialorder %v3134, 0.0
    %vm3775 = vcmp.ge.f32.partialorder %v3135, 0.0
    %vm3776 = vcmp.ge.f32.partialorder %v3136, 0.0
    %vm3777 = vcmp.ge.f32.partialorder %v3137, 0.0
    %vm3778 = vcmp.ge.f32.partialorder %v3138, 0.0
    %vm3779 = vcmp.ge.f32.partialorder %v3139, 0.0
    %vm3780 = vcmp.ge.f32.partialorder %v3140, 0.0
    %vm3781 = vcmp.ge.f32.partialorder %v3141, 0.0
    %vm3782 = vcmp.ge.f32.partialorder %v3142, 0.0
    %vm3783 = vcmp.ge.f32.partialorder %v3143, 0.0
    %vm3784 = vcmp.ge.f32.partialorder %v3144, 0.0
    %vm3785 = vcmp.ge.f32.partialorder %v3145, 0.0
    %v3786 = vsub.f32 0.0, %v3722
    %v3787 = vsub.f32 0.0, %v3723
    %v3788 = vsub.f32 0.0, %v3724
    %v3789 = vsub.f32 0.0, %v3725
    %v3790 = vsub.f32 0.0, %v3726
    %v3791 = vsub.f32 0.0, %v3727
    %v3792 = vsub.f32 0.0, %v3728
    %v3793 = vsub.f32 0.0, %v3729
    %v3794 = vsub.f32 0.0, %v3730
    %v3795 = vsub.f32 0.0, %v3731
    %v3796 = vsub.f32 0.0, %v3732
    %v3797 = vsub.f32 0.0, %v3733
    %v3798 = vsub.f32 0.0, %v3734
    %v3799 = vsub.f32 0.0, %v3735
    %v3800 = vsub.f32 0.0, %v3736
    %v3801 = vsub.f32 0.0, %v3737
    %v3802 = vsub.f32 0.0, %v3738
    %v3803 = vsub.f32 0.0, %v3739
    %v3804 = vsub.f32 0.0, %v3740
    %v3805 = vsub.f32 0.0, %v3741
    %v3806 = vsub.f32 0.0, %v3742
    %v3807 = vsub.f32 0.0, %v3743
    %v3808 = vsub.f32 0.0, %v3744
    %v3809 = vsub.f32 0.0, %v3745
    %v3810 = vsub.f32 0.0, %v3746
    %v3811 = vsub.f32 0.0, %v3747
    %v3812 = vsub.f32 0.0, %v3748
    %v3813 = vsub.f32 0.0, %v3749
    %v3814 = vsub.f32 0.0, %v3750
    %v3815 = vsub.f32 0.0, %v3751
    %v3816 = vsub.f32 0.0, %v3752
    %v3817 = vsub.f32 0.0, %v3753
    %v3818 = vsel %vm3754, %v3722, %v3786
    %v3819 = vsel %vm3755, %v3723, %v3787
    %v3820 = vsel %vm3756, %v3724, %v3788
    %v3821 = vsel %vm3757, %v3725, %v3789
    %v3822 = vsel %vm3758, %v3726, %v3790
    %v3823 = vsel %vm3759, %v3727, %v3791
    %v3824 = vsel %vm3760, %v3728, %v3792
    %v3825 = vsel %vm3761, %v3729, %v3793
    %v3826 = vsel %vm3762, %v3730, %v3794
    %v3827 = vsel %vm3763, %v3731, %v3795
    %v3828 = vsel %vm3764, %v3732, %v3796
    %v3829 = vsel %vm3765, %v3733, %v3797
    %v3830 = vsel %vm3766, %v3734, %v3798
    %v3831 = vsel %vm3767, %v3735, %v3799
    %v3832 = vsel %vm3768, %v3736, %v3800
    %v3833 = vsel %vm3769, %v3737, %v3801
    %v3834 = vsel %vm3770, %v3738, %v3802
    %v3835 = vsel %vm3771, %v3739, %v3803
    %v3836 = vsel %vm3772, %v3740, %v3804
    %v3837 = vsel %vm3773, %v3741, %v3805
    %v3838 = vsel %vm3774, %v3742, %v3806
    %v3839 = vsel %vm3775, %v3743, %v3807
    %v3840 = vsel %vm3776, %v3744, %v3808
    %v3841 = vsel %vm3777, %v3745, %v3809
    %v3842 = vsel %vm3778, %v3746, %v3810
    %v3843 = vsel %vm3779, %v3747, %v3811
    %v3844 = vsel %vm3780, %v3748, %v3812
    %v3845 = vsel %vm3781, %v3749, %v3813
    %v3846 = vsel %vm3782, %v3750, %v3814
    %v3847 = vsel %vm3783, %v3751, %v3815
    %v3848 = vsel %vm3784, %v3752, %v3816
    %v3849 = vsel %vm3785, %v3753, %v3817
    %v3850 = vmul.f32 %v3003, 0.5
    %v3851 = vmul.f32 %v3005, 0.5
    %v3852 = vmul.f32 %v3076, 0.5
    %v3853 = vmul.f32 %v3078, 0.5
    %v3854 = vmul.f32 %v3007, 0.5
    %v3855 = vmul.f32 %v3009, 0.5
    %v3856 = vmul.f32 %v3080, 0.5
    %v3857 = vmul.f32 %v3082, 0.5
    %v3858 = vmul.f32 %v3013, 0.5
    %v3859 = vmul.f32 %v3015, 0.5
    %v3860 = vmul.f32 %v3086, 0.5
    %v3861 = vmul.f32 %v3088, 0.5
    %v3862 = vmul.f32 %v3017, 0.5
    %v3863 = vmul.f32 %v3019, 0.5
    %v3864 = vmul.f32 %v3090, 0.5
    %v3865 = vmul.f32 %v3092, 0.5
    %v3866 = vmul.f32 %v3023, 0.5
    %v3867 = vmul.f32 %v3025, 0.5
    %v3868 = vmul.f32 %v3096, 0.5
    %v3869 = vmul.f32 %v3098, 0.5
    %v3870 = vmul.f32 %v3027, 0.5
    %v3871 = vmul.f32 %v3029, 0.5
    %v3872 = vmul.f32 %v3100, 0.5
    %v3873 = vmul.f32 %v3102, 0.5
    %v3874 = vmul.f32 %v3033, 0.5
    %v3875 = vmul.f32 %v3035, 0.5
    %v3876 = vmul.f32 %v3106, 0.5
    %v3877 = vmul.f32 %v3108, 0.5
    %v3878 = vmul.f32 %v3037, 0.5
    %v3879 = vmul.f32 %v3039, 0.5
    %v3880 = vmul.f32 %v3110, 0.5
    %v3881 = vmul.f32 %v3112, 0.5
    %v3882 = vadd.f32 %v3818, 1.0
    %v3883 = vadd.f32 %v3819, 1.0
    %v3884 = vadd.f32 %v3820, 1.0
    %v3885 = vadd.f32 %v3821, 1.0
    %v3886 = vadd.f32 %v3822, 1.0
    %v3887 = vadd.f32 %v3823, 1.0
    %v3888 = vadd.f32 %v3824, 1.0
    %v3889 = vadd.f32 %v3825, 1.0
    %v3890 = vadd.f32 %v3826, 1.0
    %v3891 = vadd.f32 %v3827, 1.0
    %v3892 = vadd.f32 %v3828, 1.0
    %v3893 = vadd.f32 %v3829, 1.0
    %v3894 = vadd.f32 %v3830, 1.0
    %v3895 = vadd.f32 %v3831, 1.0
    %v3896 = vadd.f32 %v3832, 1.0
    %v3897 = vadd.f32 %v3833, 1.0
    %v3898 = vadd.f32 %v3834, 1.0
    %v3899 = vadd.f32 %v3835, 1.0
    %v3900 = vadd.f32 %v3836, 1.0
    %v3901 = vadd.f32 %v3837, 1.0
    %v3902 = vadd.f32 %v3838, 1.0
    %v3903 = vadd.f32 %v3839, 1.0
    %v3904 = vadd.f32 %v3840, 1.0
    %v3905 = vadd.f32 %v3841, 1.0
    %v3906 = vadd.f32 %v3842, 1.0
    %v3907 = vadd.f32 %v3843, 1.0
    %v3908 = vadd.f32 %v3844, 1.0
    %v3909 = vadd.f32 %v3845, 1.0
    %v3910 = vadd.f32 %v3846, 1.0
    %v3911 = vadd.f32 %v3847, 1.0
    %v3912 = vadd.f32 %v3848, 1.0
    %v3913 = vadd.f32 %v3849, 1.0
    %v3914 = vmul.f32 %v3850, %v3882
    %v3915 = vmul.f32 %v3851, %v3883
    %v3916 = vmul.f32 %v3852, %v3884
    %v3917 = vmul.f32 %v3853, %v3885
    %v3918 = vmul.f32 %v3854, %v3886
    %v3919 = vmul.f32 %v3855, %v3887
    %v3920 = vmul.f32 %v3856, %v3888
    %v3921 = vmul.f32 %v3857, %v3889
    %v3922 = vmul.f32 %v3858, %v3890
    %v3923 = vmul.f32 %v3859, %v3891
    %v3924 = vmul.f32 %v3860, %v3892
    %v3925 = vmul.f32 %v3861, %v3893
    %v3926 = vmul.f32 %v3862, %v3894
    %v3927 = vmul.f32 %v3863, %v3895
    %v3928 = vmul.f32 %v3864, %v3896
    %v3929 = vmul.f32 %v3865, %v3897
    %v3930 = vmul.f32 %v3866, %v3898
    %v3931 = vmul.f32 %v3867, %v3899
    %v3932 = vmul.f32 %v3868, %v3900
    %v3933 = vmul.f32 %v3869, %v3901
    %v3934 = vmul.f32 %v3870, %v3902
    %v3935 = vmul.f32 %v3871, %v3903
    %v3936 = vmul.f32 %v3872, %v3904
    %v3937 = vmul.f32 %v3873, %v3905
    %v3938 = vmul.f32 %v3874, %v3906
    %v3939 = vmul.f32 %v3875, %v3907
    %v3940 = vmul.f32 %v3876, %v3908
    %v3941 = vmul.f32 %v3877, %v3909
    %v3942 = vmul.f32 %v3878, %v3910
    %v3943 = vmul.f32 %v3879, %v3911
    %v3944 = vmul.f32 %v3880, %v3912
    %v3945 = vmul.f32 %v3881, %v3913
    %v3946 = vpack.c.bf16 %v3918, %v3914
    %v3947 = vpack.c.bf16 %v3919, %v3915
    %v3948 = vpack.c.bf16 %v3920, %v3916
    %v3949 = vpack.c.bf16 %v3921, %v3917
    %v3950 = vpack.c.bf16 %v3926, %v3922
    %v3951 = vpack.c.bf16 %v3927, %v3923
    %v3952 = vpack.c.bf16 %v3928, %v3924
    %v3953 = vpack.c.bf16 %v3929, %v3925
    %v3954 = vpack.c.bf16 %v3934, %v3930
    %v3955 = vpack.c.bf16 %v3935, %v3931
    %v3956 = vpack.c.bf16 %v3936, %v3932
    %v3957 = vpack.c.bf16 %v3937, %v3933
    %v3958 = vpack.c.bf16 %v3942, %v3938
    %v3959 = vpack.c.bf16 %v3943, %v3939
    %v3960 = vpack.c.bf16 %v3944, %v3940
    %v3961 = vpack.c.bf16 %v3945, %v3941
    %v4026 = vunpack.c.l.b16 %v364
    %v4027 = vunpack.c.l.b16 %v365
    %v4028 = vunpack.c.l.b16 %v366
    %v4029 = vunpack.c.l.b16 %v367
    %v4030 = vunpack.c.l.b16 %v368
    %v4031 = vunpack.c.l.b16 %v369
    %v4032 = vunpack.c.l.b16 %v370
    %v4033 = vunpack.c.l.b16 %v371
    %v4034 = vunpack.c.l.b16 %v372
    %v4035 = vunpack.c.l.b16 %v373
    %v4036 = vunpack.c.l.b16 %v374
    %v4037 = vunpack.c.l.b16 %v375
    %v4038 = vunpack.c.l.b16 %v376
    %v4039 = vunpack.c.l.b16 %v377
    %v4040 = vunpack.c.l.b16 %v378
    %v4041 = vunpack.c.l.b16 %v379
    %v4042 = vunpack.c.l.b16 %v380
    %v4043 = vunpack.c.l.b16 %v381
    %v4044 = vunpack.c.l.b16 %v382
    %v4045 = vunpack.c.l.b16 %v383
    %v4046 = vunpack.c.l.b16 %v384
    %v4047 = vunpack.c.l.b16 %v385
    %v4048 = vunpack.c.l.b16 %v386
    %v4049 = vunpack.c.l.b16 %v387
    %v4050 = vunpack.c.l.b16 %v388
    %v4051 = vunpack.c.l.b16 %v389
    %v4052 = vunpack.c.l.b16 %v390
    %v4053 = vunpack.c.l.b16 %v391
    %v4054 = vunpack.c.l.b16 %v392
    %v4055 = vunpack.c.l.b16 %v393
    %v4056 = vunpack.c.l.b16 %v394
    %v4057 = vunpack.c.l.b16 %v395
    %v4058 = vunpack.c.l.b16 %v396
    %v4059 = vunpack.c.l.b16 %v397
    %v4060 = vunpack.c.l.b16 %v398
    %v4061 = vunpack.c.l.b16 %v399
    %v4062 = vunpack.c.l.b16 %v400
    %v4063 = vunpack.c.l.b16 %v401
    %v4064 = vunpack.c.l.b16 %v402
    %v4065 = vunpack.c.l.b16 %v403
    %v4066 = vunpack.c.l.b16 %v404
    %v4067 = vunpack.c.l.b16 %v405
    %v4068 = vunpack.c.l.b16 %v406
    %v4069 = vunpack.c.l.b16 %v407
    %v4070 = vunpack.c.l.b16 %v408
    %v4071 = vunpack.c.l.b16 %v409
    %v4072 = vunpack.c.l.b16 %v410
    %v4073 = vunpack.c.l.b16 %v411
    %v4074 = vunpack.c.l.b16 %v412
    %v4075 = vunpack.c.l.b16 %v413
    %v4076 = vunpack.c.l.b16 %v414
    %v4077 = vunpack.c.l.b16 %v415
    %v4078 = vunpack.c.l.b16 %v416
    %v4079 = vunpack.c.l.b16 %v417
    %v4080 = vunpack.c.l.b16 %v418
    %v4081 = vunpack.c.l.b16 %v419
    %v4082 = vunpack.c.l.b16 %v420
    %v4083 = vunpack.c.l.b16 %v421
    %v4084 = vunpack.c.l.b16 %v422
    %v4085 = vunpack.c.l.b16 %v423
    %v4086 = vunpack.c.l.b16 %v424
    %v4087 = vunpack.c.l.b16 %v425
    %v4088 = vunpack.c.l.b16 %v426
    %v4089 = vunpack.c.l.b16 %v427
    %v4090 = vpack.c.b16 %v4027, %v4026
    %v4091 = vpack.c.b16 %v4029, %v4028
    %v4092 = vpack.c.b16 %v4031, %v4030
    %v4093 = vpack.c.b16 %v4033, %v4032
    %v4094 = vpack.c.b16 %v4035, %v4034
    %v4095 = vpack.c.b16 %v4037, %v4036
    %v4096 = vpack.c.b16 %v4039, %v4038
    %v4097 = vpack.c.b16 %v4041, %v4040
    %v4098 = vpack.c.b16 %v4043, %v4042
    %v4099 = vpack.c.b16 %v4045, %v4044
    %v4100 = vpack.c.b16 %v4047, %v4046
    %v4101 = vpack.c.b16 %v4049, %v4048
    %v4102 = vpack.c.b16 %v4051, %v4050
    %v4103 = vpack.c.b16 %v4053, %v4052
    %v4104 = vpack.c.b16 %v4055, %v4054
    %v4105 = vpack.c.b16 %v4057, %v4056
    %v4106 = vpack.c.b16 %v4059, %v4058
    %v4107 = vpack.c.b16 %v4061, %v4060
    %v4108 = vpack.c.b16 %v4063, %v4062
    %v4109 = vpack.c.b16 %v4065, %v4064
    %v4110 = vpack.c.b16 %v4067, %v4066
    %v4111 = vpack.c.b16 %v4069, %v4068
    %v4112 = vpack.c.b16 %v4071, %v4070
    %v4113 = vpack.c.b16 %v4073, %v4072
    %v4114 = vpack.c.b16 %v4075, %v4074
    %v4115 = vpack.c.b16 %v4077, %v4076
    %v4116 = vpack.c.b16 %v4079, %v4078
    %v4117 = vpack.c.b16 %v4081, %v4080
    %v4118 = vpack.c.b16 %v4083, %v4082
    %v4119 = vpack.c.b16 %v4085, %v4084
    %v4120 = vpack.c.b16 %v4087, %v4086
    %v4121 = vpack.c.b16 %v4089, %v4088
    %4154 = vmatprep.subr.bf16.mxu0 0
    %4155 = vmatpush1.bf16.msra.mxu0 %v4090
    %4156 = vmatprep.subr.bf16.mxu0 0
    %4157 = vmatpush1.bf16.msra.mxu0 %v4091
    %4158 = vmatprep.subr.bf16.mxu0 0
    %4159 = vmatpush1.bf16.msra.mxu0 %v4092
    %4160 = vmatprep.subr.bf16.mxu0 0
    %4161 = vmatpush1.bf16.msra.mxu0 %v4093
    %4162 = vmatprep.subr.bf16.mxu0 0
    %4163 = vmatpush1.bf16.msra.mxu0 %v4094
    %4164 = vmatprep.subr.bf16.mxu0 0
    %4165 = vmatpush1.bf16.msra.mxu0 %v4095
    %4166 = vmatprep.subr.bf16.mxu0 0
    %4167 = vmatpush1.bf16.msra.mxu0 %v4096
    %4168 = vmatprep.subr.bf16.mxu0 0
    %4169 = vmatpush1.bf16.msra.mxu0 %v4097
    %4170 = vmatprep.subr.bf16.mxu0 0
    %4171 = vmatpush1.bf16.msra.mxu0 %v4098
    %4172 = vmatprep.subr.bf16.mxu0 0
    %4173 = vmatpush1.bf16.msra.mxu0 %v4099
    %4174 = vmatprep.subr.bf16.mxu0 0
    %4175 = vmatpush1.bf16.msra.mxu0 %v4100
    %4176 = vmatprep.subr.bf16.mxu0 0
    %4177 = vmatpush1.bf16.msra.mxu0 %v4101
    %4178 = vmatprep.subr.bf16.mxu0 0
    %4179 = vmatpush1.bf16.msra.mxu0 %v4102
    %4180 = vmatprep.subr.bf16.mxu0 0
    %4181 = vmatpush1.bf16.msra.mxu0 %v4103
    %4182 = vmatprep.subr.bf16.mxu0 0
    %4183 = vmatpush1.bf16.msra.mxu0 %v4104
    %4184 = vmatprep.subr.bf16.mxu0 0
    %4185 = vmatpush1.bf16.msra.mxu0 %v4105
    %4186 = vmatprep.mubr.bf16.mxu0 %v3947
    %4187 = vmatmul.mubr.bf16.gmra.mrb[0].mxu0 %v3946
    %v4188 = vpop.f32.mrb[0].mxu0
    %v4189 = vadd.f32 0.0, %v4188
    %v4190 = vpop.f32.mrb[0].mxu0
    %v4191 = vpop.f32.mrb[0].mxu0
    %v4192 = vadd.f32 0.0, %v4191
    %v4193 = vpop.f32.mrb[0].mxu0
    %4194 = vmatprep.mubr.bf16.mxu0 %v3951
    %4195 = vmatmul.mubr.bf16.gmra.mrb[0].mxu0 %v3950
    %v4196 = vpop.f32.mrb[0].mxu0
    %v4197 = vadd.f32 0.0, %v4196
    %v4198 = vpop.f32.mrb[0].mxu0
    %v4199 = vpop.f32.mrb[0].mxu0
    %v4200 = vadd.f32 0.0, %v4199
    %v4201 = vpop.f32.mrb[0].mxu0
    %4202 = vmatprep.mubr.bf16.mxu0 %v3955
    %4203 = vmatmul.mubr.bf16.gmra.mrb[0].mxu0 %v3954
    %v4204 = vpop.f32.mrb[0].mxu0
    %v4205 = vadd.f32 0.0, %v4204
    %v4206 = vpop.f32.mrb[0].mxu0
    %v4207 = vpop.f32.mrb[0].mxu0
    %v4208 = vadd.f32 0.0, %v4207
    %v4209 = vpop.f32.mrb[0].mxu0
    %4210 = vmatprep.mubr.bf16.mxu0 %v3959
    %4211 = vmatmul.mubr.bf16.gmra.mrb[0].mxu0 %v3958
    %v4212 = vpop.f32.mrb[0].mxu0
    %v4213 = vadd.f32 0.0, %v4212
    %v4214 = vpop.f32.mrb[0].mxu0
    %v4215 = vpop.f32.mrb[0].mxu0
    %v4216 = vadd.f32 0.0, %v4215
    %v4217 = vpop.f32.mrb[0].mxu0
    %4218 = vdwg.mxu0
    %4219 = vmatprep.subr.bf16.mxu0 0
    %4220 = vmatpush1.bf16.msra.mxu0 %v4106
    %4221 = vmatprep.subr.bf16.mxu0 0
    %4222 = vmatpush1.bf16.msra.mxu0 %v4107
    %4223 = vmatprep.subr.bf16.mxu0 0
    %4224 = vmatpush1.bf16.msra.mxu0 %v4108
    %4225 = vmatprep.subr.bf16.mxu0 0
    %4226 = vmatpush1.bf16.msra.mxu0 %v4109
    %4227 = vmatprep.subr.bf16.mxu0 0
    %4228 = vmatpush1.bf16.msra.mxu0 %v4110
    %4229 = vmatprep.subr.bf16.mxu0 0
    %4230 = vmatpush1.bf16.msra.mxu0 %v4111
    %4231 = vmatprep.subr.bf16.mxu0 0
    %4232 = vmatpush1.bf16.msra.mxu0 %v4112
    %4233 = vmatprep.subr.bf16.mxu0 0
    %4234 = vmatpush1.bf16.msra.mxu0 %v4113
    %4235 = vmatprep.subr.bf16.mxu0 0
    %4236 = vmatpush1.bf16.msra.mxu0 %v4114
    %4237 = vmatprep.subr.bf16.mxu0 0
    %4238 = vmatpush1.bf16.msra.mxu0 %v4115
    %4239 = vmatprep.subr.bf16.mxu0 0
    %4240 = vmatpush1.bf16.msra.mxu0 %v4116
    %4241 = vmatprep.subr.bf16.mxu0 0
    %4242 = vmatpush1.bf16.msra.mxu0 %v4117
    %4243 = vmatprep.subr.bf16.mxu0 0
    %4244 = vmatpush1.bf16.msra.mxu0 %v4118
    %4245 = vmatprep.subr.bf16.mxu0 0
    %4246 = vmatpush1.bf16.msra.mxu0 %v4119
    %4247 = vmatprep.subr.bf16.mxu0 0
    %4248 = vmatpush1.bf16.msra.mxu0 %v4120
    %4249 = vmatprep.subr.bf16.mxu0 0
    %4250 = vmatpush1.bf16.msra.mxu0 %v4121
    %4251 = vmatprep.mubr.bf16.mxu0 %v3949
    %4252 = vmatmul.mubr.bf16.gmra.mrb[0].mxu0 %v3948
    %v4253 = vpop.f32.mrb[0].mxu0
    %v4254 = vadd.f32 %v4189, %v4253
    %v4255 = vpop.f32.mrb[0].mxu0
    %v4256 = vpop.f32.mrb[0].mxu0
    %v4257 = vadd.f32 %v4192, %v4256
    %v4258 = vpop.f32.mrb[0].mxu0
    %4259 = vmatprep.mubr.bf16.mxu0 %v3953
    %4260 = vmatmul.mubr.bf16.gmra.mrb[0].mxu0 %v3952
    %v4261 = vpop.f32.mrb[0].mxu0
    %v4262 = vadd.f32 %v4197, %v4261
    %v4263 = vpop.f32.mrb[0].mxu0
    %v4264 = vpop.f32.mrb[0].mxu0
    %v4265 = vadd.f32 %v4200, %v4264
    %v4266 = vpop.f32.mrb[0].mxu0
    %4267 = vmatprep.mubr.bf16.mxu0 %v3957
    %4268 = vmatmul.mubr.bf16.gmra.mrb[0].mxu0 %v3956
    %v4269 = vpop.f32.mrb[0].mxu0
    %v4270 = vadd.f32 %v4205, %v4269
    %v4271 = vpop.f32.mrb[0].mxu0
    %v4272 = vpop.f32.mrb[0].mxu0
    %v4273 = vadd.f32 %v4208, %v4272
    %v4274 = vpop.f32.mrb[0].mxu0
    %4275 = vmatprep.mubr.bf16.mxu0 %v3961
    %4276 = vmatmul.mubr.bf16.gmra.mrb[0].mxu0 %v3960
    %v4277 = vpop.f32.mrb[0].mxu0
    %v4278 = vadd.f32 %v4213, %v4277
    %v4279 = vpop.f32.mrb[0].mxu0
    %v4280 = vpop.f32.mrb[0].mxu0
    %v4281 = vadd.f32 %v4216, %v4280
    %v4282 = vpop.f32.mrb[0].mxu0
    %4283 = vdwg.mxu0
    %v4284 = vadd.f32 %v2663, %v4254
    %v4285 = vadd.f32 %v2664, %v4257
    %v4286 = vadd.f32 %v2665, %v4262
    %v4287 = vadd.f32 %v2666, %v4265
    %v4288 = vadd.f32 %v2667, %v4270
    %v4289 = vadd.f32 %v2668, %v4273
    %v4290 = vadd.f32 %v2669, %v4278
    %v4291 = vadd.f32 %v2670, %v4281
    %v4292 = vlaneseq
    %v4293 = vshrl.u32 %v4292, 7
    %v4294 = vsub.s32 0, %v4293
    %v4295 = vrot.slane %v280, %v4294
    %v4296 = vadd.f32 %v4284, %v4295
    %v4297 = vadd.f32 %v4285, %v4295
    %v4298 = vadd.f32 %v4286, %v4295
    %v4299 = vadd.f32 %v4287, %v4295
    %v4300 = vadd.f32 %v4288, %v4295
    %v4301 = vadd.f32 %v4289, %v4295
    %v4302 = vadd.f32 %v4290, %v4295
    %v4303 = vadd.f32 %v4291, %v4295
    %v4304 = vld [vmem:[%s3 + $0x46] sm:$0x1]
    %v4305 = vld [vmem:[%s3 + $0x47] sm:$0x1]
    %v4306 = vld [vmem:[%s3 + $0x48] sm:$0x1]
    %v4307 = vld [vmem:[%s3 + $0x49] sm:$0x1]
    %v4308 = vld [vmem:[%s3 + $0x4a] sm:$0x1]
    %v4309 = vld [vmem:[%s3 + $0x4b] sm:$0x1]
    %s4310 = scalar_lea.vmem %s4, 1
    %v4311 = vld [vmem:[%s4310] ss:$8 sm:$0x7]
    %s4312 = scalar_lea.vmem %s4, 3
    %v4313 = vld [vmem:[%s4312] ss:$8 sm:$0xf]
    %v4314 = vld [vmem:[%s2 + $0x100] sm:$0xff]
    %v4315 = vld [vmem:[%s2 + $0x108] sm:$0xf]
    %v4316 = vld [vmem:[%s2 + $0x110] sm:$0xff]
    %v4317 = vld [vmem:[%s2 + $0x118] sm:$0xf]
    %v4318 = vld [vmem:[%s2 + $0x120] sm:$0xff]
    %v4319 = vld [vmem:[%s2 + $0x128] sm:$0xf]
    %v4320 = vld [vmem:[%s2 + $0x130] sm:$0xff]
    %v4321 = vld [vmem:[%s2 + $0x138] sm:$0xf]
    %v4322 = vld [vmem:[%s2 + $0x140] sm:$0xff]
    %v4323 = vld [vmem:[%s2 + $0x148] sm:$0xf]
    %v4324 = vld [vmem:[%s2 + $0x150] sm:$0xff]
    %v4325 = vld [vmem:[%s2 + $0x158] sm:$0xf]
    %v4326 = vld [vmem:[%s2 + $0x160] sm:$0xff]
    %v4327 = vld [vmem:[%s2 + $0x168] sm:$0xf]
    %v4328 = vld [vmem:[%s2 + $0x170] sm:$0xff]
    %v4329 = vld [vmem:[%s2 + $0x178] sm:$0xf]
    %v4330 = vld [vmem:[%s2 + $0x180] sm:$0xff]
    %v4331 = vld [vmem:[%s2 + $0x188] sm:$0xf]
    %v4332 = vld [vmem:[%s2 + $0x190] sm:$0xff]
    %v4333 = vld [vmem:[%s2 + $0x198] sm:$0xf]
    %v4334 = vld [vmem:[%s2 + $0x1a0] sm:$0xff]
    %v4335 = vld [vmem:[%s2 + $0x1a8] sm:$0xf]
    %v4336 = vld [vmem:[%s2 + $0x1b0] sm:$0xff]
    %v4337 = vld [vmem:[%s2 + $0x1b8] sm:$0xf]
    %v4338 = vld [vmem:[%s2 + $0x1c0] sm:$0xff]
    %v4339 = vld [vmem:[%s2 + $0x1c8] sm:$0xf]
    %v4340 = vld [vmem:[%s2 + $0x1d0] sm:$0xff]
    %v4341 = vld [vmem:[%s2 + $0x1d8] sm:$0xf]
    %v4342 = vld [vmem:[%s2 + $0x1e0] sm:$0xff]
    %v4343 = vld [vmem:[%s2 + $0x1e8] sm:$0xf]
    %v4344 = vld [vmem:[%s2 + $0x1f0] sm:$0xff]
    %v4345 = vld [vmem:[%s2 + $0x1f8] sm:$0xf]
    %v4346 = vld [vmem:[%s2 + $0x300] sm:$0xff]
    %v4347 = vld [vmem:[%s2 + $0x308] sm:$0xff]
    %v4348 = vld [vmem:[%s2 + $0x310] sm:$0xff]
    %v4349 = vld [vmem:[%s2 + $0x318] sm:$0xff]
    %v4350 = vld [vmem:[%s2 + $0x320] sm:$0xff]
    %v4351 = vld [vmem:[%s2 + $0x328] sm:$0xff]
    %v4352 = vld [vmem:[%s2 + $0x330] sm:$0xff]
    %v4353 = vld [vmem:[%s2 + $0x338] sm:$0xff]
    %v4354 = vld [vmem:[%s2 + $0x340] sm:$0xff]
    %v4355 = vld [vmem:[%s2 + $0x348] sm:$0xff]
    %v4356 = vld [vmem:[%s2 + $0x350] sm:$0xff]
    %v4357 = vld [vmem:[%s2 + $0x358] sm:$0xff]
    %v4358 = vld [vmem:[%s2 + $0x360] sm:$0xff]
    %v4359 = vld [vmem:[%s2 + $0x368] sm:$0xff]
    %v4360 = vld [vmem:[%s2 + $0x370] sm:$0xff]
    %v4361 = vld [vmem:[%s2 + $0x378] sm:$0xff]
    %v4362 = vld [vmem:[%s2 + $0x380] sm:$0xff]
    %v4363 = vld [vmem:[%s2 + $0x388] sm:$0xff]
    %v4364 = vld [vmem:[%s2 + $0x390] sm:$0xff]
    %v4365 = vld [vmem:[%s2 + $0x398] sm:$0xff]
    %v4366 = vld [vmem:[%s2 + $0x3a0] sm:$0xff]
    %v4367 = vld [vmem:[%s2 + $0x3a8] sm:$0xff]
    %v4368 = vld [vmem:[%s2 + $0x3b0] sm:$0xff]
    %v4369 = vld [vmem:[%s2 + $0x3b8] sm:$0xff]
    %v4370 = vld [vmem:[%s2 + $0x3c0] sm:$0xff]
    %v4371 = vld [vmem:[%s2 + $0x3c8] sm:$0xff]
    %v4372 = vld [vmem:[%s2 + $0x3d0] sm:$0xff]
    %v4373 = vld [vmem:[%s2 + $0x3d8] sm:$0xff]
    %v4374 = vld [vmem:[%s2 + $0x3e0] sm:$0xff]
    %v4375 = vld [vmem:[%s2 + $0x3e8] sm:$0xff]
    %v4376 = vld [vmem:[%s2 + $0x3f0] sm:$0xff]
    %v4377 = vld [vmem:[%s2 + $0x3f8] sm:$0xff]
    %v4378 = vld [vmem:[%s1 + $0xc0] sm:$0xf]
    %v4379 = vld [vmem:[%s1 + $0xc4] sm:$0xf]
    %v4380 = vld [vmem:[%s1 + $0xc8] sm:$0xf]
    %v4381 = vld [vmem:[%s1 + $0xcc] sm:$0xf]
    %v4382 = vld [vmem:[%s1 + $0xd0] sm:$0xf]
    %v4383 = vld [vmem:[%s1 + $0xd4] sm:$0xf]
    %v4384 = vld [vmem:[%s1 + $0xd8] sm:$0xf]
    %v4385 = vld [vmem:[%s1 + $0xdc] sm:$0xf]
    %v4386 = vld [vmem:[%s1 + $0xe0] sm:$0xf]
    %v4387 = vld [vmem:[%s1 + $0xe4] sm:$0xf]
    %v4388 = vld [vmem:[%s1 + $0xe8] sm:$0xf]
    %v4389 = vld [vmem:[%s1 + $0xec] sm:$0xf]
    %v4390 = vld [vmem:[%s1 + $0xf0] sm:$0xf]
    %v4391 = vld [vmem:[%s1 + $0xf4] sm:$0xf]
    %v4392 = vld [vmem:[%s1 + $0xf8] sm:$0xf]
    %v4393 = vld [vmem:[%s1 + $0xfc] sm:$0xf]
    %v4394 = vld [vmem:[%s1 + $0x200] sm:$0xf]
    %v4395 = vld [vmem:[%s1 + $0x204] sm:$0xf]
    %v4396 = vld [vmem:[%s1 + $0x208] sm:$0xf]
    %v4397 = vld [vmem:[%s1 + $0x20c] sm:$0xf]
    %v4398 = vld [vmem:[%s1 + $0x210] sm:$0xf]
    %v4399 = vld [vmem:[%s1 + $0x214] sm:$0xf]
    %v4400 = vld [vmem:[%s1 + $0x218] sm:$0xf]
    %v4401 = vld [vmem:[%s1 + $0x21c] sm:$0xf]
    %v4402 = vld [vmem:[%s1 + $0x220] sm:$0xf]
    %v4403 = vld [vmem:[%s1 + $0x224] sm:$0xf]
    %v4404 = vld [vmem:[%s1 + $0x228] sm:$0xf]
    %v4405 = vld [vmem:[%s1 + $0x22c] sm:$0xf]
    %v4406 = vld [vmem:[%s1 + $0x230] sm:$0xf]
    %v4407 = vld [vmem:[%s1 + $0x234] sm:$0xf]
    %v4408 = vld [vmem:[%s1 + $0x238] sm:$0xf]
    %v4409 = vld [vmem:[%s1 + $0x23c] sm:$0xf]
    %v4410 = vld [vmem:[%s1 + $0x240] sm:$0xf]
    %v4411 = vld [vmem:[%s1 + $0x244] sm:$0xf]
    %v4412 = vld [vmem:[%s1 + $0x248] sm:$0xf]
    %v4413 = vld [vmem:[%s1 + $0x24c] sm:$0xf]
    %v4414 = vld [vmem:[%s1 + $0x250] sm:$0xf]
    %v4415 = vld [vmem:[%s1 + $0x254] sm:$0xf]
    %v4416 = vld [vmem:[%s1 + $0x258] sm:$0xf]
    %v4417 = vld [vmem:[%s1 + $0x25c] sm:$0xf]
    %v4418 = vld [vmem:[%s1 + $0x260] sm:$0xf]
    %v4419 = vld [vmem:[%s1 + $0x264] sm:$0xf]
    %v4420 = vld [vmem:[%s1 + $0x268] sm:$0xf]
    %v4421 = vld [vmem:[%s1 + $0x26c] sm:$0xf]
    %v4422 = vld [vmem:[%s1 + $0x270] sm:$0xf]
    %v4423 = vld [vmem:[%s1 + $0x274] sm:$0xf]
    %v4424 = vld [vmem:[%s1 + $0x278] sm:$0xf]
    %v4425 = vld [vmem:[%s1 + $0x27c] sm:$0xf]
    %v4426 = vld [vmem:[%s1 + $0x280] sm:$0xf]
    %v4427 = vld [vmem:[%s1 + $0x284] sm:$0xf]
    %v4428 = vld [vmem:[%s1 + $0x288] sm:$0xf]
    %v4429 = vld [vmem:[%s1 + $0x28c] sm:$0xf]
    %v4430 = vld [vmem:[%s1 + $0x290] sm:$0xf]
    %v4431 = vld [vmem:[%s1 + $0x294] sm:$0xf]
    %v4432 = vld [vmem:[%s1 + $0x298] sm:$0xf]
    %v4433 = vld [vmem:[%s1 + $0x29c] sm:$0xf]
    %v4434 = vld [vmem:[%s1 + $0x2a0] sm:$0xf]
    %v4435 = vld [vmem:[%s1 + $0x2a4] sm:$0xf]
    %v4436 = vld [vmem:[%s1 + $0x2a8] sm:$0xf]
    %v4437 = vld [vmem:[%s1 + $0x2ac] sm:$0xf]
    %v4438 = vld [vmem:[%s1 + $0x2b0] sm:$0xf]
    %v4439 = vld [vmem:[%s1 + $0x2b4] sm:$0xf]
    %v4440 = vld [vmem:[%s1 + $0x2b8] sm:$0xf]
    %v4441 = vld [vmem:[%s1 + $0x2bc] sm:$0xf]
    %v4442 = vld [vmem:[%s1 + $0x2c0] sm:$0xf]
    %v4443 = vld [vmem:[%s1 + $0x2c4] sm:$0xf]
    %v4444 = vld [vmem:[%s1 + $0x2c8] sm:$0xf]
    %v4445 = vld [vmem:[%s1 + $0x2cc] sm:$0xf]
    %v4446 = vld [vmem:[%s1 + $0x2d0] sm:$0xf]
    %v4447 = vld [vmem:[%s1 + $0x2d4] sm:$0xf]
    %v4448 = vld [vmem:[%s1 + $0x2d8] sm:$0xf]
    %v4449 = vld [vmem:[%s1 + $0x2dc] sm:$0xf]
    %v4450 = vld [vmem:[%s1 + $0x2e0] sm:$0xf]
    %v4451 = vld [vmem:[%s1 + $0x2e4] sm:$0xf]
    %v4452 = vld [vmem:[%s1 + $0x2e8] sm:$0xf]
    %v4453 = vld [vmem:[%s1 + $0x2ec] sm:$0xf]
    %v4454 = vld [vmem:[%s1 + $0x2f0] sm:$0xf]
    %v4455 = vld [vmem:[%s1 + $0x2f4] sm:$0xf]
    %v4456 = vld [vmem:[%s1 + $0x2f8] sm:$0xf]
    %v4457 = vld [vmem:[%s1 + $0x2fc] sm:$0xf]
    %4458 = vadd.xlane.f32.xlu0 %v4296
    %v4459 = vpop.xlane.xlu0 %4458
    %4460 = vadd.xlane.f32.xlu0 %v4297
    %v4461 = vpop.xlane.xlu0 %4460
    %4462 = vadd.xlane.f32.xlu0 %v4298
    %v4463 = vpop.xlane.xlu0 %4462
    %4464 = vadd.xlane.f32.xlu0 %v4299
    %v4465 = vpop.xlane.xlu0 %4464
    %4466 = vadd.xlane.f32.xlu0 %v4300
    %v4467 = vpop.xlane.xlu0 %4466
    %4468 = vadd.xlane.f32.xlu0 %v4301
    %v4469 = vpop.xlane.xlu0 %4468
    %4470 = vadd.xlane.f32.xlu0 %v4302
    %v4471 = vpop.xlane.xlu0 %4470
    %4472 = vadd.xlane.f32.xlu0 %v4303
    %v4473 = vpop.xlane.xlu0 %4472
    %v4474 = vmul.f32 %v4459, %v444
    %v4475 = vmul.f32 %v4461, %v444
    %v4476 = vmul.f32 %v4463, %v444
    %v4477 = vmul.f32 %v4465, %v444
    %v4478 = vmul.f32 %v4467, %v444
    %v4479 = vmul.f32 %v4469, %v444
    %v4480 = vmul.f32 %v4471, %v444
    %v4481 = vmul.f32 %v4473, %v444
    %v4482 = vsub.f32 %v4296, %v4474
    %v4483 = vsub.f32 %v4297, %v4475
    %v4484 = vsub.f32 %v4298, %v4476
    %v4485 = vsub.f32 %v4299, %v4477
    %v4486 = vsub.f32 %v4300, %v4478
    %v4487 = vsub.f32 %v4301, %v4479
    %v4488 = vsub.f32 %v4302, %v4480
    %v4489 = vsub.f32 %v4303, %v4481
    %v4490 = vmul.f32 %v4482, %v4482
    %v4491 = vmul.f32 %v4483, %v4483
    %v4492 = vmul.f32 %v4484, %v4484
    %v4493 = vmul.f32 %v4485, %v4485
    %v4494 = vmul.f32 %v4486, %v4486
    %v4495 = vmul.f32 %v4487, %v4487
    %v4496 = vmul.f32 %v4488, %v4488
    %v4497 = vmul.f32 %v4489, %v4489
    %4498 = vadd.xlane.f32.xlu0 %v4490
    %v4499 = vpop.xlane.xlu0 %4498
    %4500 = vadd.xlane.f32.xlu0 %v4491
    %v4501 = vpop.xlane.xlu0 %4500
    %4502 = vadd.xlane.f32.xlu0 %v4492
    %v4503 = vpop.xlane.xlu0 %4502
    %4504 = vadd.xlane.f32.xlu0 %v4493
    %v4505 = vpop.xlane.xlu0 %4504
    %4506 = vadd.xlane.f32.xlu0 %v4494
    %v4507 = vpop.xlane.xlu0 %4506
    %4508 = vadd.xlane.f32.xlu0 %v4495
    %v4509 = vpop.xlane.xlu0 %4508
    %4510 = vadd.xlane.f32.xlu0 %v4496
    %v4511 = vpop.xlane.xlu0 %4510
    %4512 = vadd.xlane.f32.xlu0 %v4497
    %v4513 = vpop.xlane.xlu0 %4512
    %v4514 = vmul.f32 %v4499, %v444
    %v4515 = vmul.f32 %v4501, %v444
    %v4516 = vmul.f32 %v4503, %v444
    %v4517 = vmul.f32 %v4505, %v444
    %v4518 = vmul.f32 %v4507, %v444
    %v4519 = vmul.f32 %v4509, %v444
    %v4520 = vmul.f32 %v4511, %v444
    %v4521 = vmul.f32 %v4513, %v444
    %v4522 = vadd.f32 %v4514, 1e-12
    %v4523 = vadd.f32 %v4515, 1e-12
    %v4524 = vadd.f32 %v4516, 1e-12
    %v4525 = vadd.f32 %v4517, 1e-12
    %v4526 = vadd.f32 %v4518, 1e-12
    %v4527 = vadd.f32 %v4519, 1e-12
    %v4528 = vadd.f32 %v4520, 1e-12
    %v4529 = vadd.f32 %v4521, 1e-12
    %v4530 = vrsqrt.pop %v4522
    %v4531 = vrsqrt.pop %v4523
    %v4532 = vrsqrt.pop %v4524
    %v4533 = vrsqrt.pop %v4525
    %v4534 = vrsqrt.pop %v4526
    %v4535 = vrsqrt.pop %v4527
    %v4536 = vrsqrt.pop %v4528
    %v4537 = vrsqrt.pop %v4529
    %v4538 = vmul.f32 %v4482, %v4530
    %v4539 = vmul.f32 %v4483, %v4531
    %v4540 = vmul.f32 %v4484, %v4532
    %v4541 = vmul.f32 %v4485, %v4533
    %v4542 = vmul.f32 %v4486, %v4534
    %v4543 = vmul.f32 %v4487, %v4535
    %v4544 = vmul.f32 %v4488, %v4536
    %v4545 = vmul.f32 %v4489, %v4537
    %v4546 = vlaneseq
    %v4547 = vshrl.u32 %v4546, 7
    %v4548 = vsub.s32 0, %v4547
    %v4549 = vrot.slane %v4304, %v4548
    %v4550 = vmul.f32 %v4538, %v4549
    %v4551 = vmul.f32 %v4539, %v4549
    %v4552 = vmul.f32 %v4540, %v4549
    %v4553 = vmul.f32 %v4541, %v4549
    %v4554 = vmul.f32 %v4542, %v4549
    %v4555 = vmul.f32 %v4543, %v4549
    %v4556 = vmul.f32 %v4544, %v4549
    %v4557 = vmul.f32 %v4545, %v4549
    %v4558 = vlaneseq
    %v4559 = vshrl.u32 %v4558, 7
    %v4560 = vsub.s32 0, %v4559
    %v4561 = vrot.slane %v4305, %v4560
    %v4562 = vadd.f32 %v4550, %v4561
    %v4563 = vadd.f32 %v4551, %v4561
    %v4564 = vadd.f32 %v4552, %v4561
    %v4565 = vadd.f32 %v4553, %v4561
    %v4566 = vadd.f32 %v4554, %v4561
    %v4567 = vadd.f32 %v4555, %v4561
    %v4568 = vadd.f32 %v4556, %v4561
    %v4569 = vadd.f32 %v4557, %v4561
    %v4570 = vpack.c.bf16 %v4563, %v4562
    %v4571 = vpack.c.bf16 %v4565, %v4564
    %v4572 = vpack.c.bf16 %v4567, %v4566
    %v4573 = vpack.c.bf16 %v4569, %v4568
    %v4575 = vlaneseq
    %v4576 = vshrl.u32 %v4575, 7
    %v4577 = vsub.s32 0, %v4576
    %v4578 = vrot.slane %v4311, %v4577
    %v4579 = vlaneseq
    %v4580 = vshrl.u32 %v4579, 7
    %v4581 = vsub.s32 1, %v4580
    %v4582 = vrot.slane %v4311, %v4581
    %v4583 = vlaneseq
    %v4584 = vshrl.u32 %v4583, 7
    %v4585 = vsub.s32 2, %v4584
    %v4586 = vrot.slane %v4311, %v4585
    %v4622 = vunpack.c.l.b16 %v4314
    %v4623 = vunpack.c.h.b16 %v4314
    %v4624 = vunpack.c.l.b16 %v4315
    %v4625 = vunpack.c.l.b16 %v4316
    %v4626 = vunpack.c.h.b16 %v4316
    %v4627 = vunpack.c.l.b16 %v4317
    %v4628 = vunpack.c.l.b16 %v4318
    %v4629 = vunpack.c.h.b16 %v4318
    %v4630 = vunpack.c.l.b16 %v4319
    %v4631 = vunpack.c.l.b16 %v4320
    %v4632 = vunpack.c.h.b16 %v4320
    %v4633 = vunpack.c.l.b16 %v4321
    %v4634 = vunpack.c.l.b16 %v4322
    %v4635 = vunpack.c.h.b16 %v4322
    %v4636 = vunpack.c.l.b16 %v4323
    %v4637 = vunpack.c.l.b16 %v4324
    %v4638 = vunpack.c.h.b16 %v4324
    %v4639 = vunpack.c.l.b16 %v4325
    %v4640 = vunpack.c.l.b16 %v4326
    %v4641 = vunpack.c.h.b16 %v4326
    %v4642 = vunpack.c.l.b16 %v4327
    %v4643 = vunpack.c.l.b16 %v4328
    %v4644 = vunpack.c.h.b16 %v4328
    %v4645 = vunpack.c.l.b16 %v4329
    %v4646 = vunpack.c.l.b16 %v4330
    %v4647 = vunpack.c.h.b16 %v4330
    %v4648 = vunpack.c.l.b16 %v4331
    %v4649 = vunpack.c.l.b16 %v4332
    %v4650 = vunpack.c.h.b16 %v4332
    %v4651 = vunpack.c.l.b16 %v4333
    %v4652 = vunpack.c.l.b16 %v4334
    %v4653 = vunpack.c.h.b16 %v4334
    %v4654 = vunpack.c.l.b16 %v4335
    %v4655 = vunpack.c.l.b16 %v4336
    %v4656 = vunpack.c.h.b16 %v4336
    %v4657 = vunpack.c.l.b16 %v4337
    %v4658 = vunpack.c.l.b16 %v4338
    %v4659 = vunpack.c.h.b16 %v4338
    %v4660 = vunpack.c.l.b16 %v4339
    %v4661 = vunpack.c.l.b16 %v4340
    %v4662 = vunpack.c.h.b16 %v4340
    %v4663 = vunpack.c.l.b16 %v4341
    %v4664 = vunpack.c.l.b16 %v4342
    %v4665 = vunpack.c.h.b16 %v4342
    %v4666 = vunpack.c.l.b16 %v4343
    %v4667 = vunpack.c.l.b16 %v4344
    %v4668 = vunpack.c.h.b16 %v4344
    %v4669 = vunpack.c.l.b16 %v4345
    %v4670 = vpack.c.b16 %v4625, %v4622
    %v4671 = vpack.c.b16 %v4626, %v4623
    %v4672 = vpack.c.b16 %v4627, %v4624
    %v4673 = vpack.c.b16 %v4631, %v4628
    %v4674 = vpack.c.b16 %v4632, %v4629
    %v4675 = vpack.c.b16 %v4633, %v4630
    %v4676 = vpack.c.b16 %v4637, %v4634
    %v4677 = vpack.c.b16 %v4638, %v4635
    %v4678 = vpack.c.b16 %v4639, %v4636
    %v4679 = vpack.c.b16 %v4643, %v4640
    %v4680 = vpack.c.b16 %v4644, %v4641
    %v4681 = vpack.c.b16 %v4645, %v4642
    %v4682 = vpack.c.b16 %v4649, %v4646
    %v4683 = vpack.c.b16 %v4650, %v4647
    %v4684 = vpack.c.b16 %v4651, %v4648
    %v4685 = vpack.c.b16 %v4655, %v4652
    %v4686 = vpack.c.b16 %v4656, %v4653
    %v4687 = vpack.c.b16 %v4657, %v4654
    %v4688 = vpack.c.b16 %v4661, %v4658
    %v4689 = vpack.c.b16 %v4662, %v4659
    %v4690 = vpack.c.b16 %v4663, %v4660
    %v4691 = vpack.c.b16 %v4667, %v4664
    %v4692 = vpack.c.b16 %v4668, %v4665
    %v4693 = vpack.c.b16 %v4669, %v4666
    %4718 = vmatprep.subr.bf16.mxu0 %v4671
    %4719 = vmatpush1.bf16.msra.mxu0 %v4670
    %4720 = vmatprep.subr.bf16.mxu0 %v4674
    %4721 = vmatpush1.bf16.msra.mxu0 %v4673
    %4722 = vmatprep.subr.bf16.mxu0 %v4677
    %4723 = vmatpush1.bf16.msra.mxu0 %v4676
    %4724 = vmatprep.subr.bf16.mxu0 %v4680
    %4725 = vmatpush1.bf16.msra.mxu0 %v4679
    %4726 = vmatprep.subr.bf16.mxu0 %v4683
    %4727 = vmatpush1.bf16.msra.mxu0 %v4682
    %4728 = vmatprep.subr.bf16.mxu0 %v4686
    %4729 = vmatpush1.bf16.msra.mxu0 %v4685
    %4730 = vmatprep.subr.bf16.mxu0 %v4689
    %4731 = vmatpush1.bf16.msra.mxu0 %v4688
    %4732 = vmatprep.subr.bf16.mxu0 %v4692
    %4733 = vmatpush1.bf16.msra.mxu0 %v4691
    %4734 = vmatprep.subr.bf16.mxu0 0
    %4735 = vmatpush1.bf16.msra.mxu0 0
    %4736 = vmatprep.subr.bf16.mxu0 0
    %4737 = vmatpush1.bf16.msra.mxu0 0
    %4738 = vmatprep.subr.bf16.mxu0 0
    %4739 = vmatpush1.bf16.msra.mxu0 0
    %4740 = vmatprep.subr.bf16.mxu0 0
    %4741 = vmatpush1.bf16.msra.mxu0 0
    %4742 = vmatprep.subr.bf16.mxu0 0
    %4743 = vmatpush1.bf16.msra.mxu0 0
    %4744 = vmatprep.subr.bf16.mxu0 0
    %4745 = vmatpush1.bf16.msra.mxu0 0
    %4746 = vmatprep.subr.bf16.mxu0 0
    %4747 = vmatpush1.bf16.msra.mxu0 0
    %4748 = vmatprep.subr.bf16.mxu0 0
    %4749 = vmatpush1.bf16.msra.mxu0 0
    %4750 = vmatprep.mubr.bf16.mxu0 0
    %4751 = vmatmul.mubr.bf16.gmra.mrb[0].mxu0 %v4570
    %v4752 = vpop.f32.mrb[0].mxu0
    %v4753 = vadd.f32 %v4578, %v4752
    %v4754 = vpop.f32.mrb[0].mxu0
    %v4755 = vadd.f32 %v4582, %v4754
    %v4756 = vpop.f32.mrb[0].mxu0
    %v4757 = vadd.f32 %v4578, %v4756
    %v4758 = vpop.f32.mrb[0].mxu0
    %v4759 = vadd.f32 %v4582, %v4758
    %4760 = vmatprep.mubr.bf16.mxu0 0
    %4761 = vmatmul.mubr.bf16.gmra.mrb[0].mxu0 %v4571
    %v4762 = vpop.f32.mrb[0].mxu0
    %v4763 = vadd.f32 %v4578, %v4762
    %v4764 = vpop.f32.mrb[0].mxu0
    %v4765 = vadd.f32 %v4582, %v4764
    %v4766 = vpop.f32.mrb[0].mxu0
    %v4767 = vadd.f32 %v4578, %v4766
    %v4768 = vpop.f32.mrb[0].mxu0
    %v4769 = vadd.f32 %v4582, %v4768
    %4770 = vmatprep.mubr.bf16.mxu0 0
    %4771 = vmatmul.mubr.bf16.gmra.mrb[0].mxu0 %v4572
    %v4772 = vpop.f32.mrb[0].mxu0
    %v4773 = vadd.f32 %v4578, %v4772
    %v4774 = vpop.f32.mrb[0].mxu0
    %v4775 = vadd.f32 %v4582, %v4774
    %v4776 = vpop.f32.mrb[0].mxu0
    %v4777 = vadd.f32 %v4578, %v4776
    %v4778 = vpop.f32.mrb[0].mxu0
    %v4779 = vadd.f32 %v4582, %v4778
    %4780 = vmatprep.mubr.bf16.mxu0 0
    %4781 = vmatmul.mubr.bf16.gmra.mrb[0].mxu0 %v4573
    %v4782 = vpop.f32.mrb[0].mxu0
    %v4783 = vadd.f32 %v4578, %v4782
    %v4784 = vpop.f32.mrb[0].mxu0
    %v4785 = vadd.f32 %v4582, %v4784
    %v4786 = vpop.f32.mrb[0].mxu0
    %v4787 = vadd.f32 %v4578, %v4786
    %v4788 = vpop.f32.mrb[0].mxu0
    %v4789 = vadd.f32 %v4582, %v4788
    %4790 = vdwg.mxu0
    %4791 = vmatprep.subr.bf16.mxu0 0
    %4792 = vmatpush1.bf16.msra.mxu0 %v4672
    %4793 = vmatprep.subr.bf16.mxu0 0
    %4794 = vmatpush1.bf16.msra.mxu0 %v4675
    %4795 = vmatprep.subr.bf16.mxu0 0
    %4796 = vmatpush1.bf16.msra.mxu0 %v4678
    %4797 = vmatprep.subr.bf16.mxu0 0
    %4798 = vmatpush1.bf16.msra.mxu0 %v4681
    %4799 = vmatprep.subr.bf16.mxu0 0
    %4800 = vmatpush1.bf16.msra.mxu0 %v4684
    %4801 = vmatprep.subr.bf16.mxu0 0
    %4802 = vmatpush1.bf16.msra.mxu0 %v4687
    %4803 = vmatprep.subr.bf16.mxu0 0
    %4804 = vmatpush1.bf16.msra.mxu0 %v4690
    %4805 = vmatprep.subr.bf16.mxu0 0
    %4806 = vmatpush1.bf16.msra.mxu0 %v4693
    %4807 = vmatprep.subr.bf16.mxu0 0
    %4808 = vmatpush1.bf16.msra.mxu0 0
    %4809 = vmatprep.subr.bf16.mxu0 0
    %4810 = vmatpush1.bf16.msra.mxu0 0
    %4811 = vmatprep.subr.bf16.mxu0 0
    %4812 = vmatpush1.bf16.msra.mxu0 0
    %4813 = vmatprep.subr.bf16.mxu0 0
    %4814 = vmatpush1.bf16.msra.mxu0 0
    %4815 = vmatprep.subr.bf16.mxu0 0
    %4816 = vmatpush1.bf16.msra.mxu0 0
    %4817 = vmatprep.subr.bf16.mxu0 0
    %4818 = vmatpush1.bf16.msra.mxu0 0
    %4819 = vmatprep.subr.bf16.mxu0 0
    %4820 = vmatpush1.bf16.msra.mxu0 0
    %4821 = vmatprep.subr.bf16.mxu0 0
    %4822 = vmatpush1.bf16.msra.mxu0 0
    %4823 = vmatprep.mubr.bf16.mxu0 0
    %4824 = vmatmul.mubr.bf16.gmra.mrb[0].mxu0 %v4570
    %v4825 = vpop.f32.mrb[0].mxu0
    %v4826 = vadd.f32 %v4586, %v4825
    %v4827 = vpop.f32.mrb[0].mxu0
    %v4828 = vpop.f32.mrb[0].mxu0
    %v4829 = vadd.f32 %v4586, %v4828
    %v4830 = vpop.f32.mrb[0].mxu0
    %4831 = vmatprep.mubr.bf16.mxu0 0
    %4832 = vmatmul.mubr.bf16.gmra.mrb[0].mxu0 %v4571
    %v4833 = vpop.f32.mrb[0].mxu0
    %v4834 = vadd.f32 %v4586, %v4833
    %v4835 = vpop.f32.mrb[0].mxu0
    %v4836 = vpop.f32.mrb[0].mxu0
    %v4837 = vadd.f32 %v4586, %v4836
    %v4838 = vpop.f32.mrb[0].mxu0
    %4839 = vmatprep.mubr.bf16.mxu0 0
    %4840 = vmatmul.mubr.bf16.gmra.mrb[0].mxu0 %v4572
    %v4841 = vpop.f32.mrb[0].mxu0
    %v4842 = vadd.f32 %v4586, %v4841
    %v4843 = vpop.f32.mrb[0].mxu0
    %v4844 = vpop.f32.mrb[0].mxu0
    %v4845 = vadd.f32 %v4586, %v4844
    %v4846 = vpop.f32.mrb[0].mxu0
    %4847 = vmatprep.mubr.bf16.mxu0 0
    %4848 = vmatmul.mubr.bf16.gmra.mrb[0].mxu0 %v4573
    %v4849 = vpop.f32.mrb[0].mxu0
    %v4850 = vadd.f32 %v4586, %v4849
    %v4851 = vpop.f32.mrb[0].mxu0
    %v4852 = vpop.f32.mrb[0].mxu0
    %v4853 = vadd.f32 %v4586, %v4852
    %v4854 = vpop.f32.mrb[0].mxu0
    %4855 = vdwg.mxu0
    %4860 = vrot.lane.b32.xlu0 %v4753, 96
    %v4861 = vpop.permute.xlu0 %4860
    %4862 = vrot.lane.b32.xlu0 %v4757, 96
    %v4863 = vpop.permute.xlu0 %4862
    %4864 = vrot.lane.b32.xlu0 %v4763, 96
    %v4865 = vpop.permute.xlu0 %4864
    %4866 = vrot.lane.b32.xlu0 %v4767, 96
    %v4867 = vpop.permute.xlu0 %4866
    %4872 = vrot.lane.b32.xlu0 %v4753, 64
    %v4873 = vpop.permute.xlu0 %4872
    %4874 = vrot.lane.b32.xlu0 %v4757, 64
    %v4875 = vpop.permute.xlu0 %4874
    %4876 = vrot.lane.b32.xlu0 %v4763, 64
    %v4877 = vpop.permute.xlu0 %4876
    %4878 = vrot.lane.b32.xlu0 %v4767, 64
    %v4879 = vpop.permute.xlu0 %4878
    %4884 = vrot.lane.b32.xlu0 %v4753, 32
    %v4885 = vpop.permute.xlu0 %4884
    %4886 = vrot.lane.b32.xlu0 %v4757, 32
    %v4887 = vpop.permute.xlu0 %4886
    %4888 = vrot.lane.b32.xlu0 %v4763, 32
    %v4889 = vpop.permute.xlu0 %4888
    %4890 = vrot.lane.b32.xlu0 %v4767, 32
    %v4891 = vpop.permute.xlu0 %4890
    %4900 = vrot.lane.b32.xlu0 %v4773, 96
    %v4901 = vpop.permute.xlu0 %4900
    %4902 = vrot.lane.b32.xlu0 %v4777, 96
    %v4903 = vpop.permute.xlu0 %4902
    %4904 = vrot.lane.b32.xlu0 %v4783, 96
    %v4905 = vpop.permute.xlu0 %4904
    %4906 = vrot.lane.b32.xlu0 %v4787, 96
    %v4907 = vpop.permute.xlu0 %4906
    %4912 = vrot.lane.b32.xlu0 %v4773, 64
    %v4913 = vpop.permute.xlu0 %4912
    %4914 = vrot.lane.b32.xlu0 %v4777, 64
    %v4915 = vpop.permute.xlu0 %4914
    %4916 = vrot.lane.b32.xlu0 %v4783, 64
    %v4917 = vpop.permute.xlu0 %4916
    %4918 = vrot.lane.b32.xlu0 %v4787, 64
    %v4919 = vpop.permute.xlu0 %4918
    %4924 = vrot.lane.b32.xlu0 %v4773, 32
    %v4925 = vpop.permute.xlu0 %4924
    %4926 = vrot.lane.b32.xlu0 %v4777, 32
    %v4927 = vpop.permute.xlu0 %4926
    %4928 = vrot.lane.b32.xlu0 %v4783, 32
    %v4929 = vpop.permute.xlu0 %4928
    %4930 = vrot.lane.b32.xlu0 %v4787, 32
    %v4931 = vpop.permute.xlu0 %4930
    %v4936 = vpack.c.bf16 %v4757, %v4753
    %v4937 = vpack.c.bf16 %v4767, %v4763
    %v4938 = vpack.c.bf16 %v4863, %v4861
    %v4939 = vpack.c.bf16 %v4867, %v4865
    %v4940 = vpack.c.bf16 %v4875, %v4873
    %v4941 = vpack.c.bf16 %v4879, %v4877
    %v4942 = vpack.c.bf16 %v4887, %v4885
    %v4943 = vpack.c.bf16 %v4891, %v4889
    %v4944 = vpack.c.bf16 %v4777, %v4773
    %v4945 = vpack.c.bf16 %v4787, %v4783
    %v4946 = vpack.c.bf16 %v4903, %v4901
    %v4947 = vpack.c.bf16 %v4907, %v4905
    %v4948 = vpack.c.bf16 %v4915, %v4913
    %v4949 = vpack.c.bf16 %v4919, %v4917
    %v4950 = vpack.c.bf16 %v4927, %v4925
    %v4951 = vpack.c.bf16 %v4931, %v4929
    %4956 = vrot.lane.b32.xlu0 %v4755, 96
    %v4957 = vpop.permute.xlu0 %4956
    %4958 = vrot.lane.b32.xlu0 %v4759, 96
    %v4959 = vpop.permute.xlu0 %4958
    %4960 = vrot.lane.b32.xlu0 %v4765, 96
    %v4961 = vpop.permute.xlu0 %4960
    %4962 = vrot.lane.b32.xlu0 %v4769, 96
    %v4963 = vpop.permute.xlu0 %4962
    %4968 = vrot.lane.b32.xlu0 %v4755, 64
    %v4969 = vpop.permute.xlu0 %4968
    %4970 = vrot.lane.b32.xlu0 %v4759, 64
    %v4971 = vpop.permute.xlu0 %4970
    %4972 = vrot.lane.b32.xlu0 %v4765, 64
    %v4973 = vpop.permute.xlu0 %4972
    %4974 = vrot.lane.b32.xlu0 %v4769, 64
    %v4975 = vpop.permute.xlu0 %4974
    %4980 = vrot.lane.b32.xlu0 %v4755, 32
    %v4981 = vpop.permute.xlu0 %4980
    %4982 = vrot.lane.b32.xlu0 %v4759, 32
    %v4983 = vpop.permute.xlu0 %4982
    %4984 = vrot.lane.b32.xlu0 %v4765, 32
    %v4985 = vpop.permute.xlu0 %4984
    %4986 = vrot.lane.b32.xlu0 %v4769, 32
    %v4987 = vpop.permute.xlu0 %4986
    %4996 = vrot.lane.b32.xlu0 %v4775, 96
    %v4997 = vpop.permute.xlu0 %4996
    %4998 = vrot.lane.b32.xlu0 %v4779, 96
    %v4999 = vpop.permute.xlu0 %4998
    %5000 = vrot.lane.b32.xlu0 %v4785, 96
    %v5001 = vpop.permute.xlu0 %5000
    %5002 = vrot.lane.b32.xlu0 %v4789, 96
    %v5003 = vpop.permute.xlu0 %5002
    %5008 = vrot.lane.b32.xlu0 %v4775, 64
    %v5009 = vpop.permute.xlu0 %5008
    %5010 = vrot.lane.b32.xlu0 %v4779, 64
    %v5011 = vpop.permute.xlu0 %5010
    %5012 = vrot.lane.b32.xlu0 %v4785, 64
    %v5013 = vpop.permute.xlu0 %5012
    %5014 = vrot.lane.b32.xlu0 %v4789, 64
    %v5015 = vpop.permute.xlu0 %5014
    %5020 = vrot.lane.b32.xlu0 %v4775, 32
    %v5021 = vpop.permute.xlu0 %5020
    %5022 = vrot.lane.b32.xlu0 %v4779, 32
    %v5023 = vpop.permute.xlu0 %5022
    %5024 = vrot.lane.b32.xlu0 %v4785, 32
    %v5025 = vpop.permute.xlu0 %5024
    %5026 = vrot.lane.b32.xlu0 %v4789, 32
    %v5027 = vpop.permute.xlu0 %5026
    %v5032 = vpack.c.bf16 %v4759, %v4755
    %v5033 = vpack.c.bf16 %v4769, %v4765
    %v5034 = vpack.c.bf16 %v4959, %v4957
    %v5035 = vpack.c.bf16 %v4963, %v4961
    %v5036 = vpack.c.bf16 %v4971, %v4969
    %v5037 = vpack.c.bf16 %v4975, %v4973
    %v5038 = vpack.c.bf16 %v4983, %v4981
    %v5039 = vpack.c.bf16 %v4987, %v4985
    %v5040 = vpack.c.bf16 %v4779, %v4775
    %v5041 = vpack.c.bf16 %v4789, %v4785
    %v5042 = vpack.c.bf16 %v4999, %v4997
    %v5043 = vpack.c.bf16 %v5003, %v5001
    %v5044 = vpack.c.bf16 %v5011, %v5009
    %v5045 = vpack.c.bf16 %v5015, %v5013
    %v5046 = vpack.c.bf16 %v5023, %v5021
    %v5047 = vpack.c.bf16 %v5027, %v5025
    %5052 = vrot.lane.b32.xlu0 %v4826, 96
    %v5053 = vpop.permute.xlu0 %5052
    %5054 = vrot.lane.b32.xlu0 %v4829, 96
    %v5055 = vpop.permute.xlu0 %5054
    %5056 = vrot.lane.b32.xlu0 %v4834, 96
    %v5057 = vpop.permute.xlu0 %5056
    %5058 = vrot.lane.b32.xlu0 %v4837, 96
    %v5059 = vpop.permute.xlu0 %5058
    %5064 = vrot.lane.b32.xlu0 %v4826, 64
    %v5065 = vpop.permute.xlu0 %5064
    %5066 = vrot.lane.b32.xlu0 %v4829, 64
    %v5067 = vpop.permute.xlu0 %5066
    %5068 = vrot.lane.b32.xlu0 %v4834, 64
    %v5069 = vpop.permute.xlu0 %5068
    %5070 = vrot.lane.b32.xlu0 %v4837, 64
    %v5071 = vpop.permute.xlu0 %5070
    %5076 = vrot.lane.b32.xlu0 %v4826, 32
    %v5077 = vpop.permute.xlu0 %5076
    %5078 = vrot.lane.b32.xlu0 %v4829, 32
    %v5079 = vpop.permute.xlu0 %5078
    %5080 = vrot.lane.b32.xlu0 %v4834, 32
    %v5081 = vpop.permute.xlu0 %5080
    %5082 = vrot.lane.b32.xlu0 %v4837, 32
    %v5083 = vpop.permute.xlu0 %5082
    %5092 = vrot.lane.b32.xlu0 %v4842, 96
    %v5093 = vpop.permute.xlu0 %5092
    %5094 = vrot.lane.b32.xlu0 %v4845, 96
    %v5095 = vpop.permute.xlu0 %5094
    %5096 = vrot.lane.b32.xlu0 %v4850, 96
    %v5097 = vpop.permute.xlu0 %5096
    %5098 = vrot.lane.b32.xlu0 %v4853, 96
    %v5099 = vpop.permute.xlu0 %5098
    %5104 = vrot.lane.b32.xlu0 %v4842, 64
    %v5105 = vpop.permute.xlu0 %5104
    %5106 = vrot.lane.b32.xlu0 %v4845, 64
    %v5107 = vpop.permute.xlu0 %5106
    %5108 = vrot.lane.b32.xlu0 %v4850, 64
    %v5109 = vpop.permute.xlu0 %5108
    %5110 = vrot.lane.b32.xlu0 %v4853, 64
    %v5111 = vpop.permute.xlu0 %5110
    %5116 = vrot.lane.b32.xlu0 %v4842, 32
    %v5117 = vpop.permute.xlu0 %5116
    %5118 = vrot.lane.b32.xlu0 %v4845, 32
    %v5119 = vpop.permute.xlu0 %5118
    %5120 = vrot.lane.b32.xlu0 %v4850, 32
    %v5121 = vpop.permute.xlu0 %5120
    %5122 = vrot.lane.b32.xlu0 %v4853, 32
    %v5123 = vpop.permute.xlu0 %5122
    %v5128 = vpack.c.bf16 %v4829, %v4826
    %v5129 = vpack.c.bf16 %v4837, %v4834
    %v5130 = vpack.c.bf16 %v5055, %v5053
    %v5131 = vpack.c.bf16 %v5059, %v5057
    %v5132 = vpack.c.bf16 %v5067, %v5065
    %v5133 = vpack.c.bf16 %v5071, %v5069
    %v5134 = vpack.c.bf16 %v5079, %v5077
    %v5135 = vpack.c.bf16 %v5083, %v5081
    %v5136 = vpack.c.bf16 %v4845, %v4842
    %v5137 = vpack.c.bf16 %v4853, %v4850
    %v5138 = vpack.c.bf16 %v5095, %v5093
    %v5139 = vpack.c.bf16 %v5099, %v5097
    %v5140 = vpack.c.bf16 %v5107, %v5105
    %v5141 = vpack.c.bf16 %v5111, %v5109
    %v5142 = vpack.c.bf16 %v5119, %v5117
    %v5143 = vpack.c.bf16 %v5123, %v5121
    %v5145 = vsel %vm1115, %v4936, 0
    %v5148 = vsel %vm1115, %v4937, 0
    %v5151 = vsel %vm1115, %v5032, 0
    %v5154 = vsel %vm1115, %v5033, 0
    %5156 = vmatprep.subr.bf16.mxu0 0
    %5157 = vmatpush1.bf16.xpose.msra.mxu0 %v5151
    %5158 = vmatprep.subr.bf16.mxu0 0
    %5159 = vmatpush1.bf16.xpose.msra.mxu0 %v5154
    %5160 = vmatprep.subr.bf16.mxu0 0
    %5161 = vmatpush1.bf16.xpose.msra.mxu0 0
    %5162 = vmatprep.subr.bf16.mxu0 0
    %5163 = vmatpush1.bf16.xpose.msra.mxu0 0
    %5164 = vmatprep.subr.bf16.mxu0 0
    %5165 = vmatpush1.bf16.xpose.msra.mxu0 0
    %5166 = vmatprep.subr.bf16.mxu0 0
    %5167 = vmatpush1.bf16.xpose.msra.mxu0 0
    %5168 = vmatprep.subr.bf16.mxu0 0
    %5169 = vmatpush1.bf16.xpose.msra.mxu0 0
    %5170 = vmatprep.subr.bf16.mxu0 0
    %5171 = vmatpush1.bf16.xpose.msra.mxu0 0
    %5172 = vmatprep.subr.bf16.mxu0 0
    %5173 = vmatpush1.bf16.xpose.msra.mxu0 0
    %5174 = vmatprep.subr.bf16.mxu0 0
    %5175 = vmatpush1.bf16.xpose.msra.mxu0 0
    %5176 = vmatprep.subr.bf16.mxu0 0
    %5177 = vmatpush1.bf16.xpose.msra.mxu0 0
    %5178 = vmatprep.subr.bf16.mxu0 0
    %5179 = vmatpush1.bf16.xpose.msra.mxu0 0
    %5180 = vmatprep.subr.bf16.mxu0 0
    %5181 = vmatpush1.bf16.xpose.msra.mxu0 0
    %5182 = vmatprep.subr.bf16.mxu0 0
    %5183 = vmatpush1.bf16.xpose.msra.mxu0 0
    %5184 = vmatprep.subr.bf16.mxu0 0
    %5185 = vmatpush1.bf16.xpose.msra.mxu0 0
    %5186 = vmatprep.subr.bf16.mxu0 0
    %5187 = vmatpush1.bf16.xpose.msra.mxu0 0
    %5188 = vmatprep.mubr.bf16.mxu0 0
    %5189 = vmatmul.mubr.bf16.gmra.mrb[0].mxu0 %v5145
    %v5190 = vpop.f32.mrb[0].mxu0
    %v5191 = vadd.f32 %v274, %v5190
    %v5192 = vpop.f32.mrb[0].mxu0
    %v5193 = vpop.f32.mrb[0].mxu0
    %v5194 = vadd.f32 %v274, %v5193
    %v5195 = vpop.f32.mrb[0].mxu0
    %5196 = vmatprep.mubr.bf16.mxu0 0
    %5197 = vmatmul.mubr.bf16.gmra.mrb[0].mxu0 %v5148
    %v5198 = vpop.f32.mrb[0].mxu0
    %v5199 = vadd.f32 %v274, %v5198
    %v5200 = vpop.f32.mrb[0].mxu0
    %v5201 = vpop.f32.mrb[0].mxu0
    %v5202 = vadd.f32 %v274, %v5201
    %v5203 = vpop.f32.mrb[0].mxu0
    %5204 = vdwg.mxu0
    %v5206 = vsel %vm1115, %v4938, 0
    %v5209 = vsel %vm1115, %v4939, 0
    %v5212 = vsel %vm1115, %v5034, 0
    %v5215 = vsel %vm1115, %v5035, 0
    %5217 = vmatprep.subr.bf16.mxu0 0
    %5218 = vmatpush1.bf16.xpose.msra.mxu0 %v5212
    %5219 = vmatprep.subr.bf16.mxu0 0
    %5220 = vmatpush1.bf16.xpose.msra.mxu0 %v5215
    %5221 = vmatprep.subr.bf16.mxu0 0
    %5222 = vmatpush1.bf16.xpose.msra.mxu0 0
    %5223 = vmatprep.subr.bf16.mxu0 0
    %5224 = vmatpush1.bf16.xpose.msra.mxu0 0
    %5225 = vmatprep.subr.bf16.mxu0 0
    %5226 = vmatpush1.bf16.xpose.msra.mxu0 0
    %5227 = vmatprep.subr.bf16.mxu0 0
    %5228 = vmatpush1.bf16.xpose.msra.mxu0 0
    %5229 = vmatprep.subr.bf16.mxu0 0
    %5230 = vmatpush1.bf16.xpose.msra.mxu0 0
    %5231 = vmatprep.subr.bf16.mxu0 0
    %5232 = vmatpush1.bf16.xpose.msra.mxu0 0
    %5233 = vmatprep.subr.bf16.mxu0 0
    %5234 = vmatpush1.bf16.xpose.msra.mxu0 0
    %5235 = vmatprep.subr.bf16.mxu0 0
    %5236 = vmatpush1.bf16.xpose.msra.mxu0 0
    %5237 = vmatprep.subr.bf16.mxu0 0
    %5238 = vmatpush1.bf16.xpose.msra.mxu0 0
    %5239 = vmatprep.subr.bf16.mxu0 0
    %5240 = vmatpush1.bf16.xpose.msra.mxu0 0
    %5241 = vmatprep.subr.bf16.mxu0 0
    %5242 = vmatpush1.bf16.xpose.msra.mxu0 0
    %5243 = vmatprep.subr.bf16.mxu0 0
    %5244 = vmatpush1.bf16.xpose.msra.mxu0 0
    %5245 = vmatprep.subr.bf16.mxu0 0
    %5246 = vmatpush1.bf16.xpose.msra.mxu0 0
    %5247 = vmatprep.subr.bf16.mxu0 0
    %5248 = vmatpush1.bf16.xpose.msra.mxu0 0
    %5249 = vmatprep.mubr.bf16.mxu0 0
    %5250 = vmatmul.mubr.bf16.gmra.mrb[0].mxu0 %v5206
    %v5251 = vpop.f32.mrb[0].mxu0
    %v5252 = vadd.f32 %v274, %v5251
    %v5253 = vpop.f32.mrb[0].mxu0
    %v5254 = vpop.f32.mrb[0].mxu0
    %v5255 = vadd.f32 %v274, %v5254
    %v5256 = vpop.f32.mrb[0].mxu0
    %5257 = vmatprep.mubr.bf16.mxu0 0
    %5258 = vmatmul.mubr.bf16.gmra.mrb[0].mxu0 %v5209
    %v5259 = vpop.f32.mrb[0].mxu0
    %v5260 = vadd.f32 %v274, %v5259
    %v5261 = vpop.f32.mrb[0].mxu0
    %v5262 = vpop.f32.mrb[0].mxu0
    %v5263 = vadd.f32 %v274, %v5262
    %v5264 = vpop.f32.mrb[0].mxu0
    %5265 = vdwg.mxu0
    %v5267 = vsel %vm1115, %v4940, 0
    %v5270 = vsel %vm1115, %v4941, 0
    %v5273 = vsel %vm1115, %v5036, 0
    %v5276 = vsel %vm1115, %v5037, 0
    %5278 = vmatprep.subr.bf16.mxu0 0
    %5279 = vmatpush1.bf16.xpose.msra.mxu0 %v5273
    %5280 = vmatprep.subr.bf16.mxu0 0
    %5281 = vmatpush1.bf16.xpose.msra.mxu0 %v5276
    %5282 = vmatprep.subr.bf16.mxu0 0
    %5283 = vmatpush1.bf16.xpose.msra.mxu0 0
    %5284 = vmatprep.subr.bf16.mxu0 0
    %5285 = vmatpush1.bf16.xpose.msra.mxu0 0
    %5286 = vmatprep.subr.bf16.mxu0 0
    %5287 = vmatpush1.bf16.xpose.msra.mxu0 0
    %5288 = vmatprep.subr.bf16.mxu0 0
    %5289 = vmatpush1.bf16.xpose.msra.mxu0 0
    %5290 = vmatprep.subr.bf16.mxu0 0
    %5291 = vmatpush1.bf16.xpose.msra.mxu0 0
    %5292 = vmatprep.subr.bf16.mxu0 0
    %5293 = vmatpush1.bf16.xpose.msra.mxu0 0
    %5294 = vmatprep.subr.bf16.mxu0 0
    %5295 = vmatpush1.bf16.xpose.msra.mxu0 0
    %5296 = vmatprep.subr.bf16.mxu0 0
    %5297 = vmatpush1.bf16.xpose.msra.mxu0 0
    %5298 = vmatprep.subr.bf16.mxu0 0
    %5299 = vmatpush1.bf16.xpose.msra.mxu0 0
    %5300 = vmatprep.subr.bf16.mxu0 0
    %5301 = vmatpush1.bf16.xpose.msra.mxu0 0
    %5302 = vmatprep.subr.bf16.mxu0 0
    %5303 = vmatpush1.bf16.xpose.msra.mxu0 0
    %5304 = vmatprep.subr.bf16.mxu0 0
    %5305 = vmatpush1.bf16.xpose.msra.mxu0 0
    %5306 = vmatprep.subr.bf16.mxu0 0
    %5307 = vmatpush1.bf16.xpose.msra.mxu0 0
    %5308 = vmatprep.subr.bf16.mxu0 0
    %5309 = vmatpush1.bf16.xpose.msra.mxu0 0
    %5310 = vmatprep.mubr.bf16.mxu0 0
    %5311 = vmatmul.mubr.bf16.gmra.mrb[0].mxu0 %v5267
    %v5312 = vpop.f32.mrb[0].mxu0
    %v5313 = vadd.f32 %v274, %v5312
    %v5314 = vpop.f32.mrb[0].mxu0
    %v5315 = vpop.f32.mrb[0].mxu0
    %v5316 = vadd.f32 %v274, %v5315
    %v5317 = vpop.f32.mrb[0].mxu0
    %5318 = vmatprep.mubr.bf16.mxu0 0
    %5319 = vmatmul.mubr.bf16.gmra.mrb[0].mxu0 %v5270
    %v5320 = vpop.f32.mrb[0].mxu0
    %v5321 = vadd.f32 %v274, %v5320
    %v5322 = vpop.f32.mrb[0].mxu0
    %v5323 = vpop.f32.mrb[0].mxu0
    %v5324 = vadd.f32 %v274, %v5323
    %v5325 = vpop.f32.mrb[0].mxu0
    %5326 = vdwg.mxu0
    %v5328 = vsel %vm1115, %v4942, 0
    %v5331 = vsel %vm1115, %v4943, 0
    %v5334 = vsel %vm1115, %v5038, 0
    %v5337 = vsel %vm1115, %v5039, 0
    %5339 = vmatprep.subr.bf16.mxu0 0
    %5340 = vmatpush1.bf16.xpose.msra.mxu0 %v5334
    %5341 = vmatprep.subr.bf16.mxu0 0
    %5342 = vmatpush1.bf16.xpose.msra.mxu0 %v5337
    %5343 = vmatprep.subr.bf16.mxu0 0
    %5344 = vmatpush1.bf16.xpose.msra.mxu0 0
    %5345 = vmatprep.subr.bf16.mxu0 0
    %5346 = vmatpush1.bf16.xpose.msra.mxu0 0
    %5347 = vmatprep.subr.bf16.mxu0 0
    %5348 = vmatpush1.bf16.xpose.msra.mxu0 0
    %5349 = vmatprep.subr.bf16.mxu0 0
    %5350 = vmatpush1.bf16.xpose.msra.mxu0 0
    %5351 = vmatprep.subr.bf16.mxu0 0
    %5352 = vmatpush1.bf16.xpose.msra.mxu0 0
    %5353 = vmatprep.subr.bf16.mxu0 0
    %5354 = vmatpush1.bf16.xpose.msra.mxu0 0
    %5355 = vmatprep.subr.bf16.mxu0 0
    %5356 = vmatpush1.bf16.xpose.msra.mxu0 0
    %5357 = vmatprep.subr.bf16.mxu0 0
    %5358 = vmatpush1.bf16.xpose.msra.mxu0 0
    %5359 = vmatprep.subr.bf16.mxu0 0
    %5360 = vmatpush1.bf16.xpose.msra.mxu0 0
    %5361 = vmatprep.subr.bf16.mxu0 0
    %5362 = vmatpush1.bf16.xpose.msra.mxu0 0
    %5363 = vmatprep.subr.bf16.mxu0 0
    %5364 = vmatpush1.bf16.xpose.msra.mxu0 0
    %5365 = vmatprep.subr.bf16.mxu0 0
    %5366 = vmatpush1.bf16.xpose.msra.mxu0 0
    %5367 = vmatprep.subr.bf16.mxu0 0
    %5368 = vmatpush1.bf16.xpose.msra.mxu0 0
    %5369 = vmatprep.subr.bf16.mxu0 0
    %5370 = vmatpush1.bf16.xpose.msra.mxu0 0
    %5371 = vmatprep.mubr.bf16.mxu0 0
    %5372 = vmatmul.mubr.bf16.gmra.mrb[0].mxu0 %v5328
    %v5373 = vpop.f32.mrb[0].mxu0
    %v5374 = vadd.f32 %v274, %v5373
    %v5375 = vpop.f32.mrb[0].mxu0
    %v5376 = vpop.f32.mrb[0].mxu0
    %v5377 = vadd.f32 %v274, %v5376
    %v5378 = vpop.f32.mrb[0].mxu0
    %5379 = vmatprep.mubr.bf16.mxu0 0
    %5380 = vmatmul.mubr.bf16.gmra.mrb[0].mxu0 %v5331
    %v5381 = vpop.f32.mrb[0].mxu0
    %v5382 = vadd.f32 %v274, %v5381
    %v5383 = vpop.f32.mrb[0].mxu0
    %v5384 = vpop.f32.mrb[0].mxu0
    %v5385 = vadd.f32 %v274, %v5384
    %v5386 = vpop.f32.mrb[0].mxu0
    %5387 = vdwg.mxu0
    %v5389 = vsel %vm1115, %v4944, 0
    %v5392 = vsel %vm1115, %v4945, 0
    %v5395 = vsel %vm1115, %v5040, 0
    %v5398 = vsel %vm1115, %v5041, 0
    %5400 = vmatprep.subr.bf16.mxu0 0
    %5401 = vmatpush1.bf16.xpose.msra.mxu0 %v5395
    %5402 = vmatprep.subr.bf16.mxu0 0
    %5403 = vmatpush1.bf16.xpose.msra.mxu0 %v5398
    %5404 = vmatprep.subr.bf16.mxu0 0
    %5405 = vmatpush1.bf16.xpose.msra.mxu0 0
    %5406 = vmatprep.subr.bf16.mxu0 0
    %5407 = vmatpush1.bf16.xpose.msra.mxu0 0
    %5408 = vmatprep.subr.bf16.mxu0 0
    %5409 = vmatpush1.bf16.xpose.msra.mxu0 0
    %5410 = vmatprep.subr.bf16.mxu0 0
    %5411 = vmatpush1.bf16.xpose.msra.mxu0 0
    %5412 = vmatprep.subr.bf16.mxu0 0
    %5413 = vmatpush1.bf16.xpose.msra.mxu0 0
    %5414 = vmatprep.subr.bf16.mxu0 0
    %5415 = vmatpush1.bf16.xpose.msra.mxu0 0
    %5416 = vmatprep.subr.bf16.mxu0 0
    %5417 = vmatpush1.bf16.xpose.msra.mxu0 0
    %5418 = vmatprep.subr.bf16.mxu0 0
    %5419 = vmatpush1.bf16.xpose.msra.mxu0 0
    %5420 = vmatprep.subr.bf16.mxu0 0
    %5421 = vmatpush1.bf16.xpose.msra.mxu0 0
    %5422 = vmatprep.subr.bf16.mxu0 0
    %5423 = vmatpush1.bf16.xpose.msra.mxu0 0
    %5424 = vmatprep.subr.bf16.mxu0 0
    %5425 = vmatpush1.bf16.xpose.msra.mxu0 0
    %5426 = vmatprep.subr.bf16.mxu0 0
    %5427 = vmatpush1.bf16.xpose.msra.mxu0 0
    %5428 = vmatprep.subr.bf16.mxu0 0
    %5429 = vmatpush1.bf16.xpose.msra.mxu0 0
    %5430 = vmatprep.subr.bf16.mxu0 0
    %5431 = vmatpush1.bf16.xpose.msra.mxu0 0
    %5432 = vmatprep.mubr.bf16.mxu0 0
    %5433 = vmatmul.mubr.bf16.gmra.mrb[0].mxu0 %v5389
    %v5434 = vpop.f32.mrb[0].mxu0
    %v5435 = vadd.f32 %v274, %v5434
    %v5436 = vpop.f32.mrb[0].mxu0
    %v5437 = vpop.f32.mrb[0].mxu0
    %v5438 = vadd.f32 %v274, %v5437
    %v5439 = vpop.f32.mrb[0].mxu0
    %5440 = vmatprep.mubr.bf16.mxu0 0
    %5441 = vmatmul.mubr.bf16.gmra.mrb[0].mxu0 %v5392
    %v5442 = vpop.f32.mrb[0].mxu0
    %v5443 = vadd.f32 %v274, %v5442
    %v5444 = vpop.f32.mrb[0].mxu0
    %v5445 = vpop.f32.mrb[0].mxu0
    %v5446 = vadd.f32 %v274, %v5445
    %v5447 = vpop.f32.mrb[0].mxu0
    %5448 = vdwg.mxu0
    %v5450 = vsel %vm1115, %v4946, 0
    %v5453 = vsel %vm1115, %v4947, 0
    %v5456 = vsel %vm1115, %v5042, 0
    %v5459 = vsel %vm1115, %v5043, 0
    %5461 = vmatprep.subr.bf16.mxu0 0
    %5462 = vmatpush1.bf16.xpose.msra.mxu0 %v5456
    %5463 = vmatprep.subr.bf16.mxu0 0
    %5464 = vmatpush1.bf16.xpose.msra.mxu0 %v5459
    %5465 = vmatprep.subr.bf16.mxu0 0
    %5466 = vmatpush1.bf16.xpose.msra.mxu0 0
    %5467 = vmatprep.subr.bf16.mxu0 0
    %5468 = vmatpush1.bf16.xpose.msra.mxu0 0
    %5469 = vmatprep.subr.bf16.mxu0 0
    %5470 = vmatpush1.bf16.xpose.msra.mxu0 0
    %5471 = vmatprep.subr.bf16.mxu0 0
    %5472 = vmatpush1.bf16.xpose.msra.mxu0 0
    %5473 = vmatprep.subr.bf16.mxu0 0
    %5474 = vmatpush1.bf16.xpose.msra.mxu0 0
    %5475 = vmatprep.subr.bf16.mxu0 0
    %5476 = vmatpush1.bf16.xpose.msra.mxu0 0
    %5477 = vmatprep.subr.bf16.mxu0 0
    %5478 = vmatpush1.bf16.xpose.msra.mxu0 0
    %5479 = vmatprep.subr.bf16.mxu0 0
    %5480 = vmatpush1.bf16.xpose.msra.mxu0 0
    %5481 = vmatprep.subr.bf16.mxu0 0
    %5482 = vmatpush1.bf16.xpose.msra.mxu0 0
    %5483 = vmatprep.subr.bf16.mxu0 0
    %5484 = vmatpush1.bf16.xpose.msra.mxu0 0
    %5485 = vmatprep.subr.bf16.mxu0 0
    %5486 = vmatpush1.bf16.xpose.msra.mxu0 0
    %5487 = vmatprep.subr.bf16.mxu0 0
    %5488 = vmatpush1.bf16.xpose.msra.mxu0 0
    %5489 = vmatprep.subr.bf16.mxu0 0
    %5490 = vmatpush1.bf16.xpose.msra.mxu0 0
    %5491 = vmatprep.subr.bf16.mxu0 0
    %5492 = vmatpush1.bf16.xpose.msra.mxu0 0
    %5493 = vmatprep.mubr.bf16.mxu0 0
    %5494 = vmatmul.mubr.bf16.gmra.mrb[0].mxu0 %v5450
    %v5495 = vpop.f32.mrb[0].mxu0
    %v5496 = vadd.f32 %v274, %v5495
    %v5497 = vpop.f32.mrb[0].mxu0
    %v5498 = vpop.f32.mrb[0].mxu0
    %v5499 = vadd.f32 %v274, %v5498
    %v5500 = vpop.f32.mrb[0].mxu0
    %5501 = vmatprep.mubr.bf16.mxu0 0
    %5502 = vmatmul.mubr.bf16.gmra.mrb[0].mxu0 %v5453
    %v5503 = vpop.f32.mrb[0].mxu0
    %v5504 = vadd.f32 %v274, %v5503
    %v5505 = vpop.f32.mrb[0].mxu0
    %v5506 = vpop.f32.mrb[0].mxu0
    %v5507 = vadd.f32 %v274, %v5506
    %v5508 = vpop.f32.mrb[0].mxu0
    %5509 = vdwg.mxu0
    %v5511 = vsel %vm1115, %v4948, 0
    %v5514 = vsel %vm1115, %v4949, 0
    %v5517 = vsel %vm1115, %v5044, 0
    %v5520 = vsel %vm1115, %v5045, 0
    %5522 = vmatprep.subr.bf16.mxu0 0
    %5523 = vmatpush1.bf16.xpose.msra.mxu0 %v5517
    %5524 = vmatprep.subr.bf16.mxu0 0
    %5525 = vmatpush1.bf16.xpose.msra.mxu0 %v5520
    %5526 = vmatprep.subr.bf16.mxu0 0
    %5527 = vmatpush1.bf16.xpose.msra.mxu0 0
    %5528 = vmatprep.subr.bf16.mxu0 0
    %5529 = vmatpush1.bf16.xpose.msra.mxu0 0
    %5530 = vmatprep.subr.bf16.mxu0 0
    %5531 = vmatpush1.bf16.xpose.msra.mxu0 0
    %5532 = vmatprep.subr.bf16.mxu0 0
    %5533 = vmatpush1.bf16.xpose.msra.mxu0 0
    %5534 = vmatprep.subr.bf16.mxu0 0
    %5535 = vmatpush1.bf16.xpose.msra.mxu0 0
    %5536 = vmatprep.subr.bf16.mxu0 0
    %5537 = vmatpush1.bf16.xpose.msra.mxu0 0
    %5538 = vmatprep.subr.bf16.mxu0 0
    %5539 = vmatpush1.bf16.xpose.msra.mxu0 0
    %5540 = vmatprep.subr.bf16.mxu0 0
    %5541 = vmatpush1.bf16.xpose.msra.mxu0 0
    %5542 = vmatprep.subr.bf16.mxu0 0
    %5543 = vmatpush1.bf16.xpose.msra.mxu0 0
    %5544 = vmatprep.subr.bf16.mxu0 0
    %5545 = vmatpush1.bf16.xpose.msra.mxu0 0
    %5546 = vmatprep.subr.bf16.mxu0 0
    %5547 = vmatpush1.bf16.xpose.msra.mxu0 0
    %5548 = vmatprep.subr.bf16.mxu0 0
    %5549 = vmatpush1.bf16.xpose.msra.mxu0 0
    %5550 = vmatprep.subr.bf16.mxu0 0
    %5551 = vmatpush1.bf16.xpose.msra.mxu0 0
    %5552 = vmatprep.subr.bf16.mxu0 0
    %5553 = vmatpush1.bf16.xpose.msra.mxu0 0
    %5554 = vmatprep.mubr.bf16.mxu0 0
    %5555 = vmatmul.mubr.bf16.gmra.mrb[0].mxu0 %v5511
    %v5556 = vpop.f32.mrb[0].mxu0
    %v5557 = vadd.f32 %v274, %v5556
    %v5558 = vpop.f32.mrb[0].mxu0
    %v5559 = vpop.f32.mrb[0].mxu0
    %v5560 = vadd.f32 %v274, %v5559
    %v5561 = vpop.f32.mrb[0].mxu0
    %5562 = vmatprep.mubr.bf16.mxu0 0
    %5563 = vmatmul.mubr.bf16.gmra.mrb[0].mxu0 %v5514
    %v5564 = vpop.f32.mrb[0].mxu0
    %v5565 = vadd.f32 %v274, %v5564
    %v5566 = vpop.f32.mrb[0].mxu0
    %v5567 = vpop.f32.mrb[0].mxu0
    %v5568 = vadd.f32 %v274, %v5567
    %v5569 = vpop.f32.mrb[0].mxu0
    %5570 = vdwg.mxu0
    %v5572 = vsel %vm1115, %v4950, 0
    %v5575 = vsel %vm1115, %v4951, 0
    %v5578 = vsel %vm1115, %v5046, 0
    %v5581 = vsel %vm1115, %v5047, 0
    %5583 = vmatprep.subr.bf16.mxu0 0
    %5584 = vmatpush1.bf16.xpose.msra.mxu0 %v5578
    %5585 = vmatprep.subr.bf16.mxu0 0
    %5586 = vmatpush1.bf16.xpose.msra.mxu0 %v5581
    %5587 = vmatprep.subr.bf16.mxu0 0
    %5588 = vmatpush1.bf16.xpose.msra.mxu0 0
    %5589 = vmatprep.subr.bf16.mxu0 0
    %5590 = vmatpush1.bf16.xpose.msra.mxu0 0
    %5591 = vmatprep.subr.bf16.mxu0 0
    %5592 = vmatpush1.bf16.xpose.msra.mxu0 0
    %5593 = vmatprep.subr.bf16.mxu0 0
    %5594 = vmatpush1.bf16.xpose.msra.mxu0 0
    %5595 = vmatprep.subr.bf16.mxu0 0
    %5596 = vmatpush1.bf16.xpose.msra.mxu0 0
    %5597 = vmatprep.subr.bf16.mxu0 0
    %5598 = vmatpush1.bf16.xpose.msra.mxu0 0
    %5599 = vmatprep.subr.bf16.mxu0 0
    %5600 = vmatpush1.bf16.xpose.msra.mxu0 0
    %5601 = vmatprep.subr.bf16.mxu0 0
    %5602 = vmatpush1.bf16.xpose.msra.mxu0 0
    %5603 = vmatprep.subr.bf16.mxu0 0
    %5604 = vmatpush1.bf16.xpose.msra.mxu0 0
    %5605 = vmatprep.subr.bf16.mxu0 0
    %5606 = vmatpush1.bf16.xpose.msra.mxu0 0
    %5607 = vmatprep.subr.bf16.mxu0 0
    %5608 = vmatpush1.bf16.xpose.msra.mxu0 0
    %5609 = vmatprep.subr.bf16.mxu0 0
    %5610 = vmatpush1.bf16.xpose.msra.mxu0 0
    %5611 = vmatprep.subr.bf16.mxu0 0
    %5612 = vmatpush1.bf16.xpose.msra.mxu0 0
    %5613 = vmatprep.subr.bf16.mxu0 0
    %5614 = vmatpush1.bf16.xpose.msra.mxu0 0
    %5615 = vmatprep.mubr.bf16.mxu0 0
    %5616 = vmatmul.mubr.bf16.gmra.mrb[0].mxu0 %v5572
    %v5617 = vpop.f32.mrb[0].mxu0
    %v5618 = vadd.f32 %v274, %v5617
    %v5619 = vpop.f32.mrb[0].mxu0
    %v5620 = vpop.f32.mrb[0].mxu0
    %v5621 = vadd.f32 %v274, %v5620
    %v5622 = vpop.f32.mrb[0].mxu0
    %5623 = vmatprep.mubr.bf16.mxu0 0
    %5624 = vmatmul.mubr.bf16.gmra.mrb[0].mxu0 %v5575
    %v5625 = vpop.f32.mrb[0].mxu0
    %v5626 = vadd.f32 %v274, %v5625
    %v5627 = vpop.f32.mrb[0].mxu0
    %v5628 = vpop.f32.mrb[0].mxu0
    %v5629 = vadd.f32 %v274, %v5628
    %v5630 = vpop.f32.mrb[0].mxu0
    %5631 = vdwg.mxu0
    %v5632 = vsel %vm1115, %v5191, -inf
    %5633 = vmax.xlane.f32.xlu0 %v5632
    %v5634 = vpop.xlane.xlu0 %5633
    %v5635 = vsel %vm1115, %v5194, -inf
    %5636 = vmax.xlane.f32.xlu0 %v5635
    %v5637 = vpop.xlane.xlu0 %5636
    %v5638 = vsel %vm1115, %v5199, -inf
    %5639 = vmax.xlane.f32.xlu0 %v5638
    %v5640 = vpop.xlane.xlu0 %5639
    %v5641 = vsel %vm1115, %v5202, -inf
    %5642 = vmax.xlane.f32.xlu0 %v5641
    %v5643 = vpop.xlane.xlu0 %5642
    %v5644 = vsel %vm1115, %v5252, -inf
    %5645 = vmax.xlane.f32.xlu0 %v5644
    %v5646 = vpop.xlane.xlu0 %5645
    %v5647 = vsel %vm1115, %v5255, -inf
    %5648 = vmax.xlane.f32.xlu0 %v5647
    %v5649 = vpop.xlane.xlu0 %5648
    %v5650 = vsel %vm1115, %v5260, -inf
    %5651 = vmax.xlane.f32.xlu0 %v5650
    %v5652 = vpop.xlane.xlu0 %5651
    %v5653 = vsel %vm1115, %v5263, -inf
    %5654 = vmax.xlane.f32.xlu0 %v5653
    %v5655 = vpop.xlane.xlu0 %5654
    %v5656 = vsel %vm1115, %v5313, -inf
    %5657 = vmax.xlane.f32.xlu0 %v5656
    %v5658 = vpop.xlane.xlu0 %5657
    %v5659 = vsel %vm1115, %v5316, -inf
    %5660 = vmax.xlane.f32.xlu0 %v5659
    %v5661 = vpop.xlane.xlu0 %5660
    %v5662 = vsel %vm1115, %v5321, -inf
    %5663 = vmax.xlane.f32.xlu0 %v5662
    %v5664 = vpop.xlane.xlu0 %5663
    %v5665 = vsel %vm1115, %v5324, -inf
    %5666 = vmax.xlane.f32.xlu0 %v5665
    %v5667 = vpop.xlane.xlu0 %5666
    %v5668 = vsel %vm1115, %v5374, -inf
    %5669 = vmax.xlane.f32.xlu0 %v5668
    %v5670 = vpop.xlane.xlu0 %5669
    %v5671 = vsel %vm1115, %v5377, -inf
    %5672 = vmax.xlane.f32.xlu0 %v5671
    %v5673 = vpop.xlane.xlu0 %5672
    %v5674 = vsel %vm1115, %v5382, -inf
    %5675 = vmax.xlane.f32.xlu0 %v5674
    %v5676 = vpop.xlane.xlu0 %5675
    %v5677 = vsel %vm1115, %v5385, -inf
    %5678 = vmax.xlane.f32.xlu0 %v5677
    %v5679 = vpop.xlane.xlu0 %5678
    %v5680 = vsel %vm1115, %v5435, -inf
    %5681 = vmax.xlane.f32.xlu0 %v5680
    %v5682 = vpop.xlane.xlu0 %5681
    %v5683 = vsel %vm1115, %v5438, -inf
    %5684 = vmax.xlane.f32.xlu0 %v5683
    %v5685 = vpop.xlane.xlu0 %5684
    %v5686 = vsel %vm1115, %v5443, -inf
    %5687 = vmax.xlane.f32.xlu0 %v5686
    %v5688 = vpop.xlane.xlu0 %5687
    %v5689 = vsel %vm1115, %v5446, -inf
    %5690 = vmax.xlane.f32.xlu0 %v5689
    %v5691 = vpop.xlane.xlu0 %5690
    %v5692 = vsel %vm1115, %v5496, -inf
    %5693 = vmax.xlane.f32.xlu0 %v5692
    %v5694 = vpop.xlane.xlu0 %5693
    %v5695 = vsel %vm1115, %v5499, -inf
    %5696 = vmax.xlane.f32.xlu0 %v5695
    %v5697 = vpop.xlane.xlu0 %5696
    %v5698 = vsel %vm1115, %v5504, -inf
    %5699 = vmax.xlane.f32.xlu0 %v5698
    %v5700 = vpop.xlane.xlu0 %5699
    %v5701 = vsel %vm1115, %v5507, -inf
    %5702 = vmax.xlane.f32.xlu0 %v5701
    %v5703 = vpop.xlane.xlu0 %5702
    %v5704 = vsel %vm1115, %v5557, -inf
    %5705 = vmax.xlane.f32.xlu0 %v5704
    %v5706 = vpop.xlane.xlu0 %5705
    %v5707 = vsel %vm1115, %v5560, -inf
    %5708 = vmax.xlane.f32.xlu0 %v5707
    %v5709 = vpop.xlane.xlu0 %5708
    %v5710 = vsel %vm1115, %v5565, -inf
    %5711 = vmax.xlane.f32.xlu0 %v5710
    %v5712 = vpop.xlane.xlu0 %5711
    %v5713 = vsel %vm1115, %v5568, -inf
    %5714 = vmax.xlane.f32.xlu0 %v5713
    %v5715 = vpop.xlane.xlu0 %5714
    %v5716 = vsel %vm1115, %v5618, -inf
    %5717 = vmax.xlane.f32.xlu0 %v5716
    %v5718 = vpop.xlane.xlu0 %5717
    %v5719 = vsel %vm1115, %v5621, -inf
    %5720 = vmax.xlane.f32.xlu0 %v5719
    %v5721 = vpop.xlane.xlu0 %5720
    %v5722 = vsel %vm1115, %v5626, -inf
    %5723 = vmax.xlane.f32.xlu0 %v5722
    %v5724 = vpop.xlane.xlu0 %5723
    %v5725 = vsel %vm1115, %v5629, -inf
    %5726 = vmax.xlane.f32.xlu0 %v5725
    %v5727 = vpop.xlane.xlu0 %5726
    %v5728 = vsub.f32 %v5191, %v5634
    %v5729 = vsub.f32 %v5194, %v5637
    %v5730 = vsub.f32 %v5199, %v5640
    %v5731 = vsub.f32 %v5202, %v5643
    %v5732 = vsub.f32 %v5252, %v5646
    %v5733 = vsub.f32 %v5255, %v5649
    %v5734 = vsub.f32 %v5260, %v5652
    %v5735 = vsub.f32 %v5263, %v5655
    %v5736 = vsub.f32 %v5313, %v5658
    %v5737 = vsub.f32 %v5316, %v5661
    %v5738 = vsub.f32 %v5321, %v5664
    %v5739 = vsub.f32 %v5324, %v5667
    %v5740 = vsub.f32 %v5374, %v5670
    %v5741 = vsub.f32 %v5377, %v5673
    %v5742 = vsub.f32 %v5382, %v5676
    %v5743 = vsub.f32 %v5385, %v5679
    %v5744 = vsub.f32 %v5435, %v5682
    %v5745 = vsub.f32 %v5438, %v5685
    %v5746 = vsub.f32 %v5443, %v5688
    %v5747 = vsub.f32 %v5446, %v5691
    %v5748 = vsub.f32 %v5496, %v5694
    %v5749 = vsub.f32 %v5499, %v5697
    %v5750 = vsub.f32 %v5504, %v5700
    %v5751 = vsub.f32 %v5507, %v5703
    %v5752 = vsub.f32 %v5557, %v5706
    %v5753 = vsub.f32 %v5560, %v5709
    %v5754 = vsub.f32 %v5565, %v5712
    %v5755 = vsub.f32 %v5568, %v5715
    %v5756 = vsub.f32 %v5618, %v5718
    %v5757 = vsub.f32 %v5621, %v5721
    %v5758 = vsub.f32 %v5626, %v5724
    %v5759 = vsub.f32 %v5629, %v5727
    %v5760 = vmul.f32 %v5728, 1.442695
    %v5761 = vpow.pop %v5760
    %v5762 = vmul.f32 %v5729, 1.442695
    %v5763 = vpow.pop %v5762
    %v5764 = vmul.f32 %v5730, 1.442695
    %v5765 = vpow.pop %v5764
    %v5766 = vmul.f32 %v5731, 1.442695
    %v5767 = vpow.pop %v5766
    %v5768 = vmul.f32 %v5732, 1.442695
    %v5769 = vpow.pop %v5768
    %v5770 = vmul.f32 %v5733, 1.442695
    %v5771 = vpow.pop %v5770
    %v5772 = vmul.f32 %v5734, 1.442695
    %v5773 = vpow.pop %v5772
    %v5774 = vmul.f32 %v5735, 1.442695
    %v5775 = vpow.pop %v5774
    %v5776 = vmul.f32 %v5736, 1.442695
    %v5777 = vpow.pop %v5776
    %v5778 = vmul.f32 %v5737, 1.442695
    %v5779 = vpow.pop %v5778
    %v5780 = vmul.f32 %v5738, 1.442695
    %v5781 = vpow.pop %v5780
    %v5782 = vmul.f32 %v5739, 1.442695
    %v5783 = vpow.pop %v5782
    %v5784 = vmul.f32 %v5740, 1.442695
    %v5785 = vpow.pop %v5784
    %v5786 = vmul.f32 %v5741, 1.442695
    %v5787 = vpow.pop %v5786
    %v5788 = vmul.f32 %v5742, 1.442695
    %v5789 = vpow.pop %v5788
    %v5790 = vmul.f32 %v5743, 1.442695
    %v5791 = vpow.pop %v5790
    %v5792 = vmul.f32 %v5744, 1.442695
    %v5793 = vpow.pop %v5792
    %v5794 = vmul.f32 %v5745, 1.442695
    %v5795 = vpow.pop %v5794
    %v5796 = vmul.f32 %v5746, 1.442695
    %v5797 = vpow.pop %v5796
    %v5798 = vmul.f32 %v5747, 1.442695
    %v5799 = vpow.pop %v5798
    %v5800 = vmul.f32 %v5748, 1.442695
    %v5801 = vpow.pop %v5800
    %v5802 = vmul.f32 %v5749, 1.442695
    %v5803 = vpow.pop %v5802
    %v5804 = vmul.f32 %v5750, 1.442695
    %v5805 = vpow.pop %v5804
    %v5806 = vmul.f32 %v5751, 1.442695
    %v5807 = vpow.pop %v5806
    %v5808 = vmul.f32 %v5752, 1.442695
    %v5809 = vpow.pop %v5808
    %v5810 = vmul.f32 %v5753, 1.442695
    %v5811 = vpow.pop %v5810
    %v5812 = vmul.f32 %v5754, 1.442695
    %v5813 = vpow.pop %v5812
    %v5814 = vmul.f32 %v5755, 1.442695
    %v5815 = vpow.pop %v5814
    %v5816 = vmul.f32 %v5756, 1.442695
    %v5817 = vpow.pop %v5816
    %v5818 = vmul.f32 %v5757, 1.442695
    %v5819 = vpow.pop %v5818
    %v5820 = vmul.f32 %v5758, 1.442695
    %v5821 = vpow.pop %v5820
    %v5822 = vmul.f32 %v5759, 1.442695
    %v5823 = vpow.pop %v5822
    %v5824 = vsel %vm1115, %v5761, 0.0
    %5825 = vadd.xlane.f32.xlu0 %v5824
    %v5826 = vpop.xlane.xlu0 %5825
    %v5827 = vsel %vm1115, %v5763, 0.0
    %5828 = vadd.xlane.f32.xlu0 %v5827
    %v5829 = vpop.xlane.xlu0 %5828
    %v5830 = vsel %vm1115, %v5765, 0.0
    %5831 = vadd.xlane.f32.xlu0 %v5830
    %v5832 = vpop.xlane.xlu0 %5831
    %v5833 = vsel %vm1115, %v5767, 0.0
    %5834 = vadd.xlane.f32.xlu0 %v5833
    %v5835 = vpop.xlane.xlu0 %5834
    %v5836 = vsel %vm1115, %v5769, 0.0
    %5837 = vadd.xlane.f32.xlu0 %v5836
    %v5838 = vpop.xlane.xlu0 %5837
    %v5839 = vsel %vm1115, %v5771, 0.0
    %5840 = vadd.xlane.f32.xlu0 %v5839
    %v5841 = vpop.xlane.xlu0 %5840
    %v5842 = vsel %vm1115, %v5773, 0.0
    %5843 = vadd.xlane.f32.xlu0 %v5842
    %v5844 = vpop.xlane.xlu0 %5843
    %v5845 = vsel %vm1115, %v5775, 0.0
    %5846 = vadd.xlane.f32.xlu0 %v5845
    %v5847 = vpop.xlane.xlu0 %5846
    %v5848 = vsel %vm1115, %v5777, 0.0
    %5849 = vadd.xlane.f32.xlu0 %v5848
    %v5850 = vpop.xlane.xlu0 %5849
    %v5851 = vsel %vm1115, %v5779, 0.0
    %5852 = vadd.xlane.f32.xlu0 %v5851
    %v5853 = vpop.xlane.xlu0 %5852
    %v5854 = vsel %vm1115, %v5781, 0.0
    %5855 = vadd.xlane.f32.xlu0 %v5854
    %v5856 = vpop.xlane.xlu0 %5855
    %v5857 = vsel %vm1115, %v5783, 0.0
    %5858 = vadd.xlane.f32.xlu0 %v5857
    %v5859 = vpop.xlane.xlu0 %5858
    %v5860 = vsel %vm1115, %v5785, 0.0
    %5861 = vadd.xlane.f32.xlu0 %v5860
    %v5862 = vpop.xlane.xlu0 %5861
    %v5863 = vsel %vm1115, %v5787, 0.0
    %5864 = vadd.xlane.f32.xlu0 %v5863
    %v5865 = vpop.xlane.xlu0 %5864
    %v5866 = vsel %vm1115, %v5789, 0.0
    %5867 = vadd.xlane.f32.xlu0 %v5866
    %v5868 = vpop.xlane.xlu0 %5867
    %v5869 = vsel %vm1115, %v5791, 0.0
    %5870 = vadd.xlane.f32.xlu0 %v5869
    %v5871 = vpop.xlane.xlu0 %5870
    %v5872 = vsel %vm1115, %v5793, 0.0
    %5873 = vadd.xlane.f32.xlu0 %v5872
    %v5874 = vpop.xlane.xlu0 %5873
    %v5875 = vsel %vm1115, %v5795, 0.0
    %5876 = vadd.xlane.f32.xlu0 %v5875
    %v5877 = vpop.xlane.xlu0 %5876
    %v5878 = vsel %vm1115, %v5797, 0.0
    %5879 = vadd.xlane.f32.xlu0 %v5878
    %v5880 = vpop.xlane.xlu0 %5879
    %v5881 = vsel %vm1115, %v5799, 0.0
    %5882 = vadd.xlane.f32.xlu0 %v5881
    %v5883 = vpop.xlane.xlu0 %5882
    %v5884 = vsel %vm1115, %v5801, 0.0
    %5885 = vadd.xlane.f32.xlu0 %v5884
    %v5886 = vpop.xlane.xlu0 %5885
    %v5887 = vsel %vm1115, %v5803, 0.0
    %5888 = vadd.xlane.f32.xlu0 %v5887
    %v5889 = vpop.xlane.xlu0 %5888
    %v5890 = vsel %vm1115, %v5805, 0.0
    %5891 = vadd.xlane.f32.xlu0 %v5890
    %v5892 = vpop.xlane.xlu0 %5891
    %v5893 = vsel %vm1115, %v5807, 0.0
    %5894 = vadd.xlane.f32.xlu0 %v5893
    %v5895 = vpop.xlane.xlu0 %5894
    %v5896 = vsel %vm1115, %v5809, 0.0
    %5897 = vadd.xlane.f32.xlu0 %v5896
    %v5898 = vpop.xlane.xlu0 %5897
    %v5899 = vsel %vm1115, %v5811, 0.0
    %5900 = vadd.xlane.f32.xlu0 %v5899
    %v5901 = vpop.xlane.xlu0 %5900
    %v5902 = vsel %vm1115, %v5813, 0.0
    %5903 = vadd.xlane.f32.xlu0 %v5902
    %v5904 = vpop.xlane.xlu0 %5903
    %v5905 = vsel %vm1115, %v5815, 0.0
    %5906 = vadd.xlane.f32.xlu0 %v5905
    %v5907 = vpop.xlane.xlu0 %5906
    %v5908 = vsel %vm1115, %v5817, 0.0
    %5909 = vadd.xlane.f32.xlu0 %v5908
    %v5910 = vpop.xlane.xlu0 %5909
    %v5911 = vsel %vm1115, %v5819, 0.0
    %5912 = vadd.xlane.f32.xlu0 %v5911
    %v5913 = vpop.xlane.xlu0 %5912
    %v5914 = vsel %vm1115, %v5821, 0.0
    %5915 = vadd.xlane.f32.xlu0 %v5914
    %v5916 = vpop.xlane.xlu0 %5915
    %v5917 = vsel %vm1115, %v5823, 0.0
    %5918 = vadd.xlane.f32.xlu0 %v5917
    %v5919 = vpop.xlane.xlu0 %5918
    %v5920 = vrcp.pop %v5826
    %v5921 = vrcp.pop %v5829
    %v5922 = vrcp.pop %v5832
    %v5923 = vrcp.pop %v5835
    %v5924 = vrcp.pop %v5838
    %v5925 = vrcp.pop %v5841
    %v5926 = vrcp.pop %v5844
    %v5927 = vrcp.pop %v5847
    %v5928 = vrcp.pop %v5850
    %v5929 = vrcp.pop %v5853
    %v5930 = vrcp.pop %v5856
    %v5931 = vrcp.pop %v5859
    %v5932 = vrcp.pop %v5862
    %v5933 = vrcp.pop %v5865
    %v5934 = vrcp.pop %v5868
    %v5935 = vrcp.pop %v5871
    %v5936 = vrcp.pop %v5874
    %v5937 = vrcp.pop %v5877
    %v5938 = vrcp.pop %v5880
    %v5939 = vrcp.pop %v5883
    %v5940 = vrcp.pop %v5886
    %v5941 = vrcp.pop %v5889
    %v5942 = vrcp.pop %v5892
    %v5943 = vrcp.pop %v5895
    %v5944 = vrcp.pop %v5898
    %v5945 = vrcp.pop %v5901
    %v5946 = vrcp.pop %v5904
    %v5947 = vrcp.pop %v5907
    %v5948 = vrcp.pop %v5910
    %v5949 = vrcp.pop %v5913
    %v5950 = vrcp.pop %v5916
    %v5951 = vrcp.pop %v5919
    %v5952 = vmul.f32 %v5761, %v5920
    %v5953 = vmul.f32 %v5763, %v5921
    %v5954 = vmul.f32 %v5765, %v5922
    %v5955 = vmul.f32 %v5767, %v5923
    %v5956 = vmul.f32 %v5769, %v5924
    %v5957 = vmul.f32 %v5771, %v5925
    %v5958 = vmul.f32 %v5773, %v5926
    %v5959 = vmul.f32 %v5775, %v5927
    %v5960 = vmul.f32 %v5777, %v5928
    %v5961 = vmul.f32 %v5779, %v5929
    %v5962 = vmul.f32 %v5781, %v5930
    %v5963 = vmul.f32 %v5783, %v5931
    %v5964 = vmul.f32 %v5785, %v5932
    %v5965 = vmul.f32 %v5787, %v5933
    %v5966 = vmul.f32 %v5789, %v5934
    %v5967 = vmul.f32 %v5791, %v5935
    %v5968 = vmul.f32 %v5793, %v5936
    %v5969 = vmul.f32 %v5795, %v5937
    %v5970 = vmul.f32 %v5797, %v5938
    %v5971 = vmul.f32 %v5799, %v5939
    %v5972 = vmul.f32 %v5801, %v5940
    %v5973 = vmul.f32 %v5803, %v5941
    %v5974 = vmul.f32 %v5805, %v5942
    %v5975 = vmul.f32 %v5807, %v5943
    %v5976 = vmul.f32 %v5809, %v5944
    %v5977 = vmul.f32 %v5811, %v5945
    %v5978 = vmul.f32 %v5813, %v5946
    %v5979 = vmul.f32 %v5815, %v5947
    %v5980 = vmul.f32 %v5817, %v5948
    %v5981 = vmul.f32 %v5819, %v5949
    %v5982 = vmul.f32 %v5821, %v5950
    %v5983 = vmul.f32 %v5823, %v5951
    %v5984 = vpack.c.bf16 %v5953, %v5952
    %v5985 = vpack.c.bf16 %v5955, %v5954
    %v5986 = vpack.c.bf16 %v5957, %v5956
    %v5987 = vpack.c.bf16 %v5959, %v5958
    %v5988 = vpack.c.bf16 %v5961, %v5960
    %v5989 = vpack.c.bf16 %v5963, %v5962
    %v5990 = vpack.c.bf16 %v5965, %v5964
    %v5991 = vpack.c.bf16 %v5967, %v5966
    %v5992 = vpack.c.bf16 %v5969, %v5968
    %v5993 = vpack.c.bf16 %v5971, %v5970
    %v5994 = vpack.c.bf16 %v5973, %v5972
    %v5995 = vpack.c.bf16 %v5975, %v5974
    %v5996 = vpack.c.bf16 %v5977, %v5976
    %v5997 = vpack.c.bf16 %v5979, %v5978
    %v5998 = vpack.c.bf16 %v5981, %v5980
    %v5999 = vpack.c.bf16 %v5983, %v5982
    %v6001 = vsel %vm1115, %v5984, 0
    %v6004 = vsel %vm1115, %v5985, 0
    %6006 = vmatprep.subr.bf16.mxu0 0
    %6007 = vmatpush1.bf16.msra.mxu0 %v5128
    %6008 = vmatprep.subr.bf16.mxu0 0
    %6009 = vmatpush1.bf16.msra.mxu0 %v5129
    %6010 = vmatprep.subr.bf16.mxu0 0
    %6011 = vmatpush1.bf16.msra.mxu0 0
    %6012 = vmatprep.subr.bf16.mxu0 0
    %6013 = vmatpush1.bf16.msra.mxu0 0
    %6014 = vmatprep.subr.bf16.mxu0 0
    %6015 = vmatpush1.bf16.msra.mxu0 0
    %6016 = vmatprep.subr.bf16.mxu0 0
    %6017 = vmatpush1.bf16.msra.mxu0 0
    %6018 = vmatprep.subr.bf16.mxu0 0
    %6019 = vmatpush1.bf16.msra.mxu0 0
    %6020 = vmatprep.subr.bf16.mxu0 0
    %6021 = vmatpush1.bf16.msra.mxu0 0
    %6022 = vmatprep.subr.bf16.mxu0 0
    %6023 = vmatpush1.bf16.msra.mxu0 0
    %6024 = vmatprep.subr.bf16.mxu0 0
    %6025 = vmatpush1.bf16.msra.mxu0 0
    %6026 = vmatprep.subr.bf16.mxu0 0
    %6027 = vmatpush1.bf16.msra.mxu0 0
    %6028 = vmatprep.subr.bf16.mxu0 0
    %6029 = vmatpush1.bf16.msra.mxu0 0
    %6030 = vmatprep.subr.bf16.mxu0 0
    %6031 = vmatpush1.bf16.msra.mxu0 0
    %6032 = vmatprep.subr.bf16.mxu0 0
    %6033 = vmatpush1.bf16.msra.mxu0 0
    %6034 = vmatprep.subr.bf16.mxu0 0
    %6035 = vmatpush1.bf16.msra.mxu0 0
    %6036 = vmatprep.subr.bf16.mxu0 0
    %6037 = vmatpush1.bf16.msra.mxu0 0
    %6038 = vmatprep.mubr.bf16.mxu0 0
    %6039 = vmatmul.mubr.bf16.gmra.mrb[0].mxu0 %v6001
    %v6040 = vpop.f32.mrb[0].mxu0
    %v6041 = vadd.f32 0.0, %v6040
    %v6042 = vpop.f32.mrb[0].mxu0
    %v6043 = vpop.f32.mrb[0].mxu0
    %v6044 = vadd.f32 0.0, %v6043
    %v6045 = vpop.f32.mrb[0].mxu0
    %6046 = vmatprep.mubr.bf16.mxu0 0
    %6047 = vmatmul.mubr.bf16.gmra.mrb[0].mxu0 %v6004
    %v6048 = vpop.f32.mrb[0].mxu0
    %v6049 = vadd.f32 0.0, %v6048
    %v6050 = vpop.f32.mrb[0].mxu0
    %v6051 = vpop.f32.mrb[0].mxu0
    %v6052 = vadd.f32 0.0, %v6051
    %v6053 = vpop.f32.mrb[0].mxu0
    %6054 = vdwg.mxu0
    %v6056 = vsel %vm1115, %v5986, 0
    %v6059 = vsel %vm1115, %v5987, 0
    %6061 = vmatprep.subr.bf16.mxu0 0
    %6062 = vmatpush1.bf16.msra.mxu0 %v5130
    %6063 = vmatprep.subr.bf16.mxu0 0
    %6064 = vmatpush1.bf16.msra.mxu0 %v5131
    %6065 = vmatprep.subr.bf16.mxu0 0
    %6066 = vmatpush1.bf16.msra.mxu0 0
    %6067 = vmatprep.subr.bf16.mxu0 0
    %6068 = vmatpush1.bf16.msra.mxu0 0
    %6069 = vmatprep.subr.bf16.mxu0 0
    %6070 = vmatpush1.bf16.msra.mxu0 0
    %6071 = vmatprep.subr.bf16.mxu0 0
    %6072 = vmatpush1.bf16.msra.mxu0 0
    %6073 = vmatprep.subr.bf16.mxu0 0
    %6074 = vmatpush1.bf16.msra.mxu0 0
    %6075 = vmatprep.subr.bf16.mxu0 0
    %6076 = vmatpush1.bf16.msra.mxu0 0
    %6077 = vmatprep.subr.bf16.mxu0 0
    %6078 = vmatpush1.bf16.msra.mxu0 0
    %6079 = vmatprep.subr.bf16.mxu0 0
    %6080 = vmatpush1.bf16.msra.mxu0 0
    %6081 = vmatprep.subr.bf16.mxu0 0
    %6082 = vmatpush1.bf16.msra.mxu0 0
    %6083 = vmatprep.subr.bf16.mxu0 0
    %6084 = vmatpush1.bf16.msra.mxu0 0
    %6085 = vmatprep.subr.bf16.mxu0 0
    %6086 = vmatpush1.bf16.msra.mxu0 0
    %6087 = vmatprep.subr.bf16.mxu0 0
    %6088 = vmatpush1.bf16.msra.mxu0 0
    %6089 = vmatprep.subr.bf16.mxu0 0
    %6090 = vmatpush1.bf16.msra.mxu0 0
    %6091 = vmatprep.subr.bf16.mxu0 0
    %6092 = vmatpush1.bf16.msra.mxu0 0
    %6093 = vmatprep.mubr.bf16.mxu0 0
    %6094 = vmatmul.mubr.bf16.gmra.mrb[0].mxu0 %v6056
    %v6095 = vpop.f32.mrb[0].mxu0
    %v6096 = vadd.f32 0.0, %v6095
    %v6097 = vpop.f32.mrb[0].mxu0
    %v6098 = vpop.f32.mrb[0].mxu0
    %v6099 = vadd.f32 0.0, %v6098
    %v6100 = vpop.f32.mrb[0].mxu0
    %6101 = vmatprep.mubr.bf16.mxu0 0
    %6102 = vmatmul.mubr.bf16.gmra.mrb[0].mxu0 %v6059
    %v6103 = vpop.f32.mrb[0].mxu0
    %v6104 = vadd.f32 0.0, %v6103
    %v6105 = vpop.f32.mrb[0].mxu0
    %v6106 = vpop.f32.mrb[0].mxu0
    %v6107 = vadd.f32 0.0, %v6106
    %v6108 = vpop.f32.mrb[0].mxu0
    %6109 = vdwg.mxu0
    %v6111 = vsel %vm1115, %v5988, 0
    %v6114 = vsel %vm1115, %v5989, 0
    %6116 = vmatprep.subr.bf16.mxu0 0
    %6117 = vmatpush1.bf16.msra.mxu0 %v5132
    %6118 = vmatprep.subr.bf16.mxu0 0
    %6119 = vmatpush1.bf16.msra.mxu0 %v5133
    %6120 = vmatprep.subr.bf16.mxu0 0
    %6121 = vmatpush1.bf16.msra.mxu0 0
    %6122 = vmatprep.subr.bf16.mxu0 0
    %6123 = vmatpush1.bf16.msra.mxu0 0
    %6124 = vmatprep.subr.bf16.mxu0 0
    %6125 = vmatpush1.bf16.msra.mxu0 0
    %6126 = vmatprep.subr.bf16.mxu0 0
    %6127 = vmatpush1.bf16.msra.mxu0 0
    %6128 = vmatprep.subr.bf16.mxu0 0
    %6129 = vmatpush1.bf16.msra.mxu0 0
    %6130 = vmatprep.subr.bf16.mxu0 0
    %6131 = vmatpush1.bf16.msra.mxu0 0
    %6132 = vmatprep.subr.bf16.mxu0 0
    %6133 = vmatpush1.bf16.msra.mxu0 0
    %6134 = vmatprep.subr.bf16.mxu0 0
    %6135 = vmatpush1.bf16.msra.mxu0 0
    %6136 = vmatprep.subr.bf16.mxu0 0
    %6137 = vmatpush1.bf16.msra.mxu0 0
    %6138 = vmatprep.subr.bf16.mxu0 0
    %6139 = vmatpush1.bf16.msra.mxu0 0
    %6140 = vmatprep.subr.bf16.mxu0 0
    %6141 = vmatpush1.bf16.msra.mxu0 0
    %6142 = vmatprep.subr.bf16.mxu0 0
    %6143 = vmatpush1.bf16.msra.mxu0 0
    %6144 = vmatprep.subr.bf16.mxu0 0
    %6145 = vmatpush1.bf16.msra.mxu0 0
    %6146 = vmatprep.subr.bf16.mxu0 0
    %6147 = vmatpush1.bf16.msra.mxu0 0
    %6148 = vmatprep.mubr.bf16.mxu0 0
    %6149 = vmatmul.mubr.bf16.gmra.mrb[0].mxu0 %v6111
    %v6150 = vpop.f32.mrb[0].mxu0
    %v6151 = vadd.f32 0.0, %v6150
    %v6152 = vpop.f32.mrb[0].mxu0
    %v6153 = vpop.f32.mrb[0].mxu0
    %v6154 = vadd.f32 0.0, %v6153
    %v6155 = vpop.f32.mrb[0].mxu0
    %6156 = vmatprep.mubr.bf16.mxu0 0
    %6157 = vmatmul.mubr.bf16.gmra.mrb[0].mxu0 %v6114
    %v6158 = vpop.f32.mrb[0].mxu0
    %v6159 = vadd.f32 0.0, %v6158
    %v6160 = vpop.f32.mrb[0].mxu0
    %v6161 = vpop.f32.mrb[0].mxu0
    %v6162 = vadd.f32 0.0, %v6161
    %v6163 = vpop.f32.mrb[0].mxu0
    %6164 = vdwg.mxu0
    %v6166 = vsel %vm1115, %v5990, 0
    %v6169 = vsel %vm1115, %v5991, 0
    %6171 = vmatprep.subr.bf16.mxu0 0
    %6172 = vmatpush1.bf16.msra.mxu0 %v5134
    %6173 = vmatprep.subr.bf16.mxu0 0
    %6174 = vmatpush1.bf16.msra.mxu0 %v5135
    %6175 = vmatprep.subr.bf16.mxu0 0
    %6176 = vmatpush1.bf16.msra.mxu0 0
    %6177 = vmatprep.subr.bf16.mxu0 0
    %6178 = vmatpush1.bf16.msra.mxu0 0
    %6179 = vmatprep.subr.bf16.mxu0 0
    %6180 = vmatpush1.bf16.msra.mxu0 0
    %6181 = vmatprep.subr.bf16.mxu0 0
    %6182 = vmatpush1.bf16.msra.mxu0 0
    %6183 = vmatprep.subr.bf16.mxu0 0
    %6184 = vmatpush1.bf16.msra.mxu0 0
    %6185 = vmatprep.subr.bf16.mxu0 0
    %6186 = vmatpush1.bf16.msra.mxu0 0
    %6187 = vmatprep.subr.bf16.mxu0 0
    %6188 = vmatpush1.bf16.msra.mxu0 0
    %6189 = vmatprep.subr.bf16.mxu0 0
    %6190 = vmatpush1.bf16.msra.mxu0 0
    %6191 = vmatprep.subr.bf16.mxu0 0
    %6192 = vmatpush1.bf16.msra.mxu0 0
    %6193 = vmatprep.subr.bf16.mxu0 0
    %6194 = vmatpush1.bf16.msra.mxu0 0
    %6195 = vmatprep.subr.bf16.mxu0 0
    %6196 = vmatpush1.bf16.msra.mxu0 0
    %6197 = vmatprep.subr.bf16.mxu0 0
    %6198 = vmatpush1.bf16.msra.mxu0 0
    %6199 = vmatprep.subr.bf16.mxu0 0
    %6200 = vmatpush1.bf16.msra.mxu0 0
    %6201 = vmatprep.subr.bf16.mxu0 0
    %6202 = vmatpush1.bf16.msra.mxu0 0
    %6203 = vmatprep.mubr.bf16.mxu0 0
    %6204 = vmatmul.mubr.bf16.gmra.mrb[0].mxu0 %v6166
    %v6205 = vpop.f32.mrb[0].mxu0
    %v6206 = vadd.f32 0.0, %v6205
    %v6207 = vpop.f32.mrb[0].mxu0
    %v6208 = vpop.f32.mrb[0].mxu0
    %v6209 = vadd.f32 0.0, %v6208
    %v6210 = vpop.f32.mrb[0].mxu0
    %6211 = vmatprep.mubr.bf16.mxu0 0
    %6212 = vmatmul.mubr.bf16.gmra.mrb[0].mxu0 %v6169
    %v6213 = vpop.f32.mrb[0].mxu0
    %v6214 = vadd.f32 0.0, %v6213
    %v6215 = vpop.f32.mrb[0].mxu0
    %v6216 = vpop.f32.mrb[0].mxu0
    %v6217 = vadd.f32 0.0, %v6216
    %v6218 = vpop.f32.mrb[0].mxu0
    %6219 = vdwg.mxu0
    %v6221 = vsel %vm1115, %v5992, 0
    %v6224 = vsel %vm1115, %v5993, 0
    %6226 = vmatprep.subr.bf16.mxu0 0
    %6227 = vmatpush1.bf16.msra.mxu0 %v5136
    %6228 = vmatprep.subr.bf16.mxu0 0
    %6229 = vmatpush1.bf16.msra.mxu0 %v5137
    %6230 = vmatprep.subr.bf16.mxu0 0
    %6231 = vmatpush1.bf16.msra.mxu0 0
    %6232 = vmatprep.subr.bf16.mxu0 0
    %6233 = vmatpush1.bf16.msra.mxu0 0
    %6234 = vmatprep.subr.bf16.mxu0 0
    %6235 = vmatpush1.bf16.msra.mxu0 0
    %6236 = vmatprep.subr.bf16.mxu0 0
    %6237 = vmatpush1.bf16.msra.mxu0 0
    %6238 = vmatprep.subr.bf16.mxu0 0
    %6239 = vmatpush1.bf16.msra.mxu0 0
    %6240 = vmatprep.subr.bf16.mxu0 0
    %6241 = vmatpush1.bf16.msra.mxu0 0
    %6242 = vmatprep.subr.bf16.mxu0 0
    %6243 = vmatpush1.bf16.msra.mxu0 0
    %6244 = vmatprep.subr.bf16.mxu0 0
    %6245 = vmatpush1.bf16.msra.mxu0 0
    %6246 = vmatprep.subr.bf16.mxu0 0
    %6247 = vmatpush1.bf16.msra.mxu0 0
    %6248 = vmatprep.subr.bf16.mxu0 0
    %6249 = vmatpush1.bf16.msra.mxu0 0
    %6250 = vmatprep.subr.bf16.mxu0 0
    %6251 = vmatpush1.bf16.msra.mxu0 0
    %6252 = vmatprep.subr.bf16.mxu0 0
    %6253 = vmatpush1.bf16.msra.mxu0 0
    %6254 = vmatprep.subr.bf16.mxu0 0
    %6255 = vmatpush1.bf16.msra.mxu0 0
    %6256 = vmatprep.subr.bf16.mxu0 0
    %6257 = vmatpush1.bf16.msra.mxu0 0
    %6258 = vmatprep.mubr.bf16.mxu0 0
    %6259 = vmatmul.mubr.bf16.gmra.mrb[0].mxu0 %v6221
    %v6260 = vpop.f32.mrb[0].mxu0
    %v6261 = vadd.f32 0.0, %v6260
    %v6262 = vpop.f32.mrb[0].mxu0
    %v6263 = vpop.f32.mrb[0].mxu0
    %v6264 = vadd.f32 0.0, %v6263
    %v6265 = vpop.f32.mrb[0].mxu0
    %6266 = vmatprep.mubr.bf16.mxu0 0
    %6267 = vmatmul.mubr.bf16.gmra.mrb[0].mxu0 %v6224
    %v6268 = vpop.f32.mrb[0].mxu0
    %v6269 = vadd.f32 0.0, %v6268
    %v6270 = vpop.f32.mrb[0].mxu0
    %v6271 = vpop.f32.mrb[0].mxu0
    %v6272 = vadd.f32 0.0, %v6271
    %v6273 = vpop.f32.mrb[0].mxu0
    %6274 = vdwg.mxu0
    %v6276 = vsel %vm1115, %v5994, 0
    %v6279 = vsel %vm1115, %v5995, 0
    %6281 = vmatprep.subr.bf16.mxu0 0
    %6282 = vmatpush1.bf16.msra.mxu0 %v5138
    %6283 = vmatprep.subr.bf16.mxu0 0
    %6284 = vmatpush1.bf16.msra.mxu0 %v5139
    %6285 = vmatprep.subr.bf16.mxu0 0
    %6286 = vmatpush1.bf16.msra.mxu0 0
    %6287 = vmatprep.subr.bf16.mxu0 0
    %6288 = vmatpush1.bf16.msra.mxu0 0
    %6289 = vmatprep.subr.bf16.mxu0 0
    %6290 = vmatpush1.bf16.msra.mxu0 0
    %6291 = vmatprep.subr.bf16.mxu0 0
    %6292 = vmatpush1.bf16.msra.mxu0 0
    %6293 = vmatprep.subr.bf16.mxu0 0
    %6294 = vmatpush1.bf16.msra.mxu0 0
    %6295 = vmatprep.subr.bf16.mxu0 0
    %6296 = vmatpush1.bf16.msra.mxu0 0
    %6297 = vmatprep.subr.bf16.mxu0 0
    %6298 = vmatpush1.bf16.msra.mxu0 0
    %6299 = vmatprep.subr.bf16.mxu0 0
    %6300 = vmatpush1.bf16.msra.mxu0 0
    %6301 = vmatprep.subr.bf16.mxu0 0
    %6302 = vmatpush1.bf16.msra.mxu0 0
    %6303 = vmatprep.subr.bf16.mxu0 0
    %6304 = vmatpush1.bf16.msra.mxu0 0
    %6305 = vmatprep.subr.bf16.mxu0 0
    %6306 = vmatpush1.bf16.msra.mxu0 0
    %6307 = vmatprep.subr.bf16.mxu0 0
    %6308 = vmatpush1.bf16.msra.mxu0 0
    %6309 = vmatprep.subr.bf16.mxu0 0
    %6310 = vmatpush1.bf16.msra.mxu0 0
    %6311 = vmatprep.subr.bf16.mxu0 0
    %6312 = vmatpush1.bf16.msra.mxu0 0
    %6313 = vmatprep.mubr.bf16.mxu0 0
    %6314 = vmatmul.mubr.bf16.gmra.mrb[0].mxu0 %v6276
    %v6315 = vpop.f32.mrb[0].mxu0
    %v6316 = vadd.f32 0.0, %v6315
    %v6317 = vpop.f32.mrb[0].mxu0
    %v6318 = vpop.f32.mrb[0].mxu0
    %v6319 = vadd.f32 0.0, %v6318
    %v6320 = vpop.f32.mrb[0].mxu0
    %6321 = vmatprep.mubr.bf16.mxu0 0
    %6322 = vmatmul.mubr.bf16.gmra.mrb[0].mxu0 %v6279
    %v6323 = vpop.f32.mrb[0].mxu0
    %v6324 = vadd.f32 0.0, %v6323
    %v6325 = vpop.f32.mrb[0].mxu0
    %v6326 = vpop.f32.mrb[0].mxu0
    %v6327 = vadd.f32 0.0, %v6326
    %v6328 = vpop.f32.mrb[0].mxu0
    %6329 = vdwg.mxu0
    %v6331 = vsel %vm1115, %v5996, 0
    %v6334 = vsel %vm1115, %v5997, 0
    %6336 = vmatprep.subr.bf16.mxu0 0
    %6337 = vmatpush1.bf16.msra.mxu0 %v5140
    %6338 = vmatprep.subr.bf16.mxu0 0
    %6339 = vmatpush1.bf16.msra.mxu0 %v5141
    %6340 = vmatprep.subr.bf16.mxu0 0
    %6341 = vmatpush1.bf16.msra.mxu0 0
    %6342 = vmatprep.subr.bf16.mxu0 0
    %6343 = vmatpush1.bf16.msra.mxu0 0
    %6344 = vmatprep.subr.bf16.mxu0 0
    %6345 = vmatpush1.bf16.msra.mxu0 0
    %6346 = vmatprep.subr.bf16.mxu0 0
    %6347 = vmatpush1.bf16.msra.mxu0 0
    %6348 = vmatprep.subr.bf16.mxu0 0
    %6349 = vmatpush1.bf16.msra.mxu0 0
    %6350 = vmatprep.subr.bf16.mxu0 0
    %6351 = vmatpush1.bf16.msra.mxu0 0
    %6352 = vmatprep.subr.bf16.mxu0 0
    %6353 = vmatpush1.bf16.msra.mxu0 0
    %6354 = vmatprep.subr.bf16.mxu0 0
    %6355 = vmatpush1.bf16.msra.mxu0 0
    %6356 = vmatprep.subr.bf16.mxu0 0
    %6357 = vmatpush1.bf16.msra.mxu0 0
    %6358 = vmatprep.subr.bf16.mxu0 0
    %6359 = vmatpush1.bf16.msra.mxu0 0
    %6360 = vmatprep.subr.bf16.mxu0 0
    %6361 = vmatpush1.bf16.msra.mxu0 0
    %6362 = vmatprep.subr.bf16.mxu0 0
    %6363 = vmatpush1.bf16.msra.mxu0 0
    %6364 = vmatprep.subr.bf16.mxu0 0
    %6365 = vmatpush1.bf16.msra.mxu0 0
    %6366 = vmatprep.subr.bf16.mxu0 0
    %6367 = vmatpush1.bf16.msra.mxu0 0
    %6368 = vmatprep.mubr.bf16.mxu0 0
    %6369 = vmatmul.mubr.bf16.gmra.mrb[0].mxu0 %v6331
    %v6370 = vpop.f32.mrb[0].mxu0
    %v6371 = vadd.f32 0.0, %v6370
    %v6372 = vpop.f32.mrb[0].mxu0
    %v6373 = vpop.f32.mrb[0].mxu0
    %v6374 = vadd.f32 0.0, %v6373
    %v6375 = vpop.f32.mrb[0].mxu0
    %6376 = vmatprep.mubr.bf16.mxu0 0
    %6377 = vmatmul.mubr.bf16.gmra.mrb[0].mxu0 %v6334
    %v6378 = vpop.f32.mrb[0].mxu0
    %v6379 = vadd.f32 0.0, %v6378
    %v6380 = vpop.f32.mrb[0].mxu0
    %v6381 = vpop.f32.mrb[0].mxu0
    %v6382 = vadd.f32 0.0, %v6381
    %v6383 = vpop.f32.mrb[0].mxu0
    %6384 = vdwg.mxu0
    %v6386 = vsel %vm1115, %v5998, 0
    %v6389 = vsel %vm1115, %v5999, 0
    %6391 = vmatprep.subr.bf16.mxu0 0
    %6392 = vmatpush1.bf16.msra.mxu0 %v5142
    %6393 = vmatprep.subr.bf16.mxu0 0
    %6394 = vmatpush1.bf16.msra.mxu0 %v5143
    %6395 = vmatprep.subr.bf16.mxu0 0
    %6396 = vmatpush1.bf16.msra.mxu0 0
    %6397 = vmatprep.subr.bf16.mxu0 0
    %6398 = vmatpush1.bf16.msra.mxu0 0
    %6399 = vmatprep.subr.bf16.mxu0 0
    %6400 = vmatpush1.bf16.msra.mxu0 0
    %6401 = vmatprep.subr.bf16.mxu0 0
    %6402 = vmatpush1.bf16.msra.mxu0 0
    %6403 = vmatprep.subr.bf16.mxu0 0
    %6404 = vmatpush1.bf16.msra.mxu0 0
    %6405 = vmatprep.subr.bf16.mxu0 0
    %6406 = vmatpush1.bf16.msra.mxu0 0
    %6407 = vmatprep.subr.bf16.mxu0 0
    %6408 = vmatpush1.bf16.msra.mxu0 0
    %6409 = vmatprep.subr.bf16.mxu0 0
    %6410 = vmatpush1.bf16.msra.mxu0 0
    %6411 = vmatprep.subr.bf16.mxu0 0
    %6412 = vmatpush1.bf16.msra.mxu0 0
    %6413 = vmatprep.subr.bf16.mxu0 0
    %6414 = vmatpush1.bf16.msra.mxu0 0
    %6415 = vmatprep.subr.bf16.mxu0 0
    %6416 = vmatpush1.bf16.msra.mxu0 0
    %6417 = vmatprep.subr.bf16.mxu0 0
    %6418 = vmatpush1.bf16.msra.mxu0 0
    %6419 = vmatprep.subr.bf16.mxu0 0
    %6420 = vmatpush1.bf16.msra.mxu0 0
    %6421 = vmatprep.subr.bf16.mxu0 0
    %6422 = vmatpush1.bf16.msra.mxu0 0
    %6423 = vmatprep.mubr.bf16.mxu0 0
    %6424 = vmatmul.mubr.bf16.gmra.mrb[0].mxu0 %v6386
    %v6425 = vpop.f32.mrb[0].mxu0
    %v6426 = vadd.f32 0.0, %v6425
    %v6427 = vpop.f32.mrb[0].mxu0
    %v6428 = vpop.f32.mrb[0].mxu0
    %v6429 = vadd.f32 0.0, %v6428
    %v6430 = vpop.f32.mrb[0].mxu0
    %6431 = vmatprep.mubr.bf16.mxu0 0
    %6432 = vmatmul.mubr.bf16.gmra.mrb[0].mxu0 %v6389
    %v6433 = vpop.f32.mrb[0].mxu0
    %v6434 = vadd.f32 0.0, %v6433
    %v6435 = vpop.f32.mrb[0].mxu0
    %v6436 = vpop.f32.mrb[0].mxu0
    %v6437 = vadd.f32 0.0, %v6436
    %v6438 = vpop.f32.mrb[0].mxu0
    %6439 = vdwg.mxu0
    %6444 = vrot.lane.b32.xlu0 %v6096, 32
    %v6445 = vpop.permute.xlu0 %6444
    %6446 = vrot.lane.b32.xlu0 %v6099, 32
    %v6447 = vpop.permute.xlu0 %6446
    %6448 = vrot.lane.b32.xlu0 %v6104, 32
    %v6449 = vpop.permute.xlu0 %6448
    %6450 = vrot.lane.b32.xlu0 %v6107, 32
    %v6451 = vpop.permute.xlu0 %6450
    %6460 = vrot.lane.b32.xlu0 %v6151, 64
    %v6461 = vpop.permute.xlu0 %6460
    %6462 = vrot.lane.b32.xlu0 %v6154, 64
    %v6463 = vpop.permute.xlu0 %6462
    %6464 = vrot.lane.b32.xlu0 %v6159, 64
    %v6465 = vpop.permute.xlu0 %6464
    %6466 = vrot.lane.b32.xlu0 %v6162, 64
    %v6467 = vpop.permute.xlu0 %6466
    %6476 = vrot.lane.b32.xlu0 %v6206, 96
    %v6477 = vpop.permute.xlu0 %6476
    %6478 = vrot.lane.b32.xlu0 %v6209, 96
    %v6479 = vpop.permute.xlu0 %6478
    %6480 = vrot.lane.b32.xlu0 %v6214, 96
    %v6481 = vpop.permute.xlu0 %6480
    %6482 = vrot.lane.b32.xlu0 %v6217, 96
    %v6483 = vpop.permute.xlu0 %6482
    %v6488 = vsel %vm1115, %v6041, %v6445
    %v6489 = vsel %vm1115, %v6044, %v6447
    %v6490 = vsel %vm1115, %v6049, %v6449
    %v6491 = vsel %vm1115, %v6052, %v6451
    %v6492 = vsel %vm2464, %v6488, %v6461
    %v6493 = vsel %vm2464, %v6489, %v6463
    %v6494 = vsel %vm2464, %v6490, %v6465
    %v6495 = vsel %vm2464, %v6491, %v6467
    %v6496 = vsel %vm2469, %v6492, %v6477
    %v6497 = vsel %vm2469, %v6493, %v6479
    %v6498 = vsel %vm2469, %v6494, %v6481
    %v6499 = vsel %vm2469, %v6495, %v6483
    %6504 = vrot.lane.b32.xlu0 %v6316, 32
    %v6505 = vpop.permute.xlu0 %6504
    %6506 = vrot.lane.b32.xlu0 %v6319, 32
    %v6507 = vpop.permute.xlu0 %6506
    %6508 = vrot.lane.b32.xlu0 %v6324, 32
    %v6509 = vpop.permute.xlu0 %6508
    %6510 = vrot.lane.b32.xlu0 %v6327, 32
    %v6511 = vpop.permute.xlu0 %6510
    %6520 = vrot.lane.b32.xlu0 %v6371, 64
    %v6521 = vpop.permute.xlu0 %6520
    %6522 = vrot.lane.b32.xlu0 %v6374, 64
    %v6523 = vpop.permute.xlu0 %6522
    %6524 = vrot.lane.b32.xlu0 %v6379, 64
    %v6525 = vpop.permute.xlu0 %6524
    %6526 = vrot.lane.b32.xlu0 %v6382, 64
    %v6527 = vpop.permute.xlu0 %6526
    %6536 = vrot.lane.b32.xlu0 %v6426, 96
    %v6537 = vpop.permute.xlu0 %6536
    %6538 = vrot.lane.b32.xlu0 %v6429, 96
    %v6539 = vpop.permute.xlu0 %6538
    %6540 = vrot.lane.b32.xlu0 %v6434, 96
    %v6541 = vpop.permute.xlu0 %6540
    %6542 = vrot.lane.b32.xlu0 %v6437, 96
    %v6543 = vpop.permute.xlu0 %6542
    %v6548 = vsel %vm1115, %v6261, %v6505
    %v6549 = vsel %vm1115, %v6264, %v6507
    %v6550 = vsel %vm1115, %v6269, %v6509
    %v6551 = vsel %vm1115, %v6272, %v6511
    %v6552 = vsel %vm2464, %v6548, %v6521
    %v6553 = vsel %vm2464, %v6549, %v6523
    %v6554 = vsel %vm2464, %v6550, %v6525
    %v6555 = vsel %vm2464, %v6551, %v6527
    %v6556 = vsel %vm2469, %v6552, %v6537
    %v6557 = vsel %vm2469, %v6553, %v6539
    %v6558 = vsel %vm2469, %v6554, %v6541
    %v6559 = vsel %vm2469, %v6555, %v6543
    %v6560 = vpack.c.bf16 %v6497, %v6496
    %v6561 = vpack.c.bf16 %v6499, %v6498
    %v6562 = vpack.c.bf16 %v6557, %v6556
    %v6563 = vpack.c.bf16 %v6559, %v6558
    %v6580 = vunpack.c.l.b16 %v4378
    %v6581 = vunpack.c.l.b16 %v4379
    %v6582 = vunpack.c.l.b16 %v4380
    %v6583 = vunpack.c.l.b16 %v4381
    %v6584 = vunpack.c.l.b16 %v4382
    %v6585 = vunpack.c.l.b16 %v4383
    %v6586 = vunpack.c.l.b16 %v4384
    %v6587 = vunpack.c.l.b16 %v4385
    %v6588 = vunpack.c.l.b16 %v4386
    %v6589 = vunpack.c.l.b16 %v4387
    %v6590 = vunpack.c.l.b16 %v4388
    %v6591 = vunpack.c.l.b16 %v4389
    %v6592 = vunpack.c.l.b16 %v4390
    %v6593 = vunpack.c.l.b16 %v4391
    %v6594 = vunpack.c.l.b16 %v4392
    %v6595 = vunpack.c.l.b16 %v4393
    %v6596 = vpack.c.b16 %v6581, %v6580
    %v6597 = vpack.c.b16 %v6583, %v6582
    %v6598 = vpack.c.b16 %v6585, %v6584
    %v6599 = vpack.c.b16 %v6587, %v6586
    %v6600 = vpack.c.b16 %v6589, %v6588
    %v6601 = vpack.c.b16 %v6591, %v6590
    %v6602 = vpack.c.b16 %v6593, %v6592
    %v6603 = vpack.c.b16 %v6595, %v6594
    %6612 = vmatprep.subr.bf16.mxu0 0
    %6613 = vmatpush1.bf16.msra.mxu0 %v6596
    %6614 = vmatprep.subr.bf16.mxu0 0
    %6615 = vmatpush1.bf16.msra.mxu0 %v6597
    %6616 = vmatprep.subr.bf16.mxu0 0
    %6617 = vmatpush1.bf16.msra.mxu0 %v6598
    %6618 = vmatprep.subr.bf16.mxu0 0
    %6619 = vmatpush1.bf16.msra.mxu0 %v6599
    %6620 = vmatprep.subr.bf16.mxu0 0
    %6621 = vmatpush1.bf16.msra.mxu0 %v6600
    %6622 = vmatprep.subr.bf16.mxu0 0
    %6623 = vmatpush1.bf16.msra.mxu0 %v6601
    %6624 = vmatprep.subr.bf16.mxu0 0
    %6625 = vmatpush1.bf16.msra.mxu0 %v6602
    %6626 = vmatprep.subr.bf16.mxu0 0
    %6627 = vmatpush1.bf16.msra.mxu0 %v6603
    %6628 = vmatprep.subr.bf16.mxu0 0
    %6629 = vmatpush1.bf16.msra.mxu0 0
    %6630 = vmatprep.subr.bf16.mxu0 0
    %6631 = vmatpush1.bf16.msra.mxu0 0
    %6632 = vmatprep.subr.bf16.mxu0 0
    %6633 = vmatpush1.bf16.msra.mxu0 0
    %6634 = vmatprep.subr.bf16.mxu0 0
    %6635 = vmatpush1.bf16.msra.mxu0 0
    %6636 = vmatprep.subr.bf16.mxu0 0
    %6637 = vmatpush1.bf16.msra.mxu0 0
    %6638 = vmatprep.subr.bf16.mxu0 0
    %6639 = vmatpush1.bf16.msra.mxu0 0
    %6640 = vmatprep.subr.bf16.mxu0 0
    %6641 = vmatpush1.bf16.msra.mxu0 0
    %6642 = vmatprep.subr.bf16.mxu0 0
    %6643 = vmatpush1.bf16.msra.mxu0 0
    %6644 = vmatprep.mubr.bf16.mxu0 0
    %6645 = vmatmul.mubr.bf16.gmra.mrb[0].mxu0 %v6560
    %v6646 = vpop.f32.mrb[0].mxu0
    %v6647 = vadd.f32 0.0, %v6646
    %v6648 = vpop.f32.mrb[0].mxu0
    %v6649 = vpop.f32.mrb[0].mxu0
    %v6650 = vadd.f32 0.0, %v6649
    %v6651 = vpop.f32.mrb[0].mxu0
    %6652 = vmatprep.mubr.bf16.mxu0 0
    %6653 = vmatmul.mubr.bf16.gmra.mrb[0].mxu0 %v6561
    %v6654 = vpop.f32.mrb[0].mxu0
    %v6655 = vadd.f32 0.0, %v6654
    %v6656 = vpop.f32.mrb[0].mxu0
    %v6657 = vpop.f32.mrb[0].mxu0
    %v6658 = vadd.f32 0.0, %v6657
    %v6659 = vpop.f32.mrb[0].mxu0
    %6660 = vmatprep.mubr.bf16.mxu0 0
    %6661 = vmatmul.mubr.bf16.gmra.mrb[0].mxu0 %v6562
    %v6662 = vpop.f32.mrb[0].mxu0
    %v6663 = vadd.f32 0.0, %v6662
    %v6664 = vpop.f32.mrb[0].mxu0
    %v6665 = vpop.f32.mrb[0].mxu0
    %v6666 = vadd.f32 0.0, %v6665
    %v6667 = vpop.f32.mrb[0].mxu0
    %6668 = vmatprep.mubr.bf16.mxu0 0
    %6669 = vmatmul.mubr.bf16.gmra.mrb[0].mxu0 %v6563
    %v6670 = vpop.f32.mrb[0].mxu0
    %v6671 = vadd.f32 0.0, %v6670
    %v6672 = vpop.f32.mrb[0].mxu0
    %v6673 = vpop.f32.mrb[0].mxu0
    %v6674 = vadd.f32 0.0, %v6673
    %v6675 = vpop.f32.mrb[0].mxu0
    %6676 = vdwg.mxu0
    %v6677 = vadd.f32 %v4296, %v6647
    %v6678 = vadd.f32 %v4297, %v6650
    %v6679 = vadd.f32 %v4298, %v6655
    %v6680 = vadd.f32 %v4299, %v6658
    %v6681 = vadd.f32 %v4300, %v6663
    %v6682 = vadd.f32 %v4301, %v6666
    %v6683 = vadd.f32 %v4302, %v6671
    %v6684 = vadd.f32 %v4303, %v6674
    %v6685 = vlaneseq
    %v6686 = vshrl.u32 %v6685, 7
    %v6687 = vsub.s32 0, %v6686
    %v6688 = vrot.slane %v4306, %v6687
    %v6689 = vadd.f32 %v6677, %v6688
    %v6690 = vadd.f32 %v6678, %v6688
    %v6691 = vadd.f32 %v6679, %v6688
    %v6692 = vadd.f32 %v6680, %v6688
    %v6693 = vadd.f32 %v6681, %v6688
    %v6694 = vadd.f32 %v6682, %v6688
    %v6695 = vadd.f32 %v6683, %v6688
    %v6696 = vadd.f32 %v6684, %v6688
    %6697 = vadd.xlane.f32.xlu0 %v6689
    %v6698 = vpop.xlane.xlu0 %6697
    %6699 = vadd.xlane.f32.xlu0 %v6690
    %v6700 = vpop.xlane.xlu0 %6699
    %6701 = vadd.xlane.f32.xlu0 %v6691
    %v6702 = vpop.xlane.xlu0 %6701
    %6703 = vadd.xlane.f32.xlu0 %v6692
    %v6704 = vpop.xlane.xlu0 %6703
    %6705 = vadd.xlane.f32.xlu0 %v6693
    %v6706 = vpop.xlane.xlu0 %6705
    %6707 = vadd.xlane.f32.xlu0 %v6694
    %v6708 = vpop.xlane.xlu0 %6707
    %6709 = vadd.xlane.f32.xlu0 %v6695
    %v6710 = vpop.xlane.xlu0 %6709
    %6711 = vadd.xlane.f32.xlu0 %v6696
    %v6712 = vpop.xlane.xlu0 %6711
    %v6713 = vmul.f32 %v6698, %v444
    %v6714 = vmul.f32 %v6700, %v444
    %v6715 = vmul.f32 %v6702, %v444
    %v6716 = vmul.f32 %v6704, %v444
    %v6717 = vmul.f32 %v6706, %v444
    %v6718 = vmul.f32 %v6708, %v444
    %v6719 = vmul.f32 %v6710, %v444
    %v6720 = vmul.f32 %v6712, %v444
    %v6721 = vsub.f32 %v6689, %v6713
    %v6722 = vsub.f32 %v6690, %v6714
    %v6723 = vsub.f32 %v6691, %v6715
    %v6724 = vsub.f32 %v6692, %v6716
    %v6725 = vsub.f32 %v6693, %v6717
    %v6726 = vsub.f32 %v6694, %v6718
    %v6727 = vsub.f32 %v6695, %v6719
    %v6728 = vsub.f32 %v6696, %v6720
    %v6729 = vmul.f32 %v6721, %v6721
    %v6730 = vmul.f32 %v6722, %v6722
    %v6731 = vmul.f32 %v6723, %v6723
    %v6732 = vmul.f32 %v6724, %v6724
    %v6733 = vmul.f32 %v6725, %v6725
    %v6734 = vmul.f32 %v6726, %v6726
    %v6735 = vmul.f32 %v6727, %v6727
    %v6736 = vmul.f32 %v6728, %v6728
    %6737 = vadd.xlane.f32.xlu0 %v6729
    %v6738 = vpop.xlane.xlu0 %6737
    %6739 = vadd.xlane.f32.xlu0 %v6730
    %v6740 = vpop.xlane.xlu0 %6739
    %6741 = vadd.xlane.f32.xlu0 %v6731
    %v6742 = vpop.xlane.xlu0 %6741
    %6743 = vadd.xlane.f32.xlu0 %v6732
    %v6744 = vpop.xlane.xlu0 %6743
    %6745 = vadd.xlane.f32.xlu0 %v6733
    %v6746 = vpop.xlane.xlu0 %6745
    %6747 = vadd.xlane.f32.xlu0 %v6734
    %v6748 = vpop.xlane.xlu0 %6747
    %6749 = vadd.xlane.f32.xlu0 %v6735
    %v6750 = vpop.xlane.xlu0 %6749
    %6751 = vadd.xlane.f32.xlu0 %v6736
    %v6752 = vpop.xlane.xlu0 %6751
    %v6753 = vmul.f32 %v6738, %v444
    %v6754 = vmul.f32 %v6740, %v444
    %v6755 = vmul.f32 %v6742, %v444
    %v6756 = vmul.f32 %v6744, %v444
    %v6757 = vmul.f32 %v6746, %v444
    %v6758 = vmul.f32 %v6748, %v444
    %v6759 = vmul.f32 %v6750, %v444
    %v6760 = vmul.f32 %v6752, %v444
    %v6761 = vadd.f32 %v6753, 1e-12
    %v6762 = vadd.f32 %v6754, 1e-12
    %v6763 = vadd.f32 %v6755, 1e-12
    %v6764 = vadd.f32 %v6756, 1e-12
    %v6765 = vadd.f32 %v6757, 1e-12
    %v6766 = vadd.f32 %v6758, 1e-12
    %v6767 = vadd.f32 %v6759, 1e-12
    %v6768 = vadd.f32 %v6760, 1e-12
    %v6769 = vrsqrt.pop %v6761
    %v6770 = vrsqrt.pop %v6762
    %v6771 = vrsqrt.pop %v6763
    %v6772 = vrsqrt.pop %v6764
    %v6773 = vrsqrt.pop %v6765
    %v6774 = vrsqrt.pop %v6766
    %v6775 = vrsqrt.pop %v6767
    %v6776 = vrsqrt.pop %v6768
    %v6777 = vmul.f32 %v6721, %v6769
    %v6778 = vmul.f32 %v6722, %v6770
    %v6779 = vmul.f32 %v6723, %v6771
    %v6780 = vmul.f32 %v6724, %v6772
    %v6781 = vmul.f32 %v6725, %v6773
    %v6782 = vmul.f32 %v6726, %v6774
    %v6783 = vmul.f32 %v6727, %v6775
    %v6784 = vmul.f32 %v6728, %v6776
    %v6785 = vlaneseq
    %v6786 = vshrl.u32 %v6785, 7
    %v6787 = vsub.s32 0, %v6786
    %v6788 = vrot.slane %v4307, %v6787
    %v6789 = vmul.f32 %v6777, %v6788
    %v6790 = vmul.f32 %v6778, %v6788
    %v6791 = vmul.f32 %v6779, %v6788
    %v6792 = vmul.f32 %v6780, %v6788
    %v6793 = vmul.f32 %v6781, %v6788
    %v6794 = vmul.f32 %v6782, %v6788
    %v6795 = vmul.f32 %v6783, %v6788
    %v6796 = vmul.f32 %v6784, %v6788
    %v6797 = vlaneseq
    %v6798 = vshrl.u32 %v6797, 7
    %v6799 = vsub.s32 0, %v6798
    %v6800 = vrot.slane %v4308, %v6799
    %v6801 = vadd.f32 %v6789, %v6800
    %v6802 = vadd.f32 %v6790, %v6800
    %v6803 = vadd.f32 %v6791, %v6800
    %v6804 = vadd.f32 %v6792, %v6800
    %v6805 = vadd.f32 %v6793, %v6800
    %v6806 = vadd.f32 %v6794, %v6800
    %v6807 = vadd.f32 %v6795, %v6800
    %v6808 = vadd.f32 %v6796, %v6800
    %v6809 = vpack.c.bf16 %v6802, %v6801
    %v6810 = vpack.c.bf16 %v6804, %v6803
    %v6811 = vpack.c.bf16 %v6806, %v6805
    %v6812 = vpack.c.bf16 %v6808, %v6807
    %v6814 = vlaneseq
    %v6815 = vshrl.u32 %v6814, 7
    %v6816 = vsub.s32 0, %v6815
    %v6817 = vrot.slane %v4313, %v6816
    %v6818 = vlaneseq
    %v6819 = vshrl.u32 %v6818, 7
    %v6820 = vsub.s32 1, %v6819
    %v6821 = vrot.slane %v4313, %v6820
    %v6822 = vlaneseq
    %v6823 = vshrl.u32 %v6822, 7
    %v6824 = vsub.s32 2, %v6823
    %v6825 = vrot.slane %v4313, %v6824
    %v6826 = vlaneseq
    %v6827 = vshrl.u32 %v6826, 7
    %v6828 = vsub.s32 3, %v6827
    %v6829 = vrot.slane %v4313, %v6828
    %v6866 = vunpack.c.l.b16 %v4346
    %v6867 = vunpack.c.h.b16 %v4346
    %v6868 = vunpack.c.l.b16 %v4347
    %v6869 = vunpack.c.h.b16 %v4347
    %v6870 = vunpack.c.l.b16 %v4348
    %v6871 = vunpack.c.h.b16 %v4348
    %v6872 = vunpack.c.l.b16 %v4349
    %v6873 = vunpack.c.h.b16 %v4349
    %v6874 = vunpack.c.l.b16 %v4350
    %v6875 = vunpack.c.h.b16 %v4350
    %v6876 = vunpack.c.l.b16 %v4351
    %v6877 = vunpack.c.h.b16 %v4351
    %v6878 = vunpack.c.l.b16 %v4352
    %v6879 = vunpack.c.h.b16 %v4352
    %v6880 = vunpack.c.l.b16 %v4353
    %v6881 = vunpack.c.h.b16 %v4353
    %v6882 = vunpack.c.l.b16 %v4354
    %v6883 = vunpack.c.h.b16 %v4354
    %v6884 = vunpack.c.l.b16 %v4355
    %v6885 = vunpack.c.h.b16 %v4355
    %v6886 = vunpack.c.l.b16 %v4356
    %v6887 = vunpack.c.h.b16 %v4356
    %v6888 = vunpack.c.l.b16 %v4357
    %v6889 = vunpack.c.h.b16 %v4357
    %v6890 = vunpack.c.l.b16 %v4358
    %v6891 = vunpack.c.h.b16 %v4358
    %v6892 = vunpack.c.l.b16 %v4359
    %v6893 = vunpack.c.h.b16 %v4359
    %v6894 = vunpack.c.l.b16 %v4360
    %v6895 = vunpack.c.h.b16 %v4360
    %v6896 = vunpack.c.l.b16 %v4361
    %v6897 = vunpack.c.h.b16 %v4361
    %v6898 = vunpack.c.l.b16 %v4362
    %v6899 = vunpack.c.h.b16 %v4362
    %v6900 = vunpack.c.l.b16 %v4363
    %v6901 = vunpack.c.h.b16 %v4363
    %v6902 = vunpack.c.l.b16 %v4364
    %v6903 = vunpack.c.h.b16 %v4364
    %v6904 = vunpack.c.l.b16 %v4365
    %v6905 = vunpack.c.h.b16 %v4365
    %v6906 = vunpack.c.l.b16 %v4366
    %v6907 = vunpack.c.h.b16 %v4366
    %v6908 = vunpack.c.l.b16 %v4367
    %v6909 = vunpack.c.h.b16 %v4367
    %v6910 = vunpack.c.l.b16 %v4368
    %v6911 = vunpack.c.h.b16 %v4368
    %v6912 = vunpack.c.l.b16 %v4369
    %v6913 = vunpack.c.h.b16 %v4369
    %v6914 = vunpack.c.l.b16 %v4370
    %v6915 = vunpack.c.h.b16 %v4370
    %v6916 = vunpack.c.l.b16 %v4371
    %v6917 = vunpack.c.h.b16 %v4371
    %v6918 = vunpack.c.l.b16 %v4372
    %v6919 = vunpack.c.h.b16 %v4372
    %v6920 = vunpack.c.l.b16 %v4373
    %v6921 = vunpack.c.h.b16 %v4373
    %v6922 = vunpack.c.l.b16 %v4374
    %v6923 = vunpack.c.h.b16 %v4374
    %v6924 = vunpack.c.l.b16 %v4375
    %v6925 = vunpack.c.h.b16 %v4375
    %v6926 = vunpack.c.l.b16 %v4376
    %v6927 = vunpack.c.h.b16 %v4376
    %v6928 = vunpack.c.l.b16 %v4377
    %v6929 = vunpack.c.h.b16 %v4377
    %v6930 = vpack.c.b16 %v6870, %v6866
    %v6931 = vpack.c.b16 %v6871, %v6867
    %v6932 = vpack.c.b16 %v6872, %v6868
    %v6933 = vpack.c.b16 %v6873, %v6869
    %v6934 = vpack.c.b16 %v6878, %v6874
    %v6935 = vpack.c.b16 %v6879, %v6875
    %v6936 = vpack.c.b16 %v6880, %v6876
    %v6937 = vpack.c.b16 %v6881, %v6877
    %v6938 = vpack.c.b16 %v6886, %v6882
    %v6939 = vpack.c.b16 %v6887, %v6883
    %v6940 = vpack.c.b16 %v6888, %v6884
    %v6941 = vpack.c.b16 %v6889, %v6885
    %v6942 = vpack.c.b16 %v6894, %v6890
    %v6943 = vpack.c.b16 %v6895, %v6891
    %v6944 = vpack.c.b16 %v6896, %v6892
    %v6945 = vpack.c.b16 %v6897, %v6893
    %v6946 = vpack.c.b16 %v6902, %v6898
    %v6947 = vpack.c.b16 %v6903, %v6899
    %v6948 = vpack.c.b16 %v6904, %v6900
    %v6949 = vpack.c.b16 %v6905, %v6901
    %v6950 = vpack.c.b16 %v6910, %v6906
    %v6951 = vpack.c.b16 %v6911, %v6907
    %v6952 = vpack.c.b16 %v6912, %v6908
    %v6953 = vpack.c.b16 %v6913, %v6909
    %v6954 = vpack.c.b16 %v6918, %v6914
    %v6955 = vpack.c.b16 %v6919, %v6915
    %v6956 = vpack.c.b16 %v6920, %v6916
    %v6957 = vpack.c.b16 %v6921, %v6917
    %v6958 = vpack.c.b16 %v6926, %v6922
    %v6959 = vpack.c.b16 %v6927, %v6923
    %v6960 = vpack.c.b16 %v6928, %v6924
    %v6961 = vpack.c.b16 %v6929, %v6925
    %6994 = vmatprep.subr.bf16.mxu0 %v6931
    %6995 = vmatpush1.bf16.msra.mxu0 %v6930
    %6996 = vmatprep.subr.bf16.mxu0 %v6935
    %6997 = vmatpush1.bf16.msra.mxu0 %v6934
    %6998 = vmatprep.subr.bf16.mxu0 %v6939
    %6999 = vmatpush1.bf16.msra.mxu0 %v6938
    %7000 = vmatprep.subr.bf16.mxu0 %v6943
    %7001 = vmatpush1.bf16.msra.mxu0 %v6942
    %7002 = vmatprep.subr.bf16.mxu0 %v6947
    %7003 = vmatpush1.bf16.msra.mxu0 %v6946
    %7004 = vmatprep.subr.bf16.mxu0 %v6951
    %7005 = vmatpush1.bf16.msra.mxu0 %v6950
    %7006 = vmatprep.subr.bf16.mxu0 %v6955
    %7007 = vmatpush1.bf16.msra.mxu0 %v6954
    %7008 = vmatprep.subr.bf16.mxu0 %v6959
    %7009 = vmatpush1.bf16.msra.mxu0 %v6958
    %7010 = vmatprep.subr.bf16.mxu0 0
    %7011 = vmatpush1.bf16.msra.mxu0 0
    %7012 = vmatprep.subr.bf16.mxu0 0
    %7013 = vmatpush1.bf16.msra.mxu0 0
    %7014 = vmatprep.subr.bf16.mxu0 0
    %7015 = vmatpush1.bf16.msra.mxu0 0
    %7016 = vmatprep.subr.bf16.mxu0 0
    %7017 = vmatpush1.bf16.msra.mxu0 0
    %7018 = vmatprep.subr.bf16.mxu0 0
    %7019 = vmatpush1.bf16.msra.mxu0 0
    %7020 = vmatprep.subr.bf16.mxu0 0
    %7021 = vmatpush1.bf16.msra.mxu0 0
    %7022 = vmatprep.subr.bf16.mxu0 0
    %7023 = vmatpush1.bf16.msra.mxu0 0
    %7024 = vmatprep.subr.bf16.mxu0 0
    %7025 = vmatpush1.bf16.msra.mxu0 0
    %7026 = vmatprep.mubr.bf16.mxu0 0
    %7027 = vmatmul.mubr.bf16.gmra.mrb[0].mxu0 %v6809
    %v7028 = vpop.f32.mrb[0].mxu0
    %v7029 = vadd.f32 %v6817, %v7028
    %v7030 = vpop.f32.mrb[0].mxu0
    %v7031 = vadd.f32 %v6821, %v7030
    %v7032 = vpop.f32.mrb[0].mxu0
    %v7033 = vadd.f32 %v6817, %v7032
    %v7034 = vpop.f32.mrb[0].mxu0
    %v7035 = vadd.f32 %v6821, %v7034
    %7036 = vmatprep.mubr.bf16.mxu0 0
    %7037 = vmatmul.mubr.bf16.gmra.mrb[0].mxu0 %v6810
    %v7038 = vpop.f32.mrb[0].mxu0
    %v7039 = vadd.f32 %v6817, %v7038
    %v7040 = vpop.f32.mrb[0].mxu0
    %v7041 = vadd.f32 %v6821, %v7040
    %v7042 = vpop.f32.mrb[0].mxu0
    %v7043 = vadd.f32 %v6817, %v7042
    %v7044 = vpop.f32.mrb[0].mxu0
    %v7045 = vadd.f32 %v6821, %v7044
    %7046 = vmatprep.mubr.bf16.mxu0 0
    %7047 = vmatmul.mubr.bf16.gmra.mrb[0].mxu0 %v6811
    %v7048 = vpop.f32.mrb[0].mxu0
    %v7049 = vadd.f32 %v6817, %v7048
    %v7050 = vpop.f32.mrb[0].mxu0
    %v7051 = vadd.f32 %v6821, %v7050
    %v7052 = vpop.f32.mrb[0].mxu0
    %v7053 = vadd.f32 %v6817, %v7052
    %v7054 = vpop.f32.mrb[0].mxu0
    %v7055 = vadd.f32 %v6821, %v7054
    %7056 = vmatprep.mubr.bf16.mxu0 0
    %7057 = vmatmul.mubr.bf16.gmra.mrb[0].mxu0 %v6812
    %v7058 = vpop.f32.mrb[0].mxu0
    %v7059 = vadd.f32 %v6817, %v7058
    %v7060 = vpop.f32.mrb[0].mxu0
    %v7061 = vadd.f32 %v6821, %v7060
    %v7062 = vpop.f32.mrb[0].mxu0
    %v7063 = vadd.f32 %v6817, %v7062
    %v7064 = vpop.f32.mrb[0].mxu0
    %v7065 = vadd.f32 %v6821, %v7064
    %7066 = vdwg.mxu0
    %7067 = vmatprep.subr.bf16.mxu0 %v6933
    %7068 = vmatpush1.bf16.msra.mxu0 %v6932
    %7069 = vmatprep.subr.bf16.mxu0 %v6937
    %7070 = vmatpush1.bf16.msra.mxu0 %v6936
    %7071 = vmatprep.subr.bf16.mxu0 %v6941
    %7072 = vmatpush1.bf16.msra.mxu0 %v6940
    %7073 = vmatprep.subr.bf16.mxu0 %v6945
    %7074 = vmatpush1.bf16.msra.mxu0 %v6944
    %7075 = vmatprep.subr.bf16.mxu0 %v6949
    %7076 = vmatpush1.bf16.msra.mxu0 %v6948
    %7077 = vmatprep.subr.bf16.mxu0 %v6953
    %7078 = vmatpush1.bf16.msra.mxu0 %v6952
    %7079 = vmatprep.subr.bf16.mxu0 %v6957
    %7080 = vmatpush1.bf16.msra.mxu0 %v6956
    %7081 = vmatprep.subr.bf16.mxu0 %v6961
    %7082 = vmatpush1.bf16.msra.mxu0 %v6960
    %7083 = vmatprep.subr.bf16.mxu0 0
    %7084 = vmatpush1.bf16.msra.mxu0 0
    %7085 = vmatprep.subr.bf16.mxu0 0
    %7086 = vmatpush1.bf16.msra.mxu0 0
    %7087 = vmatprep.subr.bf16.mxu0 0
    %7088 = vmatpush1.bf16.msra.mxu0 0
    %7089 = vmatprep.subr.bf16.mxu0 0
    %7090 = vmatpush1.bf16.msra.mxu0 0
    %7091 = vmatprep.subr.bf16.mxu0 0
    %7092 = vmatpush1.bf16.msra.mxu0 0
    %7093 = vmatprep.subr.bf16.mxu0 0
    %7094 = vmatpush1.bf16.msra.mxu0 0
    %7095 = vmatprep.subr.bf16.mxu0 0
    %7096 = vmatpush1.bf16.msra.mxu0 0
    %7097 = vmatprep.subr.bf16.mxu0 0
    %7098 = vmatpush1.bf16.msra.mxu0 0
    %7099 = vmatprep.mubr.bf16.mxu0 0
    %7100 = vmatmul.mubr.bf16.gmra.mrb[0].mxu0 %v6809
    %v7101 = vpop.f32.mrb[0].mxu0
    %v7102 = vadd.f32 %v6825, %v7101
    %v7103 = vpop.f32.mrb[0].mxu0
    %v7104 = vadd.f32 %v6829, %v7103
    %v7105 = vpop.f32.mrb[0].mxu0
    %v7106 = vadd.f32 %v6825, %v7105
    %v7107 = vpop.f32.mrb[0].mxu0
    %v7108 = vadd.f32 %v6829, %v7107
    %7109 = vmatprep.mubr.bf16.mxu0 0
    %7110 = vmatmul.mubr.bf16.gmra.mrb[0].mxu0 %v6810
    %v7111 = vpop.f32.mrb[0].mxu0
    %v7112 = vadd.f32 %v6825, %v7111
    %v7113 = vpop.f32.mrb[0].mxu0
    %v7114 = vadd.f32 %v6829, %v7113
    %v7115 = vpop.f32.mrb[0].mxu0
    %v7116 = vadd.f32 %v6825, %v7115
    %v7117 = vpop.f32.mrb[0].mxu0
    %v7118 = vadd.f32 %v6829, %v7117
    %7119 = vmatprep.mubr.bf16.mxu0 0
    %7120 = vmatmul.mubr.bf16.gmra.mrb[0].mxu0 %v6811
    %v7121 = vpop.f32.mrb[0].mxu0
    %v7122 = vadd.f32 %v6825, %v7121
    %v7123 = vpop.f32.mrb[0].mxu0
    %v7124 = vadd.f32 %v6829, %v7123
    %v7125 = vpop.f32.mrb[0].mxu0
    %v7126 = vadd.f32 %v6825, %v7125
    %v7127 = vpop.f32.mrb[0].mxu0
    %v7128 = vadd.f32 %v6829, %v7127
    %7129 = vmatprep.mubr.bf16.mxu0 0
    %7130 = vmatmul.mubr.bf16.gmra.mrb[0].mxu0 %v6812
    %v7131 = vpop.f32.mrb[0].mxu0
    %v7132 = vadd.f32 %v6825, %v7131
    %v7133 = vpop.f32.mrb[0].mxu0
    %v7134 = vadd.f32 %v6829, %v7133
    %v7135 = vpop.f32.mrb[0].mxu0
    %v7136 = vadd.f32 %v6825, %v7135
    %v7137 = vpop.f32.mrb[0].mxu0
    %v7138 = vadd.f32 %v6829, %v7137
    %7139 = vdwg.mxu0
    %v7140 = vmul.f32 %v7029, 0.70710677
    %v7141 = vmul.f32 %v7031, 0.70710677
    %v7142 = vmul.f32 %v7102, 0.70710677
    %v7143 = vmul.f32 %v7104, 0.70710677
    %v7144 = vmul.f32 %v7033, 0.70710677
    %v7145 = vmul.f32 %v7035, 0.70710677
    %v7146 = vmul.f32 %v7106, 0.70710677
    %v7147 = vmul.f32 %v7108, 0.70710677
    %v7148 = vmul.f32 %v7039, 0.70710677
    %v7149 = vmul.f32 %v7041, 0.70710677
    %v7150 = vmul.f32 %v7112, 0.70710677
    %v7151 = vmul.f32 %v7114, 0.70710677
    %v7152 = vmul.f32 %v7043, 0.70710677
    %v7153 = vmul.f32 %v7045, 0.70710677
    %v7154 = vmul.f32 %v7116, 0.70710677
    %v7155 = vmul.f32 %v7118, 0.70710677
    %v7156 = vmul.f32 %v7049, 0.70710677
    %v7157 = vmul.f32 %v7051, 0.70710677
    %v7158 = vmul.f32 %v7122, 0.70710677
    %v7159 = vmul.f32 %v7124, 0.70710677
    %v7160 = vmul.f32 %v7053, 0.70710677
    %v7161 = vmul.f32 %v7055, 0.70710677
    %v7162 = vmul.f32 %v7126, 0.70710677
    %v7163 = vmul.f32 %v7128, 0.70710677
    %v7164 = vmul.f32 %v7059, 0.70710677
    %v7165 = vmul.f32 %v7061, 0.70710677
    %v7166 = vmul.f32 %v7132, 0.70710677
    %v7167 = vmul.f32 %v7134, 0.70710677
    %v7168 = vmul.f32 %v7063, 0.70710677
    %v7169 = vmul.f32 %v7065, 0.70710677
    %v7170 = vmul.f32 %v7136, 0.70710677
    %v7171 = vmul.f32 %v7138, 0.70710677
    %v7172 = vand.u32 2147483647, %v7140
    %v7173 = vand.u32 2147483647, %v7141
    %v7174 = vand.u32 2147483647, %v7142
    %v7175 = vand.u32 2147483647, %v7143
    %v7176 = vand.u32 2147483647, %v7144
    %v7177 = vand.u32 2147483647, %v7145
    %v7178 = vand.u32 2147483647, %v7146
    %v7179 = vand.u32 2147483647, %v7147
    %v7180 = vand.u32 2147483647, %v7148
    %v7181 = vand.u32 2147483647, %v7149
    %v7182 = vand.u32 2147483647, %v7150
    %v7183 = vand.u32 2147483647, %v7151
    %v7184 = vand.u32 2147483647, %v7152
    %v7185 = vand.u32 2147483647, %v7153
    %v7186 = vand.u32 2147483647, %v7154
    %v7187 = vand.u32 2147483647, %v7155
    %v7188 = vand.u32 2147483647, %v7156
    %v7189 = vand.u32 2147483647, %v7157
    %v7190 = vand.u32 2147483647, %v7158
    %v7191 = vand.u32 2147483647, %v7159
    %v7192 = vand.u32 2147483647, %v7160
    %v7193 = vand.u32 2147483647, %v7161
    %v7194 = vand.u32 2147483647, %v7162
    %v7195 = vand.u32 2147483647, %v7163
    %v7196 = vand.u32 2147483647, %v7164
    %v7197 = vand.u32 2147483647, %v7165
    %v7198 = vand.u32 2147483647, %v7166
    %v7199 = vand.u32 2147483647, %v7167
    %v7200 = vand.u32 2147483647, %v7168
    %v7201 = vand.u32 2147483647, %v7169
    %v7202 = vand.u32 2147483647, %v7170
    %v7203 = vand.u32 2147483647, %v7171
    %v7204 = vmul.f32 %v7172, 0.3275911
    %v7205 = vmul.f32 %v7173, 0.3275911
    %v7206 = vmul.f32 %v7174, 0.3275911
    %v7207 = vmul.f32 %v7175, 0.3275911
    %v7208 = vmul.f32 %v7176, 0.3275911
    %v7209 = vmul.f32 %v7177, 0.3275911
    %v7210 = vmul.f32 %v7178, 0.3275911
    %v7211 = vmul.f32 %v7179, 0.3275911
    %v7212 = vmul.f32 %v7180, 0.3275911
    %v7213 = vmul.f32 %v7181, 0.3275911
    %v7214 = vmul.f32 %v7182, 0.3275911
    %v7215 = vmul.f32 %v7183, 0.3275911
    %v7216 = vmul.f32 %v7184, 0.3275911
    %v7217 = vmul.f32 %v7185, 0.3275911
    %v7218 = vmul.f32 %v7186, 0.3275911
    %v7219 = vmul.f32 %v7187, 0.3275911
    %v7220 = vmul.f32 %v7188, 0.3275911
    %v7221 = vmul.f32 %v7189, 0.3275911
    %v7222 = vmul.f32 %v7190, 0.3275911
    %v7223 = vmul.f32 %v7191, 0.3275911
    %v7224 = vmul.f32 %v7192, 0.3275911
    %v7225 = vmul.f32 %v7193, 0.3275911
    %v7226 = vmul.f32 %v7194, 0.3275911
    %v7227 = vmul.f32 %v7195, 0.3275911
    %v7228 = vmul.f32 %v7196, 0.3275911
    %v7229 = vmul.f32 %v7197, 0.3275911
    %v7230 = vmul.f32 %v7198, 0.3275911
    %v7231 = vmul.f32 %v7199, 0.3275911
    %v7232 = vmul.f32 %v7200, 0.3275911
    %v7233 = vmul.f32 %v7201, 0.3275911
    %v7234 = vmul.f32 %v7202, 0.3275911
    %v7235 = vmul.f32 %v7203, 0.3275911
    %v7236 = vadd.f32 %v7204, 1.0
    %v7237 = vadd.f32 %v7205, 1.0
    %v7238 = vadd.f32 %v7206, 1.0
    %v7239 = vadd.f32 %v7207, 1.0
    %v7240 = vadd.f32 %v7208, 1.0
    %v7241 = vadd.f32 %v7209, 1.0
    %v7242 = vadd.f32 %v7210, 1.0
    %v7243 = vadd.f32 %v7211, 1.0
    %v7244 = vadd.f32 %v7212, 1.0
    %v7245 = vadd.f32 %v7213, 1.0
    %v7246 = vadd.f32 %v7214, 1.0
    %v7247 = vadd.f32 %v7215, 1.0
    %v7248 = vadd.f32 %v7216, 1.0
    %v7249 = vadd.f32 %v7217, 1.0
    %v7250 = vadd.f32 %v7218, 1.0
    %v7251 = vadd.f32 %v7219, 1.0
    %v7252 = vadd.f32 %v7220, 1.0
    %v7253 = vadd.f32 %v7221, 1.0
    %v7254 = vadd.f32 %v7222, 1.0
    %v7255 = vadd.f32 %v7223, 1.0
    %v7256 = vadd.f32 %v7224, 1.0
    %v7257 = vadd.f32 %v7225, 1.0
    %v7258 = vadd.f32 %v7226, 1.0
    %v7259 = vadd.f32 %v7227, 1.0
    %v7260 = vadd.f32 %v7228, 1.0
    %v7261 = vadd.f32 %v7229, 1.0
    %v7262 = vadd.f32 %v7230, 1.0
    %v7263 = vadd.f32 %v7231, 1.0
    %v7264 = vadd.f32 %v7232, 1.0
    %v7265 = vadd.f32 %v7233, 1.0
    %v7266 = vadd.f32 %v7234, 1.0
    %v7267 = vadd.f32 %v7235, 1.0
    %v7268 = vrcp.pop %v7236
    %v7269 = vrcp.pop %v7237
    %v7270 = vrcp.pop %v7238
    %v7271 = vrcp.pop %v7239
    %v7272 = vrcp.pop %v7240
    %v7273 = vrcp.pop %v7241
    %v7274 = vrcp.pop %v7242
    %v7275 = vrcp.pop %v7243
    %v7276 = vrcp.pop %v7244
    %v7277 = vrcp.pop %v7245
    %v7278 = vrcp.pop %v7246
    %v7279 = vrcp.pop %v7247
    %v7280 = vrcp.pop %v7248
    %v7281 = vrcp.pop %v7249
    %v7282 = vrcp.pop %v7250
    %v7283 = vrcp.pop %v7251
    %v7284 = vrcp.pop %v7252
    %v7285 = vrcp.pop %v7253
    %v7286 = vrcp.pop %v7254
    %v7287 = vrcp.pop %v7255
    %v7288 = vrcp.pop %v7256
    %v7289 = vrcp.pop %v7257
    %v7290 = vrcp.pop %v7258
    %v7291 = vrcp.pop %v7259
    %v7292 = vrcp.pop %v7260
    %v7293 = vrcp.pop %v7261
    %v7294 = vrcp.pop %v7262
    %v7295 = vrcp.pop %v7263
    %v7296 = vrcp.pop %v7264
    %v7297 = vrcp.pop %v7265
    %v7298 = vrcp.pop %v7266
    %v7299 = vrcp.pop %v7267
    %v7300 = vmul.f32 %v7268, 1.0614054
    %v7301 = vmul.f32 %v7269, 1.0614054
    %v7302 = vmul.f32 %v7270, 1.0614054
    %v7303 = vmul.f32 %v7271, 1.0614054
    %v7304 = vmul.f32 %v7272, 1.0614054
    %v7305 = vmul.f32 %v7273, 1.0614054
    %v7306 = vmul.f32 %v7274, 1.0614054
    %v7307 = vmul.f32 %v7275, 1.0614054
    %v7308 = vmul.f32 %v7276, 1.0614054
    %v7309 = vmul.f32 %v7277, 1.0614054
    %v7310 = vmul.f32 %v7278, 1.0614054
    %v7311 = vmul.f32 %v7279, 1.0614054
    %v7312 = vmul.f32 %v7280, 1.0614054
    %v7313 = vmul.f32 %v7281, 1.0614054
    %v7314 = vmul.f32 %v7282, 1.0614054
    %v7315 = vmul.f32 %v7283, 1.0614054
    %v7316 = vmul.f32 %v7284, 1.0614054
    %v7317 = vmul.f32 %v7285, 1.0614054
    %v7318 = vmul.f32 %v7286, 1.0614054
    %v7319 = vmul.f32 %v7287, 1.0614054
    %v7320 = vmul.f32 %v7288, 1.0614054
    %v7321 = vmul.f32 %v7289, 1.0614054
    %v7322 = vmul.f32 %v7290, 1.0614054
    %v7323 = vmul.f32 %v7291, 1.0614054
    %v7324 = vmul.f32 %v7292, 1.0614054
    %v7325 = vmul.f32 %v7293, 1.0614054
    %v7326 = vmul.f32 %v7294, 1.0614054
    %v7327 = vmul.f32 %v7295, 1.0614054
    %v7328 = vmul.f32 %v7296, 1.0614054
    %v7329 = vmul.f32 %v7297, 1.0614054
    %v7330 = vmul.f32 %v7298, 1.0614054
    %v7331 = vmul.f32 %v7299, 1.0614054
    %v7332 = vsub.f32 %v7300, 1.4531521
    %v7333 = vsub.f32 %v7301, 1.4531521
    %v7334 = vsub.f32 %v7302, 1.4531521
    %v7335 = vsub.f32 %v7303, 1.4531521
    %v7336 = vsub.f32 %v7304, 1.4531521
    %v7337 = vsub.f32 %v7305, 1.4531521
    %v7338 = vsub.f32 %v7306, 1.4531521
    %v7339 = vsub.f32 %v7307, 1.4531521
    %v7340 = vsub.f32 %v7308, 1.4531521
    %v7341 = vsub.f32 %v7309, 1.4531521
    %v7342 = vsub.f32 %v7310, 1.4531521
    %v7343 = vsub.f32 %v7311, 1.4531521
    %v7344 = vsub.f32 %v7312, 1.4531521
    %v7345 = vsub.f32 %v7313, 1.4531521
    %v7346 = vsub.f32 %v7314, 1.4531521
    %v7347 = vsub.f32 %v7315, 1.4531521
    %v7348 = vsub.f32 %v7316, 1.4531521
    %v7349 = vsub.f32 %v7317, 1.4531521
    %v7350 = vsub.f32 %v7318, 1.4531521
    %v7351 = vsub.f32 %v7319, 1.4531521
    %v7352 = vsub.f32 %v7320, 1.4531521
    %v7353 = vsub.f32 %v7321, 1.4531521
    %v7354 = vsub.f32 %v7322, 1.4531521
    %v7355 = vsub.f32 %v7323, 1.4531521
    %v7356 = vsub.f32 %v7324, 1.4531521
    %v7357 = vsub.f32 %v7325, 1.4531521
    %v7358 = vsub.f32 %v7326, 1.4531521
    %v7359 = vsub.f32 %v7327, 1.4531521
    %v7360 = vsub.f32 %v7328, 1.4531521
    %v7361 = vsub.f32 %v7329, 1.4531521
    %v7362 = vsub.f32 %v7330, 1.4531521
    %v7363 = vsub.f32 %v7331, 1.4531521
    %v7364 = vmul.f32 %v7332, %v7268
    %v7365 = vmul.f32 %v7333, %v7269
    %v7366 = vmul.f32 %v7334, %v7270
    %v7367 = vmul.f32 %v7335, %v7271
    %v7368 = vmul.f32 %v7336, %v7272
    %v7369 = vmul.f32 %v7337, %v7273
    %v7370 = vmul.f32 %v7338, %v7274
    %v7371 = vmul.f32 %v7339, %v7275
    %v7372 = vmul.f32 %v7340, %v7276
    %v7373 = vmul.f32 %v7341, %v7277
    %v7374 = vmul.f32 %v7342, %v7278
    %v7375 = vmul.f32 %v7343, %v7279
    %v7376 = vmul.f32 %v7344, %v7280
    %v7377 = vmul.f32 %v7345, %v7281
    %v7378 = vmul.f32 %v7346, %v7282
    %v7379 = vmul.f32 %v7347, %v7283
    %v7380 = vmul.f32 %v7348, %v7284
    %v7381 = vmul.f32 %v7349, %v7285
    %v7382 = vmul.f32 %v7350, %v7286
    %v7383 = vmul.f32 %v7351, %v7287
    %v7384 = vmul.f32 %v7352, %v7288
    %v7385 = vmul.f32 %v7353, %v7289
    %v7386 = vmul.f32 %v7354, %v7290
    %v7387 = vmul.f32 %v7355, %v7291
    %v7388 = vmul.f32 %v7356, %v7292
    %v7389 = vmul.f32 %v7357, %v7293
    %v7390 = vmul.f32 %v7358, %v7294
    %v7391 = vmul.f32 %v7359, %v7295
    %v7392 = vmul.f32 %v7360, %v7296
    %v7393 = vmul.f32 %v7361, %v7297
    %v7394 = vmul.f32 %v7362, %v7298
    %v7395 = vmul.f32 %v7363, %v7299
    %v7396 = vadd.f32 %v7364, 1.4214138
    %v7397 = vadd.f32 %v7365, 1.4214138
    %v7398 = vadd.f32 %v7366, 1.4214138
    %v7399 = vadd.f32 %v7367, 1.4214138
    %v7400 = vadd.f32 %v7368, 1.4214138
    %v7401 = vadd.f32 %v7369, 1.4214138
    %v7402 = vadd.f32 %v7370, 1.4214138
    %v7403 = vadd.f32 %v7371, 1.4214138
    %v7404 = vadd.f32 %v7372, 1.4214138
    %v7405 = vadd.f32 %v7373, 1.4214138
    %v7406 = vadd.f32 %v7374, 1.4214138
    %v7407 = vadd.f32 %v7375, 1.4214138
    %v7408 = vadd.f32 %v7376, 1.4214138
    %v7409 = vadd.f32 %v7377, 1.4214138
    %v7410 = vadd.f32 %v7378, 1.4214138
    %v7411 = vadd.f32 %v7379, 1.4214138
    %v7412 = vadd.f32 %v7380, 1.4214138
    %v7413 = vadd.f32 %v7381, 1.4214138
    %v7414 = vadd.f32 %v7382, 1.4214138
    %v7415 = vadd.f32 %v7383, 1.4214138
    %v7416 = vadd.f32 %v7384, 1.4214138
    %v7417 = vadd.f32 %v7385, 1.4214138
    %v7418 = vadd.f32 %v7386, 1.4214138
    %v7419 = vadd.f32 %v7387, 1.4214138
    %v7420 = vadd.f32 %v7388, 1.4214138
    %v7421 = vadd.f32 %v7389, 1.4214138
    %v7422 = vadd.f32 %v7390, 1.4214138
    %v7423 = vadd.f32 %v7391, 1.4214138
    %v7424 = vadd.f32 %v7392, 1.4214138
    %v7425 = vadd.f32 %v7393, 1.4214138
    %v7426 = vadd.f32 %v7394, 1.4214138
    %v7427 = vadd.f32 %v7395, 1.4214138
    %v7428 = vmul.f32 %v7396, %v7268
    %v7429 = vmul.f32 %v7397, %v7269
    %v7430 = vmul.f32 %v7398, %v7270
    %v7431 = vmul.f32 %v7399, %v7271
    %v7432 = vmul.f32 %v7400, %v7272
    %v7433 = vmul.f32 %v7401, %v7273
    %v7434 = vmul.f32 %v7402, %v7274
    %v7435 = vmul.f32 %v7403, %v7275
    %v7436 = vmul.f32 %v7404, %v7276
    %v7437 = vmul.f32 %v7405, %v7277
    %v7438 = vmul.f32 %v7406, %v7278
    %v7439 = vmul.f32 %v7407, %v7279
    %v7440 = vmul.f32 %v7408, %v7280
    %v7441 = vmul.f32 %v7409, %v7281
    %v7442 = vmul.f32 %v7410, %v7282
    %v7443 = vmul.f32 %v7411, %v7283
    %v7444 = vmul.f32 %v7412, %v7284
    %v7445 = vmul.f32 %v7413, %v7285
    %v7446 = vmul.f32 %v7414, %v7286
    %v7447 = vmul.f32 %v7415, %v7287
    %v7448 = vmul.f32 %v7416, %v7288
    %v7449 = vmul.f32 %v7417, %v7289
    %v7450 = vmul.f32 %v7418, %v7290
    %v7451 = vmul.f32 %v7419, %v7291
    %v7452 = vmul.f32 %v7420, %v7292
    %v7453 = vmul.f32 %v7421, %v7293
    %v7454 = vmul.f32 %v7422, %v7294
    %v7455 = vmul.f32 %v7423, %v7295
    %v7456 = vmul.f32 %v7424, %v7296
    %v7457 = vmul.f32 %v7425, %v7297
    %v7458 = vmul.f32 %v7426, %v7298
    %v7459 = vmul.f32 %v7427, %v7299
    %v7460 = vsub.f32 %v7428, 0.28449672
    %v7461 = vsub.f32 %v7429, 0.28449672
    %v7462 = vsub.f32 %v7430, 0.28449672
    %v7463 = vsub.f32 %v7431, 0.28449672
    %v7464 = vsub.f32 %v7432, 0.28449672
    %v7465 = vsub.f32 %v7433, 0.28449672
    %v7466 = vsub.f32 %v7434, 0.28449672
    %v7467 = vsub.f32 %v7435, 0.28449672
    %v7468 = vsub.f32 %v7436, 0.28449672
    %v7469 = vsub.f32 %v7437, 0.28449672
    %v7470 = vsub.f32 %v7438, 0.28449672
    %v7471 = vsub.f32 %v7439, 0.28449672
    %v7472 = vsub.f32 %v7440, 0.28449672
    %v7473 = vsub.f32 %v7441, 0.28449672
    %v7474 = vsub.f32 %v7442, 0.28449672
    %v7475 = vsub.f32 %v7443, 0.28449672
    %v7476 = vsub.f32 %v7444, 0.28449672
    %v7477 = vsub.f32 %v7445, 0.28449672
    %v7478 = vsub.f32 %v7446, 0.28449672
    %v7479 = vsub.f32 %v7447, 0.28449672
    %v7480 = vsub.f32 %v7448, 0.28449672
    %v7481 = vsub.f32 %v7449, 0.28449672
    %v7482 = vsub.f32 %v7450, 0.28449672
    %v7483 = vsub.f32 %v7451, 0.28449672
    %v7484 = vsub.f32 %v7452, 0.28449672
    %v7485 = vsub.f32 %v7453, 0.28449672
    %v7486 = vsub.f32 %v7454, 0.28449672
    %v7487 = vsub.f32 %v7455, 0.28449672
    %v7488 = vsub.f32 %v7456, 0.28449672
    %v7489 = vsub.f32 %v7457, 0.28449672
    %v7490 = vsub.f32 %v7458, 0.28449672
    %v7491 = vsub.f32 %v7459, 0.28449672
    %v7492 = vmul.f32 %v7460, %v7268
    %v7493 = vmul.f32 %v7461, %v7269
    %v7494 = vmul.f32 %v7462, %v7270
    %v7495 = vmul.f32 %v7463, %v7271
    %v7496 = vmul.f32 %v7464, %v7272
    %v7497 = vmul.f32 %v7465, %v7273
    %v7498 = vmul.f32 %v7466, %v7274
    %v7499 = vmul.f32 %v7467, %v7275
    %v7500 = vmul.f32 %v7468, %v7276
    %v7501 = vmul.f32 %v7469, %v7277
    %v7502 = vmul.f32 %v7470, %v7278
    %v7503 = vmul.f32 %v7471, %v7279
    %v7504 = vmul.f32 %v7472, %v7280
    %v7505 = vmul.f32 %v7473, %v7281
    %v7506 = vmul.f32 %v7474, %v7282
    %v7507 = vmul.f32 %v7475, %v7283
    %v7508 = vmul.f32 %v7476, %v7284
    %v7509 = vmul.f32 %v7477, %v7285
    %v7510 = vmul.f32 %v7478, %v7286
    %v7511 = vmul.f32 %v7479, %v7287
    %v7512 = vmul.f32 %v7480, %v7288
    %v7513 = vmul.f32 %v7481, %v7289
    %v7514 = vmul.f32 %v7482, %v7290
    %v7515 = vmul.f32 %v7483, %v7291
    %v7516 = vmul.f32 %v7484, %v7292
    %v7517 = vmul.f32 %v7485, %v7293
    %v7518 = vmul.f32 %v7486, %v7294
    %v7519 = vmul.f32 %v7487, %v7295
    %v7520 = vmul.f32 %v7488, %v7296
    %v7521 = vmul.f32 %v7489, %v7297
    %v7522 = vmul.f32 %v7490, %v7298
    %v7523 = vmul.f32 %v7491, %v7299
    %v7524 = vadd.f32 %v7492, 0.2548296
    %v7525 = vadd.f32 %v7493, 0.2548296
    %v7526 = vadd.f32 %v7494, 0.2548296
    %v7527 = vadd.f32 %v7495, 0.2548296
    %v7528 = vadd.f32 %v7496, 0.2548296
    %v7529 = vadd.f32 %v7497, 0.2548296
    %v7530 = vadd.f32 %v7498, 0.2548296
    %v7531 = vadd.f32 %v7499, 0.2548296
    %v7532 = vadd.f32 %v7500, 0.2548296
    %v7533 = vadd.f32 %v7501, 0.2548296
    %v7534 = vadd.f32 %v7502, 0.2548296
    %v7535 = vadd.f32 %v7503, 0.2548296
    %v7536 = vadd.f32 %v7504, 0.2548296
    %v7537 = vadd.f32 %v7505, 0.2548296
    %v7538 = vadd.f32 %v7506, 0.2548296
    %v7539 = vadd.f32 %v7507, 0.2548296
    %v7540 = vadd.f32 %v7508, 0.2548296
    %v7541 = vadd.f32 %v7509, 0.2548296
    %v7542 = vadd.f32 %v7510, 0.2548296
    %v7543 = vadd.f32 %v7511, 0.2548296
    %v7544 = vadd.f32 %v7512, 0.2548296
    %v7545 = vadd.f32 %v7513, 0.2548296
    %v7546 = vadd.f32 %v7514, 0.2548296
    %v7547 = vadd.f32 %v7515, 0.2548296
    %v7548 = vadd.f32 %v7516, 0.2548296
    %v7549 = vadd.f32 %v7517, 0.2548296
    %v7550 = vadd.f32 %v7518, 0.2548296
    %v7551 = vadd.f32 %v7519, 0.2548296
    %v7552 = vadd.f32 %v7520, 0.2548296
    %v7553 = vadd.f32 %v7521, 0.2548296
    %v7554 = vadd.f32 %v7522, 0.2548296
    %v7555 = vadd.f32 %v7523, 0.2548296
    %v7556 = vmul.f32 %v7524, %v7268
    %v7557 = vmul.f32 %v7525, %v7269
    %v7558 = vmul.f32 %v7526, %v7270
    %v7559 = vmul.f32 %v7527, %v7271
    %v7560 = vmul.f32 %v7528, %v7272
    %v7561 = vmul.f32 %v7529, %v7273
    %v7562 = vmul.f32 %v7530, %v7274
    %v7563 = vmul.f32 %v7531, %v7275
    %v7564 = vmul.f32 %v7532, %v7276
    %v7565 = vmul.f32 %v7533, %v7277
    %v7566 = vmul.f32 %v7534, %v7278
    %v7567 = vmul.f32 %v7535, %v7279
    %v7568 = vmul.f32 %v7536, %v7280
    %v7569 = vmul.f32 %v7537, %v7281
    %v7570 = vmul.f32 %v7538, %v7282
    %v7571 = vmul.f32 %v7539, %v7283
    %v7572 = vmul.f32 %v7540, %v7284
    %v7573 = vmul.f32 %v7541, %v7285
    %v7574 = vmul.f32 %v7542, %v7286
    %v7575 = vmul.f32 %v7543, %v7287
    %v7576 = vmul.f32 %v7544, %v7288
    %v7577 = vmul.f32 %v7545, %v7289
    %v7578 = vmul.f32 %v7546, %v7290
    %v7579 = vmul.f32 %v7547, %v7291
    %v7580 = vmul.f32 %v7548, %v7292
    %v7581 = vmul.f32 %v7549, %v7293
    %v7582 = vmul.f32 %v7550, %v7294
    %v7583 = vmul.f32 %v7551, %v7295
    %v7584 = vmul.f32 %v7552, %v7296
    %v7585 = vmul.f32 %v7553, %v7297
    %v7586 = vmul.f32 %v7554, %v7298
    %v7587 = vmul.f32 %v7555, %v7299
    %v7588 = vmul.f32 %v7172, %v7172
    %v7589 = vmul.f32 %v7173, %v7173
    %v7590 = vmul.f32 %v7174, %v7174
    %v7591 = vmul.f32 %v7175, %v7175
    %v7592 = vmul.f32 %v7176, %v7176
    %v7593 = vmul.f32 %v7177, %v7177
    %v7594 = vmul.f32 %v7178, %v7178
    %v7595 = vmul.f32 %v7179, %v7179
    %v7596 = vmul.f32 %v7180, %v7180
    %v7597 = vmul.f32 %v7181, %v7181
    %v7598 = vmul.f32 %v7182, %v7182
    %v7599 = vmul.f32 %v7183, %v7183
    %v7600 = vmul.f32 %v7184, %v7184
    %v7601 = vmul.f32 %v7185, %v7185
    %v7602 = vmul.f32 %v7186, %v7186
    %v7603 = vmul.f32 %v7187, %v7187
    %v7604 = vmul.f32 %v7188, %v7188
    %v7605 = vmul.f32 %v7189, %v7189
    %v7606 = vmul.f32 %v7190, %v7190
    %v7607 = vmul.f32 %v7191, %v7191
    %v7608 = vmul.f32 %v7192, %v7192
    %v7609 = vmul.f32 %v7193, %v7193
    %v7610 = vmul.f32 %v7194, %v7194
    %v7611 = vmul.f32 %v7195, %v7195
    %v7612 = vmul.f32 %v7196, %v7196
    %v7613 = vmul.f32 %v7197, %v7197
    %v7614 = vmul.f32 %v7198, %v7198
    %v7615 = vmul.f32 %v7199, %v7199
    %v7616 = vmul.f32 %v7200, %v7200
    %v7617 = vmul.f32 %v7201, %v7201
    %v7618 = vmul.f32 %v7202, %v7202
    %v7619 = vmul.f32 %v7203, %v7203
    %v7620 = vsub.f32 0.0, %v7588
    %v7621 = vsub.f32 0.0, %v7589
    %v7622 = vsub.f32 0.0, %v7590
    %v7623 = vsub.f32 0.0, %v7591
    %v7624 = vsub.f32 0.0, %v7592
    %v7625 = vsub.f32 0.0, %v7593
    %v7626 = vsub.f32 0.0, %v7594
    %v7627 = vsub.f32 0.0, %v7595
    %v7628 = vsub.f32 0.0, %v7596
    %v7629 = vsub.f32 0.0, %v7597
    %v7630 = vsub.f32 0.0, %v7598
    %v7631 = vsub.f32 0.0, %v7599
    %v7632 = vsub.f32 0.0, %v7600
    %v7633 = vsub.f32 0.0, %v7601
    %v7634 = vsub.f32 0.0, %v7602
    %v7635 = vsub.f32 0.0, %v7603
    %v7636 = vsub.f32 0.0, %v7604
    %v7637 = vsub.f32 0.0, %v7605
    %v7638 = vsub.f32 0.0, %v7606
    %v7639 = vsub.f32 0.0, %v7607
    %v7640 = vsub.f32 0.0, %v7608
    %v7641 = vsub.f32 0.0, %v7609
    %v7642 = vsub.f32 0.0, %v7610
    %v7643 = vsub.f32 0.0, %v7611
    %v7644 = vsub.f32 0.0, %v7612
    %v7645 = vsub.f32 0.0, %v7613
    %v7646 = vsub.f32 0.0, %v7614
    %v7647 = vsub.f32 0.0, %v7615
    %v7648 = vsub.f32 0.0, %v7616
    %v7649 = vsub.f32 0.0, %v7617
    %v7650 = vsub.f32 0.0, %v7618
    %v7651 = vsub.f32 0.0, %v7619
    %v7652 = vmul.f32 %v7620, 1.442695
    %v7653 = vpow.pop %v7652
    %v7654 = vmul.f32 %v7621, 1.442695
    %v7655 = vpow.pop %v7654
    %v7656 = vmul.f32 %v7622, 1.442695
    %v7657 = vpow.pop %v7656
    %v7658 = vmul.f32 %v7623, 1.442695
    %v7659 = vpow.pop %v7658
    %v7660 = vmul.f32 %v7624, 1.442695
    %v7661 = vpow.pop %v7660
    %v7662 = vmul.f32 %v7625, 1.442695
    %v7663 = vpow.pop %v7662
    %v7664 = vmul.f32 %v7626, 1.442695
    %v7665 = vpow.pop %v7664
    %v7666 = vmul.f32 %v7627, 1.442695
    %v7667 = vpow.pop %v7666
    %v7668 = vmul.f32 %v7628, 1.442695
    %v7669 = vpow.pop %v7668
    %v7670 = vmul.f32 %v7629, 1.442695
    %v7671 = vpow.pop %v7670
    %v7672 = vmul.f32 %v7630, 1.442695
    %v7673 = vpow.pop %v7672
    %v7674 = vmul.f32 %v7631, 1.442695
    %v7675 = vpow.pop %v7674
    %v7676 = vmul.f32 %v7632, 1.442695
    %v7677 = vpow.pop %v7676
    %v7678 = vmul.f32 %v7633, 1.442695
    %v7679 = vpow.pop %v7678
    %v7680 = vmul.f32 %v7634, 1.442695
    %v7681 = vpow.pop %v7680
    %v7682 = vmul.f32 %v7635, 1.442695
    %v7683 = vpow.pop %v7682
    %v7684 = vmul.f32 %v7636, 1.442695
    %v7685 = vpow.pop %v7684
    %v7686 = vmul.f32 %v7637, 1.442695
    %v7687 = vpow.pop %v7686
    %v7688 = vmul.f32 %v7638, 1.442695
    %v7689 = vpow.pop %v7688
    %v7690 = vmul.f32 %v7639, 1.442695
    %v7691 = vpow.pop %v7690
    %v7692 = vmul.f32 %v7640, 1.442695
    %v7693 = vpow.pop %v7692
    %v7694 = vmul.f32 %v7641, 1.442695
    %v7695 = vpow.pop %v7694
    %v7696 = vmul.f32 %v7642, 1.442695
    %v7697 = vpow.pop %v7696
    %v7698 = vmul.f32 %v7643, 1.442695
    %v7699 = vpow.pop %v7698
    %v7700 = vmul.f32 %v7644, 1.442695
    %v7701 = vpow.pop %v7700
    %v7702 = vmul.f32 %v7645, 1.442695
    %v7703 = vpow.pop %v7702
    %v7704 = vmul.f32 %v7646, 1.442695
    %v7705 = vpow.pop %v7704
    %v7706 = vmul.f32 %v7647, 1.442695
    %v7707 = vpow.pop %v7706
    %v7708 = vmul.f32 %v7648, 1.442695
    %v7709 = vpow.pop %v7708
    %v7710 = vmul.f32 %v7649, 1.442695
    %v7711 = vpow.pop %v7710
    %v7712 = vmul.f32 %v7650, 1.442695
    %v7713 = vpow.pop %v7712
    %v7714 = vmul.f32 %v7651, 1.442695
    %v7715 = vpow.pop %v7714
    %v7716 = vmul.f32 %v7556, %v7653
    %v7717 = vmul.f32 %v7557, %v7655
    %v7718 = vmul.f32 %v7558, %v7657
    %v7719 = vmul.f32 %v7559, %v7659
    %v7720 = vmul.f32 %v7560, %v7661
    %v7721 = vmul.f32 %v7561, %v7663
    %v7722 = vmul.f32 %v7562, %v7665
    %v7723 = vmul.f32 %v7563, %v7667
    %v7724 = vmul.f32 %v7564, %v7669
    %v7725 = vmul.f32 %v7565, %v7671
    %v7726 = vmul.f32 %v7566, %v7673
    %v7727 = vmul.f32 %v7567, %v7675
    %v7728 = vmul.f32 %v7568, %v7677
    %v7729 = vmul.f32 %v7569, %v7679
    %v7730 = vmul.f32 %v7570, %v7681
    %v7731 = vmul.f32 %v7571, %v7683
    %v7732 = vmul.f32 %v7572, %v7685
    %v7733 = vmul.f32 %v7573, %v7687
    %v7734 = vmul.f32 %v7574, %v7689
    %v7735 = vmul.f32 %v7575, %v7691
    %v7736 = vmul.f32 %v7576, %v7693
    %v7737 = vmul.f32 %v7577, %v7695
    %v7738 = vmul.f32 %v7578, %v7697
    %v7739 = vmul.f32 %v7579, %v7699
    %v7740 = vmul.f32 %v7580, %v7701
    %v7741 = vmul.f32 %v7581, %v7703
    %v7742 = vmul.f32 %v7582, %v7705
    %v7743 = vmul.f32 %v7583, %v7707
    %v7744 = vmul.f32 %v7584, %v7709
    %v7745 = vmul.f32 %v7585, %v7711
    %v7746 = vmul.f32 %v7586, %v7713
    %v7747 = vmul.f32 %v7587, %v7715
    %v7748 = vsub.f32 1.0, %v7716
    %v7749 = vsub.f32 1.0, %v7717
    %v7750 = vsub.f32 1.0, %v7718
    %v7751 = vsub.f32 1.0, %v7719
    %v7752 = vsub.f32 1.0, %v7720
    %v7753 = vsub.f32 1.0, %v7721
    %v7754 = vsub.f32 1.0, %v7722
    %v7755 = vsub.f32 1.0, %v7723
    %v7756 = vsub.f32 1.0, %v7724
    %v7757 = vsub.f32 1.0, %v7725
    %v7758 = vsub.f32 1.0, %v7726
    %v7759 = vsub.f32 1.0, %v7727
    %v7760 = vsub.f32 1.0, %v7728
    %v7761 = vsub.f32 1.0, %v7729
    %v7762 = vsub.f32 1.0, %v7730
    %v7763 = vsub.f32 1.0, %v7731
    %v7764 = vsub.f32 1.0, %v7732
    %v7765 = vsub.f32 1.0, %v7733
    %v7766 = vsub.f32 1.0, %v7734
    %v7767 = vsub.f32 1.0, %v7735
    %v7768 = vsub.f32 1.0, %v7736
    %v7769 = vsub.f32 1.0, %v7737
    %v7770 = vsub.f32 1.0, %v7738
    %v7771 = vsub.f32 1.0, %v7739
    %v7772 = vsub.f32 1.0, %v7740
    %v7773 = vsub.f32 1.0, %v7741
    %v7774 = vsub.f32 1.0, %v7742
    %v7775 = vsub.f32 1.0, %v7743
    %v7776 = vsub.f32 1.0, %v7744
    %v7777 = vsub.f32 1.0, %v7745
    %v7778 = vsub.f32 1.0, %v7746
    %v7779 = vsub.f32 1.0, %v7747
    %vm7780 = vcmp.ge.f32.partialorder %v7140, 0.0
    %vm7781 = vcmp.ge.f32.partialorder %v7141, 0.0
    %vm7782 = vcmp.ge.f32.partialorder %v7142, 0.0
    %vm7783 = vcmp.ge.f32.partialorder %v7143, 0.0
    %vm7784 = vcmp.ge.f32.partialorder %v7144, 0.0
    %vm7785 = vcmp.ge.f32.partialorder %v7145, 0.0
    %vm7786 = vcmp.ge.f32.partialorder %v7146, 0.0
    %vm7787 = vcmp.ge.f32.partialorder %v7147, 0.0
    %vm7788 = vcmp.ge.f32.partialorder %v7148, 0.0
    %vm7789 = vcmp.ge.f32.partialorder %v7149, 0.0
    %vm7790 = vcmp.ge.f32.partialorder %v7150, 0.0
    %vm7791 = vcmp.ge.f32.partialorder %v7151, 0.0
    %vm7792 = vcmp.ge.f32.partialorder %v7152, 0.0
    %vm7793 = vcmp.ge.f32.partialorder %v7153, 0.0
    %vm7794 = vcmp.ge.f32.partialorder %v7154, 0.0
    %vm7795 = vcmp.ge.f32.partialorder %v7155, 0.0
    %vm7796 = vcmp.ge.f32.partialorder %v7156, 0.0
    %vm7797 = vcmp.ge.f32.partialorder %v7157, 0.0
    %vm7798 = vcmp.ge.f32.partialorder %v7158, 0.0
    %vm7799 = vcmp.ge.f32.partialorder %v7159, 0.0
    %vm7800 = vcmp.ge.f32.partialorder %v7160, 0.0
    %vm7801 = vcmp.ge.f32.partialorder %v7161, 0.0
    %vm7802 = vcmp.ge.f32.partialorder %v7162, 0.0
    %vm7803 = vcmp.ge.f32.partialorder %v7163, 0.0
    %vm7804 = vcmp.ge.f32.partialorder %v7164, 0.0
    %vm7805 = vcmp.ge.f32.partialorder %v7165, 0.0
    %vm7806 = vcmp.ge.f32.partialorder %v7166, 0.0
    %vm7807 = vcmp.ge.f32.partialorder %v7167, 0.0
    %vm7808 = vcmp.ge.f32.partialorder %v7168, 0.0
    %vm7809 = vcmp.ge.f32.partialorder %v7169, 0.0
    %vm7810 = vcmp.ge.f32.partialorder %v7170, 0.0
    %vm7811 = vcmp.ge.f32.partialorder %v7171, 0.0
    %v7812 = vsub.f32 0.0, %v7748
    %v7813 = vsub.f32 0.0, %v7749
    %v7814 = vsub.f32 0.0, %v7750
    %v7815 = vsub.f32 0.0, %v7751
    %v7816 = vsub.f32 0.0, %v7752
    %v7817 = vsub.f32 0.0, %v7753
    %v7818 = vsub.f32 0.0, %v7754
    %v7819 = vsub.f32 0.0, %v7755
    %v7820 = vsub.f32 0.0, %v7756
    %v7821 = vsub.f32 0.0, %v7757
    %v7822 = vsub.f32 0.0, %v7758
    %v7823 = vsub.f32 0.0, %v7759
    %v7824 = vsub.f32 0.0, %v7760
    %v7825 = vsub.f32 0.0, %v7761
    %v7826 = vsub.f32 0.0, %v7762
    %v7827 = vsub.f32 0.0, %v7763
    %v7828 = vsub.f32 0.0, %v7764
    %v7829 = vsub.f32 0.0, %v7765
    %v7830 = vsub.f32 0.0, %v7766
    %v7831 = vsub.f32 0.0, %v7767
    %v7832 = vsub.f32 0.0, %v7768
    %v7833 = vsub.f32 0.0, %v7769
    %v7834 = vsub.f32 0.0, %v7770
    %v7835 = vsub.f32 0.0, %v7771
    %v7836 = vsub.f32 0.0, %v7772
    %v7837 = vsub.f32 0.0, %v7773
    %v7838 = vsub.f32 0.0, %v7774
    %v7839 = vsub.f32 0.0, %v7775
    %v7840 = vsub.f32 0.0, %v7776
    %v7841 = vsub.f32 0.0, %v7777
    %v7842 = vsub.f32 0.0, %v7778
    %v7843 = vsub.f32 0.0, %v7779
    %v7844 = vsel %vm7780, %v7748, %v7812
    %v7845 = vsel %vm7781, %v7749, %v7813
    %v7846 = vsel %vm7782, %v7750, %v7814
    %v7847 = vsel %vm7783, %v7751, %v7815
    %v7848 = vsel %vm7784, %v7752, %v7816
    %v7849 = vsel %vm7785, %v7753, %v7817
    %v7850 = vsel %vm7786, %v7754, %v7818
    %v7851 = vsel %vm7787, %v7755, %v7819
    %v7852 = vsel %vm7788, %v7756, %v7820
    %v7853 = vsel %vm7789, %v7757, %v7821
    %v7854 = vsel %vm7790, %v7758, %v7822
    %v7855 = vsel %vm7791, %v7759, %v7823
    %v7856 = vsel %vm7792, %v7760, %v7824
    %v7857 = vsel %vm7793, %v7761, %v7825
    %v7858 = vsel %vm7794, %v7762, %v7826
    %v7859 = vsel %vm7795, %v7763, %v7827
    %v7860 = vsel %vm7796, %v7764, %v7828
    %v7861 = vsel %vm7797, %v7765, %v7829
    %v7862 = vsel %vm7798, %v7766, %v7830
    %v7863 = vsel %vm7799, %v7767, %v7831
    %v7864 = vsel %vm7800, %v7768, %v7832
    %v7865 = vsel %vm7801, %v7769, %v7833
    %v7866 = vsel %vm7802, %v7770, %v7834
    %v7867 = vsel %vm7803, %v7771, %v7835
    %v7868 = vsel %vm7804, %v7772, %v7836
    %v7869 = vsel %vm7805, %v7773, %v7837
    %v7870 = vsel %vm7806, %v7774, %v7838
    %v7871 = vsel %vm7807, %v7775, %v7839
    %v7872 = vsel %vm7808, %v7776, %v7840
    %v7873 = vsel %vm7809, %v7777, %v7841
    %v7874 = vsel %vm7810, %v7778, %v7842
    %v7875 = vsel %vm7811, %v7779, %v7843
    %v7876 = vmul.f32 %v7029, 0.5
    %v7877 = vmul.f32 %v7031, 0.5
    %v7878 = vmul.f32 %v7102, 0.5
    %v7879 = vmul.f32 %v7104, 0.5
    %v7880 = vmul.f32 %v7033, 0.5
    %v7881 = vmul.f32 %v7035, 0.5
    %v7882 = vmul.f32 %v7106, 0.5
    %v7883 = vmul.f32 %v7108, 0.5
    %v7884 = vmul.f32 %v7039, 0.5
    %v7885 = vmul.f32 %v7041, 0.5
    %v7886 = vmul.f32 %v7112, 0.5
    %v7887 = vmul.f32 %v7114, 0.5
    %v7888 = vmul.f32 %v7043, 0.5
    %v7889 = vmul.f32 %v7045, 0.5
    %v7890 = vmul.f32 %v7116, 0.5
    %v7891 = vmul.f32 %v7118, 0.5
    %v7892 = vmul.f32 %v7049, 0.5
    %v7893 = vmul.f32 %v7051, 0.5
    %v7894 = vmul.f32 %v7122, 0.5
    %v7895 = vmul.f32 %v7124, 0.5
    %v7896 = vmul.f32 %v7053, 0.5
    %v7897 = vmul.f32 %v7055, 0.5
    %v7898 = vmul.f32 %v7126, 0.5
    %v7899 = vmul.f32 %v7128, 0.5
    %v7900 = vmul.f32 %v7059, 0.5
    %v7901 = vmul.f32 %v7061, 0.5
    %v7902 = vmul.f32 %v7132, 0.5
    %v7903 = vmul.f32 %v7134, 0.5
    %v7904 = vmul.f32 %v7063, 0.5
    %v7905 = vmul.f32 %v7065, 0.5
    %v7906 = vmul.f32 %v7136, 0.5
    %v7907 = vmul.f32 %v7138, 0.5
    %v7908 = vadd.f32 %v7844, 1.0
    %v7909 = vadd.f32 %v7845, 1.0
    %v7910 = vadd.f32 %v7846, 1.0
    %v7911 = vadd.f32 %v7847, 1.0
    %v7912 = vadd.f32 %v7848, 1.0
    %v7913 = vadd.f32 %v7849, 1.0
    %v7914 = vadd.f32 %v7850, 1.0
    %v7915 = vadd.f32 %v7851, 1.0
    %v7916 = vadd.f32 %v7852, 1.0
    %v7917 = vadd.f32 %v7853, 1.0
    %v7918 = vadd.f32 %v7854, 1.0
    %v7919 = vadd.f32 %v7855, 1.0
    %v7920 = vadd.f32 %v7856, 1.0
    %v7921 = vadd.f32 %v7857, 1.0
    %v7922 = vadd.f32 %v7858, 1.0
    %v7923 = vadd.f32 %v7859, 1.0
    %v7924 = vadd.f32 %v7860, 1.0
    %v7925 = vadd.f32 %v7861, 1.0
    %v7926 = vadd.f32 %v7862, 1.0
    %v7927 = vadd.f32 %v7863, 1.0
    %v7928 = vadd.f32 %v7864, 1.0
    %v7929 = vadd.f32 %v7865, 1.0
    %v7930 = vadd.f32 %v7866, 1.0
    %v7931 = vadd.f32 %v7867, 1.0
    %v7932 = vadd.f32 %v7868, 1.0
    %v7933 = vadd.f32 %v7869, 1.0
    %v7934 = vadd.f32 %v7870, 1.0
    %v7935 = vadd.f32 %v7871, 1.0
    %v7936 = vadd.f32 %v7872, 1.0
    %v7937 = vadd.f32 %v7873, 1.0
    %v7938 = vadd.f32 %v7874, 1.0
    %v7939 = vadd.f32 %v7875, 1.0
    %v7940 = vmul.f32 %v7876, %v7908
    %v7941 = vmul.f32 %v7877, %v7909
    %v7942 = vmul.f32 %v7878, %v7910
    %v7943 = vmul.f32 %v7879, %v7911
    %v7944 = vmul.f32 %v7880, %v7912
    %v7945 = vmul.f32 %v7881, %v7913
    %v7946 = vmul.f32 %v7882, %v7914
    %v7947 = vmul.f32 %v7883, %v7915
    %v7948 = vmul.f32 %v7884, %v7916
    %v7949 = vmul.f32 %v7885, %v7917
    %v7950 = vmul.f32 %v7886, %v7918
    %v7951 = vmul.f32 %v7887, %v7919
    %v7952 = vmul.f32 %v7888, %v7920
    %v7953 = vmul.f32 %v7889, %v7921
    %v7954 = vmul.f32 %v7890, %v7922
    %v7955 = vmul.f32 %v7891, %v7923
    %v7956 = vmul.f32 %v7892, %v7924
    %v7957 = vmul.f32 %v7893, %v7925
    %v7958 = vmul.f32 %v7894, %v7926
    %v7959 = vmul.f32 %v7895, %v7927
    %v7960 = vmul.f32 %v7896, %v7928
    %v7961 = vmul.f32 %v7897, %v7929
    %v7962 = vmul.f32 %v7898, %v7930
    %v7963 = vmul.f32 %v7899, %v7931
    %v7964 = vmul.f32 %v7900, %v7932
    %v7965 = vmul.f32 %v7901, %v7933
    %v7966 = vmul.f32 %v7902, %v7934
    %v7967 = vmul.f32 %v7903, %v7935
    %v7968 = vmul.f32 %v7904, %v7936
    %v7969 = vmul.f32 %v7905, %v7937
    %v7970 = vmul.f32 %v7906, %v7938
    %v7971 = vmul.f32 %v7907, %v7939
    %v7972 = vpack.c.bf16 %v7944, %v7940
    %v7973 = vpack.c.bf16 %v7945, %v7941
    %v7974 = vpack.c.bf16 %v7946, %v7942
    %v7975 = vpack.c.bf16 %v7947, %v7943
    %v7976 = vpack.c.bf16 %v7952, %v7948
    %v7977 = vpack.c.bf16 %v7953, %v7949
    %v7978 = vpack.c.bf16 %v7954, %v7950
    %v7979 = vpack.c.bf16 %v7955, %v7951
    %v7980 = vpack.c.bf16 %v7960, %v7956
    %v7981 = vpack.c.bf16 %v7961, %v7957
    %v7982 = vpack.c.bf16 %v7962, %v7958
    %v7983 = vpack.c.bf16 %v7963, %v7959
    %v7984 = vpack.c.bf16 %v7968, %v7964
    %v7985 = vpack.c.bf16 %v7969, %v7965
    %v7986 = vpack.c.bf16 %v7970, %v7966
    %v7987 = vpack.c.bf16 %v7971, %v7967
    %v8052 = vunpack.c.l.b16 %v4394
    %v8053 = vunpack.c.l.b16 %v4395
    %v8054 = vunpack.c.l.b16 %v4396
    %v8055 = vunpack.c.l.b16 %v4397
    %v8056 = vunpack.c.l.b16 %v4398
    %v8057 = vunpack.c.l.b16 %v4399
    %v8058 = vunpack.c.l.b16 %v4400
    %v8059 = vunpack.c.l.b16 %v4401
    %v8060 = vunpack.c.l.b16 %v4402
    %v8061 = vunpack.c.l.b16 %v4403
    %v8062 = vunpack.c.l.b16 %v4404
    %v8063 = vunpack.c.l.b16 %v4405
    %v8064 = vunpack.c.l.b16 %v4406
    %v8065 = vunpack.c.l.b16 %v4407
    %v8066 = vunpack.c.l.b16 %v4408
    %v8067 = vunpack.c.l.b16 %v4409
    %v8068 = vunpack.c.l.b16 %v4410
    %v8069 = vunpack.c.l.b16 %v4411
    %v8070 = vunpack.c.l.b16 %v4412
    %v8071 = vunpack.c.l.b16 %v4413
    %v8072 = vunpack.c.l.b16 %v4414
    %v8073 = vunpack.c.l.b16 %v4415
    %v8074 = vunpack.c.l.b16 %v4416
    %v8075 = vunpack.c.l.b16 %v4417
    %v8076 = vunpack.c.l.b16 %v4418
    %v8077 = vunpack.c.l.b16 %v4419
    %v8078 = vunpack.c.l.b16 %v4420
    %v8079 = vunpack.c.l.b16 %v4421
    %v8080 = vunpack.c.l.b16 %v4422
    %v8081 = vunpack.c.l.b16 %v4423
    %v8082 = vunpack.c.l.b16 %v4424
    %v8083 = vunpack.c.l.b16 %v4425
    %v8084 = vunpack.c.l.b16 %v4426
    %v8085 = vunpack.c.l.b16 %v4427
    %v8086 = vunpack.c.l.b16 %v4428
    %v8087 = vunpack.c.l.b16 %v4429
    %v8088 = vunpack.c.l.b16 %v4430
    %v8089 = vunpack.c.l.b16 %v4431
    %v8090 = vunpack.c.l.b16 %v4432
    %v8091 = vunpack.c.l.b16 %v4433
    %v8092 = vunpack.c.l.b16 %v4434
    %v8093 = vunpack.c.l.b16 %v4435
    %v8094 = vunpack.c.l.b16 %v4436
    %v8095 = vunpack.c.l.b16 %v4437
    %v8096 = vunpack.c.l.b16 %v4438
    %v8097 = vunpack.c.l.b16 %v4439
    %v8098 = vunpack.c.l.b16 %v4440
    %v8099 = vunpack.c.l.b16 %v4441
    %v8100 = vunpack.c.l.b16 %v4442
    %v8101 = vunpack.c.l.b16 %v4443
    %v8102 = vunpack.c.l.b16 %v4444
    %v8103 = vunpack.c.l.b16 %v4445
    %v8104 = vunpack.c.l.b16 %v4446
    %v8105 = vunpack.c.l.b16 %v4447
    %v8106 = vunpack.c.l.b16 %v4448
    %v8107 = vunpack.c.l.b16 %v4449
    %v8108 = vunpack.c.l.b16 %v4450
    %v8109 = vunpack.c.l.b16 %v4451
    %v8110 = vunpack.c.l.b16 %v4452
    %v8111 = vunpack.c.l.b16 %v4453
    %v8112 = vunpack.c.l.b16 %v4454
    %v8113 = vunpack.c.l.b16 %v4455
    %v8114 = vunpack.c.l.b16 %v4456
    %v8115 = vunpack.c.l.b16 %v4457
    %v8116 = vpack.c.b16 %v8053, %v8052
    %v8117 = vpack.c.b16 %v8055, %v8054
    %v8118 = vpack.c.b16 %v8057, %v8056
    %v8119 = vpack.c.b16 %v8059, %v8058
    %v8120 = vpack.c.b16 %v8061, %v8060
    %v8121 = vpack.c.b16 %v8063, %v8062
    %v8122 = vpack.c.b16 %v8065, %v8064
    %v8123 = vpack.c.b16 %v8067, %v8066
    %v8124 = vpack.c.b16 %v8069, %v8068
    %v8125 = vpack.c.b16 %v8071, %v8070
    %v8126 = vpack.c.b16 %v8073, %v8072
    %v8127 = vpack.c.b16 %v8075, %v8074
    %v8128 = vpack.c.b16 %v8077, %v8076
    %v8129 = vpack.c.b16 %v8079, %v8078
    %v8130 = vpack.c.b16 %v8081, %v8080
    %v8131 = vpack.c.b16 %v8083, %v8082
    %v8132 = vpack.c.b16 %v8085, %v8084
    %v8133 = vpack.c.b16 %v8087, %v8086
    %v8134 = vpack.c.b16 %v8089, %v8088
    %v8135 = vpack.c.b16 %v8091, %v8090
    %v8136 = vpack.c.b16 %v8093, %v8092
    %v8137 = vpack.c.b16 %v8095, %v8094
    %v8138 = vpack.c.b16 %v8097, %v8096
    %v8139 = vpack.c.b16 %v8099, %v8098
    %v8140 = vpack.c.b16 %v8101, %v8100
    %v8141 = vpack.c.b16 %v8103, %v8102
    %v8142 = vpack.c.b16 %v8105, %v8104
    %v8143 = vpack.c.b16 %v8107, %v8106
    %v8144 = vpack.c.b16 %v8109, %v8108
    %v8145 = vpack.c.b16 %v8111, %v8110
    %v8146 = vpack.c.b16 %v8113, %v8112
    %v8147 = vpack.c.b16 %v8115, %v8114
    %8180 = vmatprep.subr.bf16.mxu0 0
    %8181 = vmatpush1.bf16.msra.mxu0 %v8116
    %8182 = vmatprep.subr.bf16.mxu0 0
    %8183 = vmatpush1.bf16.msra.mxu0 %v8117
    %8184 = vmatprep.subr.bf16.mxu0 0
    %8185 = vmatpush1.bf16.msra.mxu0 %v8118
    %8186 = vmatprep.subr.bf16.mxu0 0
    %8187 = vmatpush1.bf16.msra.mxu0 %v8119
    %8188 = vmatprep.subr.bf16.mxu0 0
    %8189 = vmatpush1.bf16.msra.mxu0 %v8120
    %8190 = vmatprep.subr.bf16.mxu0 0
    %8191 = vmatpush1.bf16.msra.mxu0 %v8121
    %8192 = vmatprep.subr.bf16.mxu0 0
    %8193 = vmatpush1.bf16.msra.mxu0 %v8122
    %8194 = vmatprep.subr.bf16.mxu0 0
    %8195 = vmatpush1.bf16.msra.mxu0 %v8123
    %8196 = vmatprep.subr.bf16.mxu0 0
    %8197 = vmatpush1.bf16.msra.mxu0 %v8124
    %8198 = vmatprep.subr.bf16.mxu0 0
    %8199 = vmatpush1.bf16.msra.mxu0 %v8125
    %8200 = vmatprep.subr.bf16.mxu0 0
    %8201 = vmatpush1.bf16.msra.mxu0 %v8126
    %8202 = vmatprep.subr.bf16.mxu0 0
    %8203 = vmatpush1.bf16.msra.mxu0 %v8127
    %8204 = vmatprep.subr.bf16.mxu0 0
    %8205 = vmatpush1.bf16.msra.mxu0 %v8128
    %8206 = vmatprep.subr.bf16.mxu0 0
    %8207 = vmatpush1.bf16.msra.mxu0 %v8129
    %8208 = vmatprep.subr.bf16.mxu0 0
    %8209 = vmatpush1.bf16.msra.mxu0 %v8130
    %8210 = vmatprep.subr.bf16.mxu0 0
    %8211 = vmatpush1.bf16.msra.mxu0 %v8131
    %8212 = vmatprep.mubr.bf16.mxu0 %v7973
    %8213 = vmatmul.mubr.bf16.gmra.mrb[0].mxu0 %v7972
    %v8214 = vpop.f32.mrb[0].mxu0
    %v8215 = vadd.f32 0.0, %v8214
    %v8216 = vpop.f32.mrb[0].mxu0
    %v8217 = vpop.f32.mrb[0].mxu0
    %v8218 = vadd.f32 0.0, %v8217
    %v8219 = vpop.f32.mrb[0].mxu0
    %8220 = vmatprep.mubr.bf16.mxu0 %v7977
    %8221 = vmatmul.mubr.bf16.gmra.mrb[0].mxu0 %v7976
    %v8222 = vpop.f32.mrb[0].mxu0
    %v8223 = vpop.f32.mrb[0].mxu0
    %v8224 = vpop.f32.mrb[0].mxu0
    %v8225 = vpop.f32.mrb[0].mxu0
    %8226 = vmatprep.mubr.bf16.mxu0 %v7981
    %8227 = vmatmul.mubr.bf16.gmra.mrb[0].mxu0 %v7980
    %v8228 = vpop.f32.mrb[0].mxu0
    %v8229 = vadd.f32 0.0, %v8228
    %v8230 = vpop.f32.mrb[0].mxu0
    %v8231 = vpop.f32.mrb[0].mxu0
    %v8232 = vadd.f32 0.0, %v8231
    %v8233 = vpop.f32.mrb[0].mxu0
    %8234 = vmatprep.mubr.bf16.mxu0 %v7985
    %8235 = vmatmul.mubr.bf16.gmra.mrb[0].mxu0 %v7984
    %v8236 = vpop.f32.mrb[0].mxu0
    %v8237 = vpop.f32.mrb[0].mxu0
    %v8238 = vpop.f32.mrb[0].mxu0
    %v8239 = vpop.f32.mrb[0].mxu0
    %8240 = vdwg.mxu0
    %8241 = vmatprep.subr.bf16.mxu0 0
    %8242 = vmatpush1.bf16.msra.mxu0 %v8132
    %8243 = vmatprep.subr.bf16.mxu0 0
    %8244 = vmatpush1.bf16.msra.mxu0 %v8133
    %8245 = vmatprep.subr.bf16.mxu0 0
    %8246 = vmatpush1.bf16.msra.mxu0 %v8134
    %8247 = vmatprep.subr.bf16.mxu0 0
    %8248 = vmatpush1.bf16.msra.mxu0 %v8135
    %8249 = vmatprep.subr.bf16.mxu0 0
    %8250 = vmatpush1.bf16.msra.mxu0 %v8136
    %8251 = vmatprep.subr.bf16.mxu0 0
    %8252 = vmatpush1.bf16.msra.mxu0 %v8137
    %8253 = vmatprep.subr.bf16.mxu0 0
    %8254 = vmatpush1.bf16.msra.mxu0 %v8138
    %8255 = vmatprep.subr.bf16.mxu0 0
    %8256 = vmatpush1.bf16.msra.mxu0 %v8139
    %8257 = vmatprep.subr.bf16.mxu0 0
    %8258 = vmatpush1.bf16.msra.mxu0 %v8140
    %8259 = vmatprep.subr.bf16.mxu0 0
    %8260 = vmatpush1.bf16.msra.mxu0 %v8141
    %8261 = vmatprep.subr.bf16.mxu0 0
    %8262 = vmatpush1.bf16.msra.mxu0 %v8142
    %8263 = vmatprep.subr.bf16.mxu0 0
    %8264 = vmatpush1.bf16.msra.mxu0 %v8143
    %8265 = vmatprep.subr.bf16.mxu0 0
    %8266 = vmatpush1.bf16.msra.mxu0 %v8144
    %8267 = vmatprep.subr.bf16.mxu0 0
    %8268 = vmatpush1.bf16.msra.mxu0 %v8145
    %8269 = vmatprep.subr.bf16.mxu0 0
    %8270 = vmatpush1.bf16.msra.mxu0 %v8146
    %8271 = vmatprep.subr.bf16.mxu0 0
    %8272 = vmatpush1.bf16.msra.mxu0 %v8147
    %8273 = vmatprep.mubr.bf16.mxu0 %v7975
    %8274 = vmatmul.mubr.bf16.gmra.mrb[0].mxu0 %v7974
    %v8275 = vpop.f32.mrb[0].mxu0
    %v8276 = vadd.f32 %v8215, %v8275
    %v8277 = vpop.f32.mrb[0].mxu0
    %v8278 = vpop.f32.mrb[0].mxu0
    %v8279 = vadd.f32 %v8218, %v8278
    %v8280 = vpop.f32.mrb[0].mxu0
    %8281 = vmatprep.mubr.bf16.mxu0 %v7979
    %8282 = vmatmul.mubr.bf16.gmra.mrb[0].mxu0 %v7978
    %v8283 = vpop.f32.mrb[0].mxu0
    %v8284 = vpop.f32.mrb[0].mxu0
    %v8285 = vpop.f32.mrb[0].mxu0
    %v8286 = vpop.f32.mrb[0].mxu0
    %8287 = vmatprep.mubr.bf16.mxu0 %v7983
    %8288 = vmatmul.mubr.bf16.gmra.mrb[0].mxu0 %v7982
    %v8289 = vpop.f32.mrb[0].mxu0
    %v8290 = vadd.f32 %v8229, %v8289
    %v8291 = vpop.f32.mrb[0].mxu0
    %v8292 = vpop.f32.mrb[0].mxu0
    %v8293 = vadd.f32 %v8232, %v8292
    %v8294 = vpop.f32.mrb[0].mxu0
    %8295 = vmatprep.mubr.bf16.mxu0 %v7987
    %8296 = vmatmul.mubr.bf16.gmra.mrb[0].mxu0 %v7986
    %v8297 = vpop.f32.mrb[0].mxu0
    %v8298 = vpop.f32.mrb[0].mxu0
    %v8299 = vpop.f32.mrb[0].mxu0
    %v8300 = vpop.f32.mrb[0].mxu0
    %8301 = vdwg.mxu0
    %v8302 = vadd.f32 %v6689, %v8276
    %v8303 = vadd.f32 %v6690, %v8279
    %v8304 = vadd.f32 %v6693, %v8290
    %v8305 = vadd.f32 %v6694, %v8293
    %v8306 = vlaneseq
    %v8307 = vshrl.u32 %v8306, 7
    %v8308 = vsub.s32 0, %v8307
    %v8309 = vrot.slane %v4309, %v8308
    %v8310 = vadd.f32 %v8302, %v8309
    %v8311 = vadd.f32 %v8303, %v8309
    %v8312 = vadd.f32 %v8304, %v8309
    %v8313 = vadd.f32 %v8305, %v8309
    %v8314 = vld [vmem:[%s3 + $0x4c] sm:$0x1]
    %v8315 = vld [vmem:[%s3 + $0x4d] sm:$0x1]
    %8316 = vadd.xlane.f32.xlu0 %v8310
    %v8317 = vpop.xlane.xlu0 %8316
    %8318 = vadd.xlane.f32.xlu0 %v8311
    %v8319 = vpop.xlane.xlu0 %8318
    %8320 = vadd.xlane.f32.xlu0 %v8312
    %v8321 = vpop.xlane.xlu0 %8320
    %8322 = vadd.xlane.f32.xlu0 %v8313
    %v8323 = vpop.xlane.xlu0 %8322
    %v8324 = vmul.f32 %v8317, %v444
    %v8325 = vmul.f32 %v8319, %v444
    %v8326 = vmul.f32 %v8321, %v444
    %v8327 = vmul.f32 %v8323, %v444
    %v8328 = vsub.f32 %v8310, %v8324
    %v8329 = vsub.f32 %v8311, %v8325
    %v8330 = vsub.f32 %v8312, %v8326
    %v8331 = vsub.f32 %v8313, %v8327
    %v8332 = vmul.f32 %v8328, %v8328
    %v8333 = vmul.f32 %v8329, %v8329
    %v8334 = vmul.f32 %v8330, %v8330
    %v8335 = vmul.f32 %v8331, %v8331
    %8336 = vadd.xlane.f32.xlu0 %v8332
    %v8337 = vpop.xlane.xlu0 %8336
    %8338 = vadd.xlane.f32.xlu0 %v8333
    %v8339 = vpop.xlane.xlu0 %8338
    %8340 = vadd.xlane.f32.xlu0 %v8334
    %v8341 = vpop.xlane.xlu0 %8340
    %8342 = vadd.xlane.f32.xlu0 %v8335
    %v8343 = vpop.xlane.xlu0 %8342
    %v8344 = vmul.f32 %v8337, %v444
    %v8345 = vmul.f32 %v8339, %v444
    %v8346 = vmul.f32 %v8341, %v444
    %v8347 = vmul.f32 %v8343, %v444
    %v8348 = vadd.f32 %v8344, 1e-12
    %v8349 = vadd.f32 %v8345, 1e-12
    %v8350 = vadd.f32 %v8346, 1e-12
    %v8351 = vadd.f32 %v8347, 1e-12
    %v8352 = vrsqrt.pop %v8348
    %v8353 = vrsqrt.pop %v8349
    %v8354 = vrsqrt.pop %v8350
    %v8355 = vrsqrt.pop %v8351
    %v8356 = vmul.f32 %v8328, %v8352
    %v8357 = vmul.f32 %v8329, %v8353
    %v8358 = vmul.f32 %v8330, %v8354
    %v8359 = vmul.f32 %v8331, %v8355
    %v8360 = vlaneseq
    %v8361 = vshrl.u32 %v8360, 7
    %v8362 = vsub.s32 0, %v8361
    %v8363 = vrot.slane %v8314, %v8362
    %v8364 = vmul.f32 %v8356, %v8363
    %v8365 = vmul.f32 %v8357, %v8363
    %v8366 = vmul.f32 %v8358, %v8363
    %v8367 = vmul.f32 %v8359, %v8363
    %v8368 = vlaneseq
    %v8369 = vshrl.u32 %v8368, 7
    %v8370 = vsub.s32 0, %v8369
    %v8371 = vrot.slane %v8315, %v8370
    %v8372 = vadd.f32 %v8364, %v8371
    %v8373 = vadd.f32 %v8365, %v8371
    %v8374 = vadd.f32 %v8366, %v8371
    %v8375 = vadd.f32 %v8367, %v8371
    %8376 = vst [vmem:[#allocation2] sm:$0xff] %v8372
    %8377 = vst [vmem:[#allocation2 + $0x8] sm:$0xff] %v8373
    %s8378 = scalar_lea.vmem [#allocation2], 16
    %8379 = vst [vmem:[%s8378] sm:$0xff] %v8374
    %8380 = vst [vmem:[%s8378 + $0x8] sm:$0xff] %v8375
    // Predicated region
    $region22: #{audio_modality_forward.1} parent=1 // pred_check
      _
    $region23: #{audio_modality_forward.1} parent=1 // pred_check_branch
      %8382 = sbr.rel (0) target = $region25
    $region24: #{audio_modality_forward.1} parent=1 // pred_region
      %s8384 = ssub.s32 512, 512
      %8385 = vsyncadd [#allocation3], %s8384
      %s8386 = sshll.u32 [#allocation2], 4
      %s8387 = int_to_ptr.vmem [resolvable:$true] %s8386
      %8392 = dma.vmem_to_hbm [thread:$0]  %s8387, 512, %s5, [#allocation3], 128, 128, 8
    $region25: #{audio_modality_forward.1} parent=1 // pred_fallthru
      _
    // Predicated region
    $region26: #{audio_modality_forward.1} parent=1 // pred_check
      _
    $region27: #{audio_modality_forward.1} parent=1 // pred_check_branch
      %8394 = sbr.rel (0) target = $region29
    $region28: #{audio_modality_forward.1} parent=1 // pred_region
      %8395 = dma.done [#allocation3], 512
    $region29: #{audio_modality_forward.1} parent=1 // pred_fallthru
      _
    %8396 = vsyncpa [#allocation3], 1

</llo_original>
